<compile_context>
chip_gen: v7x
topology: tpu7x:2x2x1
jax: 0.10.0
libtpu: 0.0.40
codegen_flags: <defaults>
</compile_context>

<pallas_src>
from functools import partial

import jax
import jax.numpy as jnp
import numpy as np
from jax.experimental import pallas as pl
from jax.experimental.pallas import tpu as pltpu

EPS = 1e-5  # nn.BatchNorm2d default


# ----------------------------------------------------------------- kernel ----

def _conv3x3_fused(a_bf16, w_ref, H):
    """3x3 'same' conv on a (B*H, W*Cin) bf16 slab as ONE MXU dot.

    w_ref: (3*W*Cin, W*Cout) bf16; the three row-offset (dh = -1, 0, +1) block-banded
    matrices are stacked along K, with the 3 column taps and zero padding in W folded in.
    Zero padding in H is realised by masking the first/last row of each image.
    """
    M, K = a_bf16.shape
    row = jax.lax.broadcasted_iota(jnp.int32, (M, 1), 0)
    zrow = jnp.zeros((1, K), a_bf16.dtype)
    zero = jnp.zeros_like(a_bf16)
    # a'[i] = a[i-1] within the image (dh = -1); zero at each image's first row.
    up = jnp.where((row % H) == 0, zero,
                   jnp.concatenate([zrow, a_bf16[:-1, :]], axis=0))
    # a'[i] = a[i+1] within the image (dh = +1); zero at each image's last row.
    dn = jnp.where((row % H) == (H - 1), zero,
                   jnp.concatenate([a_bf16[1:, :], zrow], axis=0))
    lhs = jnp.concatenate([up, a_bf16, dn], axis=1)               # (M, 3*W*Cin)
    return jnp.dot(lhs, w_ref[...], preferred_element_type=jnp.float32)


def _preact_block_body(x_ref, s1_ref, b1_ref, s2_ref, b2_ref, w1_ref, w2_ref,
                       fc1w_ref, fc1b_ref, fc2w_ref, fc2b_ref, o_ref,
                       *, B, H, sc_ref=None):
    x = x_ref[...]                                               # (B*H, W*Cin) f32
    a1 = jnp.maximum(x * s1_ref[...] + b1_ref[...], 0.0)        # bn1 + relu
    a1b = a1.astype(jnp.bfloat16)                                # single bf16 cast

    if sc_ref is not None:
        # projection shortcut: 1x1 conv of relu(bn1(x)), block-diagonal weight
        shortcut = jnp.dot(a1b, sc_ref[...], preferred_element_type=jnp.float32)
    else:
        # identity shortcut uses the pre-activation input itself
        shortcut = x

    c1 = _conv3x3_fused(a1b, w1_ref, H)                          # (B*H, W*Cout)
    a2 = jnp.maximum(c1 * s2_ref[...] + b2_ref[...], 0.0)       # bn2 + relu
    c2 = _conv3x3_fused(a2.astype(jnp.bfloat16), w2_ref, H)     # (B*H, W*Cout)

    # Squeeze-excite, per image.  Mean over W is folded into fc1w; the W-wise broadcast of
    # the gate is folded into fc2w / fc2b, so only the mean over H happens here.
    WC = c2.shape[1]
    c2i = c2.reshape(B, H, WC)
    pooled = jnp.mean(c2i, axis=1)                               # (B, W*Cout)
    h = jnp.maximum(jnp.dot(pooled, fc1w_ref[...],
                            preferred_element_type=jnp.float32) + fc1b_ref[...], 0.0)
    z = jnp.dot(h, fc2w_ref[...],
                preferred_element_type=jnp.float32) + fc2b_ref[...]
    gate = 1.0 / (1.0 + jnp.exp(-z))                             # (B, W*Cout)

    out = (c2i * gate[:, None, :]).reshape(B * H, WC) + shortcut
    o_ref[...] = out.astype(o_ref.dtype)


def _kernel_proj(x, s1, b1, s2, b2, w1, w2, sc, fc1w, fc1b, fc2w, fc2b, o, *, B, H):
    _preact_block_body(x, s1, b1, s2, b2, w1, w2, fc1w, fc1b, fc2w, fc2b, o,
                       B=B, H=H, sc_ref=sc)


def _kernel_identity(x, s1, b1, s2, b2, w1, w2, fc1w, fc1b, fc2w, fc2b, o, *, B, H):
    _preact_block_body(x, s1, b1, s2, b2, w1, w2, fc1w, fc1b, fc2w, fc2b, o,
                       B=B, H=H, sc_ref=None)


# -------------------------------------------- one-time weight folding (numpy) ---

def _banded_conv_weights_np(w_hwio, width):
    """(3,3,Cin,Cout) -> (3*width*Cin, width*Cout) block-banded matrix (numpy, f32).

    Rows are stacked for row offsets dh = -1, 0, +1;
    mats[kh][jw*Cin+ci, j*Cout+co] = w[kh, (jw-j)+1, ci, co] for |jw-j| <= 1, else 0.
    """
    w = np.asarray(w_hwio, dtype=np.float32)
    _, _, cin, cout = w.shape
    mats = np.zeros((3, width * cin, width * cout), np.float32)
    for kh in range(3):
        for kw in range(3):
            band = np.eye(width, k=-(kw - 1), dtype=np.float32)
            mats[kh] += np.kron(band, w[kh, kw])
    return mats.reshape(3 * width * cin, width * cout)


def prepare_preact_block(params, in_planes, planes, H, W, stride=1):
    """Fold BN / conv / shortcut / SE weights once (numpy) into kernel-ready device arrays.

    Hoisted out of the per-call path per the performance review: none of this work runs as
    XLA ops on the forward pass.
    """
    assert stride == 1, "only stride=1 implemented"  # TODO(synk): stride > 1
    f32 = np.float32

    def to_np(a):
        return np.asarray(a, dtype=f32)

    def bn_fold(g, b, m, v):
        scale = to_np(g) / np.sqrt(to_np(v) + EPS)
        bias = to_np(b) - to_np(m) * scale
        return (np.tile(scale, W)[None, :].astype(f32),
                np.tile(bias, W)[None, :].astype(f32))

    s1, b1 = bn_fold(params["bn1_gamma"], params["bn1_beta"],
                     params["bn1_mean"], params["bn1_var"])
    s2, b2 = bn_fold(params["bn2_gamma"], params["bn2_beta"],
                     params["bn2_mean"], params["bn2_var"])

    w1 = _banded_conv_weights_np(params["conv1_w"], W)            # (3*W*Cin, W*Cout)
    w2 = _banded_conv_weights_np(params["conv2_w"], W)            # (3*W*Cout, W*Cout)

    proj = (stride != 1) or (in_planes != planes)
    sc = (np.kron(np.eye(W, dtype=f32), to_np(params["sc_w"]))
          if proj else None)                                       # (W*Cin, W*Cout)

    # SE: fold mean-over-W into fc1, fold the W-wise gate broadcast into fc2;
    # pad the tiny squeeze dim (planes//16) to 8 lanes with zeros (exact no-op).
    se = params["fc1_w"].shape[1]
    sep = max(8, se)
    fc1w = np.zeros((W * planes, sep), f32)
    fc1w[:, :se] = np.tile(to_np(params["fc1_w"]), (W, 1)) / float(W)
    fc1b = np.zeros((1, sep), f32)
    fc1b[:, :se] = to_np(params["fc1_b"])
    fc2w_pad = np.zeros((sep, planes), f32)
    fc2w_pad[:se, :] = to_np(params["fc2_w"])
    fc2w = np.tile(fc2w_pad, (1, W))                               # (sep, W*planes)
    fc2b = np.tile(to_np(params["fc2_b"]), (1, W))                 # (1, W*planes)

    prep = {
        "in_planes": in_planes, "planes": planes, "H": H, "W": W, "sep": sep,
        "proj": proj,
        "s1": jnp.asarray(s1), "b1": jnp.asarray(b1),
        "s2": jnp.asarray(s2), "b2": jnp.asarray(b2),
        "w1": jnp.asarray(w1, jnp.bfloat16), "w2": jnp.asarray(w2, jnp.bfloat16),
        "fc1w": jnp.asarray(fc1w), "fc1b": jnp.asarray(fc1b),
        "fc2w": jnp.asarray(fc2w), "fc2b": jnp.asarray(fc2b),
    }
    if proj:
        prep["sc"] = jnp.asarray(sc, jnp.bfloat16)
    return prep


# ----------------------------------------------------------- forward pass -----

def _const_spec(shape, single_buffer):
    """BlockSpec for an operand that is identical at every grid step."""
    zeros = (0,) * len(shape)
    index_map = lambda b, _z=zeros: _z
    if single_buffer and hasattr(pl, "Buffered"):
        # Constant blocks never change -> no need for double buffering (saves VMEM).
        return pl.BlockSpec(shape, index_map, pipeline_mode=pl.Buffered(1))
    return pl.BlockSpec(shape, index_map)


def preact_block_apply_slab(x_slab, prep, *, batch_block=None, out_dtype=jnp.float32):
    """Run the fused block on a lane-dense (N*H, W*Cin) f32 slab -> (N*H, W*planes)."""
    H, W = prep["H"], prep["W"]
    cin, cout, sep = prep["in_planes"], prep["planes"], prep["sep"]
    NH, WCin = x_slab.shape
    assert WCin == W * cin and NH % H == 0
    N = NH // H

    if batch_block is None:
        # Largest divisor of N with B_blk*H <= 256 (MXU-height target on v6e/v7x; >=128 is
        # already ideal on v5e).  For v7x, prefer configurations where N//B_blk stays a
        # multiple of 2 so the "parallel" batch axis can split across both TensorCores.
        batch_block = 1
        for b in range(1, N + 1):
            if N % b == 0 and b * H <= 256:
                batch_block = b
    B = batch_block
    assert N % B == 0
    M = B * H
    grid = (N // B,)
    if grid[0] > 1:
        assert M % 8 == 0, "B_blk*H must be a multiple of 8 when the grid has >1 step"

    def build(single_buf):
        in_specs = [pl.BlockSpec((M, W * cin), lambda b: (b, 0))]          # x slab
        in_specs += [
            _const_spec((1, W * cin), single_buf),                         # bn1 scale
            _const_spec((1, W * cin), single_buf),                         # bn1 bias
            _const_spec((1, W * cout), single_buf),                        # bn2 scale
            _const_spec((1, W * cout), single_buf),                        # bn2 bias
            _const_spec((3 * W * cin, W * cout), single_buf),              # conv1 (banded)
            _const_spec((3 * W * cout, W * cout), single_buf),             # conv2 (banded)
        ]
        operands = [x_slab, prep["s1"], prep["b1"], prep["s2"], prep["b2"],
                    prep["w1"], prep["w2"]]
        if prep["proj"]:
            in_specs.append(_const_spec((W * cin, W * cout), single_buf))  # 1x1 shortcut
            operands.append(prep["sc"])
            kern = partial(_kernel_proj, B=B, H=H)
        else:
            kern = partial(_kernel_identity, B=B, H=H)
        in_specs += [
            _const_spec((W * cout, sep), single_buf),                      # fc1 w (pool-folded)
            _const_spec((1, sep), single_buf),                             # fc1 b
            _const_spec((sep, W * cout), single_buf),                      # fc2 w (tiled)
            _const_spec((1, W * cout), single_buf),                        # fc2 b (tiled)
        ]
        operands += [prep["fc1w"], prep["fc1b"], prep["fc2w"], prep["fc2b"]]

        call = pl.pallas_call(
            kern,
            out_shape=jax.ShapeDtypeStruct((NH, W * cout), out_dtype),
            grid=grid,
            in_specs=in_specs,
            out_specs=pl.BlockSpec((M, W * cout), lambda b: (b, 0)),
            compiler_params=pltpu.CompilerParams(
                dimension_semantics=("parallel",),   # batch axis shards across TCs (v7x)
                vmem_limit_bytes=48 * 1024 * 1024),  # v7x-safe (64 MiB physical); re-derive
                                                     # for larger planes / B_blk
        )
        return call, operands

    try:
        call, operands = build(single_buf=True)
        return jax.block_until_ready(call(*operands))
    except Exception:
        # Fallback for Pallas versions where pl.Buffered(1) is unavailable/rejected.
        call, operands = build(single_buf=False)
        return call(*operands)


def preact_block_forward(x_nchw, params=None, in_planes=None, planes=None, stride=1,
                         *, prep=None, batch_block=None, out_dtype=jnp.float32):
    """NCHW wrapper (matches the PyTorch module).  For chained blocks, keep data in the
    (N*H, W*C) slab layout and call preact_block_apply_slab to avoid per-call relayouts."""
    N, C, H, W = x_nchw.shape
    if prep is None:
        prep = prepare_preact_block(params, in_planes, planes, H, W, stride)
    assert C == prep["in_planes"] and H == prep["H"] and W == prep["W"]

    x_slab = jnp.transpose(x_nchw, (0, 2, 3, 1)).astype(jnp.float32).reshape(
        N * H, W * prep["in_planes"])
    out_slab = preact_block_apply_slab(x_slab, prep, batch_block=batch_block,
                                       out_dtype=out_dtype)
    out = out_slab.reshape(N, H, W, prep["planes"])
    return jnp.transpose(out, (0, 3, 1, 2))


# --------------------------------------------------- pure-JAX reference -------

def _bf16(x):
    # round to bf16 and back: mirrors the kernel's bf16 MXU inputs (f32 accumulation)
    return x.astype(jnp.bfloat16).astype(jnp.float32)


def _ref_conv3x3(x, w):
    N, H, W, Cin = x.shape
    Cout = w.shape[-1]
    xb, wb = _bf16(x), _bf16(w)
    xp = jnp.pad(xb, ((0, 0), (1, 1), (1, 1), (0, 0)))
    acc = jnp.zeros((N, H, W, Cout), jnp.float32)
    for kh in range(3):
        for kw in range(3):
            acc = acc + jnp.einsum("nhwc,cd->nhwd",
                                   xp[:, kh:kh + H, kw:kw + W, :], wb[kh, kw])
    return acc


def ref_forward(x_nchw, params, in_planes, planes, stride=1):
    x = jnp.transpose(x_nchw, (0, 2, 3, 1)).astype(jnp.float32)

    def bnr(v, g, b, m, var):
        return jnp.maximum((v - m) / jnp.sqrt(var + EPS) * g + b, 0.0)

    a1 = bnr(x, params["bn1_gamma"], params["bn1_beta"],
             params["bn1_mean"], params["bn1_var"])
    if stride != 1 or in_planes != planes:
        shortcut = jnp.einsum("nhwc,cd->nhwd", _bf16(a1), _bf16(params["sc_w"]))
    else:
        shortcut = x
    c1 = _ref_conv3x3(a1, params["conv1_w"])
    a2 = bnr(c1, params["bn2_gamma"], params["bn2_beta"],
             params["bn2_mean"], params["bn2_var"])
    c2 = _ref_conv3x3(a2, params["conv2_w"])
    w = jnp.mean(c2, axis=(1, 2), keepdims=True)                      # (N,1,1,C)
    h = jnp.maximum(jnp.einsum("nijc,cd->nijd", w, params["fc1_w"])
                    + params["fc1_b"][0], 0.0)
    s = jax.nn.sigmoid(jnp.einsum("nijd,dc->nijc", h, params["fc2_w"])
                       + params["fc2_b"][0])
    out = c2 * s + shortcut
    return jnp.transpose(out, (0, 3, 1, 2))


# ----------------------------------------------------------------- params -----

def init_params(key, in_planes, planes):
    se = planes // 16
    ks = jax.random.split(key, 15)
    f32 = jnp.float32
    return {
        "bn1_gamma": 1.0 + 0.1 * jax.random.normal(ks[0], (in_planes,), f32),
        "bn1_beta": 0.1 * jax.random.normal(ks[1], (in_planes,), f32),
        "bn1_mean": 0.1 * jax.random.normal(ks[2], (in_planes,), f32),
        "bn1_var": 1.0 + 0.1 * jnp.abs(jax.random.normal(ks[3], (in_planes,), f32)),
        "bn2_gamma": 1.0 + 0.1 * jax.random.normal(ks[4], (planes,), f32),
        "bn2_beta": 0.1 * jax.random.normal(ks[5], (planes,), f32),
        "bn2_mean": 0.1 * jax.random.normal(ks[6], (planes,), f32),
        "bn2_var": 1.0 + 0.1 * jnp.abs(jax.random.normal(ks[7], (planes,), f32)),
        "conv1_w": 0.1 * jax.random.normal(ks[8], (3, 3, in_planes, planes), f32),
        "conv2_w": 0.1 * jax.random.normal(ks[9], (3, 3, planes, planes), f32),
        "sc_w": 0.1 * jax.random.normal(ks[10], (in_planes, planes), f32),
        "fc1_w": 0.1 * jax.random.normal(ks[11], (planes, se), f32),
        "fc1_b": 0.1 * jax.random.normal(ks[12], (1, se), f32),
        "fc2_w": 0.1 * jax.random.normal(ks[13], (se, planes), f32),
        "fc2_b": 0.1 * jax.random.normal(ks[14], (1, planes), f32),
    }


if __name__ == "__main__":
    key = jax.random.PRNGKey(0)
    kx1, kp1, kx2, kp2 = jax.random.split(key, 4)
    N, H, W = 2, 16, 16

    # Case 1: projection shortcut (in_planes != planes), SE squeeze dim = 2
    in_planes, planes, stride = 16, 32, 1
    x1 = jax.random.normal(kx1, (N, in_planes, H, W), jnp.float32)    # NCHW like PyTorch
    params1 = init_params(kp1, in_planes, planes)
    prep1 = prepare_preact_block(params1, in_planes, planes, H, W, stride)
    out1 = jax.block_until_ready(preact_block_forward(x1, prep=prep1))
    ref1 = jax.block_until_ready(ref_forward(x1, params1, in_planes, planes, stride))
    assert out1.shape == (N, planes, H, W)
    np.testing.assert_allclose(np.asarray(out1), np.asarray(ref1), rtol=1e-2, atol=1e-2)

    # Case 2: identity shortcut (in_planes == planes)
    planes2 = 32
    x2 = jax.random.normal(kx2, (N, planes2, H, W), jnp.float32)
    params2 = init_params(kp2, planes2, planes2)
    prep2 = prepare_preact_block(params2, planes2, planes2, H, W, 1)
    out2 = jax.block_until_ready(preact_block_forward(x2, prep=prep2))
    ref2 = jax.block_until_ready(ref_forward(x2, params2, planes2, planes2, 1))
    assert out2.shape == (N, planes2, H, W)
    np.testing.assert_allclose(np.asarray(out2), np.asarray(ref2), rtol=1e-2, atol=1e-2)

    print("KERNEL_OK")
</pallas_src>

<mosaic_0001>
module attributes {stable_mosaic.version = 11 : i64} {
  func.func @_kernel_proj(%arg0: i32, %arg1: memref<32x256xf32, #tpu.memory_space<vmem>>, %arg2: memref<1x256xf32, #tpu.memory_space<vmem>>, %arg3: memref<1x256xf32, #tpu.memory_space<vmem>>, %arg4: memref<1x512xf32, #tpu.memory_space<vmem>>, %arg5: memref<1x512xf32, #tpu.memory_space<vmem>>, %arg6: memref<768x512xbf16, #tpu.memory_space<vmem>>, %arg7: memref<1536x512xbf16, #tpu.memory_space<vmem>>, %arg8: memref<256x512xbf16, #tpu.memory_space<vmem>>, %arg9: memref<512x8xf32, #tpu.memory_space<vmem>>, %arg10: memref<1x8xf32, #tpu.memory_space<vmem>>, %arg11: memref<8x512xf32, #tpu.memory_space<vmem>>, %arg12: memref<1x512xf32, #tpu.memory_space<vmem>>, %arg13: memref<32x512xf32, #tpu.memory_space<vmem>>) attributes {dimension_semantics = [#tpu.dimension_semantics<parallel>], iteration_bounds = array<i64: 1>, scalar_prefetch = 0 : i64, scratch_operands = 0 : i64, tpu.core_type = #tpu.core_type<tc>, window_params = [{transform_indices = @transform_0, window_bounds = array<i64: 32, 256>}, {pipeline_mode = #tpu.pipeline_mode<synchronous>, transform_indices = @transform_1, window_bounds = array<i64: 1, 256>}, {pipeline_mode = #tpu.pipeline_mode<synchronous>, transform_indices = @transform_2, window_bounds = array<i64: 1, 256>}, {pipeline_mode = #tpu.pipeline_mode<synchronous>, transform_indices = @transform_3, window_bounds = array<i64: 1, 512>}, {pipeline_mode = #tpu.pipeline_mode<synchronous>, transform_indices = @transform_4, window_bounds = array<i64: 1, 512>}, {pipeline_mode = #tpu.pipeline_mode<synchronous>, transform_indices = @transform_5, window_bounds = array<i64: 768, 512>}, {pipeline_mode = #tpu.pipeline_mode<synchronous>, transform_indices = @transform_6, window_bounds = array<i64: 1536, 512>}, {pipeline_mode = #tpu.pipeline_mode<synchronous>, transform_indices = @transform_7, window_bounds = array<i64: 256, 512>}, {pipeline_mode = #tpu.pipeline_mode<synchronous>, transform_indices = @transform_8, window_bounds = array<i64: 512, 8>}, {pipeline_mode = #tpu.pipeline_mode<synchronous>, transform_indices = @transform_9, window_bounds = array<i64: 1, 8>}, {pipeline_mode = #tpu.pipeline_mode<synchronous>, transform_indices = @transform_10, window_bounds = array<i64: 8, 512>}, {pipeline_mode = #tpu.pipeline_mode<synchronous>, transform_indices = @transform_11, window_bounds = array<i64: 1, 512>}, {transform_indices = @transform_12, window_bounds = array<i64: 32, 512>}]} {
    %c0 = arith.constant 0 : index
    %c0_0 = arith.constant 0 : index
    %0 = vector.load %arg1[%c0, %c0_0] : memref<32x256xf32, #tpu.memory_space<vmem>>, vector<32x256xf32>
    %c0_1 = arith.constant 0 : index
    %c0_2 = arith.constant 0 : index
    %1 = vector.load %arg2[%c0_1, %c0_2] : memref<1x256xf32, #tpu.memory_space<vmem>>, vector<1x256xf32>
    %2 = vector.broadcast %1 : vector<1x256xf32> to vector<32x256xf32>
    %3 = arith.mulf %0, %2 : vector<32x256xf32>
    %c0_3 = arith.constant 0 : index
    %c0_4 = arith.constant 0 : index
    %4 = vector.load %arg3[%c0_3, %c0_4] : memref<1x256xf32, #tpu.memory_space<vmem>>, vector<1x256xf32>
    %5 = vector.broadcast %4 : vector<1x256xf32> to vector<32x256xf32>
    %6 = arith.addf %3, %5 : vector<32x256xf32>
    %cst = arith.constant 0.000000e+00 : f32
    %7 = vector.broadcast %cst : f32 to vector<32x256xf32>
    %8 = arith.maximumf %6, %7 : vector<32x256xf32>
    %9 = arith.truncf %8 : vector<32x256xf32> to vector<32x256xbf16>
    %c0_5 = arith.constant 0 : index
    %c0_6 = arith.constant 0 : index
    %10 = vector.load %arg8[%c0_5, %c0_6] : memref<256x512xbf16, #tpu.memory_space<vmem>>, vector<256x512xbf16>
    %cst_7 = arith.constant dense<0.000000e+00> : vector<32x512xf32>
    %11 = tpu.matmul %9, %10, %cst_7 {dimension_numbers = #tpu.dot_dimension_numbers<[1], [0], [0], [1], [0, 0, 1, 1], [], []>} : vector<32x256xbf16>, vector<256x512xbf16>, vector<32x512xf32> -> vector<32x512xf32>
    %12 = tpu.iota {dimensions = array<i32: 0>} : vector<32x1xi32>
    %cst_8 = arith.constant 0.000000e+00 : bf16
    %13 = vector.broadcast %cst_8 : bf16 to vector<1x256xbf16>
    %cst_9 = arith.constant 0.000000e+00 : bf16
    %14 = vector.broadcast %cst_9 : bf16 to vector<32x256xbf16>
    %c16_i32 = arith.constant 16 : i32
    %c0_i32 = arith.constant 0 : i32
    %15 = arith.cmpi eq, %c16_i32, %c0_i32 : i32
    %c1_i32 = arith.constant 1 : i32
    %16 = arith.select %15, %c1_i32, %c16_i32 : i32
    %17 = vector.broadcast %16 : i32 to vector<32x1xi32>
    %18 = arith.remsi %12, %17 : vector<32x1xi32>
    %c0_i32_10 = arith.constant 0 : i32
    %19 = vector.broadcast %c0_i32_10 : i32 to vector<32x1xi32>
    %20 = arith.cmpi ne, %18, %19 : vector<32x1xi32>
    %c0_i32_11 = arith.constant 0 : i32
    %21 = vector.broadcast %c0_i32_11 : i32 to vector<32x1xi32>
    %22 = arith.cmpi slt, %18, %21 : vector<32x1xi32>
    %c0_i32_12 = arith.constant 0 : i32
    %23 = arith.cmpi slt, %16, %c0_i32_12 : i32
    %24 = vector.broadcast %23 : i1 to vector<32x1xi1>
    %25 = vector.broadcast %24 : vector<32x1xi1> to vector<32x1xi1>
    %26 = arith.xori %22, %25 : vector<32x1xi1>
    %27 = arith.andi %26, %20 : vector<32x1xi1>
    %28 = vector.broadcast %16 : i32 to vector<32x1xi32>
    %29 = arith.addi %18, %28 : vector<32x1xi32>
    %30 = arith.select %27, %29, %18 : vector<32x1xi1>, vector<32x1xi32>
    %c0_i32_13 = arith.constant 0 : i32
    %31 = vector.broadcast %c0_i32_13 : i32 to vector<32x1xi32>
    %32 = arith.cmpi eq, %30, %31 : vector<32x1xi32>
    %33 = vector.extract_strided_slice %9 {offsets = [0, 0], sizes = [31, 256], strides = [1, 1]} : vector<32x256xbf16> to vector<31x256xbf16>
    %34 = tpu.concatenate %13, %33 in 0 : vector<1x256xbf16>, vector<31x256xbf16> -> vector<32x256xbf16>
    %35 = vector.shape_cast %32 : vector<32x1xi1> to vector<32x1xi1>
    %36 = vector.broadcast %35 : vector<32x1xi1> to vector<32x256xi1>
    %37 = arith.select %36, %14, %34 : vector<32x256xi1>, vector<32x256xbf16>
    %c16_i32_14 = arith.constant 16 : i32
    %c0_i32_15 = arith.constant 0 : i32
    %38 = arith.cmpi eq, %c16_i32_14, %c0_i32_15 : i32
    %c1_i32_16 = arith.constant 1 : i32
    %39 = arith.select %38, %c1_i32_16, %c16_i32_14 : i32
    %40 = vector.broadcast %39 : i32 to vector<32x1xi32>
    %41 = arith.remsi %12, %40 : vector<32x1xi32>
    %c0_i32_17 = arith.constant 0 : i32
    %42 = vector.broadcast %c0_i32_17 : i32 to vector<32x1xi32>
    %43 = arith.cmpi ne, %41, %42 : vector<32x1xi32>
    %c0_i32_18 = arith.constant 0 : i32
    %44 = vector.broadcast %c0_i32_18 : i32 to vector<32x1xi32>
    %45 = arith.cmpi slt, %41, %44 : vector<32x1xi32>
    %c0_i32_19 = arith.constant 0 : i32
    %46 = arith.cmpi slt, %39, %c0_i32_19 : i32
    %47 = vector.broadcast %46 : i1 to vector<32x1xi1>
    %48 = vector.broadcast %47 : vector<32x1xi1> to vector<32x1xi1>
    %49 = arith.xori %45, %48 : vector<32x1xi1>
    %50 = arith.andi %49, %43 : vector<32x1xi1>
    %51 = vector.broadcast %39 : i32 to vector<32x1xi32>
    %52 = arith.addi %41, %51 : vector<32x1xi32>
    %53 = arith.select %50, %52, %41 : vector<32x1xi1>, vector<32x1xi32>
    %c15_i32 = arith.constant 15 : i32
    %54 = vector.broadcast %c15_i32 : i32 to vector<32x1xi32>
    %55 = arith.cmpi eq, %53, %54 : vector<32x1xi32>
    %56 = vector.extract_strided_slice %9 {offsets = [1, 0], sizes = [31, 256], strides = [1, 1]} : vector<32x256xbf16> to vector<31x256xbf16>
    %57 = tpu.concatenate %56, %13 in 0 : vector<31x256xbf16>, vector<1x256xbf16> -> vector<32x256xbf16>
    %58 = vector.shape_cast %55 : vector<32x1xi1> to vector<32x1xi1>
    %59 = vector.broadcast %58 : vector<32x1xi1> to vector<32x256xi1>
    %60 = arith.select %59, %14, %57 : vector<32x256xi1>, vector<32x256xbf16>
    %61 = tpu.concatenate %37, %9, %60 in 1 : vector<32x256xbf16>, vector<32x256xbf16>, vector<32x256xbf16> -> vector<32x768xbf16>
    %c0_20 = arith.constant 0 : index
    %c0_21 = arith.constant 0 : index
    %62 = vector.load %arg6[%c0_20, %c0_21] : memref<768x512xbf16, #tpu.memory_space<vmem>>, vector<768x512xbf16>
    %cst_22 = arith.constant dense<0.000000e+00> : vector<32x512xf32>
    %63 = tpu.matmul %61, %62, %cst_22 {dimension_numbers = #tpu.dot_dimension_numbers<[1], [0], [0], [1], [0, 0, 1, 1], [], []>} : vector<32x768xbf16>, vector<768x512xbf16>, vector<32x512xf32> -> vector<32x512xf32>
    %c0_23 = arith.constant 0 : index
    %c0_24 = arith.constant 0 : index
    %64 = vector.load %arg4[%c0_23, %c0_24] : memref<1x512xf32, #tpu.memory_space<vmem>>, vector<1x512xf32>
    %65 = vector.broadcast %64 : vector<1x512xf32> to vector<32x512xf32>
    %66 = arith.mulf %63, %65 : vector<32x512xf32>
    %c0_25 = arith.constant 0 : index
    %c0_26 = arith.constant 0 : index
    %67 = vector.load %arg5[%c0_25, %c0_26] : memref<1x512xf32, #tpu.memory_space<vmem>>, vector<1x512xf32>
    %68 = vector.broadcast %67 : vector<1x512xf32> to vector<32x512xf32>
    %69 = arith.addf %66, %68 : vector<32x512xf32>
    %cst_27 = arith.constant 0.000000e+00 : f32
    %70 = vector.broadcast %cst_27 : f32 to vector<32x512xf32>
    %71 = arith.maximumf %69, %70 : vector<32x512xf32>
    %72 = arith.truncf %71 : vector<32x512xf32> to vector<32x512xbf16>
    %73 = tpu.iota {dimensions = array<i32: 0>} : vector<32x1xi32>
    %cst_28 = arith.constant 0.000000e+00 : bf16
    %74 = vector.broadcast %cst_28 : bf16 to vector<1x512xbf16>
    %cst_29 = arith.constant 0.000000e+00 : bf16
    %75 = vector.broadcast %cst_29 : bf16 to vector<32x512xbf16>
    %c16_i32_30 = arith.constant 16 : i32
    %c0_i32_31 = arith.constant 0 : i32
    %76 = arith.cmpi eq, %c16_i32_30, %c0_i32_31 : i32
    %c1_i32_32 = arith.constant 1 : i32
    %77 = arith.select %76, %c1_i32_32, %c16_i32_30 : i32
    %78 = vector.broadcast %77 : i32 to vector<32x1xi32>
    %79 = arith.remsi %73, %78 : vector<32x1xi32>
    %c0_i32_33 = arith.constant 0 : i32
    %80 = vector.broadcast %c0_i32_33 : i32 to vector<32x1xi32>
    %81 = arith.cmpi ne, %79, %80 : vector<32x1xi32>
    %c0_i32_34 = arith.constant 0 : i32
    %82 = vector.broadcast %c0_i32_34 : i32 to vector<32x1xi32>
    %83 = arith.cmpi slt, %79, %82 : vector<32x1xi32>
    %c0_i32_35 = arith.constant 0 : i32
    %84 = arith.cmpi slt, %77, %c0_i32_35 : i32
    %85 = vector.broadcast %84 : i1 to vector<32x1xi1>
    %86 = vector.broadcast %85 : vector<32x1xi1> to vector<32x1xi1>
    %87 = arith.xori %83, %86 : vector<32x1xi1>
    %88 = arith.andi %87, %81 : vector<32x1xi1>
    %89 = vector.broadcast %77 : i32 to vector<32x1xi32>
    %90 = arith.addi %79, %89 : vector<32x1xi32>
    %91 = arith.select %88, %90, %79 : vector<32x1xi1>, vector<32x1xi32>
    %c0_i32_36 = arith.constant 0 : i32
    %92 = vector.broadcast %c0_i32_36 : i32 to vector<32x1xi32>
    %93 = arith.cmpi eq, %91, %92 : vector<32x1xi32>
    %94 = vector.extract_strided_slice %72 {offsets = [0, 0], sizes = [31, 512], strides = [1, 1]} : vector<32x512xbf16> to vector<31x512xbf16>
    %95 = tpu.concatenate %74, %94 in 0 : vector<1x512xbf16>, vector<31x512xbf16> -> vector<32x512xbf16>
    %96 = vector.shape_cast %93 : vector<32x1xi1> to vector<32x1xi1>
    %97 = vector.broadcast %96 : vector<32x1xi1> to vector<32x512xi1>
    %98 = arith.select %97, %75, %95 : vector<32x512xi1>, vector<32x512xbf16>
    %c16_i32_37 = arith.constant 16 : i32
    %c0_i32_38 = arith.constant 0 : i32
    %99 = arith.cmpi eq, %c16_i32_37, %c0_i32_38 : i32
    %c1_i32_39 = arith.constant 1 : i32
    %100 = arith.select %99, %c1_i32_39, %c16_i32_37 : i32
    %101 = vector.broadcast %100 : i32 to vector<32x1xi32>
    %102 = arith.remsi %73, %101 : vector<32x1xi32>
    %c0_i32_40 = arith.constant 0 : i32
    %103 = vector.broadcast %c0_i32_40 : i32 to vector<32x1xi32>
    %104 = arith.cmpi ne, %102, %103 : vector<32x1xi32>
    %c0_i32_41 = arith.constant 0 : i32
    %105 = vector.broadcast %c0_i32_41 : i32 to vector<32x1xi32>
    %106 = arith.cmpi slt, %102, %105 : vector<32x1xi32>
    %c0_i32_42 = arith.constant 0 : i32
    %107 = arith.cmpi slt, %100, %c0_i32_42 : i32
    %108 = vector.broadcast %107 : i1 to vector<32x1xi1>
    %109 = vector.broadcast %108 : vector<32x1xi1> to vector<32x1xi1>
    %110 = arith.xori %106, %109 : vector<32x1xi1>
    %111 = arith.andi %110, %104 : vector<32x1xi1>
    %112 = vector.broadcast %100 : i32 to vector<32x1xi32>
    %113 = arith.addi %102, %112 : vector<32x1xi32>
    %114 = arith.select %111, %113, %102 : vector<32x1xi1>, vector<32x1xi32>
    %c15_i32_43 = arith.constant 15 : i32
    %115 = vector.broadcast %c15_i32_43 : i32 to vector<32x1xi32>
    %116 = arith.cmpi eq, %114, %115 : vector<32x1xi32>
    %117 = vector.extract_strided_slice %72 {offsets = [1, 0], sizes = [31, 512], strides = [1, 1]} : vector<32x512xbf16> to vector<31x512xbf16>
    %118 = tpu.concatenate %117, %74 in 0 : vector<31x512xbf16>, vector<1x512xbf16> -> vector<32x512xbf16>
    %119 = vector.shape_cast %116 : vector<32x1xi1> to vector<32x1xi1>
    %120 = vector.broadcast %119 : vector<32x1xi1> to vector<32x512xi1>
    %121 = arith.select %120, %75, %118 : vector<32x512xi1>, vector<32x512xbf16>
    %122 = tpu.concatenate %98, %72, %121 in 1 : vector<32x512xbf16>, vector<32x512xbf16>, vector<32x512xbf16> -> vector<32x1536xbf16>
    %c0_44 = arith.constant 0 : index
    %c0_45 = arith.constant 0 : index
    %123 = vector.load %arg7[%c0_44, %c0_45] : memref<1536x512xbf16, #tpu.memory_space<vmem>>, vector<1536x512xbf16>
    %cst_46 = arith.constant dense<0.000000e+00> : vector<32x512xf32>
    %124 = tpu.matmul %122, %123, %cst_46 {dimension_numbers = #tpu.dot_dimension_numbers<[1], [0], [0], [1], [0, 0, 1, 1], [], []>} : vector<32x1536xbf16>, vector<1536x512xbf16>, vector<32x512xf32> -> vector<32x512xf32>
    %125 = vector.shape_cast %124 : vector<32x512xf32> to vector<2x16x512xf32>
    %cst_47 = arith.constant dense<0.000000e+00> : vector<2x512xf32>
    %126 = vector.multi_reduction <add>, %125, %cst_47 [1] : vector<2x16x512xf32> to vector<2x512xf32>
    %cst_48 = arith.constant 1.600000e+01 : f32
    %127 = vector.broadcast %cst_48 : f32 to vector<2x512xf32>
    %128 = arith.divf %126, %127 : vector<2x512xf32>
    %c0_49 = arith.constant 0 : index
    %c0_50 = arith.constant 0 : index
    %129 = vector.load %arg9[%c0_49, %c0_50] : memref<512x8xf32, #tpu.memory_space<vmem>>, vector<512x8xf32>
    %cst_51 = arith.constant dense<0.000000e+00> : vector<2x8xf32>
    %130 = tpu.matmul %128, %129, %cst_51 {dimension_numbers = #tpu.dot_dimension_numbers<[1], [0], [0], [1], [0, 0, 1, 1], [], []>} : vector<2x512xf32>, vector<512x8xf32>, vector<2x8xf32> -> vector<2x8xf32>
    %c0_52 = arith.constant 0 : index
    %c0_53 = arith.constant 0 : index
    %131 = vector.load %arg10[%c0_52, %c0_53] : memref<1x8xf32, #tpu.memory_space<vmem>>, vector<1x8xf32>
    %132 = vector.broadcast %131 : vector<1x8xf32> to vector<2x8xf32>
    %133 = arith.addf %130, %132 : vector<2x8xf32>
    %cst_54 = arith.constant 0.000000e+00 : f32
    %134 = vector.broadcast %cst_54 : f32 to vector<2x8xf32>
    %135 = arith.maximumf %133, %134 : vector<2x8xf32>
    %c0_55 = arith.constant 0 : index
    %c0_56 = arith.constant 0 : index
    %136 = vector.load %arg11[%c0_55, %c0_56] : memref<8x512xf32, #tpu.memory_space<vmem>>, vector<8x512xf32>
    %cst_57 = arith.constant dense<0.000000e+00> : vector<2x512xf32>
    %137 = tpu.matmul %135, %136, %cst_57 {dimension_numbers = #tpu.dot_dimension_numbers<[1], [0], [0], [1], [0, 0, 1, 1], [], []>} : vector<2x8xf32>, vector<8x512xf32>, vector<2x512xf32> -> vector<2x512xf32>
    %c0_58 = arith.constant 0 : index
    %c0_59 = arith.constant 0 : index
    %138 = vector.load %arg12[%c0_58, %c0_59] : memref<1x512xf32, #tpu.memory_space<vmem>>, vector<1x512xf32>
    %139 = vector.broadcast %138 : vector<1x512xf32> to vector<2x512xf32>
    %140 = arith.addf %137, %139 : vector<2x512xf32>
    %cst_60 = arith.constant 0.000000e+00 : f32
    %141 = vector.broadcast %cst_60 : f32 to vector<2x512xf32>
    %142 = arith.subf %141, %140 : vector<2x512xf32>
    %143 = math.exp %142 : vector<2x512xf32>
    %cst_61 = arith.constant 1.000000e+00 : f32
    %144 = vector.broadcast %cst_61 : f32 to vector<2x512xf32>
    %145 = arith.addf %144, %143 : vector<2x512xf32>
    %cst_62 = arith.constant 1.000000e+00 : f32
    %146 = vector.broadcast %cst_62 : f32 to vector<2x512xf32>
    %147 = arith.divf %146, %145 : vector<2x512xf32>
    %148 = vector.shape_cast %147 : vector<2x512xf32> to vector<2x1x512xf32>
    %149 = vector.broadcast %148 : vector<2x1x512xf32> to vector<2x16x512xf32>
    %150 = arith.mulf %125, %149 : vector<2x16x512xf32>
    %151 = vector.shape_cast %150 : vector<2x16x512xf32> to vector<32x512xf32>
    %152 = arith.addf %151, %11 : vector<32x512xf32>
    %c0_63 = arith.constant 0 : index
    %c0_64 = arith.constant 0 : index
    %153 = vector.load %arg13[%c0_63, %c0_64] : memref<32x512xf32, #tpu.memory_space<vmem>>, vector<32x512xf32>
    tpu.vector_store %arg13[%c0_63, %c0_64], %152 {strides = array<i32>} : memref<32x512xf32, #tpu.memory_space<vmem>>, vector<32x512xf32>,
    return
  }
  func.func @transform_0(%arg0: i32) -> (i32, i32) {
    %c0_i32 = arith.constant 0 : i32
    %c0_i32_0 = arith.constant 0 : i32
    return %arg0, %c0_i32 : i32, i32
  }
  func.func @transform_1(%arg0: i32) -> (i32, i32) {
    %c0_i32 = arith.constant 0 : i32
    %c0_i32_0 = arith.constant 0 : i32
    %c0_i32_1 = arith.constant 0 : i32
    return %c0_i32, %c0_i32_0 : i32, i32
  }
  func.func @transform_2(%arg0: i32) -> (i32, i32) {
    %c0_i32 = arith.constant 0 : i32
    %c0_i32_0 = arith.constant 0 : i32
    %c0_i32_1 = arith.constant 0 : i32
    return %c0_i32, %c0_i32_0 : i32, i32
  }
  func.func @transform_3(%arg0: i32) -> (i32, i32) {
    %c0_i32 = arith.constant 0 : i32
    %c0_i32_0 = arith.constant 0 : i32
    %c0_i32_1 = arith.constant 0 : i32
    return %c0_i32, %c0_i32_0 : i32, i32
  }
  func.func @transform_4(%arg0: i32) -> (i32, i32) {
    %c0_i32 = arith.constant 0 : i32
    %c0_i32_0 = arith.constant 0 : i32
    %c0_i32_1 = arith.constant 0 : i32
    return %c0_i32, %c0_i32_0 : i32, i32
  }
  func.func @transform_5(%arg0: i32) -> (i32, i32) {
    %c0_i32 = arith.constant 0 : i32
    %c0_i32_0 = arith.constant 0 : i32
    %c0_i32_1 = arith.constant 0 : i32
    return %c0_i32, %c0_i32_0 : i32, i32
  }
  func.func @transform_6(%arg0: i32) -> (i32, i32) {
    %c0_i32 = arith.constant 0 : i32
    %c0_i32_0 = arith.constant 0 : i32
    %c0_i32_1 = arith.constant 0 : i32
    return %c0_i32, %c0_i32_0 : i32, i32
  }
  func.func @transform_7(%arg0: i32) -> (i32, i32) {
    %c0_i32 = arith.constant 0 : i32
    %c0_i32_0 = arith.constant 0 : i32
    %c0_i32_1 = arith.constant 0 : i32
    return %c0_i32, %c0_i32_0 : i32, i32
  }
  func.func @transform_8(%arg0: i32) -> (i32, i32) {
    %c0_i32 = arith.constant 0 : i32
    %c0_i32_0 = arith.constant 0 : i32
    %c0_i32_1 = arith.constant 0 : i32
    return %c0_i32, %c0_i32_0 : i32, i32
  }
  func.func @transform_9(%arg0: i32) -> (i32, i32) {
    %c0_i32 = arith.constant 0 : i32
    %c0_i32_0 = arith.constant 0 : i32
    %c0_i32_1 = arith.constant 0 : i32
    return %c0_i32, %c0_i32_0 : i32, i32
  }
  func.func @transform_10(%arg0: i32) -> (i32, i32) {
    %c0_i32 = arith.constant 0 : i32
    %c0_i32_0 = arith.constant 0 : i32
    %c0_i32_1 = arith.constant 0 : i32
    return %c0_i32, %c0_i32_0 : i32, i32
  }
  func.func @transform_11(%arg0: i32) -> (i32, i32) {
    %c0_i32 = arith.constant 0 : i32
    %c0_i32_0 = arith.constant 0 : i32
    %c0_i32_1 = arith.constant 0 : i32
    return %c0_i32, %c0_i32_0 : i32, i32
  }
  func.func @transform_12(%arg0: i32) -> (i32, i32) {
    %c0_i32 = arith.constant 0 : i32
    %c0_i32_0 = arith.constant 0 : i32
    return %arg0, %c0_i32 : i32, i32
  }
}

module attributes {stable_mosaic.version = 11 : i64} {
  func.func @_kernel_proj(%arg0: i32, %arg1: memref<32x256xf32, #tpu.memory_space<vmem>>, %arg2: memref<1x256xf32, #tpu.memory_space<vmem>>, %arg3: memref<1x256xf32, #tpu.memory_space<vmem>>, %arg4: memref<1x512xf32, #tpu.memory_space<vmem>>, %arg5: memref<1x512xf32, #tpu.memory_space<vmem>>, %arg6: memref<768x512xbf16, #tpu.memory_space<vmem>>, %arg7: memref<1536x512xbf16, #tpu.memory_space<vmem>>, %arg8: memref<256x512xbf16, #tpu.memory_space<vmem>>, %arg9: memref<512x8xf32, #tpu.memory_space<vmem>>, %arg10: memref<1x8xf32, #tpu.memory_space<vmem>>, %arg11: memref<8x512xf32, #tpu.memory_space<vmem>>, %arg12: memref<1x512xf32, #tpu.memory_space<vmem>>, %arg13: memref<32x512xf32, #tpu.memory_space<vmem>>) attributes {dimension_semantics = [#tpu.dimension_semantics<parallel>], iteration_bounds = array<i64: 1>, scalar_prefetch = 0 : i64, scratch_operands = 0 : i64, tpu.core_type = #tpu.core_type<tc>, window_params = [{transform_indices = @transform_0, window_bounds = array<i64: 32, 256>}, {pipeline_mode = #tpu.pipeline_mode<synchronous>, transform_indices = @transform_1, window_bounds = array<i64: 1, 256>}, {pipeline_mode = #tpu.pipeline_mode<synchronous>, transform_indices = @transform_2, window_bounds = array<i64: 1, 256>}, {pipeline_mode = #tpu.pipeline_mode<synchronous>, transform_indices = @transform_3, window_bounds = array<i64: 1, 512>}, {pipeline_mode = #tpu.pipeline_mode<synchronous>, transform_indices = @transform_4, window_bounds = array<i64: 1, 512>}, {pipeline_mode = #tpu.pipeline_mode<synchronous>, transform_indices = @transform_5, window_bounds = array<i64: 768, 512>}, {pipeline_mode = #tpu.pipeline_mode<synchronous>, transform_indices = @transform_6, window_bounds = array<i64: 1536, 512>}, {pipeline_mode = #tpu.pipeline_mode<synchronous>, transform_indices = @transform_7, window_bounds = array<i64: 256, 512>}, {pipeline_mode = #tpu.pipeline_mode<synchronous>, transform_indices = @transform_8, window_bounds = array<i64: 512, 8>}, {pipeline_mode = #tpu.pipeline_mode<synchronous>, transform_indices = @transform_9, window_bounds = array<i64: 1, 8>}, {pipeline_mode = #tpu.pipeline_mode<synchronous>, transform_indices = @transform_10, window_bounds = array<i64: 8, 512>}, {pipeline_mode = #tpu.pipeline_mode<synchronous>, transform_indices = @transform_11, window_bounds = array<i64: 1, 512>}, {transform_indices = @transform_12, window_bounds = array<i64: 32, 512>}]} {
    %c0 = arith.constant 0 : index
    %c0_0 = arith.constant 0 : index
    %0 = vector.load %arg1[%c0, %c0_0] : memref<32x256xf32, #tpu.memory_space<vmem>>, vector<32x256xf32>
    %c0_1 = arith.constant 0 : index
    %c0_2 = arith.constant 0 : index
    %1 = vector.load %arg2[%c0_1, %c0_2] : memref<1x256xf32, #tpu.memory_space<vmem>>, vector<1x256xf32>
    %2 = vector.broadcast %1 : vector<1x256xf32> to vector<32x256xf32>
    %3 = arith.mulf %0, %2 : vector<32x256xf32>
    %c0_3 = arith.constant 0 : index
    %c0_4 = arith.constant 0 : index
    %4 = vector.load %arg3[%c0_3, %c0_4] : memref<1x256xf32, #tpu.memory_space<vmem>>, vector<1x256xf32>
    %5 = vector.broadcast %4 : vector<1x256xf32> to vector<32x256xf32>
    %6 = arith.addf %3, %5 : vector<32x256xf32>
    %cst = arith.constant 0.000000e+00 : f32
    %7 = vector.broadcast %cst : f32 to vector<32x256xf32>
    %8 = arith.maximumf %6, %7 : vector<32x256xf32>
    %9 = arith.truncf %8 : vector<32x256xf32> to vector<32x256xbf16>
    %c0_5 = arith.constant 0 : index
    %c0_6 = arith.constant 0 : index
    %10 = vector.load %arg8[%c0_5, %c0_6] : memref<256x512xbf16, #tpu.memory_space<vmem>>, vector<256x512xbf16>
    %cst_7 = arith.constant dense<0.000000e+00> : vector<32x512xf32>
    %11 = tpu.matmul %9, %10, %cst_7 {dimension_numbers = #tpu.dot_dimension_numbers<[1], [0], [0], [1], [0, 0, 1, 1], [], []>} : vector<32x256xbf16>, vector<256x512xbf16>, vector<32x512xf32> -> vector<32x512xf32>
    %12 = tpu.iota {dimensions = array<i32: 0>} : vector<32x1xi32>
    %cst_8 = arith.constant 0.000000e+00 : bf16
    %13 = vector.broadcast %cst_8 : bf16 to vector<1x256xbf16>
    %cst_9 = arith.constant 0.000000e+00 : bf16
    %14 = vector.broadcast %cst_9 : bf16 to vector<32x256xbf16>
    %c16_i32 = arith.constant 16 : i32
    %c0_i32 = arith.constant 0 : i32
    %15 = arith.cmpi eq, %c16_i32, %c0_i32 : i32
    %c1_i32 = arith.constant 1 : i32
    %16 = arith.select %15, %c1_i32, %c16_i32 : i32
    %17 = vector.broadcast %16 : i32 to vector<32x1xi32>
    %18 = arith.remsi %12, %17 : vector<32x1xi32>
    %c0_i32_10 = arith.constant 0 : i32
    %19 = vector.broadcast %c0_i32_10 : i32 to vector<32x1xi32>
    %20 = arith.cmpi ne, %18, %19 : vector<32x1xi32>
    %c0_i32_11 = arith.constant 0 : i32
    %21 = vector.broadcast %c0_i32_11 : i32 to vector<32x1xi32>
    %22 = arith.cmpi slt, %18, %21 : vector<32x1xi32>
    %c0_i32_12 = arith.constant 0 : i32
    %23 = arith.cmpi slt, %16, %c0_i32_12 : i32
    %24 = vector.broadcast %23 : i1 to vector<32x1xi1>
    %25 = vector.broadcast %24 : vector<32x1xi1> to vector<32x1xi1>
    %26 = arith.xori %22, %25 : vector<32x1xi1>
    %27 = arith.andi %26, %20 : vector<32x1xi1>
    %28 = vector.broadcast %16 : i32 to vector<32x1xi32>
    %29 = arith.addi %18, %28 : vector<32x1xi32>
    %30 = arith.select %27, %29, %18 : vector<32x1xi1>, vector<32x1xi32>
    %c0_i32_13 = arith.constant 0 : i32
    %31 = vector.broadcast %c0_i32_13 : i32 to vector<32x1xi32>
    %32 = arith.cmpi eq, %30, %31 : vector<32x1xi32>
    %33 = vector.extract_strided_slice %9 {offsets = [0, 0], sizes = [31, 256], strides = [1, 1]} : vector<32x256xbf16> to vector<31x256xbf16>
    %34 = tpu.concatenate %13, %33 in 0 : vector<1x256xbf16>, vector<31x256xbf16> -> vector<32x256xbf16>
    %35 = vector.shape_cast %32 : vector<32x1xi1> to vector<32x1xi1>
    %36 = vector.broadcast %35 : vector<32x1xi1> to vector<32x256xi1>
    %37 = arith.select %36, %14, %34 : vector<32x256xi1>, vector<32x256xbf16>
    %c16_i32_14 = arith.constant 16 : i32
    %c0_i32_15 = arith.constant 0 : i32
    %38 = arith.cmpi eq, %c16_i32_14, %c0_i32_15 : i32
    %c1_i32_16 = arith.constant 1 : i32
    %39 = arith.select %38, %c1_i32_16, %c16_i32_14 : i32
    %40 = vector.broadcast %39 : i32 to vector<32x1xi32>
    %41 = arith.remsi %12, %40 : vector<32x1xi32>
    %c0_i32_17 = arith.constant 0 : i32
    %42 = vector.broadcast %c0_i32_17 : i32 to vector<32x1xi32>
    %43 = arith.cmpi ne, %41, %42 : vector<32x1xi32>
    %c0_i32_18 = arith.constant 0 : i32
    %44 = vector.broadcast %c0_i32_18 : i32 to vector<32x1xi32>
    %45 = arith.cmpi slt, %41, %44 : vector<32x1xi32>
    %c0_i32_19 = arith.constant 0 : i32
    %46 = arith.cmpi slt, %39, %c0_i32_19 : i32
    %47 = vector.broadcast %46 : i1 to vector<32x1xi1>
    %48 = vector.broadcast %47 : vector<32x1xi1> to vector<32x1xi1>
    %49 = arith.xori %45, %48 : vector<32x1xi1>
    %50 = arith.andi %49, %43 : vector<32x1xi1>
    %51 = vector.broadcast %39 : i32 to vector<32x1xi32>
    %52 = arith.addi %41, %51 : vector<32x1xi32>
    %53 = arith.select %50, %52, %41 : vector<32x1xi1>, vector<32x1xi32>
    %c15_i32 = arith.constant 15 : i32
    %54 = vector.broadcast %c15_i32 : i32 to vector<32x1xi32>
    %55 = arith.cmpi eq, %53, %54 : vector<32x1xi32>
    %56 = vector.extract_strided_slice %9 {offsets = [1, 0], sizes = [31, 256], strides = [1, 1]} : vector<32x256xbf16> to vector<31x256xbf16>
    %57 = tpu.concatenate %56, %13 in 0 : vector<31x256xbf16>, vector<1x256xbf16> -> vector<32x256xbf16>
    %58 = vector.shape_cast %55 : vector<32x1xi1> to vector<32x1xi1>
    %59 = vector.broadcast %58 : vector<32x1xi1> to vector<32x256xi1>
    %60 = arith.select %59, %14, %57 : vector<32x256xi1>, vector<32x256xbf16>
    %61 = tpu.concatenate %37, %9, %60 in 1 : vector<32x256xbf16>, vector<32x256xbf16>, vector<32x256xbf16> -> vector<32x768xbf16>
    %c0_20 = arith.constant 0 : index
    %c0_21 = arith.constant 0 : index
    %62 = vector.load %arg6[%c0_20, %c0_21] : memref<768x512xbf16, #tpu.memory_space<vmem>>, vector<768x512xbf16>
    %cst_22 = arith.constant dense<0.000000e+00> : vector<32x512xf32>
    %63 = tpu.matmul %61, %62, %cst_22 {dimension_numbers = #tpu.dot_dimension_numbers<[1], [0], [0], [1], [0, 0, 1, 1], [], []>} : vector<32x768xbf16>, vector<768x512xbf16>, vector<32x512xf32> -> vector<32x512xf32>
    %c0_23 = arith.constant 0 : index
    %c0_24 = arith.constant 0 : index
    %64 = vector.load %arg4[%c0_23, %c0_24] : memref<1x512xf32, #tpu.memory_space<vmem>>, vector<1x512xf32>
    %65 = vector.broadcast %64 : vector<1x512xf32> to vector<32x512xf32>
    %66 = arith.mulf %63, %65 : vector<32x512xf32>
    %c0_25 = arith.constant 0 : index
    %c0_26 = arith.constant 0 : index
    %67 = vector.load %arg5[%c0_25, %c0_26] : memref<1x512xf32, #tpu.memory_space<vmem>>, vector<1x512xf32>
    %68 = vector.broadcast %67 : vector<1x512xf32> to vector<32x512xf32>
    %69 = arith.addf %66, %68 : vector<32x512xf32>
    %cst_27 = arith.constant 0.000000e+00 : f32
    %70 = vector.broadcast %cst_27 : f32 to vector<32x512xf32>
    %71 = arith.maximumf %69, %70 : vector<32x512xf32>
    %72 = arith.truncf %71 : vector<32x512xf32> to vector<32x512xbf16>
    %73 = tpu.iota {dimensions = array<i32: 0>} : vector<32x1xi32>
    %cst_28 = arith.constant 0.000000e+00 : bf16
    %74 = vector.broadcast %cst_28 : bf16 to vector<1x512xbf16>
    %cst_29 = arith.constant 0.000000e+00 : bf16
    %75 = vector.broadcast %cst_29 : bf16 to vector<32x512xbf16>
    %c16_i32_30 = arith.constant 16 : i32
    %c0_i32_31 = arith.constant 0 : i32
    %76 = arith.cmpi eq, %c16_i32_30, %c0_i32_31 : i32
    %c1_i32_32 = arith.constant 1 : i32
    %77 = arith.select %76, %c1_i32_32, %c16_i32_30 : i32
    %78 = vector.broadcast %77 : i32 to vector<32x1xi32>
    %79 = arith.remsi %73, %78 : vector<32x1xi32>
    %c0_i32_33 = arith.constant 0 : i32
    %80 = vector.broadcast %c0_i32_33 : i32 to vector<32x1xi32>
    %81 = arith.cmpi ne, %79, %80 : vector<32x1xi32>
    %c0_i32_34 = arith.constant 0 : i32
    %82 = vector.broadcast %c0_i32_34 : i32 to vector<32x1xi32>
    %83 = arith.cmpi slt, %79, %82 : vector<32x1xi32>
    %c0_i32_35 = arith.constant 0 : i32
    %84 = arith.cmpi slt, %77, %c0_i32_35 : i32
    %85 = vector.broadcast %84 : i1 to vector<32x1xi1>
    %86 = vector.broadcast %85 : vector<32x1xi1> to vector<32x1xi1>
    %87 = arith.xori %83, %86 : vector<32x1xi1>
    %88 = arith.andi %87, %81 : vector<32x1xi1>
    %89 = vector.broadcast %77 : i32 to vector<32x1xi32>
    %90 = arith.addi %79, %89 : vector<32x1xi32>
    %91 = arith.select %88, %90, %79 : vector<32x1xi1>, vector<32x1xi32>
    %c0_i32_36 = arith.constant 0 : i32
    %92 = vector.broadcast %c0_i32_36 : i32 to vector<32x1xi32>
    %93 = arith.cmpi eq, %91, %92 : vector<32x1xi32>
    %94 = vector.extract_strided_slice %72 {offsets = [0, 0], sizes = [31, 512], strides = [1, 1]} : vector<32x512xbf16> to vector<31x512xbf16>
    %95 = tpu.concatenate %74, %94 in 0 : vector<1x512xbf16>, vector<31x512xbf16> -> vector<32x512xbf16>
    %96 = vector.shape_cast %93 : vector<32x1xi1> to vector<32x1xi1>
    %97 = vector.broadcast %96 : vector<32x1xi1> to vector<32x512xi1>
    %98 = arith.select %97, %75, %95 : vector<32x512xi1>, vector<32x512xbf16>
    %c16_i32_37 = arith.constant 16 : i32
    %c0_i32_38 = arith.constant 0 : i32
    %99 = arith.cmpi eq, %c16_i32_37, %c0_i32_38 : i32
    %c1_i32_39 = arith.constant 1 : i32
    %100 = arith.select %99, %c1_i32_39, %c16_i32_37 : i32
    %101 = vector.broadcast %100 : i32 to vector<32x1xi32>
    %102 = arith.remsi %73, %101 : vector<32x1xi32>
    %c0_i32_40 = arith.constant 0 : i32
    %103 = vector.broadcast %c0_i32_40 : i32 to vector<32x1xi32>
    %104 = arith.cmpi ne, %102, %103 : vector<32x1xi32>
    %c0_i32_41 = arith.constant 0 : i32
    %105 = vector.broadcast %c0_i32_41 : i32 to vector<32x1xi32>
    %106 = arith.cmpi slt, %102, %105 : vector<32x1xi32>
    %c0_i32_42 = arith.constant 0 : i32
    %107 = arith.cmpi slt, %100, %c0_i32_42 : i32
    %108 = vector.broadcast %107 : i1 to vector<32x1xi1>
    %109 = vector.broadcast %108 : vector<32x1xi1> to vector<32x1xi1>
    %110 = arith.xori %106, %109 : vector<32x1xi1>
    %111 = arith.andi %110, %104 : vector<32x1xi1>
    %112 = vector.broadcast %100 : i32 to vector<32x1xi32>
    %113 = arith.addi %102, %112 : vector<32x1xi32>
    %114 = arith.select %111, %113, %102 : vector<32x1xi1>, vector<32x1xi32>
    %c15_i32_43 = arith.constant 15 : i32
    %115 = vector.broadcast %c15_i32_43 : i32 to vector<32x1xi32>
    %116 = arith.cmpi eq, %114, %115 : vector<32x1xi32>
    %117 = vector.extract_strided_slice %72 {offsets = [1, 0], sizes = [31, 512], strides = [1, 1]} : vector<32x512xbf16> to vector<31x512xbf16>
    %118 = tpu.concatenate %117, %74 in 0 : vector<31x512xbf16>, vector<1x512xbf16> -> vector<32x512xbf16>
    %119 = vector.shape_cast %116 : vector<32x1xi1> to vector<32x1xi1>
    %120 = vector.broadcast %119 : vector<32x1xi1> to vector<32x512xi1>
    %121 = arith.select %120, %75, %118 : vector<32x512xi1>, vector<32x512xbf16>
    %122 = tpu.concatenate %98, %72, %121 in 1 : vector<32x512xbf16>, vector<32x512xbf16>, vector<32x512xbf16> -> vector<32x1536xbf16>
    %c0_44 = arith.constant 0 : index
    %c0_45 = arith.constant 0 : index
    %123 = vector.load %arg7[%c0_44, %c0_45] : memref<1536x512xbf16, #tpu.memory_space<vmem>>, vector<1536x512xbf16>
    %cst_46 = arith.constant dense<0.000000e+00> : vector<32x512xf32>
    %124 = tpu.matmul %122, %123, %cst_46 {dimension_numbers = #tpu.dot_dimension_numbers<[1], [0], [0], [1], [0, 0, 1, 1], [], []>} : vector<32x1536xbf16>, vector<1536x512xbf16>, vector<32x512xf32> -> vector<32x512xf32>
    %125 = vector.shape_cast %124 : vector<32x512xf32> to vector<2x16x512xf32>
    %cst_47 = arith.constant dense<0.000000e+00> : vector<2x512xf32>
    %126 = vector.multi_reduction <add>, %125, %cst_47 [1] : vector<2x16x512xf32> to vector<2x512xf32>
    %cst_48 = arith.constant 1.600000e+01 : f32
    %127 = vector.broadcast %cst_48 : f32 to vector<2x512xf32>
    %128 = arith.divf %126, %127 : vector<2x512xf32>
    %c0_49 = arith.constant 0 : index
    %c0_50 = arith.constant 0 : index
    %129 = vector.load %arg9[%c0_49, %c0_50] : memref<512x8xf32, #tpu.memory_space<vmem>>, vector<512x8xf32>
    %cst_51 = arith.constant dense<0.000000e+00> : vector<2x8xf32>
    %130 = tpu.matmul %128, %129, %cst_51 {dimension_numbers = #tpu.dot_dimension_numbers<[1], [0], [0], [1], [0, 0, 1, 1], [], []>} : vector<2x512xf32>, vector<512x8xf32>, vector<2x8xf32> -> vector<2x8xf32>
    %c0_52 = arith.constant 0 : index
    %c0_53 = arith.constant 0 : index
    %131 = vector.load %arg10[%c0_52, %c0_53] : memref<1x8xf32, #tpu.memory_space<vmem>>, vector<1x8xf32>
    %132 = vector.broadcast %131 : vector<1x8xf32> to vector<2x8xf32>
    %133 = arith.addf %130, %132 : vector<2x8xf32>
    %cst_54 = arith.constant 0.000000e+00 : f32
    %134 = vector.broadcast %cst_54 : f32 to vector<2x8xf32>
    %135 = arith.maximumf %133, %134 : vector<2x8xf32>
    %c0_55 = arith.constant 0 : index
    %c0_56 = arith.constant 0 : index
    %136 = vector.load %arg11[%c0_55, %c0_56] : memref<8x512xf32, #tpu.memory_space<vmem>>, vector<8x512xf32>
    %cst_57 = arith.constant dense<0.000000e+00> : vector<2x512xf32>
    %137 = tpu.matmul %135, %136, %cst_57 {dimension_numbers = #tpu.dot_dimension_numbers<[1], [0], [0], [1], [0, 0, 1, 1], [], []>} : vector<2x8xf32>, vector<8x512xf32>, vector<2x512xf32> -> vector<2x512xf32>
    %c0_58 = arith.constant 0 : index
    %c0_59 = arith.constant 0 : index
    %138 = vector.load %arg12[%c0_58, %c0_59] : memref<1x512xf32, #tpu.memory_space<vmem>>, vector<1x512xf32>
    %139 = vector.broadcast %138 : vector<1x512xf32> to vector<2x512xf32>
    %140 = arith.addf %137, %139 : vector<2x512xf32>
    %cst_60 = arith.constant 0.000000e+00 : f32
    %141 = vector.broadcast %cst_60 : f32 to vector<2x512xf32>
    %142 = arith.subf %141, %140 : vector<2x512xf32>
    %143 = math.exp %142 : vector<2x512xf32>
    %cst_61 = arith.constant 1.000000e+00 : f32
    %144 = vector.broadcast %cst_61 : f32 to vector<2x512xf32>
    %145 = arith.addf %144, %143 : vector<2x512xf32>
    %cst_62 = arith.constant 1.000000e+00 : f32
    %146 = vector.broadcast %cst_62 : f32 to vector<2x512xf32>
    %147 = arith.divf %146, %145 : vector<2x512xf32>
    %148 = vector.shape_cast %147 : vector<2x512xf32> to vector<2x1x512xf32>
    %149 = vector.broadcast %148 : vector<2x1x512xf32> to vector<2x16x512xf32>
    %150 = arith.mulf %125, %149 : vector<2x16x512xf32>
    %151 = vector.shape_cast %150 : vector<2x16x512xf32> to vector<32x512xf32>
    %152 = arith.addf %151, %11 : vector<32x512xf32>
    %c0_63 = arith.constant 0 : index
    %c0_64 = arith.constant 0 : index
    %153 = vector.load %arg13[%c0_63, %c0_64] : memref<32x512xf32, #tpu.memory_space<vmem>>, vector<32x512xf32>
    tpu.vector_store %arg13[%c0_63, %c0_64], %152 {strides = array<i32>} : memref<32x512xf32, #tpu.memory_space<vmem>>, vector<32x512xf32>,
    return
  }
  func.func @transform_0(%arg0: i32) -> (i32, i32) {
    %c0_i32 = arith.constant 0 : i32
    %c0_i32_0 = arith.constant 0 : i32
    return %arg0, %c0_i32 : i32, i32
  }
  func.func @transform_1(%arg0: i32) -> (i32, i32) {
    %c0_i32 = arith.constant 0 : i32
    %c0_i32_0 = arith.constant 0 : i32
    %c0_i32_1 = arith.constant 0 : i32
    return %c0_i32, %c0_i32_0 : i32, i32
  }
  func.func @transform_2(%arg0: i32) -> (i32, i32) {
    %c0_i32 = arith.constant 0 : i32
    %c0_i32_0 = arith.constant 0 : i32
    %c0_i32_1 = arith.constant 0 : i32
    return %c0_i32, %c0_i32_0 : i32, i32
  }
  func.func @transform_3(%arg0: i32) -> (i32, i32) {
    %c0_i32 = arith.constant 0 : i32
    %c0_i32_0 = arith.constant 0 : i32
    %c0_i32_1 = arith.constant 0 : i32
    return %c0_i32, %c0_i32_0 : i32, i32
  }
  func.func @transform_4(%arg0: i32) -> (i32, i32) {
    %c0_i32 = arith.constant 0 : i32
    %c0_i32_0 = arith.constant 0 : i32
    %c0_i32_1 = arith.constant 0 : i32
    return %c0_i32, %c0_i32_0 : i32, i32
  }
  func.func @transform_5(%arg0: i32) -> (i32, i32) {
    %c0_i32 = arith.constant 0 : i32
    %c0_i32_0 = arith.constant 0 : i32
    %c0_i32_1 = arith.constant 0 : i32
    return %c0_i32, %c0_i32_0 : i32, i32
  }
  func.func @transform_6(%arg0: i32) -> (i32, i32) {
    %c0_i32 = arith.constant 0 : i32
    %c0_i32_0 = arith.constant 0 : i32
    %c0_i32_1 = arith.constant 0 : i32
    return %c0_i32, %c0_i32_0 : i32, i32
  }
  func.func @transform_7(%arg0: i32) -> (i32, i32) {
    %c0_i32 = arith.constant 0 : i32
    %c0_i32_0 = arith.constant 0 : i32
    %c0_i32_1 = arith.constant 0 : i32
    return %c0_i32, %c0_i32_0 : i32, i32
  }
  func.func @transform_8(%arg0: i32) -> (i32, i32) {
    %c0_i32 = arith.constant 0 : i32
    %c0_i32_0 = arith.constant 0 : i32
    %c0_i32_1 = arith.constant 0 : i32
    return %c0_i32, %c0_i32_0 : i32, i32
  }
  func.func @transform_9(%arg0: i32) -> (i32, i32) {
    %c0_i32 = arith.constant 0 : i32
    %c0_i32_0 = arith.constant 0 : i32
    %c0_i32_1 = arith.constant 0 : i32
    return %c0_i32, %c0_i32_0 : i32, i32
  }
  func.func @transform_10(%arg0: i32) -> (i32, i32) {
    %c0_i32 = arith.constant 0 : i32
    %c0_i32_0 = arith.constant 0 : i32
    %c0_i32_1 = arith.constant 0 : i32
    return %c0_i32, %c0_i32_0 : i32, i32
  }
  func.func @transform_11(%arg0: i32) -> (i32, i32) {
    %c0_i32 = arith.constant 0 : i32
    %c0_i32_0 = arith.constant 0 : i32
    %c0_i32_1 = arith.constant 0 : i32
    return %c0_i32, %c0_i32_0 : i32, i32
  }
  func.func @transform_12(%arg0: i32) -> (i32, i32) {
    %c0_i32 = arith.constant 0 : i32
    %c0_i32_0 = arith.constant 0 : i32
    return %arg0, %c0_i32 : i32, i32
  }
}

</mosaic_0001>

<llo_original>
// kernel: tpu_custom_call.1
$region0: #{tpu_custom_call.1}
  #allocation0 [shape = 'u32[]', space=smem, size = 0x4, offset = 0x4, fixed_abs, tag = 'smem constant byte address 0x4 - core index']
  #allocation1 [shape = 'u32[144,128]{1,0:T(1,128)}', space=vmem, size = 0x12000, scoped, tag = 'internal scratch']
  %s0 = inlined_call_operand.hbm [shape: f32[32,256], index: 0, kind: input, shape index: {}]
  %s1 = inlined_call_operand.hbm [shape: f32[1,256], index: 1, kind: input, shape index: {}]
  %s2 = inlined_call_operand.hbm [shape: f32[1,256], index: 2, kind: input, shape index: {}]
  %s3 = inlined_call_operand.hbm [shape: f32[1,512], index: 3, kind: input, shape index: {}]
  %s4 = inlined_call_operand.hbm [shape: f32[1,512], index: 4, kind: input, shape index: {}]
  %s5 = inlined_call_operand.hbm [shape: bf16[768,512], index: 5, kind: input, shape index: {}]
  %s6 = inlined_call_operand.hbm [shape: bf16[1536,512], index: 6, kind: input, shape index: {}]
  %s7 = inlined_call_operand.hbm [shape: bf16[256,512], index: 7, kind: input, shape index: {}]
  %s8 = inlined_call_operand.vmem [shape: f32[512,8], index: 8, kind: input, shape index: {}]
  %s9 = inlined_call_operand.hbm [shape: f32[1,8], index: 9, kind: input, shape index: {}]
  %s10 = inlined_call_operand.hbm [shape: f32[8,512], index: 10, kind: input, shape index: {}]
  %s11 = inlined_call_operand.hbm [shape: f32[1,512], index: 11, kind: input, shape index: {}]
  %s12 = inlined_call_operand.hbm [shape: f32[32,512], index: 12, kind: output, shape index: {}]
  %s13 = sld [smem:[#allocation0]]
  $region102: #{tpu_custom_call.1} parent=0
    _
  %s15 = ssub.s32 1, %s13
  %s16 = scalar_select 0, %s15, %s13
  $region1: #{tpu_custom_call.1} parent=0
    #allocation2 [shape = 'u8[32768]{0}', space=vmem, size = 0x8000, scoped, tag = 'input window, operand 0, single buffered']
    #allocation3 [shape = 's32[1]{0}', space=sflag, size = 0x4, scoped, tag = 'scoped memory for tpu_custom_call.1']
    #allocation4 [shape = 's32[1]{0}', space=sflag, size = 0x4, scoped, tag = 'scoped memory for tpu_custom_call.1']
    #allocation5 [shape = 'u8[1024]{0}', space=vmem, size = 0x400, scoped, tag = 'input window, operand 1, single buffered']
    #allocation6 [shape = 's32[1]{0}', space=sflag, size = 0x4, scoped, tag = 'scoped memory for tpu_custom_call.1']
    #allocation7 [shape = 'u8[1024]{0}', space=vmem, size = 0x400, scoped, tag = 'input window, operand 2, single buffered']
    #allocation8 [shape = 'u8[2048]{0}', space=vmem, size = 0x800, scoped, tag = 'input window, operand 3, single buffered']
    #allocation9 [shape = 's32[1]{0}', space=sflag, size = 0x4, scoped, tag = 'scoped memory for tpu_custom_call.1']
    #allocation10 [shape = 'u8[2048]{0}', space=vmem, size = 0x800, scoped, tag = 'input window, operand 4, single buffered']
    #allocation11 [shape = 'u8[786432]{0}', space=vmem, size = 0xc0000, scoped, tag = 'input window, operand 5, single buffered']
    #allocation12 [shape = 's32[1]{0}', space=sflag, size = 0x4, scoped, tag = 'scoped memory for tpu_custom_call.1']
    #allocation13 [shape = 'u8[1572864]{0}', space=vmem, size = 0x180000, scoped, tag = 'input window, operand 6, single buffered']
    #allocation14 [shape = 'u8[262144]{0}', space=vmem, size = 0x40000, scoped, tag = 'input window, operand 7, single buffered']
    #allocation15 [shape = 's32[1]{0}', space=sflag, size = 0x4, scoped, tag = 'scoped memory for tpu_custom_call.1']
    #allocation16 [shape = 'u8[512]{0}', space=vmem, size = 0x400, scoped, tag = 'input window, operand 9, single buffered']
    #allocation17 [shape = 'u8[16384]{0}', space=vmem, size = 0x4000, scoped, tag = 'input window, operand 10, single buffered']
    #allocation18 [shape = 's32[1]{0}', space=sflag, size = 0x4, scoped, tag = 'scoped memory for tpu_custom_call.1']
    #allocation19 [shape = 'u8[2048]{0}', space=vmem, size = 0x800, scoped, tag = 'input window, operand 11, single buffered']
    #allocation20 [shape = 'u8[65536]{0}', space=vmem, size = 0x10000, scoped, tag = 'output window, operand 0, single buffered']
    %17 = vsyncpa [#allocation3], 0
    %18 = vsyncpa [#allocation6], 0
    %19 = vsyncpa [#allocation9], 0
    %20 = vsyncpa [#allocation12], 0
    %21 = vsyncpa [#allocation15], 0
    %22 = vsyncpa [#allocation18], 0
    %23 = vsyncpa [#allocation4], 0
    // Predicated region
    $region2: #{tpu_custom_call.1} parent=1 // pred_check
      _
    $region3: #{tpu_custom_call.1} parent=1 // pred_check_branch
      %25 = sbr.rel (0) target = $region5
    $region4: #{tpu_custom_call.1} parent=1 // pred_region
      %s27 = ssub.s32 1024, 1024
      %28 = vsyncadd [#allocation3], %s27
      %s29 = sshll.u32 [#allocation2], 4
      %s30 = int_to_ptr.vmem [resolvable:$true] %s29
      %35 = dma.hbm_to_vmem [thread:$0]  %s0, 1024, %s30, [#allocation3], 256, 256, 16
    $region5: #{tpu_custom_call.1} parent=1 // pred_fallthru
      _
    // Predicated region
    $region6: #{tpu_custom_call.1} parent=1 // pred_check
      _
    $region7: #{tpu_custom_call.1} parent=1 // pred_check_branch
      %37 = sbr.rel (0) target = $region9
    $region8: #{tpu_custom_call.1} parent=1 // pred_region
      %s39 = ssub.s32 32, 32
      %40 = vsyncadd [#allocation6], %s39
      %s42 = sshll.u32 [#allocation5], 4
      %s43 = int_to_ptr.vmem [resolvable:$true] %s42
      %45 = dma.hbm_to_vmem [thread:$0]  %s1, 32, %s43, [#allocation6]
    $region9: #{tpu_custom_call.1} parent=1 // pred_fallthru
      _
    // Predicated region
    $region10: #{tpu_custom_call.1} parent=1 // pred_check
      _
    $region11: #{tpu_custom_call.1} parent=1 // pred_check_branch
      %47 = sbr.rel (0) target = $region13
    $region12: #{tpu_custom_call.1} parent=1 // pred_region
      %s49 = ssub.s32 32, 32
      %50 = vsyncadd [#allocation6], %s49
      %s52 = sshll.u32 [#allocation7], 4
      %s53 = int_to_ptr.vmem [resolvable:$true] %s52
      %55 = dma.hbm_to_vmem [thread:$0]  %s2, 32, %s53, [#allocation6]
    $region13: #{tpu_custom_call.1} parent=1 // pred_fallthru
      _
    // Predicated region
    $region14: #{tpu_custom_call.1} parent=1 // pred_check
      _
    $region15: #{tpu_custom_call.1} parent=1 // pred_check_branch
      %57 = sbr.rel (0) target = $region17
    $region16: #{tpu_custom_call.1} parent=1 // pred_region
      %s59 = ssub.s32 64, 64
      %60 = vsyncadd [#allocation9], %s59
      %s62 = sshll.u32 [#allocation8], 4
      %s63 = int_to_ptr.vmem [resolvable:$true] %s62
      %65 = dma.hbm_to_vmem [thread:$0]  %s3, 64, %s63, [#allocation9]
    $region17: #{tpu_custom_call.1} parent=1 // pred_fallthru
      _
    // Predicated region
    $region18: #{tpu_custom_call.1} parent=1 // pred_check
      _
    $region19: #{tpu_custom_call.1} parent=1 // pred_check_branch
      %67 = sbr.rel (0) target = $region21
    $region20: #{tpu_custom_call.1} parent=1 // pred_region
      %s69 = ssub.s32 64, 64
      %70 = vsyncadd [#allocation9], %s69
      %s72 = sshll.u32 [#allocation10], 4
      %s73 = int_to_ptr.vmem [resolvable:$true] %s72
      %75 = dma.hbm_to_vmem [thread:$0]  %s4, 64, %s73, [#allocation9]
    $region21: #{tpu_custom_call.1} parent=1 // pred_fallthru
      _
    // Predicated region
    $region22: #{tpu_custom_call.1} parent=1 // pred_check
      _
    $region23: #{tpu_custom_call.1} parent=1 // pred_check_branch
      %77 = sbr.rel (0) target = $region25
    $region24: #{tpu_custom_call.1} parent=1 // pred_region
      %s79 = ssub.s32 24576, 24576
      %80 = vsyncadd [#allocation12], %s79
      %s81 = sshll.u32 [#allocation11], 4
      %s82 = int_to_ptr.vmem [resolvable:$true] %s81
      %87 = dma.hbm_to_vmem [thread:$0]  %s5, 24576, %s82, [#allocation12], 256, 256, 16
    $region25: #{tpu_custom_call.1} parent=1 // pred_fallthru
      _
    // Predicated region
    $region26: #{tpu_custom_call.1} parent=1 // pred_check
      _
    $region27: #{tpu_custom_call.1} parent=1 // pred_check_branch
      %89 = sbr.rel (0) target = $region29
    $region28: #{tpu_custom_call.1} parent=1 // pred_region
      %s91 = ssub.s32 49152, 49152
      %92 = vsyncadd [#allocation12], %s91
      %s93 = sshll.u32 [#allocation13], 4
      %s94 = int_to_ptr.vmem [resolvable:$true] %s93
      %99 = dma.hbm_to_vmem [thread:$0]  %s6, 49152, %s94, [#allocation12], 256, 256, 16
    $region29: #{tpu_custom_call.1} parent=1 // pred_fallthru
      _
    // Predicated region
    $region30: #{tpu_custom_call.1} parent=1 // pred_check
      _
    $region31: #{tpu_custom_call.1} parent=1 // pred_check_branch
      %101 = sbr.rel (0) target = $region33
    $region32: #{tpu_custom_call.1} parent=1 // pred_region
      %s103 = ssub.s32 8192, 8192
      %104 = vsyncadd [#allocation15], %s103
      %s105 = sshll.u32 [#allocation14], 4
      %s106 = int_to_ptr.vmem [resolvable:$true] %s105
      %111 = dma.hbm_to_vmem [thread:$0]  %s7, 8192, %s106, [#allocation15], 256, 256, 16
    $region33: #{tpu_custom_call.1} parent=1 // pred_fallthru
      _
    // Predicated region
    $region34: #{tpu_custom_call.1} parent=1 // pred_check
      _
    $region35: #{tpu_custom_call.1} parent=1 // pred_check_branch
      %113 = sbr.rel (0) target = $region37
    $region36: #{tpu_custom_call.1} parent=1 // pred_region
      _
    $region37: #{tpu_custom_call.1} parent=1 // pred_fallthru
      _
    // Predicated region
    $region38: #{tpu_custom_call.1} parent=1 // pred_check
      _
    $region39: #{tpu_custom_call.1} parent=1 // pred_check_branch
      %115 = sbr.rel (0) target = $region41
    $region40: #{tpu_custom_call.1} parent=1 // pred_region
      %s117 = ssub.s32 16, 16
      %118 = vsyncadd [#allocation15], %s117
      %s120 = sshll.u32 [#allocation16], 4
      %s121 = int_to_ptr.vmem [resolvable:$true] %s120
      %123 = dma.hbm_to_vmem [thread:$0]  %s9, 16, %s121, [#allocation15]
    $region41: #{tpu_custom_call.1} parent=1 // pred_fallthru
      _
    // Predicated region
    $region42: #{tpu_custom_call.1} parent=1 // pred_check
      _
    $region43: #{tpu_custom_call.1} parent=1 // pred_check_branch
      %125 = sbr.rel (0) target = $region45
    $region44: #{tpu_custom_call.1} parent=1 // pred_region
      %s127 = ssub.s32 512, 512
      %128 = vsyncadd [#allocation18], %s127
      %s130 = sshll.u32 [#allocation17], 4
      %s131 = int_to_ptr.vmem [resolvable:$true] %s130
      %133 = dma.hbm_to_vmem [thread:$0]  %s10, 512, %s131, [#allocation18]
    $region45: #{tpu_custom_call.1} parent=1 // pred_fallthru
      _
    // Predicated region
    $region46: #{tpu_custom_call.1} parent=1 // pred_check
      _
    $region47: #{tpu_custom_call.1} parent=1 // pred_check_branch
      %135 = sbr.rel (0) target = $region49
    $region48: #{tpu_custom_call.1} parent=1 // pred_region
      %s137 = ssub.s32 64, 64
      %138 = vsyncadd [#allocation18], %s137
      %s140 = sshll.u32 [#allocation19], 4
      %s141 = int_to_ptr.vmem [resolvable:$true] %s140
      %143 = dma.hbm_to_vmem [thread:$0]  %s11, 64, %s141, [#allocation18]
    $region49: #{tpu_custom_call.1} parent=1 // pred_fallthru
      _
    // Predicated region
    $region50: #{tpu_custom_call.1} parent=1 // pred_check
      _
    $region51: #{tpu_custom_call.1} parent=1 // pred_check_branch
      %145 = sbr.rel (0) target = $region53
    $region52: #{tpu_custom_call.1} parent=1 // pred_region
      %146 = dma.done [#allocation3], 1024
    $region53: #{tpu_custom_call.1} parent=1 // pred_fallthru
      _
    // Predicated region
    $region54: #{tpu_custom_call.1} parent=1 // pred_check
      _
    $region55: #{tpu_custom_call.1} parent=1 // pred_check_branch
      %148 = sbr.rel (0) target = $region57
    $region56: #{tpu_custom_call.1} parent=1 // pred_region
      %149 = dma.done [#allocation6], 32
    $region57: #{tpu_custom_call.1} parent=1 // pred_fallthru
      _
    // Predicated region
    $region58: #{tpu_custom_call.1} parent=1 // pred_check
      _
    $region59: #{tpu_custom_call.1} parent=1 // pred_check_branch
      %151 = sbr.rel (0) target = $region61
    $region60: #{tpu_custom_call.1} parent=1 // pred_region
      %152 = dma.done [#allocation6], 32
    $region61: #{tpu_custom_call.1} parent=1 // pred_fallthru
      _
    // Predicated region
    $region62: #{tpu_custom_call.1} parent=1 // pred_check
      _
    $region63: #{tpu_custom_call.1} parent=1 // pred_check_branch
      %154 = sbr.rel (0) target = $region65
    $region64: #{tpu_custom_call.1} parent=1 // pred_region
      %155 = dma.done [#allocation9], 64
    $region65: #{tpu_custom_call.1} parent=1 // pred_fallthru
      _
    // Predicated region
    $region66: #{tpu_custom_call.1} parent=1 // pred_check
      _
    $region67: #{tpu_custom_call.1} parent=1 // pred_check_branch
      %157 = sbr.rel (0) target = $region69
    $region68: #{tpu_custom_call.1} parent=1 // pred_region
      %158 = dma.done [#allocation9], 64
    $region69: #{tpu_custom_call.1} parent=1 // pred_fallthru
      _
    // Predicated region
    $region70: #{tpu_custom_call.1} parent=1 // pred_check
      _
    $region71: #{tpu_custom_call.1} parent=1 // pred_check_branch
      %160 = sbr.rel (0) target = $region73
    $region72: #{tpu_custom_call.1} parent=1 // pred_region
      %161 = dma.done [#allocation12], 24576
    $region73: #{tpu_custom_call.1} parent=1 // pred_fallthru
      _
    // Predicated region
    $region74: #{tpu_custom_call.1} parent=1 // pred_check
      _
    $region75: #{tpu_custom_call.1} parent=1 // pred_check_branch
      %163 = sbr.rel (0) target = $region77
    $region76: #{tpu_custom_call.1} parent=1 // pred_region
      %164 = dma.done [#allocation12], 49152
    $region77: #{tpu_custom_call.1} parent=1 // pred_fallthru
      _
    // Predicated region
    $region78: #{tpu_custom_call.1} parent=1 // pred_check
      _
    $region79: #{tpu_custom_call.1} parent=1 // pred_check_branch
      %166 = sbr.rel (0) target = $region81
    $region80: #{tpu_custom_call.1} parent=1 // pred_region
      %167 = dma.done [#allocation15], 8192
    $region81: #{tpu_custom_call.1} parent=1 // pred_fallthru
      _
    // Predicated region
    $region82: #{tpu_custom_call.1} parent=1 // pred_check
      _
    $region83: #{tpu_custom_call.1} parent=1 // pred_check_branch
      %169 = sbr.rel (0) target = $region85
    $region84: #{tpu_custom_call.1} parent=1 // pred_region
      %170 = dma.done [#allocation15], 16
    $region85: #{tpu_custom_call.1} parent=1 // pred_fallthru
      _
    // Predicated region
    $region86: #{tpu_custom_call.1} parent=1 // pred_check
      _
    $region87: #{tpu_custom_call.1} parent=1 // pred_check_branch
      %172 = sbr.rel (0) target = $region89
    $region88: #{tpu_custom_call.1} parent=1 // pred_region
      %173 = dma.done [#allocation18], 512
    $region89: #{tpu_custom_call.1} parent=1 // pred_fallthru
      _
    // Predicated region
    $region90: #{tpu_custom_call.1} parent=1 // pred_check
      _
    $region91: #{tpu_custom_call.1} parent=1 // pred_check_branch
      %175 = sbr.rel (0) target = $region93
    $region92: #{tpu_custom_call.1} parent=1 // pred_region
      %176 = dma.done [#allocation18], 64
    $region93: #{tpu_custom_call.1} parent=1 // pred_fallthru
      _
    %v180 = vld [vmem:[#allocation2] sm:$0xff]
    %v181 = vld [vmem:[#allocation2 + $0x8] sm:$0xff]
    %v182 = vld [vmem:[#allocation2 + $0x10] sm:$0xff]
    %v183 = vld [vmem:[#allocation2 + $0x18] sm:$0xff]
    %v184 = vld [vmem:[#allocation2 + $0x20] sm:$0xff]
    %v185 = vld [vmem:[#allocation2 + $0x28] sm:$0xff]
    %v186 = vld [vmem:[#allocation2 + $0x30] sm:$0xff]
    %v187 = vld [vmem:[#allocation2 + $0x38] sm:$0xff]
    %v188 = vld [vmem:[#allocation5] sm:$0x3]
    %v190 = vlaneseq
    %v191 = vshrl.u32 %v190, 7
    %v192 = vsub.s32 0, %v191
    %v193 = vrot.slane %v188, %v192
    %v194 = vlaneseq
    %v195 = vshrl.u32 %v194, 7
    %v196 = vsub.s32 1, %v195
    %v197 = vrot.slane %v188, %v196
    %v200 = vmul.f32 %v180, %v193
    %v201 = vmul.f32 %v181, %v197
    %v202 = vmul.f32 %v182, %v193
    %v203 = vmul.f32 %v183, %v197
    %v204 = vmul.f32 %v184, %v193
    %v205 = vmul.f32 %v185, %v197
    %v206 = vmul.f32 %v186, %v193
    %v207 = vmul.f32 %v187, %v197
    %v208 = vld [vmem:[#allocation7] sm:$0x3]
    %v210 = vlaneseq
    %v211 = vshrl.u32 %v210, 7
    %v212 = vsub.s32 0, %v211
    %v213 = vrot.slane %v208, %v212
    %v214 = vlaneseq
    %v215 = vshrl.u32 %v214, 7
    %v216 = vsub.s32 1, %v215
    %v217 = vrot.slane %v208, %v216
    %v220 = vadd.f32 %v200, %v213
    %v221 = vadd.f32 %v201, %v217
    %v222 = vadd.f32 %v202, %v213
    %v223 = vadd.f32 %v203, %v217
    %v224 = vadd.f32 %v204, %v213
    %v225 = vadd.f32 %v205, %v217
    %v226 = vadd.f32 %v206, %v213
    %v227 = vadd.f32 %v207, %v217
    %v228 = vmax.f32 %v220, 0.0
    %v229 = vmax.f32 %v221, 0.0
    %v230 = vmax.f32 %v222, 0.0
    %v231 = vmax.f32 %v223, 0.0
    %v232 = vmax.f32 %v224, 0.0
    %v233 = vmax.f32 %v225, 0.0
    %v234 = vmax.f32 %v226, 0.0
    %v235 = vmax.f32 %v227, 0.0
    %v236 = vpack.c.bf16 %v230, %v228
    %v237 = vpack.c.bf16 %v231, %v229
    %v238 = vpack.c.bf16 %v234, %v232
    %v239 = vpack.c.bf16 %v235, %v233
    %v240 = vld [vmem:[#allocation14] sm:$0xff]
    %v241 = vld [vmem:[#allocation14 + $0x8] sm:$0xff]
    %v242 = vld [vmem:[#allocation14 + $0x10] sm:$0xff]
    %v243 = vld [vmem:[#allocation14 + $0x18] sm:$0xff]
    %v244 = vld [vmem:[#allocation14 + $0x20] sm:$0xff]
    %v245 = vld [vmem:[#allocation14 + $0x28] sm:$0xff]
    %v246 = vld [vmem:[#allocation14 + $0x30] sm:$0xff]
    %v247 = vld [vmem:[#allocation14 + $0x38] sm:$0xff]
    %v248 = vld [vmem:[#allocation14 + $0x40] sm:$0xff]
    %v249 = vld [vmem:[#allocation14 + $0x48] sm:$0xff]
    %v250 = vld [vmem:[#allocation14 + $0x50] sm:$0xff]
    %v251 = vld [vmem:[#allocation14 + $0x58] sm:$0xff]
    %v252 = vld [vmem:[#allocation14 + $0x60] sm:$0xff]
    %v253 = vld [vmem:[#allocation14 + $0x68] sm:$0xff]
    %v254 = vld [vmem:[#allocation14 + $0x70] sm:$0xff]
    %v255 = vld [vmem:[#allocation14 + $0x78] sm:$0xff]
    %v256 = vld [vmem:[#allocation14 + $0x80] sm:$0xff]
    %v257 = vld [vmem:[#allocation14 + $0x88] sm:$0xff]
    %v258 = vld [vmem:[#allocation14 + $0x90] sm:$0xff]
    %v259 = vld [vmem:[#allocation14 + $0x98] sm:$0xff]
    %v260 = vld [vmem:[#allocation14 + $0xa0] sm:$0xff]
    %v261 = vld [vmem:[#allocation14 + $0xa8] sm:$0xff]
    %v262 = vld [vmem:[#allocation14 + $0xb0] sm:$0xff]
    %v263 = vld [vmem:[#allocation14 + $0xb8] sm:$0xff]
    %v264 = vld [vmem:[#allocation14 + $0xc0] sm:$0xff]
    %v265 = vld [vmem:[#allocation14 + $0xc8] sm:$0xff]
    %v266 = vld [vmem:[#allocation14 + $0xd0] sm:$0xff]
    %v267 = vld [vmem:[#allocation14 + $0xd8] sm:$0xff]
    %v268 = vld [vmem:[#allocation14 + $0xe0] sm:$0xff]
    %v269 = vld [vmem:[#allocation14 + $0xe8] sm:$0xff]
    %v270 = vld [vmem:[#allocation14 + $0xf0] sm:$0xff]
    %v271 = vld [vmem:[#allocation14 + $0xf8] sm:$0xff]
    %v272 = vld [vmem:[#allocation14 + $0x100] sm:$0xff]
    %v273 = vld [vmem:[#allocation14 + $0x108] sm:$0xff]
    %v274 = vld [vmem:[#allocation14 + $0x110] sm:$0xff]
    %v275 = vld [vmem:[#allocation14 + $0x118] sm:$0xff]
    %v276 = vld [vmem:[#allocation14 + $0x120] sm:$0xff]
    %v277 = vld [vmem:[#allocation14 + $0x128] sm:$0xff]
    %v278 = vld [vmem:[#allocation14 + $0x130] sm:$0xff]
    %v279 = vld [vmem:[#allocation14 + $0x138] sm:$0xff]
    %v280 = vld [vmem:[#allocation14 + $0x140] sm:$0xff]
    %v281 = vld [vmem:[#allocation14 + $0x148] sm:$0xff]
    %v282 = vld [vmem:[#allocation14 + $0x150] sm:$0xff]
    %v283 = vld [vmem:[#allocation14 + $0x158] sm:$0xff]
    %v284 = vld [vmem:[#allocation14 + $0x160] sm:$0xff]
    %v285 = vld [vmem:[#allocation14 + $0x168] sm:$0xff]
    %v286 = vld [vmem:[#allocation14 + $0x170] sm:$0xff]
    %v287 = vld [vmem:[#allocation14 + $0x178] sm:$0xff]
    %v288 = vld [vmem:[#allocation14 + $0x180] sm:$0xff]
    %v289 = vld [vmem:[#allocation14 + $0x188] sm:$0xff]
    %v290 = vld [vmem:[#allocation14 + $0x190] sm:$0xff]
    %v291 = vld [vmem:[#allocation14 + $0x198] sm:$0xff]
    %v292 = vld [vmem:[#allocation14 + $0x1a0] sm:$0xff]
    %v293 = vld [vmem:[#allocation14 + $0x1a8] sm:$0xff]
    %v294 = vld [vmem:[#allocation14 + $0x1b0] sm:$0xff]
    %v295 = vld [vmem:[#allocation14 + $0x1b8] sm:$0xff]
    %v296 = vld [vmem:[#allocation14 + $0x1c0] sm:$0xff]
    %v297 = vld [vmem:[#allocation14 + $0x1c8] sm:$0xff]
    %v298 = vld [vmem:[#allocation14 + $0x1d0] sm:$0xff]
    %v299 = vld [vmem:[#allocation14 + $0x1d8] sm:$0xff]
    %v300 = vld [vmem:[#allocation14 + $0x1e0] sm:$0xff]
    %v301 = vld [vmem:[#allocation14 + $0x1e8] sm:$0xff]
    %v302 = vld [vmem:[#allocation14 + $0x1f0] sm:$0xff]
    %v303 = vld [vmem:[#allocation14 + $0x1f8] sm:$0xff]
    %v368 = vunpack.c.l.b16 %v240
    %v369 = vunpack.c.h.b16 %v240
    %v370 = vunpack.c.l.b16 %v241
    %v371 = vunpack.c.h.b16 %v241
    %v372 = vunpack.c.l.b16 %v242
    %v373 = vunpack.c.h.b16 %v242
    %v374 = vunpack.c.l.b16 %v243
    %v375 = vunpack.c.h.b16 %v243
    %v376 = vunpack.c.l.b16 %v244
    %v377 = vunpack.c.h.b16 %v244
    %v378 = vunpack.c.l.b16 %v245
    %v379 = vunpack.c.h.b16 %v245
    %v380 = vunpack.c.l.b16 %v246
    %v381 = vunpack.c.h.b16 %v246
    %v382 = vunpack.c.l.b16 %v247
    %v383 = vunpack.c.h.b16 %v247
    %v384 = vunpack.c.l.b16 %v248
    %v385 = vunpack.c.h.b16 %v248
    %v386 = vunpack.c.l.b16 %v249
    %v387 = vunpack.c.h.b16 %v249
    %v388 = vunpack.c.l.b16 %v250
    %v389 = vunpack.c.h.b16 %v250
    %v390 = vunpack.c.l.b16 %v251
    %v391 = vunpack.c.h.b16 %v251
    %v392 = vunpack.c.l.b16 %v252
    %v393 = vunpack.c.h.b16 %v252
    %v394 = vunpack.c.l.b16 %v253
    %v395 = vunpack.c.h.b16 %v253
    %v396 = vunpack.c.l.b16 %v254
    %v397 = vunpack.c.h.b16 %v254
    %v398 = vunpack.c.l.b16 %v255
    %v399 = vunpack.c.h.b16 %v255
    %v400 = vunpack.c.l.b16 %v256
    %v401 = vunpack.c.h.b16 %v256
    %v402 = vunpack.c.l.b16 %v257
    %v403 = vunpack.c.h.b16 %v257
    %v404 = vunpack.c.l.b16 %v258
    %v405 = vunpack.c.h.b16 %v258
    %v406 = vunpack.c.l.b16 %v259
    %v407 = vunpack.c.h.b16 %v259
    %v408 = vunpack.c.l.b16 %v260
    %v409 = vunpack.c.h.b16 %v260
    %v410 = vunpack.c.l.b16 %v261
    %v411 = vunpack.c.h.b16 %v261
    %v412 = vunpack.c.l.b16 %v262
    %v413 = vunpack.c.h.b16 %v262
    %v414 = vunpack.c.l.b16 %v263
    %v415 = vunpack.c.h.b16 %v263
    %v416 = vunpack.c.l.b16 %v264
    %v417 = vunpack.c.h.b16 %v264
    %v418 = vunpack.c.l.b16 %v265
    %v419 = vunpack.c.h.b16 %v265
    %v420 = vunpack.c.l.b16 %v266
    %v421 = vunpack.c.h.b16 %v266
    %v422 = vunpack.c.l.b16 %v267
    %v423 = vunpack.c.h.b16 %v267
    %v424 = vunpack.c.l.b16 %v268
    %v425 = vunpack.c.h.b16 %v268
    %v426 = vunpack.c.l.b16 %v269
    %v427 = vunpack.c.h.b16 %v269
    %v428 = vunpack.c.l.b16 %v270
    %v429 = vunpack.c.h.b16 %v270
    %v430 = vunpack.c.l.b16 %v271
    %v431 = vunpack.c.h.b16 %v271
    %v432 = vunpack.c.l.b16 %v272
    %v433 = vunpack.c.h.b16 %v272
    %v434 = vunpack.c.l.b16 %v273
    %v435 = vunpack.c.h.b16 %v273
    %v436 = vunpack.c.l.b16 %v274
    %v437 = vunpack.c.h.b16 %v274
    %v438 = vunpack.c.l.b16 %v275
    %v439 = vunpack.c.h.b16 %v275
    %v440 = vunpack.c.l.b16 %v276
    %v441 = vunpack.c.h.b16 %v276
    %v442 = vunpack.c.l.b16 %v277
    %v443 = vunpack.c.h.b16 %v277
    %v444 = vunpack.c.l.b16 %v278
    %v445 = vunpack.c.h.b16 %v278
    %v446 = vunpack.c.l.b16 %v279
    %v447 = vunpack.c.h.b16 %v279
    %v448 = vunpack.c.l.b16 %v280
    %v449 = vunpack.c.h.b16 %v280
    %v450 = vunpack.c.l.b16 %v281
    %v451 = vunpack.c.h.b16 %v281
    %v452 = vunpack.c.l.b16 %v282
    %v453 = vunpack.c.h.b16 %v282
    %v454 = vunpack.c.l.b16 %v283
    %v455 = vunpack.c.h.b16 %v283
    %v456 = vunpack.c.l.b16 %v284
    %v457 = vunpack.c.h.b16 %v284
    %v458 = vunpack.c.l.b16 %v285
    %v459 = vunpack.c.h.b16 %v285
    %v460 = vunpack.c.l.b16 %v286
    %v461 = vunpack.c.h.b16 %v286
    %v462 = vunpack.c.l.b16 %v287
    %v463 = vunpack.c.h.b16 %v287
    %v464 = vunpack.c.l.b16 %v288
    %v465 = vunpack.c.h.b16 %v288
    %v466 = vunpack.c.l.b16 %v289
    %v467 = vunpack.c.h.b16 %v289
    %v468 = vunpack.c.l.b16 %v290
    %v469 = vunpack.c.h.b16 %v290
    %v470 = vunpack.c.l.b16 %v291
    %v471 = vunpack.c.h.b16 %v291
    %v472 = vunpack.c.l.b16 %v292
    %v473 = vunpack.c.h.b16 %v292
    %v474 = vunpack.c.l.b16 %v293
    %v475 = vunpack.c.h.b16 %v293
    %v476 = vunpack.c.l.b16 %v294
    %v477 = vunpack.c.h.b16 %v294
    %v478 = vunpack.c.l.b16 %v295
    %v479 = vunpack.c.h.b16 %v295
    %v480 = vunpack.c.l.b16 %v296
    %v481 = vunpack.c.h.b16 %v296
    %v482 = vunpack.c.l.b16 %v297
    %v483 = vunpack.c.h.b16 %v297
    %v484 = vunpack.c.l.b16 %v298
    %v485 = vunpack.c.h.b16 %v298
    %v486 = vunpack.c.l.b16 %v299
    %v487 = vunpack.c.h.b16 %v299
    %v488 = vunpack.c.l.b16 %v300
    %v489 = vunpack.c.h.b16 %v300
    %v490 = vunpack.c.l.b16 %v301
    %v491 = vunpack.c.h.b16 %v301
    %v492 = vunpack.c.l.b16 %v302
    %v493 = vunpack.c.h.b16 %v302
    %v494 = vunpack.c.l.b16 %v303
    %v495 = vunpack.c.h.b16 %v303
    %v496 = vpack.c.b16 %v372, %v368
    %v497 = vpack.c.b16 %v373, %v369
    %v498 = vpack.c.b16 %v374, %v370
    %v499 = vpack.c.b16 %v375, %v371
    %v500 = vpack.c.b16 %v380, %v376
    %v501 = vpack.c.b16 %v381, %v377
    %v502 = vpack.c.b16 %v382, %v378
    %v503 = vpack.c.b16 %v383, %v379
    %v504 = vpack.c.b16 %v388, %v384
    %v505 = vpack.c.b16 %v389, %v385
    %v506 = vpack.c.b16 %v390, %v386
    %v507 = vpack.c.b16 %v391, %v387
    %v508 = vpack.c.b16 %v396, %v392
    %v509 = vpack.c.b16 %v397, %v393
    %v510 = vpack.c.b16 %v398, %v394
    %v511 = vpack.c.b16 %v399, %v395
    %v512 = vpack.c.b16 %v404, %v400
    %v513 = vpack.c.b16 %v405, %v401
    %v514 = vpack.c.b16 %v406, %v402
    %v515 = vpack.c.b16 %v407, %v403
    %v516 = vpack.c.b16 %v412, %v408
    %v517 = vpack.c.b16 %v413, %v409
    %v518 = vpack.c.b16 %v414, %v410
    %v519 = vpack.c.b16 %v415, %v411
    %v520 = vpack.c.b16 %v420, %v416
    %v521 = vpack.c.b16 %v421, %v417
    %v522 = vpack.c.b16 %v422, %v418
    %v523 = vpack.c.b16 %v423, %v419
    %v524 = vpack.c.b16 %v428, %v424
    %v525 = vpack.c.b16 %v429, %v425
    %v526 = vpack.c.b16 %v430, %v426
    %v527 = vpack.c.b16 %v431, %v427
    %v528 = vpack.c.b16 %v436, %v432
    %v529 = vpack.c.b16 %v437, %v433
    %v530 = vpack.c.b16 %v438, %v434
    %v531 = vpack.c.b16 %v439, %v435
    %v532 = vpack.c.b16 %v444, %v440
    %v533 = vpack.c.b16 %v445, %v441
    %v534 = vpack.c.b16 %v446, %v442
    %v535 = vpack.c.b16 %v447, %v443
    %v536 = vpack.c.b16 %v452, %v448
    %v537 = vpack.c.b16 %v453, %v449
    %v538 = vpack.c.b16 %v454, %v450
    %v539 = vpack.c.b16 %v455, %v451
    %v540 = vpack.c.b16 %v460, %v456
    %v541 = vpack.c.b16 %v461, %v457
    %v542 = vpack.c.b16 %v462, %v458
    %v543 = vpack.c.b16 %v463, %v459
    %v544 = vpack.c.b16 %v468, %v464
    %v545 = vpack.c.b16 %v469, %v465
    %v546 = vpack.c.b16 %v470, %v466
    %v547 = vpack.c.b16 %v471, %v467
    %v548 = vpack.c.b16 %v476, %v472
    %v549 = vpack.c.b16 %v477, %v473
    %v550 = vpack.c.b16 %v478, %v474
    %v551 = vpack.c.b16 %v479, %v475
    %v552 = vpack.c.b16 %v484, %v480
    %v553 = vpack.c.b16 %v485, %v481
    %v554 = vpack.c.b16 %v486, %v482
    %v555 = vpack.c.b16 %v487, %v483
    %v556 = vpack.c.b16 %v492, %v488
    %v557 = vpack.c.b16 %v493, %v489
    %v558 = vpack.c.b16 %v494, %v490
    %v559 = vpack.c.b16 %v495, %v491
    %624 = vmatprep.subr.bf16.mxu0 %v497
    %625 = vmatpush1.bf16.msra.mxu0 %v496
    %626 = vmatprep.subr.bf16.mxu0 %v501
    %627 = vmatpush1.bf16.msra.mxu0 %v500
    %628 = vmatprep.subr.bf16.mxu0 %v505
    %629 = vmatpush1.bf16.msra.mxu0 %v504
    %630 = vmatprep.subr.bf16.mxu0 %v509
    %631 = vmatpush1.bf16.msra.mxu0 %v508
    %632 = vmatprep.subr.bf16.mxu0 %v513
    %633 = vmatpush1.bf16.msra.mxu0 %v512
    %634 = vmatprep.subr.bf16.mxu0 %v517
    %635 = vmatpush1.bf16.msra.mxu0 %v516
    %636 = vmatprep.subr.bf16.mxu0 %v521
    %637 = vmatpush1.bf16.msra.mxu0 %v520
    %638 = vmatprep.subr.bf16.mxu0 %v525
    %639 = vmatpush1.bf16.msra.mxu0 %v524
    %640 = vmatprep.subr.bf16.mxu0 %v529
    %641 = vmatpush1.bf16.msra.mxu0 %v528
    %642 = vmatprep.subr.bf16.mxu0 %v533
    %643 = vmatpush1.bf16.msra.mxu0 %v532
    %644 = vmatprep.subr.bf16.mxu0 %v537
    %645 = vmatpush1.bf16.msra.mxu0 %v536
    %646 = vmatprep.subr.bf16.mxu0 %v541
    %647 = vmatpush1.bf16.msra.mxu0 %v540
    %648 = vmatprep.subr.bf16.mxu0 %v545
    %649 = vmatpush1.bf16.msra.mxu0 %v544
    %650 = vmatprep.subr.bf16.mxu0 %v549
    %651 = vmatpush1.bf16.msra.mxu0 %v548
    %652 = vmatprep.subr.bf16.mxu0 %v553
    %653 = vmatpush1.bf16.msra.mxu0 %v552
    %654 = vmatprep.subr.bf16.mxu0 %v557
    %655 = vmatpush1.bf16.msra.mxu0 %v556
    %656 = vmatprep.mubr.bf16.mxu0 %v237
    %657 = vmatmul.mubr.bf16.gmra.mrb[0].mxu0 %v236
    %v658 = vpop.f32.mrb[0].mxu0
    %v659 = vadd.f32 0.0, %v658
    %v660 = vpop.f32.mrb[0].mxu0
    %v661 = vadd.f32 0.0, %v660
    %v662 = vpop.f32.mrb[0].mxu0
    %v663 = vadd.f32 0.0, %v662
    %v664 = vpop.f32.mrb[0].mxu0
    %v665 = vadd.f32 0.0, %v664
    %666 = vmatprep.mubr.bf16.mxu0 %v239
    %667 = vmatmul.mubr.bf16.gmra.mrb[0].mxu0 %v238
    %v668 = vpop.f32.mrb[0].mxu0
    %v669 = vadd.f32 0.0, %v668
    %v670 = vpop.f32.mrb[0].mxu0
    %v671 = vadd.f32 0.0, %v670
    %v672 = vpop.f32.mrb[0].mxu0
    %v673 = vadd.f32 0.0, %v672
    %v674 = vpop.f32.mrb[0].mxu0
    %v675 = vadd.f32 0.0, %v674
    %676 = vdwg.mxu0
    %677 = vmatprep.subr.bf16.mxu0 %v499
    %678 = vmatpush1.bf16.msra.mxu0 %v498
    %679 = vmatprep.subr.bf16.mxu0 %v503
    %680 = vmatpush1.bf16.msra.mxu0 %v502
    %681 = vmatprep.subr.bf16.mxu0 %v507
    %682 = vmatpush1.bf16.msra.mxu0 %v506
    %683 = vmatprep.subr.bf16.mxu0 %v511
    %684 = vmatpush1.bf16.msra.mxu0 %v510
    %685 = vmatprep.subr.bf16.mxu0 %v515
    %686 = vmatpush1.bf16.msra.mxu0 %v514
    %687 = vmatprep.subr.bf16.mxu0 %v519
    %688 = vmatpush1.bf16.msra.mxu0 %v518
    %689 = vmatprep.subr.bf16.mxu0 %v523
    %690 = vmatpush1.bf16.msra.mxu0 %v522
    %691 = vmatprep.subr.bf16.mxu0 %v527
    %692 = vmatpush1.bf16.msra.mxu0 %v526
    %693 = vmatprep.subr.bf16.mxu0 %v531
    %694 = vmatpush1.bf16.msra.mxu0 %v530
    %695 = vmatprep.subr.bf16.mxu0 %v535
    %696 = vmatpush1.bf16.msra.mxu0 %v534
    %697 = vmatprep.subr.bf16.mxu0 %v539
    %698 = vmatpush1.bf16.msra.mxu0 %v538
    %699 = vmatprep.subr.bf16.mxu0 %v543
    %700 = vmatpush1.bf16.msra.mxu0 %v542
    %701 = vmatprep.subr.bf16.mxu0 %v547
    %702 = vmatpush1.bf16.msra.mxu0 %v546
    %703 = vmatprep.subr.bf16.mxu0 %v551
    %704 = vmatpush1.bf16.msra.mxu0 %v550
    %705 = vmatprep.subr.bf16.mxu0 %v555
    %706 = vmatpush1.bf16.msra.mxu0 %v554
    %707 = vmatprep.subr.bf16.mxu0 %v559
    %708 = vmatpush1.bf16.msra.mxu0 %v558
    %709 = vmatprep.mubr.bf16.mxu0 %v237
    %710 = vmatmul.mubr.bf16.gmra.mrb[0].mxu0 %v236
    %v711 = vpop.f32.mrb[0].mxu0
    %v712 = vadd.f32 0.0, %v711
    %v713 = vpop.f32.mrb[0].mxu0
    %v714 = vadd.f32 0.0, %v713
    %v715 = vpop.f32.mrb[0].mxu0
    %v716 = vadd.f32 0.0, %v715
    %v717 = vpop.f32.mrb[0].mxu0
    %v718 = vadd.f32 0.0, %v717
    %719 = vmatprep.mubr.bf16.mxu0 %v239
    %720 = vmatmul.mubr.bf16.gmra.mrb[0].mxu0 %v238
    %v721 = vpop.f32.mrb[0].mxu0
    %v722 = vadd.f32 0.0, %v721
    %v723 = vpop.f32.mrb[0].mxu0
    %v724 = vadd.f32 0.0, %v723
    %v725 = vpop.f32.mrb[0].mxu0
    %v726 = vadd.f32 0.0, %v725
    %v727 = vpop.f32.mrb[0].mxu0
    %v728 = vadd.f32 0.0, %v727
    %729 = vdwg.mxu0
    %v730 = vlaneseq
    %v731 = vshrl.u32 %v730, 7
    %v732 = vadd.s32 %v731, 8
    %v733 = vadd.s32 %v731, 16
    %v734 = vadd.s32 %v731, 24
    %vm735 = vcmp.lt.s32.totalorder %v731, 0
    %v736 = vsub.s32 0, %v731
    %v737 = vsel %vm735, %v736, %v731
    %v738 = vshrl.u32 %v737, 4
    %v739 = vand.u32 %v737, 15
    %v740 = vsub.s32 0, %v739
    %v741 = vsel %vm735, %v740, %v739
    %vm742 = vcmp.lt.s32.totalorder %v732, 0
    %v743 = vsub.s32 0, %v732
    %v744 = vsel %vm742, %v743, %v732
    %v745 = vshrl.u32 %v744, 4
    %v746 = vand.u32 %v744, 15
    %v747 = vsub.s32 0, %v746
    %v748 = vsel %vm742, %v747, %v746
    %vm749 = vcmp.lt.s32.totalorder %v733, 0
    %v750 = vsub.s32 0, %v733
    %v751 = vsel %vm749, %v750, %v733
    %v752 = vshrl.u32 %v751, 4
    %v753 = vand.u32 %v751, 15
    %v754 = vsub.s32 0, %v753
    %v755 = vsel %vm749, %v754, %v753
    %vm756 = vcmp.lt.s32.totalorder %v734, 0
    %v757 = vsub.s32 0, %v734
    %v758 = vsel %vm756, %v757, %v734
    %v759 = vshrl.u32 %v758, 4
    %v760 = vand.u32 %v758, 15
    %v761 = vsub.s32 0, %v760
    %v762 = vsel %vm756, %v761, %v760
    %vm763 = vcmp.ne.s32.totalorder %v741, 0
    %vm764 = vcmp.ne.s32.totalorder %v748, 0
    %vm765 = vcmp.ne.s32.totalorder %v755, 0
    %vm766 = vcmp.ne.s32.totalorder %v762, 0
    %vm767 = vcmp.lt.s32.totalorder %v741, 0
    %vm768 = vcmp.lt.s32.totalorder %v748, 0
    %vm769 = vcmp.lt.s32.totalorder %v755, 0
    %vm770 = vcmp.lt.s32.totalorder %v762, 0
    %vm771 = vmand %vm767, %vm763
    %vm772 = vmand %vm768, %vm764
    %vm773 = vmand %vm769, %vm765
    %vm774 = vmand %vm770, %vm766
    %v775 = vadd.s32 %v741, 16
    %v776 = vadd.s32 %v748, 16
    %v777 = vadd.s32 %v755, 16
    %v778 = vadd.s32 %v762, 16
    %v779 = vsel %vm771, %v775, %v741
    %v780 = vsel %vm772, %v776, %v748
    %v781 = vsel %vm773, %v777, %v755
    %v782 = vsel %vm774, %v778, %v762
    %vm783 = vcmp.eq.s32.totalorder %v779, 0
    %vm784 = vcmp.eq.s32.totalorder %v780, 0
    %vm785 = vcmp.eq.s32.totalorder %v781, 0
    %vm786 = vcmp.eq.s32.totalorder %v782, 0
    %vm787 = vsmask.f32 256
    %v789 = vshrl.u32 %v236, 16
    %v791 = vrot.slane %v789, 7
    %v792 = vshll.u32 %v236, 16
    %v794 = vor.u32 %v791, %v792
    %v796 = vshrl.u32 %v237, 16
    %v798 = vrot.slane %v796, 7
    %v799 = vshll.u32 %v237, 16
    %v801 = vor.u32 %v798, %v799
    %v803 = vshrl.u32 %v238, 16
    %v805 = vrot.slane %v803, 7
    %v806 = vshll.u32 %v238, 16
    %v808 = vor.u32 %v805, %v806
    %v809 = vsel %vm787, %v791, %v808
    %v811 = vshrl.u32 %v239, 16
    %v813 = vrot.slane %v811, 7
    %v814 = vshll.u32 %v239, 16
    %v816 = vor.u32 %v813, %v814
    %v817 = vsel %vm787, %v798, %v816
    %vm822 = vcmask 1040384
    %vm823 = vmand %vm822, %vm787
    %v824 = vsel %vm823, 0, %v794
    %v825 = vsel %vm823, 0, %v801
    %v826 = vsel %vm783, 1, 0
    %v827 = vsel %vm784, 1, 0
    %v828 = vsel %vm785, 1, 0
    %v829 = vsel %vm786, 1, 0
    %vm830 = vcmp.eq.s32.totalorder %v826, 1
    %vm831 = vcmp.eq.s32.totalorder %v827, 1
    %vm832 = vcmp.eq.s32.totalorder %v828, 1
    %vm833 = vcmp.eq.s32.totalorder %v829, 1
    %vm834 = vmpackc.low %vm830, %vm830
    %vm835 = vmpackc.low %vm831, %vm831
    %vm836 = vmpackc.low %vm832, %vm832
    %vm837 = vmpackc.low %vm833, %vm833
    %v838 = vsel %vm834, 65537, 0
    %v839 = vsel %vm835, 65537, 0
    %v840 = vsel %vm836, 65537, 0
    %v841 = vsel %vm837, 65537, 0
    %v842 = vunpack.c.l.b16 %v838
    %v843 = vunpack.c.l.b16 %v839
    %v844 = vunpack.c.l.b16 %v840
    %v845 = vunpack.c.l.b16 %v841
    %v846 = vpack.c.b16 %v843, %v842
    %v847 = vpack.c.b16 %v845, %v844
    %vm848 = vcmp.ne.s16.totalorder %v846, 0
    %vm849 = vcmp.ne.s16.totalorder %v847, 0
    %v850 = vsel %vm848, 0, %v824
    %v851 = vsel %vm848, 0, %v825
    %v852 = vsel %vm849, 0, %v809
    %v853 = vsel %vm849, 0, %v817
    %vm854 = vcmp.eq.s32.totalorder %v779, 15
    %vm855 = vcmp.eq.s32.totalorder %v780, 15
    %vm856 = vcmp.eq.s32.totalorder %v781, 15
    %vm857 = vcmp.eq.s32.totalorder %v782, 15
    %vm858 = vsmask.f32 7424
    %v859 = vrot.slane %v792, 1
    %v860 = vor.u32 %v789, %v859
    %v861 = vrot.slane %v806, 1
    %v862 = vsel %vm858, %v860, %v861
    %v863 = vrot.slane %v799, 1
    %v864 = vor.u32 %v796, %v863
    %v865 = vrot.slane %v814, 1
    %v866 = vsel %vm858, %v864, %v865
    %v867 = vor.u32 %v803, %v861
    %v868 = vor.u32 %v811, %v865
    %vm873 = vcmask 1047552
    %vm874 = vmand %vm873, %vm858
    %v875 = vsel %vm874, %v867, 0
    %v876 = vsel %vm874, %v868, 0
    %v877 = vsel %vm854, 1, 0
    %v878 = vsel %vm855, 1, 0
    %v879 = vsel %vm856, 1, 0
    %v880 = vsel %vm857, 1, 0
    %vm881 = vcmp.eq.s32.totalorder %v877, 1
    %vm882 = vcmp.eq.s32.totalorder %v878, 1
    %vm883 = vcmp.eq.s32.totalorder %v879, 1
    %vm884 = vcmp.eq.s32.totalorder %v880, 1
    %vm885 = vmpackc.low %vm881, %vm881
    %vm886 = vmpackc.low %vm882, %vm882
    %vm887 = vmpackc.low %vm883, %vm883
    %vm888 = vmpackc.low %vm884, %vm884
    %v889 = vsel %vm885, 65537, 0
    %v890 = vsel %vm886, 65537, 0
    %v891 = vsel %vm887, 65537, 0
    %v892 = vsel %vm888, 65537, 0
    %v893 = vunpack.c.l.b16 %v889
    %v894 = vunpack.c.l.b16 %v890
    %v895 = vunpack.c.l.b16 %v891
    %v896 = vunpack.c.l.b16 %v892
    %v897 = vpack.c.b16 %v894, %v893
    %v898 = vpack.c.b16 %v896, %v895
    %vm899 = vcmp.ne.s16.totalorder %v897, 0
    %vm900 = vcmp.ne.s16.totalorder %v898, 0
    %v901 = vsel %vm899, 0, %v862
    %v902 = vsel %vm899, 0, %v866
    %v903 = vsel %vm900, 0, %v875
    %v904 = vsel %vm900, 0, %v876
    %v905 = vld [vmem:[#allocation11] sm:$0xff]
    %v906 = vld [vmem:[#allocation11 + $0x8] sm:$0xff]
    %v907 = vld [vmem:[#allocation11 + $0x10] sm:$0xff]
    %v908 = vld [vmem:[#allocation11 + $0x18] sm:$0xff]
    %v909 = vld [vmem:[#allocation11 + $0x20] sm:$0xff]
    %v910 = vld [vmem:[#allocation11 + $0x28] sm:$0xff]
    %v911 = vld [vmem:[#allocation11 + $0x30] sm:$0xff]
    %v912 = vld [vmem:[#allocation11 + $0x38] sm:$0xff]
    %v913 = vld [vmem:[#allocation11 + $0x40] sm:$0xff]
    %v914 = vld [vmem:[#allocation11 + $0x48] sm:$0xff]
    %v915 = vld [vmem:[#allocation11 + $0x50] sm:$0xff]
    %v916 = vld [vmem:[#allocation11 + $0x58] sm:$0xff]
    %v917 = vld [vmem:[#allocation11 + $0x60] sm:$0xff]
    %v918 = vld [vmem:[#allocation11 + $0x68] sm:$0xff]
    %v919 = vld [vmem:[#allocation11 + $0x70] sm:$0xff]
    %v920 = vld [vmem:[#allocation11 + $0x78] sm:$0xff]
    %v921 = vld [vmem:[#allocation11 + $0x80] sm:$0xff]
    %v922 = vld [vmem:[#allocation11 + $0x88] sm:$0xff]
    %v923 = vld [vmem:[#allocation11 + $0x90] sm:$0xff]
    %v924 = vld [vmem:[#allocation11 + $0x98] sm:$0xff]
    %v925 = vld [vmem:[#allocation11 + $0xa0] sm:$0xff]
    %v926 = vld [vmem:[#allocation11 + $0xa8] sm:$0xff]
    %v927 = vld [vmem:[#allocation11 + $0xb0] sm:$0xff]
    %v928 = vld [vmem:[#allocation11 + $0xb8] sm:$0xff]
    %v929 = vld [vmem:[#allocation11 + $0xc0] sm:$0xff]
    %v930 = vld [vmem:[#allocation11 + $0xc8] sm:$0xff]
    %v931 = vld [vmem:[#allocation11 + $0xd0] sm:$0xff]
    %v932 = vld [vmem:[#allocation11 + $0xd8] sm:$0xff]
    %v933 = vld [vmem:[#allocation11 + $0xe0] sm:$0xff]
    %v934 = vld [vmem:[#allocation11 + $0xe8] sm:$0xff]
    %v935 = vld [vmem:[#allocation11 + $0xf0] sm:$0xff]
    %v936 = vld [vmem:[#allocation11 + $0xf8] sm:$0xff]
    %v937 = vld [vmem:[#allocation11 + $0x100] sm:$0xff]
    %v938 = vld [vmem:[#allocation11 + $0x108] sm:$0xff]
    %v939 = vld [vmem:[#allocation11 + $0x110] sm:$0xff]
    %v940 = vld [vmem:[#allocation11 + $0x118] sm:$0xff]
    %v941 = vld [vmem:[#allocation11 + $0x120] sm:$0xff]
    %v942 = vld [vmem:[#allocation11 + $0x128] sm:$0xff]
    %v943 = vld [vmem:[#allocation11 + $0x130] sm:$0xff]
    %v944 = vld [vmem:[#allocation11 + $0x138] sm:$0xff]
    %v945 = vld [vmem:[#allocation11 + $0x140] sm:$0xff]
    %v946 = vld [vmem:[#allocation11 + $0x148] sm:$0xff]
    %v947 = vld [vmem:[#allocation11 + $0x150] sm:$0xff]
    %v948 = vld [vmem:[#allocation11 + $0x158] sm:$0xff]
    %v949 = vld [vmem:[#allocation11 + $0x160] sm:$0xff]
    %v950 = vld [vmem:[#allocation11 + $0x168] sm:$0xff]
    %v951 = vld [vmem:[#allocation11 + $0x170] sm:$0xff]
    %v952 = vld [vmem:[#allocation11 + $0x178] sm:$0xff]
    %v953 = vld [vmem:[#allocation11 + $0x180] sm:$0xff]
    %v954 = vld [vmem:[#allocation11 + $0x188] sm:$0xff]
    %v955 = vld [vmem:[#allocation11 + $0x190] sm:$0xff]
    %v956 = vld [vmem:[#allocation11 + $0x198] sm:$0xff]
    %v957 = vld [vmem:[#allocation11 + $0x1a0] sm:$0xff]
    %v958 = vld [vmem:[#allocation11 + $0x1a8] sm:$0xff]
    %v959 = vld [vmem:[#allocation11 + $0x1b0] sm:$0xff]
    %v960 = vld [vmem:[#allocation11 + $0x1b8] sm:$0xff]
    %v961 = vld [vmem:[#allocation11 + $0x1c0] sm:$0xff]
    %v962 = vld [vmem:[#allocation11 + $0x1c8] sm:$0xff]
    %v963 = vld [vmem:[#allocation11 + $0x1d0] sm:$0xff]
    %v964 = vld [vmem:[#allocation11 + $0x1d8] sm:$0xff]
    %v965 = vld [vmem:[#allocation11 + $0x1e0] sm:$0xff]
    %v966 = vld [vmem:[#allocation11 + $0x1e8] sm:$0xff]
    %v967 = vld [vmem:[#allocation11 + $0x1f0] sm:$0xff]
    %v968 = vld [vmem:[#allocation11 + $0x1f8] sm:$0xff]
    %v969 = vld [vmem:[#allocation11 + $0x200] sm:$0xff]
    %v970 = vld [vmem:[#allocation11 + $0x208] sm:$0xff]
    %v971 = vld [vmem:[#allocation11 + $0x210] sm:$0xff]
    %v972 = vld [vmem:[#allocation11 + $0x218] sm:$0xff]
    %v973 = vld [vmem:[#allocation11 + $0x220] sm:$0xff]
    %v974 = vld [vmem:[#allocation11 + $0x228] sm:$0xff]
    %v975 = vld [vmem:[#allocation11 + $0x230] sm:$0xff]
    %v976 = vld [vmem:[#allocation11 + $0x238] sm:$0xff]
    %v977 = vld [vmem:[#allocation11 + $0x240] sm:$0xff]
    %v978 = vld [vmem:[#allocation11 + $0x248] sm:$0xff]
    %v979 = vld [vmem:[#allocation11 + $0x250] sm:$0xff]
    %v980 = vld [vmem:[#allocation11 + $0x258] sm:$0xff]
    %v981 = vld [vmem:[#allocation11 + $0x260] sm:$0xff]
    %v982 = vld [vmem:[#allocation11 + $0x268] sm:$0xff]
    %v983 = vld [vmem:[#allocation11 + $0x270] sm:$0xff]
    %v984 = vld [vmem:[#allocation11 + $0x278] sm:$0xff]
    %v985 = vld [vmem:[#allocation11 + $0x280] sm:$0xff]
    %v986 = vld [vmem:[#allocation11 + $0x288] sm:$0xff]
    %v987 = vld [vmem:[#allocation11 + $0x290] sm:$0xff]
    %v988 = vld [vmem:[#allocation11 + $0x298] sm:$0xff]
    %v989 = vld [vmem:[#allocation11 + $0x2a0] sm:$0xff]
    %v990 = vld [vmem:[#allocation11 + $0x2a8] sm:$0xff]
    %v991 = vld [vmem:[#allocation11 + $0x2b0] sm:$0xff]
    %v992 = vld [vmem:[#allocation11 + $0x2b8] sm:$0xff]
    %v993 = vld [vmem:[#allocation11 + $0x2c0] sm:$0xff]
    %v994 = vld [vmem:[#allocation11 + $0x2c8] sm:$0xff]
    %v995 = vld [vmem:[#allocation11 + $0x2d0] sm:$0xff]
    %v996 = vld [vmem:[#allocation11 + $0x2d8] sm:$0xff]
    %v997 = vld [vmem:[#allocation11 + $0x2e0] sm:$0xff]
    %v998 = vld [vmem:[#allocation11 + $0x2e8] sm:$0xff]
    %v999 = vld [vmem:[#allocation11 + $0x2f0] sm:$0xff]
    %v1000 = vld [vmem:[#allocation11 + $0x2f8] sm:$0xff]
    %v1001 = vld [vmem:[#allocation11 + $0x300] sm:$0xff]
    %v1002 = vld [vmem:[#allocation11 + $0x308] sm:$0xff]
    %v1003 = vld [vmem:[#allocation11 + $0x310] sm:$0xff]
    %v1004 = vld [vmem:[#allocation11 + $0x318] sm:$0xff]
    %v1005 = vld [vmem:[#allocation11 + $0x320] sm:$0xff]
    %v1006 = vld [vmem:[#allocation11 + $0x328] sm:$0xff]
    %v1007 = vld [vmem:[#allocation11 + $0x330] sm:$0xff]
    %v1008 = vld [vmem:[#allocation11 + $0x338] sm:$0xff]
    %v1009 = vld [vmem:[#allocation11 + $0x340] sm:$0xff]
    %v1010 = vld [vmem:[#allocation11 + $0x348] sm:$0xff]
    %v1011 = vld [vmem:[#allocation11 + $0x350] sm:$0xff]
    %v1012 = vld [vmem:[#allocation11 + $0x358] sm:$0xff]
    %v1013 = vld [vmem:[#allocation11 + $0x360] sm:$0xff]
    %v1014 = vld [vmem:[#allocation11 + $0x368] sm:$0xff]
    %v1015 = vld [vmem:[#allocation11 + $0x370] sm:$0xff]
    %v1016 = vld [vmem:[#allocation11 + $0x378] sm:$0xff]
    %v1017 = vld [vmem:[#allocation11 + $0x380] sm:$0xff]
    %v1018 = vld [vmem:[#allocation11 + $0x388] sm:$0xff]
    %v1019 = vld [vmem:[#allocation11 + $0x390] sm:$0xff]
    %v1020 = vld [vmem:[#allocation11 + $0x398] sm:$0xff]
    %v1021 = vld [vmem:[#allocation11 + $0x3a0] sm:$0xff]
    %v1022 = vld [vmem:[#allocation11 + $0x3a8] sm:$0xff]
    %v1023 = vld [vmem:[#allocation11 + $0x3b0] sm:$0xff]
    %v1024 = vld [vmem:[#allocation11 + $0x3b8] sm:$0xff]
    %v1025 = vld [vmem:[#allocation11 + $0x3c0] sm:$0xff]
    %v1026 = vld [vmem:[#allocation11 + $0x3c8] sm:$0xff]
    %v1027 = vld [vmem:[#allocation11 + $0x3d0] sm:$0xff]
    %v1028 = vld [vmem:[#allocation11 + $0x3d8] sm:$0xff]
    %v1029 = vld [vmem:[#allocation11 + $0x3e0] sm:$0xff]
    %v1030 = vld [vmem:[#allocation11 + $0x3e8] sm:$0xff]
    %v1031 = vld [vmem:[#allocation11 + $0x3f0] sm:$0xff]
    %v1032 = vld [vmem:[#allocation11 + $0x3f8] sm:$0xff]
    %v1033 = vld [vmem:[#allocation11 + $0x400] sm:$0xff]
    %v1034 = vld [vmem:[#allocation11 + $0x408] sm:$0xff]
    %v1035 = vld [vmem:[#allocation11 + $0x410] sm:$0xff]
    %v1036 = vld [vmem:[#allocation11 + $0x418] sm:$0xff]
    %v1037 = vld [vmem:[#allocation11 + $0x420] sm:$0xff]
    %v1038 = vld [vmem:[#allocation11 + $0x428] sm:$0xff]
    %v1039 = vld [vmem:[#allocation11 + $0x430] sm:$0xff]
    %v1040 = vld [vmem:[#allocation11 + $0x438] sm:$0xff]
    %v1041 = vld [vmem:[#allocation11 + $0x440] sm:$0xff]
    %v1042 = vld [vmem:[#allocation11 + $0x448] sm:$0xff]
    %v1043 = vld [vmem:[#allocation11 + $0x450] sm:$0xff]
    %v1044 = vld [vmem:[#allocation11 + $0x458] sm:$0xff]
    %v1045 = vld [vmem:[#allocation11 + $0x460] sm:$0xff]
    %v1046 = vld [vmem:[#allocation11 + $0x468] sm:$0xff]
    %v1047 = vld [vmem:[#allocation11 + $0x470] sm:$0xff]
    %v1048 = vld [vmem:[#allocation11 + $0x478] sm:$0xff]
    %v1049 = vld [vmem:[#allocation11 + $0x480] sm:$0xff]
    %v1050 = vld [vmem:[#allocation11 + $0x488] sm:$0xff]
    %v1051 = vld [vmem:[#allocation11 + $0x490] sm:$0xff]
    %v1052 = vld [vmem:[#allocation11 + $0x498] sm:$0xff]
    %v1053 = vld [vmem:[#allocation11 + $0x4a0] sm:$0xff]
    %v1054 = vld [vmem:[#allocation11 + $0x4a8] sm:$0xff]
    %v1055 = vld [vmem:[#allocation11 + $0x4b0] sm:$0xff]
    %v1056 = vld [vmem:[#allocation11 + $0x4b8] sm:$0xff]
    %v1057 = vld [vmem:[#allocation11 + $0x4c0] sm:$0xff]
    %v1058 = vld [vmem:[#allocation11 + $0x4c8] sm:$0xff]
    %v1059 = vld [vmem:[#allocation11 + $0x4d0] sm:$0xff]
    %v1060 = vld [vmem:[#allocation11 + $0x4d8] sm:$0xff]
    %v1061 = vld [vmem:[#allocation11 + $0x4e0] sm:$0xff]
    %v1062 = vld [vmem:[#allocation11 + $0x4e8] sm:$0xff]
    %v1063 = vld [vmem:[#allocation11 + $0x4f0] sm:$0xff]
    %v1064 = vld [vmem:[#allocation11 + $0x4f8] sm:$0xff]
    %v1065 = vld [vmem:[#allocation11 + $0x500] sm:$0xff]
    %v1066 = vld [vmem:[#allocation11 + $0x508] sm:$0xff]
    %v1067 = vld [vmem:[#allocation11 + $0x510] sm:$0xff]
    %v1068 = vld [vmem:[#allocation11 + $0x518] sm:$0xff]
    %v1069 = vld [vmem:[#allocation11 + $0x520] sm:$0xff]
    %v1070 = vld [vmem:[#allocation11 + $0x528] sm:$0xff]
    %v1071 = vld [vmem:[#allocation11 + $0x530] sm:$0xff]
    %v1072 = vld [vmem:[#allocation11 + $0x538] sm:$0xff]
    %v1073 = vld [vmem:[#allocation11 + $0x540] sm:$0xff]
    %v1074 = vld [vmem:[#allocation11 + $0x548] sm:$0xff]
    %v1075 = vld [vmem:[#allocation11 + $0x550] sm:$0xff]
    %v1076 = vld [vmem:[#allocation11 + $0x558] sm:$0xff]
    %v1077 = vld [vmem:[#allocation11 + $0x560] sm:$0xff]
    %v1078 = vld [vmem:[#allocation11 + $0x568] sm:$0xff]
    %v1079 = vld [vmem:[#allocation11 + $0x570] sm:$0xff]
    %v1080 = vld [vmem:[#allocation11 + $0x578] sm:$0xff]
    %v1081 = vld [vmem:[#allocation11 + $0x580] sm:$0xff]
    %v1082 = vld [vmem:[#allocation11 + $0x588] sm:$0xff]
    %v1083 = vld [vmem:[#allocation11 + $0x590] sm:$0xff]
    %v1084 = vld [vmem:[#allocation11 + $0x598] sm:$0xff]
    %v1085 = vld [vmem:[#allocation11 + $0x5a0] sm:$0xff]
    %v1086 = vld [vmem:[#allocation11 + $0x5a8] sm:$0xff]
    %v1087 = vld [vmem:[#allocation11 + $0x5b0] sm:$0xff]
    %v1088 = vld [vmem:[#allocation11 + $0x5b8] sm:$0xff]
    %v1089 = vld [vmem:[#allocation11 + $0x5c0] sm:$0xff]
    %v1090 = vld [vmem:[#allocation11 + $0x5c8] sm:$0xff]
    %v1091 = vld [vmem:[#allocation11 + $0x5d0] sm:$0xff]
    %v1092 = vld [vmem:[#allocation11 + $0x5d8] sm:$0xff]
    %v1093 = vld [vmem:[#allocation11 + $0x5e0] sm:$0xff]
    %v1094 = vld [vmem:[#allocation11 + $0x5e8] sm:$0xff]
    %v1095 = vld [vmem:[#allocation11 + $0x5f0] sm:$0xff]
    %v1096 = vld [vmem:[#allocation11 + $0x5f8] sm:$0xff]
    %v1289 = vunpack.c.l.b16 %v905
    %v1290 = vunpack.c.h.b16 %v905
    %v1291 = vunpack.c.l.b16 %v906
    %v1292 = vunpack.c.h.b16 %v906
    %v1293 = vunpack.c.l.b16 %v907
    %v1294 = vunpack.c.h.b16 %v907
    %v1295 = vunpack.c.l.b16 %v908
    %v1296 = vunpack.c.h.b16 %v908
    %v1297 = vunpack.c.l.b16 %v909
    %v1298 = vunpack.c.h.b16 %v909
    %v1299 = vunpack.c.l.b16 %v910
    %v1300 = vunpack.c.h.b16 %v910
    %v1301 = vunpack.c.l.b16 %v911
    %v1302 = vunpack.c.h.b16 %v911
    %v1303 = vunpack.c.l.b16 %v912
    %v1304 = vunpack.c.h.b16 %v912
    %v1305 = vunpack.c.l.b16 %v913
    %v1306 = vunpack.c.h.b16 %v913
    %v1307 = vunpack.c.l.b16 %v914
    %v1308 = vunpack.c.h.b16 %v914
    %v1309 = vunpack.c.l.b16 %v915
    %v1310 = vunpack.c.h.b16 %v915
    %v1311 = vunpack.c.l.b16 %v916
    %v1312 = vunpack.c.h.b16 %v916
    %v1313 = vunpack.c.l.b16 %v917
    %v1314 = vunpack.c.h.b16 %v917
    %v1315 = vunpack.c.l.b16 %v918
    %v1316 = vunpack.c.h.b16 %v918
    %v1317 = vunpack.c.l.b16 %v919
    %v1318 = vunpack.c.h.b16 %v919
    %v1319 = vunpack.c.l.b16 %v920
    %v1320 = vunpack.c.h.b16 %v920
    %v1321 = vunpack.c.l.b16 %v921
    %v1322 = vunpack.c.h.b16 %v921
    %v1323 = vunpack.c.l.b16 %v922
    %v1324 = vunpack.c.h.b16 %v922
    %v1325 = vunpack.c.l.b16 %v923
    %v1326 = vunpack.c.h.b16 %v923
    %v1327 = vunpack.c.l.b16 %v924
    %v1328 = vunpack.c.h.b16 %v924
    %v1329 = vunpack.c.l.b16 %v925
    %v1330 = vunpack.c.h.b16 %v925
    %v1331 = vunpack.c.l.b16 %v926
    %v1332 = vunpack.c.h.b16 %v926
    %v1333 = vunpack.c.l.b16 %v927
    %v1334 = vunpack.c.h.b16 %v927
    %v1335 = vunpack.c.l.b16 %v928
    %v1336 = vunpack.c.h.b16 %v928
    %v1337 = vunpack.c.l.b16 %v929
    %v1338 = vunpack.c.h.b16 %v929
    %v1339 = vunpack.c.l.b16 %v930
    %v1340 = vunpack.c.h.b16 %v930
    %v1341 = vunpack.c.l.b16 %v931
    %v1342 = vunpack.c.h.b16 %v931
    %v1343 = vunpack.c.l.b16 %v932
    %v1344 = vunpack.c.h.b16 %v932
    %v1345 = vunpack.c.l.b16 %v933
    %v1346 = vunpack.c.h.b16 %v933
    %v1347 = vunpack.c.l.b16 %v934
    %v1348 = vunpack.c.h.b16 %v934
    %v1349 = vunpack.c.l.b16 %v935
    %v1350 = vunpack.c.h.b16 %v935
    %v1351 = vunpack.c.l.b16 %v936
    %v1352 = vunpack.c.h.b16 %v936
    %v1353 = vunpack.c.l.b16 %v937
    %v1354 = vunpack.c.h.b16 %v937
    %v1355 = vunpack.c.l.b16 %v938
    %v1356 = vunpack.c.h.b16 %v938
    %v1357 = vunpack.c.l.b16 %v939
    %v1358 = vunpack.c.h.b16 %v939
    %v1359 = vunpack.c.l.b16 %v940
    %v1360 = vunpack.c.h.b16 %v940
    %v1361 = vunpack.c.l.b16 %v941
    %v1362 = vunpack.c.h.b16 %v941
    %v1363 = vunpack.c.l.b16 %v942
    %v1364 = vunpack.c.h.b16 %v942
    %v1365 = vunpack.c.l.b16 %v943
    %v1366 = vunpack.c.h.b16 %v943
    %v1367 = vunpack.c.l.b16 %v944
    %v1368 = vunpack.c.h.b16 %v944
    %v1369 = vunpack.c.l.b16 %v945
    %v1370 = vunpack.c.h.b16 %v945
    %v1371 = vunpack.c.l.b16 %v946
    %v1372 = vunpack.c.h.b16 %v946
    %v1373 = vunpack.c.l.b16 %v947
    %v1374 = vunpack.c.h.b16 %v947
    %v1375 = vunpack.c.l.b16 %v948
    %v1376 = vunpack.c.h.b16 %v948
    %v1377 = vunpack.c.l.b16 %v949
    %v1378 = vunpack.c.h.b16 %v949
    %v1379 = vunpack.c.l.b16 %v950
    %v1380 = vunpack.c.h.b16 %v950
    %v1381 = vunpack.c.l.b16 %v951
    %v1382 = vunpack.c.h.b16 %v951
    %v1383 = vunpack.c.l.b16 %v952
    %v1384 = vunpack.c.h.b16 %v952
    %v1385 = vunpack.c.l.b16 %v953
    %v1386 = vunpack.c.h.b16 %v953
    %v1387 = vunpack.c.l.b16 %v954
    %v1388 = vunpack.c.h.b16 %v954
    %v1389 = vunpack.c.l.b16 %v955
    %v1390 = vunpack.c.h.b16 %v955
    %v1391 = vunpack.c.l.b16 %v956
    %v1392 = vunpack.c.h.b16 %v956
    %v1393 = vunpack.c.l.b16 %v957
    %v1394 = vunpack.c.h.b16 %v957
    %v1395 = vunpack.c.l.b16 %v958
    %v1396 = vunpack.c.h.b16 %v958
    %v1397 = vunpack.c.l.b16 %v959
    %v1398 = vunpack.c.h.b16 %v959
    %v1399 = vunpack.c.l.b16 %v960
    %v1400 = vunpack.c.h.b16 %v960
    %v1401 = vunpack.c.l.b16 %v961
    %v1402 = vunpack.c.h.b16 %v961
    %v1403 = vunpack.c.l.b16 %v962
    %v1404 = vunpack.c.h.b16 %v962
    %v1405 = vunpack.c.l.b16 %v963
    %v1406 = vunpack.c.h.b16 %v963
    %v1407 = vunpack.c.l.b16 %v964
    %v1408 = vunpack.c.h.b16 %v964
    %v1409 = vunpack.c.l.b16 %v965
    %v1410 = vunpack.c.h.b16 %v965
    %v1411 = vunpack.c.l.b16 %v966
    %v1412 = vunpack.c.h.b16 %v966
    %v1413 = vunpack.c.l.b16 %v967
    %v1414 = vunpack.c.h.b16 %v967
    %v1415 = vunpack.c.l.b16 %v968
    %v1416 = vunpack.c.h.b16 %v968
    %v1417 = vunpack.c.l.b16 %v969
    %v1418 = vunpack.c.h.b16 %v969
    %v1419 = vunpack.c.l.b16 %v970
    %v1420 = vunpack.c.h.b16 %v970
    %v1421 = vunpack.c.l.b16 %v971
    %v1422 = vunpack.c.h.b16 %v971
    %v1423 = vunpack.c.l.b16 %v972
    %v1424 = vunpack.c.h.b16 %v972
    %v1425 = vunpack.c.l.b16 %v973
    %v1426 = vunpack.c.h.b16 %v973
    %v1427 = vunpack.c.l.b16 %v974
    %v1428 = vunpack.c.h.b16 %v974
    %v1429 = vunpack.c.l.b16 %v975
    %v1430 = vunpack.c.h.b16 %v975
    %v1431 = vunpack.c.l.b16 %v976
    %v1432 = vunpack.c.h.b16 %v976
    %v1433 = vunpack.c.l.b16 %v977
    %v1434 = vunpack.c.h.b16 %v977
    %v1435 = vunpack.c.l.b16 %v978
    %v1436 = vunpack.c.h.b16 %v978
    %v1437 = vunpack.c.l.b16 %v979
    %v1438 = vunpack.c.h.b16 %v979
    %v1439 = vunpack.c.l.b16 %v980
    %v1440 = vunpack.c.h.b16 %v980
    %v1441 = vunpack.c.l.b16 %v981
    %v1442 = vunpack.c.h.b16 %v981
    %v1443 = vunpack.c.l.b16 %v982
    %v1444 = vunpack.c.h.b16 %v982
    %v1445 = vunpack.c.l.b16 %v983
    %v1446 = vunpack.c.h.b16 %v983
    %v1447 = vunpack.c.l.b16 %v984
    %v1448 = vunpack.c.h.b16 %v984
    %v1449 = vunpack.c.l.b16 %v985
    %v1450 = vunpack.c.h.b16 %v985
    %v1451 = vunpack.c.l.b16 %v986
    %v1452 = vunpack.c.h.b16 %v986
    %v1453 = vunpack.c.l.b16 %v987
    %v1454 = vunpack.c.h.b16 %v987
    %v1455 = vunpack.c.l.b16 %v988
    %v1456 = vunpack.c.h.b16 %v988
    %v1457 = vunpack.c.l.b16 %v989
    %v1458 = vunpack.c.h.b16 %v989
    %v1459 = vunpack.c.l.b16 %v990
    %v1460 = vunpack.c.h.b16 %v990
    %v1461 = vunpack.c.l.b16 %v991
    %v1462 = vunpack.c.h.b16 %v991
    %v1463 = vunpack.c.l.b16 %v992
    %v1464 = vunpack.c.h.b16 %v992
    %v1465 = vunpack.c.l.b16 %v993
    %v1466 = vunpack.c.h.b16 %v993
    %v1467 = vunpack.c.l.b16 %v994
    %v1468 = vunpack.c.h.b16 %v994
    %v1469 = vunpack.c.l.b16 %v995
    %v1470 = vunpack.c.h.b16 %v995
    %v1471 = vunpack.c.l.b16 %v996
    %v1472 = vunpack.c.h.b16 %v996
    %v1473 = vunpack.c.l.b16 %v997
    %v1474 = vunpack.c.h.b16 %v997
    %v1475 = vunpack.c.l.b16 %v998
    %v1476 = vunpack.c.h.b16 %v998
    %v1477 = vunpack.c.l.b16 %v999
    %v1478 = vunpack.c.h.b16 %v999
    %v1479 = vunpack.c.l.b16 %v1000
    %v1480 = vunpack.c.h.b16 %v1000
    %v1481 = vunpack.c.l.b16 %v1001
    %v1482 = vunpack.c.h.b16 %v1001
    %v1483 = vunpack.c.l.b16 %v1002
    %v1484 = vunpack.c.h.b16 %v1002
    %v1485 = vunpack.c.l.b16 %v1003
    %v1486 = vunpack.c.h.b16 %v1003
    %v1487 = vunpack.c.l.b16 %v1004
    %v1488 = vunpack.c.h.b16 %v1004
    %v1489 = vunpack.c.l.b16 %v1005
    %v1490 = vunpack.c.h.b16 %v1005
    %v1491 = vunpack.c.l.b16 %v1006
    %v1492 = vunpack.c.h.b16 %v1006
    %v1493 = vunpack.c.l.b16 %v1007
    %v1494 = vunpack.c.h.b16 %v1007
    %v1495 = vunpack.c.l.b16 %v1008
    %v1496 = vunpack.c.h.b16 %v1008
    %v1497 = vunpack.c.l.b16 %v1009
    %v1498 = vunpack.c.h.b16 %v1009
    %v1499 = vunpack.c.l.b16 %v1010
    %v1500 = vunpack.c.h.b16 %v1010
    %v1501 = vunpack.c.l.b16 %v1011
    %v1502 = vunpack.c.h.b16 %v1011
    %v1503 = vunpack.c.l.b16 %v1012
    %v1504 = vunpack.c.h.b16 %v1012
    %v1505 = vunpack.c.l.b16 %v1013
    %v1506 = vunpack.c.h.b16 %v1013
    %v1507 = vunpack.c.l.b16 %v1014
    %v1508 = vunpack.c.h.b16 %v1014
    %v1509 = vunpack.c.l.b16 %v1015
    %v1510 = vunpack.c.h.b16 %v1015
    %v1511 = vunpack.c.l.b16 %v1016
    %v1512 = vunpack.c.h.b16 %v1016
    %v1513 = vunpack.c.l.b16 %v1017
    %v1514 = vunpack.c.h.b16 %v1017
    %v1515 = vunpack.c.l.b16 %v1018
    %v1516 = vunpack.c.h.b16 %v1018
    %v1517 = vunpack.c.l.b16 %v1019
    %v1518 = vunpack.c.h.b16 %v1019
    %v1519 = vunpack.c.l.b16 %v1020
    %v1520 = vunpack.c.h.b16 %v1020
    %v1521 = vunpack.c.l.b16 %v1021
    %v1522 = vunpack.c.h.b16 %v1021
    %v1523 = vunpack.c.l.b16 %v1022
    %v1524 = vunpack.c.h.b16 %v1022
    %v1525 = vunpack.c.l.b16 %v1023
    %v1526 = vunpack.c.h.b16 %v1023
    %v1527 = vunpack.c.l.b16 %v1024
    %v1528 = vunpack.c.h.b16 %v1024
    %v1529 = vunpack.c.l.b16 %v1025
    %v1530 = vunpack.c.h.b16 %v1025
    %v1531 = vunpack.c.l.b16 %v1026
    %v1532 = vunpack.c.h.b16 %v1026
    %v1533 = vunpack.c.l.b16 %v1027
    %v1534 = vunpack.c.h.b16 %v1027
    %v1535 = vunpack.c.l.b16 %v1028
    %v1536 = vunpack.c.h.b16 %v1028
    %v1537 = vunpack.c.l.b16 %v1029
    %v1538 = vunpack.c.h.b16 %v1029
    %v1539 = vunpack.c.l.b16 %v1030
    %v1540 = vunpack.c.h.b16 %v1030
    %v1541 = vunpack.c.l.b16 %v1031
    %v1542 = vunpack.c.h.b16 %v1031
    %v1543 = vunpack.c.l.b16 %v1032
    %v1544 = vunpack.c.h.b16 %v1032
    %v1545 = vunpack.c.l.b16 %v1033
    %v1546 = vunpack.c.h.b16 %v1033
    %v1547 = vunpack.c.l.b16 %v1034
    %v1548 = vunpack.c.h.b16 %v1034
    %v1549 = vunpack.c.l.b16 %v1035
    %v1550 = vunpack.c.h.b16 %v1035
    %v1551 = vunpack.c.l.b16 %v1036
    %v1552 = vunpack.c.h.b16 %v1036
    %v1553 = vunpack.c.l.b16 %v1037
    %v1554 = vunpack.c.h.b16 %v1037
    %v1555 = vunpack.c.l.b16 %v1038
    %v1556 = vunpack.c.h.b16 %v1038
    %v1557 = vunpack.c.l.b16 %v1039
    %v1558 = vunpack.c.h.b16 %v1039
    %v1559 = vunpack.c.l.b16 %v1040
    %v1560 = vunpack.c.h.b16 %v1040
    %v1561 = vunpack.c.l.b16 %v1041
    %v1562 = vunpack.c.h.b16 %v1041
    %v1563 = vunpack.c.l.b16 %v1042
    %v1564 = vunpack.c.h.b16 %v1042
    %v1565 = vunpack.c.l.b16 %v1043
    %v1566 = vunpack.c.h.b16 %v1043
    %v1567 = vunpack.c.l.b16 %v1044
    %v1568 = vunpack.c.h.b16 %v1044
    %v1569 = vunpack.c.l.b16 %v1045
    %v1570 = vunpack.c.h.b16 %v1045
    %v1571 = vunpack.c.l.b16 %v1046
    %v1572 = vunpack.c.h.b16 %v1046
    %v1573 = vunpack.c.l.b16 %v1047
    %v1574 = vunpack.c.h.b16 %v1047
    %v1575 = vunpack.c.l.b16 %v1048
    %v1576 = vunpack.c.h.b16 %v1048
    %v1577 = vunpack.c.l.b16 %v1049
    %v1578 = vunpack.c.h.b16 %v1049
    %v1579 = vunpack.c.l.b16 %v1050
    %v1580 = vunpack.c.h.b16 %v1050
    %v1581 = vunpack.c.l.b16 %v1051
    %v1582 = vunpack.c.h.b16 %v1051
    %v1583 = vunpack.c.l.b16 %v1052
    %v1584 = vunpack.c.h.b16 %v1052
    %v1585 = vunpack.c.l.b16 %v1053
    %v1586 = vunpack.c.h.b16 %v1053
    %v1587 = vunpack.c.l.b16 %v1054
    %v1588 = vunpack.c.h.b16 %v1054
    %v1589 = vunpack.c.l.b16 %v1055
    %v1590 = vunpack.c.h.b16 %v1055
    %v1591 = vunpack.c.l.b16 %v1056
    %v1592 = vunpack.c.h.b16 %v1056
    %v1593 = vunpack.c.l.b16 %v1057
    %v1594 = vunpack.c.h.b16 %v1057
    %v1595 = vunpack.c.l.b16 %v1058
    %v1596 = vunpack.c.h.b16 %v1058
    %v1597 = vunpack.c.l.b16 %v1059
    %v1598 = vunpack.c.h.b16 %v1059
    %v1599 = vunpack.c.l.b16 %v1060
    %v1600 = vunpack.c.h.b16 %v1060
    %v1601 = vunpack.c.l.b16 %v1061
    %v1602 = vunpack.c.h.b16 %v1061
    %v1603 = vunpack.c.l.b16 %v1062
    %v1604 = vunpack.c.h.b16 %v1062
    %v1605 = vunpack.c.l.b16 %v1063
    %v1606 = vunpack.c.h.b16 %v1063
    %v1607 = vunpack.c.l.b16 %v1064
    %v1608 = vunpack.c.h.b16 %v1064
    %v1609 = vunpack.c.l.b16 %v1065
    %v1610 = vunpack.c.h.b16 %v1065
    %v1611 = vunpack.c.l.b16 %v1066
    %v1612 = vunpack.c.h.b16 %v1066
    %v1613 = vunpack.c.l.b16 %v1067
    %v1614 = vunpack.c.h.b16 %v1067
    %v1615 = vunpack.c.l.b16 %v1068
    %v1616 = vunpack.c.h.b16 %v1068
    %v1617 = vunpack.c.l.b16 %v1069
    %v1618 = vunpack.c.h.b16 %v1069
    %v1619 = vunpack.c.l.b16 %v1070
    %v1620 = vunpack.c.h.b16 %v1070
    %v1621 = vunpack.c.l.b16 %v1071
    %v1622 = vunpack.c.h.b16 %v1071
    %v1623 = vunpack.c.l.b16 %v1072
    %v1624 = vunpack.c.h.b16 %v1072
    %v1625 = vunpack.c.l.b16 %v1073
    %v1626 = vunpack.c.h.b16 %v1073
    %v1627 = vunpack.c.l.b16 %v1074
    %v1628 = vunpack.c.h.b16 %v1074
    %v1629 = vunpack.c.l.b16 %v1075
    %v1630 = vunpack.c.h.b16 %v1075
    %v1631 = vunpack.c.l.b16 %v1076
    %v1632 = vunpack.c.h.b16 %v1076
    %v1633 = vunpack.c.l.b16 %v1077
    %v1634 = vunpack.c.h.b16 %v1077
    %v1635 = vunpack.c.l.b16 %v1078
    %v1636 = vunpack.c.h.b16 %v1078
    %v1637 = vunpack.c.l.b16 %v1079
    %v1638 = vunpack.c.h.b16 %v1079
    %v1639 = vunpack.c.l.b16 %v1080
    %v1640 = vunpack.c.h.b16 %v1080
    %v1641 = vunpack.c.l.b16 %v1081
    %v1642 = vunpack.c.h.b16 %v1081
    %v1643 = vunpack.c.l.b16 %v1082
    %v1644 = vunpack.c.h.b16 %v1082
    %v1645 = vunpack.c.l.b16 %v1083
    %v1646 = vunpack.c.h.b16 %v1083
    %v1647 = vunpack.c.l.b16 %v1084
    %v1648 = vunpack.c.h.b16 %v1084
    %v1649 = vunpack.c.l.b16 %v1085
    %v1650 = vunpack.c.h.b16 %v1085
    %v1651 = vunpack.c.l.b16 %v1086
    %v1652 = vunpack.c.h.b16 %v1086
    %v1653 = vunpack.c.l.b16 %v1087
    %v1654 = vunpack.c.h.b16 %v1087
    %v1655 = vunpack.c.l.b16 %v1088
    %v1656 = vunpack.c.h.b16 %v1088
    %v1657 = vunpack.c.l.b16 %v1089
    %v1658 = vunpack.c.h.b16 %v1089
    %v1659 = vunpack.c.l.b16 %v1090
    %v1660 = vunpack.c.h.b16 %v1090
    %v1661 = vunpack.c.l.b16 %v1091
    %v1662 = vunpack.c.h.b16 %v1091
    %v1663 = vunpack.c.l.b16 %v1092
    %v1664 = vunpack.c.h.b16 %v1092
    %v1665 = vunpack.c.l.b16 %v1093
    %v1666 = vunpack.c.h.b16 %v1093
    %v1667 = vunpack.c.l.b16 %v1094
    %v1668 = vunpack.c.h.b16 %v1094
    %v1669 = vunpack.c.l.b16 %v1095
    %v1670 = vunpack.c.h.b16 %v1095
    %v1671 = vunpack.c.l.b16 %v1096
    %v1672 = vunpack.c.h.b16 %v1096
    %v1673 = vpack.c.b16 %v1293, %v1289
    %v1674 = vpack.c.b16 %v1294, %v1290
    %v1675 = vpack.c.b16 %v1295, %v1291
    %v1676 = vpack.c.b16 %v1296, %v1292
    %v1677 = vpack.c.b16 %v1301, %v1297
    %v1678 = vpack.c.b16 %v1302, %v1298
    %v1679 = vpack.c.b16 %v1303, %v1299
    %v1680 = vpack.c.b16 %v1304, %v1300
    %v1681 = vpack.c.b16 %v1309, %v1305
    %v1682 = vpack.c.b16 %v1310, %v1306
    %v1683 = vpack.c.b16 %v1311, %v1307
    %v1684 = vpack.c.b16 %v1312, %v1308
    %v1685 = vpack.c.b16 %v1317, %v1313
    %v1686 = vpack.c.b16 %v1318, %v1314
    %v1687 = vpack.c.b16 %v1319, %v1315
    %v1688 = vpack.c.b16 %v1320, %v1316
    %v1689 = vpack.c.b16 %v1325, %v1321
    %v1690 = vpack.c.b16 %v1326, %v1322
    %v1691 = vpack.c.b16 %v1327, %v1323
    %v1692 = vpack.c.b16 %v1328, %v1324
    %v1693 = vpack.c.b16 %v1333, %v1329
    %v1694 = vpack.c.b16 %v1334, %v1330
    %v1695 = vpack.c.b16 %v1335, %v1331
    %v1696 = vpack.c.b16 %v1336, %v1332
    %v1697 = vpack.c.b16 %v1341, %v1337
    %v1698 = vpack.c.b16 %v1342, %v1338
    %v1699 = vpack.c.b16 %v1343, %v1339
    %v1700 = vpack.c.b16 %v1344, %v1340
    %v1701 = vpack.c.b16 %v1349, %v1345
    %v1702 = vpack.c.b16 %v1350, %v1346
    %v1703 = vpack.c.b16 %v1351, %v1347
    %v1704 = vpack.c.b16 %v1352, %v1348
    %v1705 = vpack.c.b16 %v1357, %v1353
    %v1706 = vpack.c.b16 %v1358, %v1354
    %v1707 = vpack.c.b16 %v1359, %v1355
    %v1708 = vpack.c.b16 %v1360, %v1356
    %v1709 = vpack.c.b16 %v1365, %v1361
    %v1710 = vpack.c.b16 %v1366, %v1362
    %v1711 = vpack.c.b16 %v1367, %v1363
    %v1712 = vpack.c.b16 %v1368, %v1364
    %v1713 = vpack.c.b16 %v1373, %v1369
    %v1714 = vpack.c.b16 %v1374, %v1370
    %v1715 = vpack.c.b16 %v1375, %v1371
    %v1716 = vpack.c.b16 %v1376, %v1372
    %v1717 = vpack.c.b16 %v1381, %v1377
    %v1718 = vpack.c.b16 %v1382, %v1378
    %v1719 = vpack.c.b16 %v1383, %v1379
    %v1720 = vpack.c.b16 %v1384, %v1380
    %v1721 = vpack.c.b16 %v1389, %v1385
    %v1722 = vpack.c.b16 %v1390, %v1386
    %v1723 = vpack.c.b16 %v1391, %v1387
    %v1724 = vpack.c.b16 %v1392, %v1388
    %v1725 = vpack.c.b16 %v1397, %v1393
    %v1726 = vpack.c.b16 %v1398, %v1394
    %v1727 = vpack.c.b16 %v1399, %v1395
    %v1728 = vpack.c.b16 %v1400, %v1396
    %v1729 = vpack.c.b16 %v1405, %v1401
    %v1730 = vpack.c.b16 %v1406, %v1402
    %v1731 = vpack.c.b16 %v1407, %v1403
    %v1732 = vpack.c.b16 %v1408, %v1404
    %v1733 = vpack.c.b16 %v1413, %v1409
    %v1734 = vpack.c.b16 %v1414, %v1410
    %v1735 = vpack.c.b16 %v1415, %v1411
    %v1736 = vpack.c.b16 %v1416, %v1412
    %v1737 = vpack.c.b16 %v1421, %v1417
    %v1738 = vpack.c.b16 %v1422, %v1418
    %v1739 = vpack.c.b16 %v1423, %v1419
    %v1740 = vpack.c.b16 %v1424, %v1420
    %v1741 = vpack.c.b16 %v1429, %v1425
    %v1742 = vpack.c.b16 %v1430, %v1426
    %v1743 = vpack.c.b16 %v1431, %v1427
    %v1744 = vpack.c.b16 %v1432, %v1428
    %v1745 = vpack.c.b16 %v1437, %v1433
    %v1746 = vpack.c.b16 %v1438, %v1434
    %v1747 = vpack.c.b16 %v1439, %v1435
    %v1748 = vpack.c.b16 %v1440, %v1436
    %v1749 = vpack.c.b16 %v1445, %v1441
    %v1750 = vpack.c.b16 %v1446, %v1442
    %v1751 = vpack.c.b16 %v1447, %v1443
    %v1752 = vpack.c.b16 %v1448, %v1444
    %v1753 = vpack.c.b16 %v1453, %v1449
    %v1754 = vpack.c.b16 %v1454, %v1450
    %v1755 = vpack.c.b16 %v1455, %v1451
    %v1756 = vpack.c.b16 %v1456, %v1452
    %v1757 = vpack.c.b16 %v1461, %v1457
    %v1758 = vpack.c.b16 %v1462, %v1458
    %v1759 = vpack.c.b16 %v1463, %v1459
    %v1760 = vpack.c.b16 %v1464, %v1460
    %v1761 = vpack.c.b16 %v1469, %v1465
    %v1762 = vpack.c.b16 %v1470, %v1466
    %v1763 = vpack.c.b16 %v1471, %v1467
    %v1764 = vpack.c.b16 %v1472, %v1468
    %v1765 = vpack.c.b16 %v1477, %v1473
    %v1766 = vpack.c.b16 %v1478, %v1474
    %v1767 = vpack.c.b16 %v1479, %v1475
    %v1768 = vpack.c.b16 %v1480, %v1476
    %v1769 = vpack.c.b16 %v1485, %v1481
    %v1770 = vpack.c.b16 %v1486, %v1482
    %v1771 = vpack.c.b16 %v1487, %v1483
    %v1772 = vpack.c.b16 %v1488, %v1484
    %v1773 = vpack.c.b16 %v1493, %v1489
    %v1774 = vpack.c.b16 %v1494, %v1490
    %v1775 = vpack.c.b16 %v1495, %v1491
    %v1776 = vpack.c.b16 %v1496, %v1492
    %v1777 = vpack.c.b16 %v1501, %v1497
    %v1778 = vpack.c.b16 %v1502, %v1498
    %v1779 = vpack.c.b16 %v1503, %v1499
    %v1780 = vpack.c.b16 %v1504, %v1500
    %v1781 = vpack.c.b16 %v1509, %v1505
    %v1782 = vpack.c.b16 %v1510, %v1506
    %v1783 = vpack.c.b16 %v1511, %v1507
    %v1784 = vpack.c.b16 %v1512, %v1508
    %v1785 = vpack.c.b16 %v1517, %v1513
    %v1786 = vpack.c.b16 %v1518, %v1514
    %v1787 = vpack.c.b16 %v1519, %v1515
    %v1788 = vpack.c.b16 %v1520, %v1516
    %v1789 = vpack.c.b16 %v1525, %v1521
    %v1790 = vpack.c.b16 %v1526, %v1522
    %v1791 = vpack.c.b16 %v1527, %v1523
    %v1792 = vpack.c.b16 %v1528, %v1524
    %v1793 = vpack.c.b16 %v1533, %v1529
    %v1794 = vpack.c.b16 %v1534, %v1530
    %v1795 = vpack.c.b16 %v1535, %v1531
    %v1796 = vpack.c.b16 %v1536, %v1532
    %v1797 = vpack.c.b16 %v1541, %v1537
    %v1798 = vpack.c.b16 %v1542, %v1538
    %v1799 = vpack.c.b16 %v1543, %v1539
    %v1800 = vpack.c.b16 %v1544, %v1540
    %v1801 = vpack.c.b16 %v1549, %v1545
    %v1802 = vpack.c.b16 %v1550, %v1546
    %v1803 = vpack.c.b16 %v1551, %v1547
    %v1804 = vpack.c.b16 %v1552, %v1548
    %v1805 = vpack.c.b16 %v1557, %v1553
    %v1806 = vpack.c.b16 %v1558, %v1554
    %v1807 = vpack.c.b16 %v1559, %v1555
    %v1808 = vpack.c.b16 %v1560, %v1556
    %v1809 = vpack.c.b16 %v1565, %v1561
    %v1810 = vpack.c.b16 %v1566, %v1562
    %v1811 = vpack.c.b16 %v1567, %v1563
    %v1812 = vpack.c.b16 %v1568, %v1564
    %v1813 = vpack.c.b16 %v1573, %v1569
    %v1814 = vpack.c.b16 %v1574, %v1570
    %v1815 = vpack.c.b16 %v1575, %v1571
    %v1816 = vpack.c.b16 %v1576, %v1572
    %v1817 = vpack.c.b16 %v1581, %v1577
    %v1818 = vpack.c.b16 %v1582, %v1578
    %v1819 = vpack.c.b16 %v1583, %v1579
    %v1820 = vpack.c.b16 %v1584, %v1580
    %v1821 = vpack.c.b16 %v1589, %v1585
    %v1822 = vpack.c.b16 %v1590, %v1586
    %v1823 = vpack.c.b16 %v1591, %v1587
    %v1824 = vpack.c.b16 %v1592, %v1588
    %v1825 = vpack.c.b16 %v1597, %v1593
    %v1826 = vpack.c.b16 %v1598, %v1594
    %v1827 = vpack.c.b16 %v1599, %v1595
    %v1828 = vpack.c.b16 %v1600, %v1596
    %v1829 = vpack.c.b16 %v1605, %v1601
    %v1830 = vpack.c.b16 %v1606, %v1602
    %v1831 = vpack.c.b16 %v1607, %v1603
    %v1832 = vpack.c.b16 %v1608, %v1604
    %v1833 = vpack.c.b16 %v1613, %v1609
    %v1834 = vpack.c.b16 %v1614, %v1610
    %v1835 = vpack.c.b16 %v1615, %v1611
    %v1836 = vpack.c.b16 %v1616, %v1612
    %v1837 = vpack.c.b16 %v1621, %v1617
    %v1838 = vpack.c.b16 %v1622, %v1618
    %v1839 = vpack.c.b16 %v1623, %v1619
    %v1840 = vpack.c.b16 %v1624, %v1620
    %v1841 = vpack.c.b16 %v1629, %v1625
    %v1842 = vpack.c.b16 %v1630, %v1626
    %v1843 = vpack.c.b16 %v1631, %v1627
    %v1844 = vpack.c.b16 %v1632, %v1628
    %v1845 = vpack.c.b16 %v1637, %v1633
    %v1846 = vpack.c.b16 %v1638, %v1634
    %v1847 = vpack.c.b16 %v1639, %v1635
    %v1848 = vpack.c.b16 %v1640, %v1636
    %v1849 = vpack.c.b16 %v1645, %v1641
    %v1850 = vpack.c.b16 %v1646, %v1642
    %v1851 = vpack.c.b16 %v1647, %v1643
    %v1852 = vpack.c.b16 %v1648, %v1644
    %v1853 = vpack.c.b16 %v1653, %v1649
    %v1854 = vpack.c.b16 %v1654, %v1650
    %v1855 = vpack.c.b16 %v1655, %v1651
    %v1856 = vpack.c.b16 %v1656, %v1652
    %v1857 = vpack.c.b16 %v1661, %v1657
    %v1858 = vpack.c.b16 %v1662, %v1658
    %v1859 = vpack.c.b16 %v1663, %v1659
    %v1860 = vpack.c.b16 %v1664, %v1660
    %v1861 = vpack.c.b16 %v1669, %v1665
    %v1862 = vpack.c.b16 %v1670, %v1666
    %v1863 = vpack.c.b16 %v1671, %v1667
    %v1864 = vpack.c.b16 %v1672, %v1668
    %2057 = vmatprep.subr.bf16.mxu0 %v1674
    %2058 = vmatpush1.bf16.msra.mxu0 %v1673
    %2059 = vmatprep.subr.bf16.mxu0 %v1678
    %2060 = vmatpush1.bf16.msra.mxu0 %v1677
    %2061 = vmatprep.subr.bf16.mxu0 %v1682
    %2062 = vmatpush1.bf16.msra.mxu0 %v1681
    %2063 = vmatprep.subr.bf16.mxu0 %v1686
    %2064 = vmatpush1.bf16.msra.mxu0 %v1685
    %2065 = vmatprep.subr.bf16.mxu0 %v1690
    %2066 = vmatpush1.bf16.msra.mxu0 %v1689
    %2067 = vmatprep.subr.bf16.mxu0 %v1694
    %2068 = vmatpush1.bf16.msra.mxu0 %v1693
    %2069 = vmatprep.subr.bf16.mxu0 %v1698
    %2070 = vmatpush1.bf16.msra.mxu0 %v1697
    %2071 = vmatprep.subr.bf16.mxu0 %v1702
    %2072 = vmatpush1.bf16.msra.mxu0 %v1701
    %2073 = vmatprep.subr.bf16.mxu0 %v1706
    %2074 = vmatpush1.bf16.msra.mxu0 %v1705
    %2075 = vmatprep.subr.bf16.mxu0 %v1710
    %2076 = vmatpush1.bf16.msra.mxu0 %v1709
    %2077 = vmatprep.subr.bf16.mxu0 %v1714
    %2078 = vmatpush1.bf16.msra.mxu0 %v1713
    %2079 = vmatprep.subr.bf16.mxu0 %v1718
    %2080 = vmatpush1.bf16.msra.mxu0 %v1717
    %2081 = vmatprep.subr.bf16.mxu0 %v1722
    %2082 = vmatpush1.bf16.msra.mxu0 %v1721
    %2083 = vmatprep.subr.bf16.mxu0 %v1726
    %2084 = vmatpush1.bf16.msra.mxu0 %v1725
    %2085 = vmatprep.subr.bf16.mxu0 %v1730
    %2086 = vmatpush1.bf16.msra.mxu0 %v1729
    %2087 = vmatprep.subr.bf16.mxu0 %v1734
    %2088 = vmatpush1.bf16.msra.mxu0 %v1733
    %2089 = vmatprep.mubr.bf16.mxu0 %v851
    %2090 = vmatmul.mubr.bf16.gmra.mrb[0].mxu0 %v850
    %v2091 = vpop.f32.mrb[0].mxu0
    %v2092 = vadd.f32 0.0, %v2091
    %v2093 = vpop.f32.mrb[0].mxu0
    %v2094 = vadd.f32 0.0, %v2093
    %v2095 = vpop.f32.mrb[0].mxu0
    %v2096 = vadd.f32 0.0, %v2095
    %v2097 = vpop.f32.mrb[0].mxu0
    %v2098 = vadd.f32 0.0, %v2097
    %2099 = vmatprep.mubr.bf16.mxu0 %v853
    %2100 = vmatmul.mubr.bf16.gmra.mrb[0].mxu0 %v852
    %v2101 = vpop.f32.mrb[0].mxu0
    %v2102 = vadd.f32 0.0, %v2101
    %v2103 = vpop.f32.mrb[0].mxu0
    %v2104 = vadd.f32 0.0, %v2103
    %v2105 = vpop.f32.mrb[0].mxu0
    %v2106 = vadd.f32 0.0, %v2105
    %v2107 = vpop.f32.mrb[0].mxu0
    %v2108 = vadd.f32 0.0, %v2107
    %2109 = vdwg.mxu0
    %2110 = vmatprep.subr.bf16.mxu0 %v1738
    %2111 = vmatpush1.bf16.msra.mxu0 %v1737
    %2112 = vmatprep.subr.bf16.mxu0 %v1742
    %2113 = vmatpush1.bf16.msra.mxu0 %v1741
    %2114 = vmatprep.subr.bf16.mxu0 %v1746
    %2115 = vmatpush1.bf16.msra.mxu0 %v1745
    %2116 = vmatprep.subr.bf16.mxu0 %v1750
    %2117 = vmatpush1.bf16.msra.mxu0 %v1749
    %2118 = vmatprep.subr.bf16.mxu0 %v1754
    %2119 = vmatpush1.bf16.msra.mxu0 %v1753
    %2120 = vmatprep.subr.bf16.mxu0 %v1758
    %2121 = vmatpush1.bf16.msra.mxu0 %v1757
    %2122 = vmatprep.subr.bf16.mxu0 %v1762
    %2123 = vmatpush1.bf16.msra.mxu0 %v1761
    %2124 = vmatprep.subr.bf16.mxu0 %v1766
    %2125 = vmatpush1.bf16.msra.mxu0 %v1765
    %2126 = vmatprep.subr.bf16.mxu0 %v1770
    %2127 = vmatpush1.bf16.msra.mxu0 %v1769
    %2128 = vmatprep.subr.bf16.mxu0 %v1774
    %2129 = vmatpush1.bf16.msra.mxu0 %v1773
    %2130 = vmatprep.subr.bf16.mxu0 %v1778
    %2131 = vmatpush1.bf16.msra.mxu0 %v1777
    %2132 = vmatprep.subr.bf16.mxu0 %v1782
    %2133 = vmatpush1.bf16.msra.mxu0 %v1781
    %2134 = vmatprep.subr.bf16.mxu0 %v1786
    %2135 = vmatpush1.bf16.msra.mxu0 %v1785
    %2136 = vmatprep.subr.bf16.mxu0 %v1790
    %2137 = vmatpush1.bf16.msra.mxu0 %v1789
    %2138 = vmatprep.subr.bf16.mxu0 %v1794
    %2139 = vmatpush1.bf16.msra.mxu0 %v1793
    %2140 = vmatprep.subr.bf16.mxu0 %v1798
    %2141 = vmatpush1.bf16.msra.mxu0 %v1797
    %2142 = vmatprep.mubr.bf16.mxu0 %v237
    %2143 = vmatmul.mubr.bf16.gmra.mrb[0].mxu0 %v236
    %v2144 = vpop.f32.mrb[0].mxu0
    %v2145 = vadd.f32 %v2092, %v2144
    %v2146 = vpop.f32.mrb[0].mxu0
    %v2147 = vadd.f32 %v2094, %v2146
    %v2148 = vpop.f32.mrb[0].mxu0
    %v2149 = vadd.f32 %v2096, %v2148
    %v2150 = vpop.f32.mrb[0].mxu0
    %v2151 = vadd.f32 %v2098, %v2150
    %2152 = vmatprep.mubr.bf16.mxu0 %v239
    %2153 = vmatmul.mubr.bf16.gmra.mrb[0].mxu0 %v238
    %v2154 = vpop.f32.mrb[0].mxu0
    %v2155 = vadd.f32 %v2102, %v2154
    %v2156 = vpop.f32.mrb[0].mxu0
    %v2157 = vadd.f32 %v2104, %v2156
    %v2158 = vpop.f32.mrb[0].mxu0
    %v2159 = vadd.f32 %v2106, %v2158
    %v2160 = vpop.f32.mrb[0].mxu0
    %v2161 = vadd.f32 %v2108, %v2160
    %2162 = vdwg.mxu0
    %2163 = vmatprep.subr.bf16.mxu0 %v1802
    %2164 = vmatpush1.bf16.msra.mxu0 %v1801
    %2165 = vmatprep.subr.bf16.mxu0 %v1806
    %2166 = vmatpush1.bf16.msra.mxu0 %v1805
    %2167 = vmatprep.subr.bf16.mxu0 %v1810
    %2168 = vmatpush1.bf16.msra.mxu0 %v1809
    %2169 = vmatprep.subr.bf16.mxu0 %v1814
    %2170 = vmatpush1.bf16.msra.mxu0 %v1813
    %2171 = vmatprep.subr.bf16.mxu0 %v1818
    %2172 = vmatpush1.bf16.msra.mxu0 %v1817
    %2173 = vmatprep.subr.bf16.mxu0 %v1822
    %2174 = vmatpush1.bf16.msra.mxu0 %v1821
    %2175 = vmatprep.subr.bf16.mxu0 %v1826
    %2176 = vmatpush1.bf16.msra.mxu0 %v1825
    %2177 = vmatprep.subr.bf16.mxu0 %v1830
    %2178 = vmatpush1.bf16.msra.mxu0 %v1829
    %2179 = vmatprep.subr.bf16.mxu0 %v1834
    %2180 = vmatpush1.bf16.msra.mxu0 %v1833
    %2181 = vmatprep.subr.bf16.mxu0 %v1838
    %2182 = vmatpush1.bf16.msra.mxu0 %v1837
    %2183 = vmatprep.subr.bf16.mxu0 %v1842
    %2184 = vmatpush1.bf16.msra.mxu0 %v1841
    %2185 = vmatprep.subr.bf16.mxu0 %v1846
    %2186 = vmatpush1.bf16.msra.mxu0 %v1845
    %2187 = vmatprep.subr.bf16.mxu0 %v1850
    %2188 = vmatpush1.bf16.msra.mxu0 %v1849
    %2189 = vmatprep.subr.bf16.mxu0 %v1854
    %2190 = vmatpush1.bf16.msra.mxu0 %v1853
    %2191 = vmatprep.subr.bf16.mxu0 %v1858
    %2192 = vmatpush1.bf16.msra.mxu0 %v1857
    %2193 = vmatprep.subr.bf16.mxu0 %v1862
    %2194 = vmatpush1.bf16.msra.mxu0 %v1861
    %2195 = vmatprep.mubr.bf16.mxu0 %v902
    %2196 = vmatmul.mubr.bf16.gmra.mrb[0].mxu0 %v901
    %v2197 = vpop.f32.mrb[0].mxu0
    %v2198 = vadd.f32 %v2145, %v2197
    %v2199 = vpop.f32.mrb[0].mxu0
    %v2200 = vadd.f32 %v2147, %v2199
    %v2201 = vpop.f32.mrb[0].mxu0
    %v2202 = vadd.f32 %v2149, %v2201
    %v2203 = vpop.f32.mrb[0].mxu0
    %v2204 = vadd.f32 %v2151, %v2203
    %2205 = vmatprep.mubr.bf16.mxu0 %v904
    %2206 = vmatmul.mubr.bf16.gmra.mrb[0].mxu0 %v903
    %v2207 = vpop.f32.mrb[0].mxu0
    %v2208 = vadd.f32 %v2155, %v2207
    %v2209 = vpop.f32.mrb[0].mxu0
    %v2210 = vadd.f32 %v2157, %v2209
    %v2211 = vpop.f32.mrb[0].mxu0
    %v2212 = vadd.f32 %v2159, %v2211
    %v2213 = vpop.f32.mrb[0].mxu0
    %v2214 = vadd.f32 %v2161, %v2213
    %2215 = vdwg.mxu0
    %2216 = vmatprep.subr.bf16.mxu0 %v1676
    %2217 = vmatpush1.bf16.msra.mxu0 %v1675
    %2218 = vmatprep.subr.bf16.mxu0 %v1680
    %2219 = vmatpush1.bf16.msra.mxu0 %v1679
    %2220 = vmatprep.subr.bf16.mxu0 %v1684
    %2221 = vmatpush1.bf16.msra.mxu0 %v1683
    %2222 = vmatprep.subr.bf16.mxu0 %v1688
    %2223 = vmatpush1.bf16.msra.mxu0 %v1687
    %2224 = vmatprep.subr.bf16.mxu0 %v1692
    %2225 = vmatpush1.bf16.msra.mxu0 %v1691
    %2226 = vmatprep.subr.bf16.mxu0 %v1696
    %2227 = vmatpush1.bf16.msra.mxu0 %v1695
    %2228 = vmatprep.subr.bf16.mxu0 %v1700
    %2229 = vmatpush1.bf16.msra.mxu0 %v1699
    %2230 = vmatprep.subr.bf16.mxu0 %v1704
    %2231 = vmatpush1.bf16.msra.mxu0 %v1703
    %2232 = vmatprep.subr.bf16.mxu0 %v1708
    %2233 = vmatpush1.bf16.msra.mxu0 %v1707
    %2234 = vmatprep.subr.bf16.mxu0 %v1712
    %2235 = vmatpush1.bf16.msra.mxu0 %v1711
    %2236 = vmatprep.subr.bf16.mxu0 %v1716
    %2237 = vmatpush1.bf16.msra.mxu0 %v1715
    %2238 = vmatprep.subr.bf16.mxu0 %v1720
    %2239 = vmatpush1.bf16.msra.mxu0 %v1719
    %2240 = vmatprep.subr.bf16.mxu0 %v1724
    %2241 = vmatpush1.bf16.msra.mxu0 %v1723
    %2242 = vmatprep.subr.bf16.mxu0 %v1728
    %2243 = vmatpush1.bf16.msra.mxu0 %v1727
    %2244 = vmatprep.subr.bf16.mxu0 %v1732
    %2245 = vmatpush1.bf16.msra.mxu0 %v1731
    %2246 = vmatprep.subr.bf16.mxu0 %v1736
    %2247 = vmatpush1.bf16.msra.mxu0 %v1735
    %2248 = vmatprep.mubr.bf16.mxu0 %v851
    %2249 = vmatmul.mubr.bf16.gmra.mrb[0].mxu0 %v850
    %v2250 = vpop.f32.mrb[0].mxu0
    %v2251 = vadd.f32 0.0, %v2250
    %v2252 = vpop.f32.mrb[0].mxu0
    %v2253 = vadd.f32 0.0, %v2252
    %v2254 = vpop.f32.mrb[0].mxu0
    %v2255 = vadd.f32 0.0, %v2254
    %v2256 = vpop.f32.mrb[0].mxu0
    %v2257 = vadd.f32 0.0, %v2256
    %2258 = vmatprep.mubr.bf16.mxu0 %v853
    %2259 = vmatmul.mubr.bf16.gmra.mrb[0].mxu0 %v852
    %v2260 = vpop.f32.mrb[0].mxu0
    %v2261 = vadd.f32 0.0, %v2260
    %v2262 = vpop.f32.mrb[0].mxu0
    %v2263 = vadd.f32 0.0, %v2262
    %v2264 = vpop.f32.mrb[0].mxu0
    %v2265 = vadd.f32 0.0, %v2264
    %v2266 = vpop.f32.mrb[0].mxu0
    %v2267 = vadd.f32 0.0, %v2266
    %2268 = vdwg.mxu0
    %2269 = vmatprep.subr.bf16.mxu0 %v1740
    %2270 = vmatpush1.bf16.msra.mxu0 %v1739
    %2271 = vmatprep.subr.bf16.mxu0 %v1744
    %2272 = vmatpush1.bf16.msra.mxu0 %v1743
    %2273 = vmatprep.subr.bf16.mxu0 %v1748
    %2274 = vmatpush1.bf16.msra.mxu0 %v1747
    %2275 = vmatprep.subr.bf16.mxu0 %v1752
    %2276 = vmatpush1.bf16.msra.mxu0 %v1751
    %2277 = vmatprep.subr.bf16.mxu0 %v1756
    %2278 = vmatpush1.bf16.msra.mxu0 %v1755
    %2279 = vmatprep.subr.bf16.mxu0 %v1760
    %2280 = vmatpush1.bf16.msra.mxu0 %v1759
    %2281 = vmatprep.subr.bf16.mxu0 %v1764
    %2282 = vmatpush1.bf16.msra.mxu0 %v1763
    %2283 = vmatprep.subr.bf16.mxu0 %v1768
    %2284 = vmatpush1.bf16.msra.mxu0 %v1767
    %2285 = vmatprep.subr.bf16.mxu0 %v1772
    %2286 = vmatpush1.bf16.msra.mxu0 %v1771
    %2287 = vmatprep.subr.bf16.mxu0 %v1776
    %2288 = vmatpush1.bf16.msra.mxu0 %v1775
    %2289 = vmatprep.subr.bf16.mxu0 %v1780
    %2290 = vmatpush1.bf16.msra.mxu0 %v1779
    %2291 = vmatprep.subr.bf16.mxu0 %v1784
    %2292 = vmatpush1.bf16.msra.mxu0 %v1783
    %2293 = vmatprep.subr.bf16.mxu0 %v1788
    %2294 = vmatpush1.bf16.msra.mxu0 %v1787
    %2295 = vmatprep.subr.bf16.mxu0 %v1792
    %2296 = vmatpush1.bf16.msra.mxu0 %v1791
    %2297 = vmatprep.subr.bf16.mxu0 %v1796
    %2298 = vmatpush1.bf16.msra.mxu0 %v1795
    %2299 = vmatprep.subr.bf16.mxu0 %v1800
    %2300 = vmatpush1.bf16.msra.mxu0 %v1799
    %2301 = vmatprep.mubr.bf16.mxu0 %v237
    %2302 = vmatmul.mubr.bf16.gmra.mrb[0].mxu0 %v236
    %v2303 = vpop.f32.mrb[0].mxu0
    %v2304 = vadd.f32 %v2251, %v2303
    %v2305 = vpop.f32.mrb[0].mxu0
    %v2306 = vadd.f32 %v2253, %v2305
    %v2307 = vpop.f32.mrb[0].mxu0
    %v2308 = vadd.f32 %v2255, %v2307
    %v2309 = vpop.f32.mrb[0].mxu0
    %v2310 = vadd.f32 %v2257, %v2309
    %2311 = vmatprep.mubr.bf16.mxu0 %v239
    %2312 = vmatmul.mubr.bf16.gmra.mrb[0].mxu0 %v238
    %v2313 = vpop.f32.mrb[0].mxu0
    %v2314 = vadd.f32 %v2261, %v2313
    %v2315 = vpop.f32.mrb[0].mxu0
    %v2316 = vadd.f32 %v2263, %v2315
    %v2317 = vpop.f32.mrb[0].mxu0
    %v2318 = vadd.f32 %v2265, %v2317
    %v2319 = vpop.f32.mrb[0].mxu0
    %v2320 = vadd.f32 %v2267, %v2319
    %2321 = vdwg.mxu0
    %2322 = vmatprep.subr.bf16.mxu0 %v1804
    %2323 = vmatpush1.bf16.msra.mxu0 %v1803
    %2324 = vmatprep.subr.bf16.mxu0 %v1808
    %2325 = vmatpush1.bf16.msra.mxu0 %v1807
    %2326 = vmatprep.subr.bf16.mxu0 %v1812
    %2327 = vmatpush1.bf16.msra.mxu0 %v1811
    %2328 = vmatprep.subr.bf16.mxu0 %v1816
    %2329 = vmatpush1.bf16.msra.mxu0 %v1815
    %2330 = vmatprep.subr.bf16.mxu0 %v1820
    %2331 = vmatpush1.bf16.msra.mxu0 %v1819
    %2332 = vmatprep.subr.bf16.mxu0 %v1824
    %2333 = vmatpush1.bf16.msra.mxu0 %v1823
    %2334 = vmatprep.subr.bf16.mxu0 %v1828
    %2335 = vmatpush1.bf16.msra.mxu0 %v1827
    %2336 = vmatprep.subr.bf16.mxu0 %v1832
    %2337 = vmatpush1.bf16.msra.mxu0 %v1831
    %2338 = vmatprep.subr.bf16.mxu0 %v1836
    %2339 = vmatpush1.bf16.msra.mxu0 %v1835
    %2340 = vmatprep.subr.bf16.mxu0 %v1840
    %2341 = vmatpush1.bf16.msra.mxu0 %v1839
    %2342 = vmatprep.subr.bf16.mxu0 %v1844
    %2343 = vmatpush1.bf16.msra.mxu0 %v1843
    %2344 = vmatprep.subr.bf16.mxu0 %v1848
    %2345 = vmatpush1.bf16.msra.mxu0 %v1847
    %2346 = vmatprep.subr.bf16.mxu0 %v1852
    %2347 = vmatpush1.bf16.msra.mxu0 %v1851
    %2348 = vmatprep.subr.bf16.mxu0 %v1856
    %2349 = vmatpush1.bf16.msra.mxu0 %v1855
    %2350 = vmatprep.subr.bf16.mxu0 %v1860
    %2351 = vmatpush1.bf16.msra.mxu0 %v1859
    %2352 = vmatprep.subr.bf16.mxu0 %v1864
    %2353 = vmatpush1.bf16.msra.mxu0 %v1863
    %2354 = vmatprep.mubr.bf16.mxu0 %v902
    %2355 = vmatmul.mubr.bf16.gmra.mrb[0].mxu0 %v901
    %v2356 = vpop.f32.mrb[0].mxu0
    %v2357 = vadd.f32 %v2304, %v2356
    %v2358 = vpop.f32.mrb[0].mxu0
    %v2359 = vadd.f32 %v2306, %v2358
    %v2360 = vpop.f32.mrb[0].mxu0
    %v2361 = vadd.f32 %v2308, %v2360
    %v2362 = vpop.f32.mrb[0].mxu0
    %v2363 = vadd.f32 %v2310, %v2362
    %2364 = vmatprep.mubr.bf16.mxu0 %v904
    %2365 = vmatmul.mubr.bf16.gmra.mrb[0].mxu0 %v903
    %v2366 = vpop.f32.mrb[0].mxu0
    %v2367 = vadd.f32 %v2314, %v2366
    %v2368 = vpop.f32.mrb[0].mxu0
    %v2369 = vadd.f32 %v2316, %v2368
    %v2370 = vpop.f32.mrb[0].mxu0
    %v2371 = vadd.f32 %v2318, %v2370
    %v2372 = vpop.f32.mrb[0].mxu0
    %v2373 = vadd.f32 %v2320, %v2372
    %2374 = vdwg.mxu0
    %v2375 = vld [vmem:[#allocation8] sm:$0xf]
    %v2377 = vlaneseq
    %v2378 = vshrl.u32 %v2377, 7
    %v2379 = vsub.s32 0, %v2378
    %v2380 = vrot.slane %v2375, %v2379
    %v2381 = vlaneseq
    %v2382 = vshrl.u32 %v2381, 7
    %v2383 = vsub.s32 1, %v2382
    %v2384 = vrot.slane %v2375, %v2383
    %v2385 = vlaneseq
    %v2386 = vshrl.u32 %v2385, 7
    %v2387 = vsub.s32 2, %v2386
    %v2388 = vrot.slane %v2375, %v2387
    %v2389 = vlaneseq
    %v2390 = vshrl.u32 %v2389, 7
    %v2391 = vsub.s32 3, %v2390
    %v2392 = vrot.slane %v2375, %v2391
    %v2397 = vmul.f32 %v2198, %v2380
    %v2398 = vmul.f32 %v2200, %v2384
    %v2399 = vmul.f32 %v2357, %v2388
    %v2400 = vmul.f32 %v2359, %v2392
    %v2401 = vmul.f32 %v2202, %v2380
    %v2402 = vmul.f32 %v2204, %v2384
    %v2403 = vmul.f32 %v2361, %v2388
    %v2404 = vmul.f32 %v2363, %v2392
    %v2405 = vmul.f32 %v2208, %v2380
    %v2406 = vmul.f32 %v2210, %v2384
    %v2407 = vmul.f32 %v2367, %v2388
    %v2408 = vmul.f32 %v2369, %v2392
    %v2409 = vmul.f32 %v2212, %v2380
    %v2410 = vmul.f32 %v2214, %v2384
    %v2411 = vmul.f32 %v2371, %v2388
    %v2412 = vmul.f32 %v2373, %v2392
    %v2413 = vld [vmem:[#allocation10] sm:$0xf]
    %v2415 = vlaneseq
    %v2416 = vshrl.u32 %v2415, 7
    %v2417 = vsub.s32 0, %v2416
    %v2418 = vrot.slane %v2413, %v2417
    %v2419 = vlaneseq
    %v2420 = vshrl.u32 %v2419, 7
    %v2421 = vsub.s32 1, %v2420
    %v2422 = vrot.slane %v2413, %v2421
    %v2423 = vlaneseq
    %v2424 = vshrl.u32 %v2423, 7
    %v2425 = vsub.s32 2, %v2424
    %v2426 = vrot.slane %v2413, %v2425
    %v2427 = vlaneseq
    %v2428 = vshrl.u32 %v2427, 7
    %v2429 = vsub.s32 3, %v2428
    %v2430 = vrot.slane %v2413, %v2429
    %v2435 = vadd.f32 %v2397, %v2418
    %v2436 = vadd.f32 %v2398, %v2422
    %v2437 = vadd.f32 %v2399, %v2426
    %v2438 = vadd.f32 %v2400, %v2430
    %v2439 = vadd.f32 %v2401, %v2418
    %v2440 = vadd.f32 %v2402, %v2422
    %v2441 = vadd.f32 %v2403, %v2426
    %v2442 = vadd.f32 %v2404, %v2430
    %v2443 = vadd.f32 %v2405, %v2418
    %v2444 = vadd.f32 %v2406, %v2422
    %v2445 = vadd.f32 %v2407, %v2426
    %v2446 = vadd.f32 %v2408, %v2430
    %v2447 = vadd.f32 %v2409, %v2418
    %v2448 = vadd.f32 %v2410, %v2422
    %v2449 = vadd.f32 %v2411, %v2426
    %v2450 = vadd.f32 %v2412, %v2430
    %v2451 = vmax.f32 %v2435, 0.0
    %v2452 = vmax.f32 %v2436, 0.0
    %v2453 = vmax.f32 %v2437, 0.0
    %v2454 = vmax.f32 %v2438, 0.0
    %v2455 = vmax.f32 %v2439, 0.0
    %v2456 = vmax.f32 %v2440, 0.0
    %v2457 = vmax.f32 %v2441, 0.0
    %v2458 = vmax.f32 %v2442, 0.0
    %v2459 = vmax.f32 %v2443, 0.0
    %v2460 = vmax.f32 %v2444, 0.0
    %v2461 = vmax.f32 %v2445, 0.0
    %v2462 = vmax.f32 %v2446, 0.0
    %v2463 = vmax.f32 %v2447, 0.0
    %v2464 = vmax.f32 %v2448, 0.0
    %v2465 = vmax.f32 %v2449, 0.0
    %v2466 = vmax.f32 %v2450, 0.0
    %v2467 = vpack.c.bf16 %v2455, %v2451
    %v2468 = vpack.c.bf16 %v2456, %v2452
    %v2469 = vpack.c.bf16 %v2457, %v2453
    %v2470 = vpack.c.bf16 %v2458, %v2454
    %v2471 = vpack.c.bf16 %v2463, %v2459
    %v2472 = vpack.c.bf16 %v2464, %v2460
    %v2473 = vpack.c.bf16 %v2465, %v2461
    %v2474 = vpack.c.bf16 %v2466, %v2462
    %v2476 = vshrl.u32 %v2467, 16
    %v2478 = vrot.slane %v2476, 7
    %v2479 = vshll.u32 %v2467, 16
    %v2481 = vor.u32 %v2478, %v2479
    %v2483 = vshrl.u32 %v2468, 16
    %v2485 = vrot.slane %v2483, 7
    %v2486 = vshll.u32 %v2468, 16
    %v2488 = vor.u32 %v2485, %v2486
    %v2490 = vshrl.u32 %v2469, 16
    %v2492 = vrot.slane %v2490, 7
    %v2493 = vshll.u32 %v2469, 16
    %v2495 = vor.u32 %v2492, %v2493
    %v2497 = vshrl.u32 %v2470, 16
    %v2499 = vrot.slane %v2497, 7
    %v2500 = vshll.u32 %v2470, 16
    %v2502 = vor.u32 %v2499, %v2500
    %v2504 = vshrl.u32 %v2471, 16
    %v2506 = vrot.slane %v2504, 7
    %v2507 = vshll.u32 %v2471, 16
    %v2509 = vor.u32 %v2506, %v2507
    %v2510 = vsel %vm787, %v2478, %v2509
    %v2512 = vshrl.u32 %v2472, 16
    %v2514 = vrot.slane %v2512, 7
    %v2515 = vshll.u32 %v2472, 16
    %v2517 = vor.u32 %v2514, %v2515
    %v2518 = vsel %vm787, %v2485, %v2517
    %v2520 = vshrl.u32 %v2473, 16
    %v2522 = vrot.slane %v2520, 7
    %v2523 = vshll.u32 %v2473, 16
    %v2525 = vor.u32 %v2522, %v2523
    %v2526 = vsel %vm787, %v2492, %v2525
    %v2528 = vshrl.u32 %v2474, 16
    %v2530 = vrot.slane %v2528, 7
    %v2531 = vshll.u32 %v2474, 16
    %v2533 = vor.u32 %v2530, %v2531
    %v2534 = vsel %vm787, %v2499, %v2533
    %v2543 = vsel %vm823, 0, %v2481
    %v2544 = vsel %vm823, 0, %v2488
    %v2545 = vsel %vm823, 0, %v2495
    %v2546 = vsel %vm823, 0, %v2502
    %v2547 = vsel %vm848, 0, %v2543
    %v2548 = vsel %vm848, 0, %v2544
    %v2549 = vsel %vm848, 0, %v2545
    %v2550 = vsel %vm848, 0, %v2546
    %v2551 = vsel %vm849, 0, %v2510
    %v2552 = vsel %vm849, 0, %v2518
    %v2553 = vsel %vm849, 0, %v2526
    %v2554 = vsel %vm849, 0, %v2534
    %v2555 = vrot.slane %v2479, 1
    %v2556 = vor.u32 %v2476, %v2555
    %v2557 = vrot.slane %v2507, 1
    %v2558 = vsel %vm858, %v2556, %v2557
    %v2559 = vrot.slane %v2486, 1
    %v2560 = vor.u32 %v2483, %v2559
    %v2561 = vrot.slane %v2515, 1
    %v2562 = vsel %vm858, %v2560, %v2561
    %v2563 = vrot.slane %v2493, 1
    %v2564 = vor.u32 %v2490, %v2563
    %v2565 = vrot.slane %v2523, 1
    %v2566 = vsel %vm858, %v2564, %v2565
    %v2567 = vrot.slane %v2500, 1
    %v2568 = vor.u32 %v2497, %v2567
    %v2569 = vrot.slane %v2531, 1
    %v2570 = vsel %vm858, %v2568, %v2569
    %v2571 = vor.u32 %v2504, %v2557
    %v2572 = vor.u32 %v2512, %v2561
    %v2573 = vor.u32 %v2520, %v2565
    %v2574 = vor.u32 %v2528, %v2569
    %v2583 = vsel %vm874, %v2571, 0
    %v2584 = vsel %vm874, %v2572, 0
    %v2585 = vsel %vm874, %v2573, 0
    %v2586 = vsel %vm874, %v2574, 0
    %v2587 = vsel %vm899, 0, %v2558
    %v2588 = vsel %vm899, 0, %v2562
    %v2589 = vsel %vm899, 0, %v2566
    %v2590 = vsel %vm899, 0, %v2570
    %v2591 = vsel %vm900, 0, %v2583
    %v2592 = vsel %vm900, 0, %v2584
    %v2593 = vsel %vm900, 0, %v2585
    %v2594 = vsel %vm900, 0, %v2586
    %v2595 = vld [vmem:[#allocation13] sm:$0xff]
    %v2596 = vld [vmem:[#allocation13 + $0x8] sm:$0xff]
    %v2597 = vld [vmem:[#allocation13 + $0x10] sm:$0xff]
    %v2598 = vld [vmem:[#allocation13 + $0x18] sm:$0xff]
    %v2599 = vld [vmem:[#allocation13 + $0x20] sm:$0xff]
    %v2600 = vld [vmem:[#allocation13 + $0x28] sm:$0xff]
    %v2601 = vld [vmem:[#allocation13 + $0x30] sm:$0xff]
    %v2602 = vld [vmem:[#allocation13 + $0x38] sm:$0xff]
    %v2603 = vld [vmem:[#allocation13 + $0x40] sm:$0xff]
    %v2604 = vld [vmem:[#allocation13 + $0x48] sm:$0xff]
    %v2605 = vld [vmem:[#allocation13 + $0x50] sm:$0xff]
    %v2606 = vld [vmem:[#allocation13 + $0x58] sm:$0xff]
    %v2607 = vld [vmem:[#allocation13 + $0x60] sm:$0xff]
    %v2608 = vld [vmem:[#allocation13 + $0x68] sm:$0xff]
    %v2609 = vld [vmem:[#allocation13 + $0x70] sm:$0xff]
    %v2610 = vld [vmem:[#allocation13 + $0x78] sm:$0xff]
    %v2611 = vld [vmem:[#allocation13 + $0x80] sm:$0xff]
    %v2612 = vld [vmem:[#allocation13 + $0x88] sm:$0xff]
    %v2613 = vld [vmem:[#allocation13 + $0x90] sm:$0xff]
    %v2614 = vld [vmem:[#allocation13 + $0x98] sm:$0xff]
    %v2615 = vld [vmem:[#allocation13 + $0xa0] sm:$0xff]
    %v2616 = vld [vmem:[#allocation13 + $0xa8] sm:$0xff]
    %v2617 = vld [vmem:[#allocation13 + $0xb0] sm:$0xff]
    %v2618 = vld [vmem:[#allocation13 + $0xb8] sm:$0xff]
    %v2619 = vld [vmem:[#allocation13 + $0xc0] sm:$0xff]
    %v2620 = vld [vmem:[#allocation13 + $0xc8] sm:$0xff]
    %v2621 = vld [vmem:[#allocation13 + $0xd0] sm:$0xff]
    %v2622 = vld [vmem:[#allocation13 + $0xd8] sm:$0xff]
    %v2623 = vld [vmem:[#allocation13 + $0xe0] sm:$0xff]
    %v2624 = vld [vmem:[#allocation13 + $0xe8] sm:$0xff]
    %v2625 = vld [vmem:[#allocation13 + $0xf0] sm:$0xff]
    %v2626 = vld [vmem:[#allocation13 + $0xf8] sm:$0xff]
    %v2627 = vld [vmem:[#allocation13 + $0x100] sm:$0xff]
    %v2628 = vld [vmem:[#allocation13 + $0x108] sm:$0xff]
    %v2629 = vld [vmem:[#allocation13 + $0x110] sm:$0xff]
    %v2630 = vld [vmem:[#allocation13 + $0x118] sm:$0xff]
    %v2631 = vld [vmem:[#allocation13 + $0x120] sm:$0xff]
    %v2632 = vld [vmem:[#allocation13 + $0x128] sm:$0xff]
    %v2633 = vld [vmem:[#allocation13 + $0x130] sm:$0xff]
    %v2634 = vld [vmem:[#allocation13 + $0x138] sm:$0xff]
    %v2635 = vld [vmem:[#allocation13 + $0x140] sm:$0xff]
    %v2636 = vld [vmem:[#allocation13 + $0x148] sm:$0xff]
    %v2637 = vld [vmem:[#allocation13 + $0x150] sm:$0xff]
    %v2638 = vld [vmem:[#allocation13 + $0x158] sm:$0xff]
    %v2639 = vld [vmem:[#allocation13 + $0x160] sm:$0xff]
    %v2640 = vld [vmem:[#allocation13 + $0x168] sm:$0xff]
    %v2641 = vld [vmem:[#allocation13 + $0x170] sm:$0xff]
    %v2642 = vld [vmem:[#allocation13 + $0x178] sm:$0xff]
    %v2643 = vld [vmem:[#allocation13 + $0x180] sm:$0xff]
    %v2644 = vld [vmem:[#allocation13 + $0x188] sm:$0xff]
    %v2645 = vld [vmem:[#allocation13 + $0x190] sm:$0xff]
    %v2646 = vld [vmem:[#allocation13 + $0x198] sm:$0xff]
    %v2647 = vld [vmem:[#allocation13 + $0x1a0] sm:$0xff]
    %v2648 = vld [vmem:[#allocation13 + $0x1a8] sm:$0xff]
    %v2649 = vld [vmem:[#allocation13 + $0x1b0] sm:$0xff]
    %v2650 = vld [vmem:[#allocation13 + $0x1b8] sm:$0xff]
    %v2651 = vld [vmem:[#allocation13 + $0x1c0] sm:$0xff]
    %v2652 = vld [vmem:[#allocation13 + $0x1c8] sm:$0xff]
    %v2653 = vld [vmem:[#allocation13 + $0x1d0] sm:$0xff]
    %v2654 = vld [vmem:[#allocation13 + $0x1d8] sm:$0xff]
    %v2655 = vld [vmem:[#allocation13 + $0x1e0] sm:$0xff]
    %v2656 = vld [vmem:[#allocation13 + $0x1e8] sm:$0xff]
    %v2657 = vld [vmem:[#allocation13 + $0x1f0] sm:$0xff]
    %v2658 = vld [vmem:[#allocation13 + $0x1f8] sm:$0xff]
    %v2659 = vld [vmem:[#allocation13 + $0x200] sm:$0xff]
    %v2660 = vld [vmem:[#allocation13 + $0x208] sm:$0xff]
    %v2661 = vld [vmem:[#allocation13 + $0x210] sm:$0xff]
    %v2662 = vld [vmem:[#allocation13 + $0x218] sm:$0xff]
    %v2663 = vld [vmem:[#allocation13 + $0x220] sm:$0xff]
    %v2664 = vld [vmem:[#allocation13 + $0x228] sm:$0xff]
    %v2665 = vld [vmem:[#allocation13 + $0x230] sm:$0xff]
    %v2666 = vld [vmem:[#allocation13 + $0x238] sm:$0xff]
    %v2667 = vld [vmem:[#allocation13 + $0x240] sm:$0xff]
    %v2668 = vld [vmem:[#allocation13 + $0x248] sm:$0xff]
    %v2669 = vld [vmem:[#allocation13 + $0x250] sm:$0xff]
    %v2670 = vld [vmem:[#allocation13 + $0x258] sm:$0xff]
    %v2671 = vld [vmem:[#allocation13 + $0x260] sm:$0xff]
    %v2672 = vld [vmem:[#allocation13 + $0x268] sm:$0xff]
    %v2673 = vld [vmem:[#allocation13 + $0x270] sm:$0xff]
    %v2674 = vld [vmem:[#allocation13 + $0x278] sm:$0xff]
    %v2675 = vld [vmem:[#allocation13 + $0x280] sm:$0xff]
    %v2676 = vld [vmem:[#allocation13 + $0x288] sm:$0xff]
    %v2677 = vld [vmem:[#allocation13 + $0x290] sm:$0xff]
    %v2678 = vld [vmem:[#allocation13 + $0x298] sm:$0xff]
    %v2679 = vld [vmem:[#allocation13 + $0x2a0] sm:$0xff]
    %v2680 = vld [vmem:[#allocation13 + $0x2a8] sm:$0xff]
    %v2681 = vld [vmem:[#allocation13 + $0x2b0] sm:$0xff]
    %v2682 = vld [vmem:[#allocation13 + $0x2b8] sm:$0xff]
    %v2683 = vld [vmem:[#allocation13 + $0x2c0] sm:$0xff]
    %v2684 = vld [vmem:[#allocation13 + $0x2c8] sm:$0xff]
    %v2685 = vld [vmem:[#allocation13 + $0x2d0] sm:$0xff]
    %v2686 = vld [vmem:[#allocation13 + $0x2d8] sm:$0xff]
    %v2687 = vld [vmem:[#allocation13 + $0x2e0] sm:$0xff]
    %v2688 = vld [vmem:[#allocation13 + $0x2e8] sm:$0xff]
    %v2689 = vld [vmem:[#allocation13 + $0x2f0] sm:$0xff]
    %v2690 = vld [vmem:[#allocation13 + $0x2f8] sm:$0xff]
    %v2691 = vld [vmem:[#allocation13 + $0x300] sm:$0xff]
    %v2692 = vld [vmem:[#allocation13 + $0x308] sm:$0xff]
    %v2693 = vld [vmem:[#allocation13 + $0x310] sm:$0xff]
    %v2694 = vld [vmem:[#allocation13 + $0x318] sm:$0xff]
    %v2695 = vld [vmem:[#allocation13 + $0x320] sm:$0xff]
    %v2696 = vld [vmem:[#allocation13 + $0x328] sm:$0xff]
    %v2697 = vld [vmem:[#allocation13 + $0x330] sm:$0xff]
    %v2698 = vld [vmem:[#allocation13 + $0x338] sm:$0xff]
    %v2699 = vld [vmem:[#allocation13 + $0x340] sm:$0xff]
    %v2700 = vld [vmem:[#allocation13 + $0x348] sm:$0xff]
    %v2701 = vld [vmem:[#allocation13 + $0x350] sm:$0xff]
    %v2702 = vld [vmem:[#allocation13 + $0x358] sm:$0xff]
    %v2703 = vld [vmem:[#allocation13 + $0x360] sm:$0xff]
    %v2704 = vld [vmem:[#allocation13 + $0x368] sm:$0xff]
    %v2705 = vld [vmem:[#allocation13 + $0x370] sm:$0xff]
    %v2706 = vld [vmem:[#allocation13 + $0x378] sm:$0xff]
    %v2707 = vld [vmem:[#allocation13 + $0x380] sm:$0xff]
    %v2708 = vld [vmem:[#allocation13 + $0x388] sm:$0xff]
    %v2709 = vld [vmem:[#allocation13 + $0x390] sm:$0xff]
    %v2710 = vld [vmem:[#allocation13 + $0x398] sm:$0xff]
    %v2711 = vld [vmem:[#allocation13 + $0x3a0] sm:$0xff]
    %v2712 = vld [vmem:[#allocation13 + $0x3a8] sm:$0xff]
    %v2713 = vld [vmem:[#allocation13 + $0x3b0] sm:$0xff]
    %v2714 = vld [vmem:[#allocation13 + $0x3b8] sm:$0xff]
    %v2715 = vld [vmem:[#allocation13 + $0x3c0] sm:$0xff]
    %v2716 = vld [vmem:[#allocation13 + $0x3c8] sm:$0xff]
    %v2717 = vld [vmem:[#allocation13 + $0x3d0] sm:$0xff]
    %v2718 = vld [vmem:[#allocation13 + $0x3d8] sm:$0xff]
    %v2719 = vld [vmem:[#allocation13 + $0x3e0] sm:$0xff]
    %v2720 = vld [vmem:[#allocation13 + $0x3e8] sm:$0xff]
    %v2721 = vld [vmem:[#allocation13 + $0x3f0] sm:$0xff]
    %v2722 = vld [vmem:[#allocation13 + $0x3f8] sm:$0xff]
    %v2723 = vld [vmem:[#allocation13 + $0x400] sm:$0xff]
    %v2724 = vld [vmem:[#allocation13 + $0x408] sm:$0xff]
    %v2725 = vld [vmem:[#allocation13 + $0x410] sm:$0xff]
    %v2726 = vld [vmem:[#allocation13 + $0x418] sm:$0xff]
    %v2727 = vld [vmem:[#allocation13 + $0x420] sm:$0xff]
    %v2728 = vld [vmem:[#allocation13 + $0x428] sm:$0xff]
    %v2729 = vld [vmem:[#allocation13 + $0x430] sm:$0xff]
    %v2730 = vld [vmem:[#allocation13 + $0x438] sm:$0xff]
    %v2731 = vld [vmem:[#allocation13 + $0x440] sm:$0xff]
    %v2732 = vld [vmem:[#allocation13 + $0x448] sm:$0xff]
    %v2733 = vld [vmem:[#allocation13 + $0x450] sm:$0xff]
    %v2734 = vld [vmem:[#allocation13 + $0x458] sm:$0xff]
    %v2735 = vld [vmem:[#allocation13 + $0x460] sm:$0xff]
    %v2736 = vld [vmem:[#allocation13 + $0x468] sm:$0xff]
    %v2737 = vld [vmem:[#allocation13 + $0x470] sm:$0xff]
    %v2738 = vld [vmem:[#allocation13 + $0x478] sm:$0xff]
    %v2739 = vld [vmem:[#allocation13 + $0x480] sm:$0xff]
    %v2740 = vld [vmem:[#allocation13 + $0x488] sm:$0xff]
    %v2741 = vld [vmem:[#allocation13 + $0x490] sm:$0xff]
    %v2742 = vld [vmem:[#allocation13 + $0x498] sm:$0xff]
    %v2743 = vld [vmem:[#allocation13 + $0x4a0] sm:$0xff]
    %v2744 = vld [vmem:[#allocation13 + $0x4a8] sm:$0xff]
    %v2745 = vld [vmem:[#allocation13 + $0x4b0] sm:$0xff]
    %v2746 = vld [vmem:[#allocation13 + $0x4b8] sm:$0xff]
    %v2747 = vld [vmem:[#allocation13 + $0x4c0] sm:$0xff]
    %v2748 = vld [vmem:[#allocation13 + $0x4c8] sm:$0xff]
    %v2749 = vld [vmem:[#allocation13 + $0x4d0] sm:$0xff]
    %v2750 = vld [vmem:[#allocation13 + $0x4d8] sm:$0xff]
    %v2751 = vld [vmem:[#allocation13 + $0x4e0] sm:$0xff]
    %v2752 = vld [vmem:[#allocation13 + $0x4e8] sm:$0xff]
    %v2753 = vld [vmem:[#allocation13 + $0x4f0] sm:$0xff]
    %v2754 = vld [vmem:[#allocation13 + $0x4f8] sm:$0xff]
    %v2755 = vld [vmem:[#allocation13 + $0x500] sm:$0xff]
    %v2756 = vld [vmem:[#allocation13 + $0x508] sm:$0xff]
    %v2757 = vld [vmem:[#allocation13 + $0x510] sm:$0xff]
    %v2758 = vld [vmem:[#allocation13 + $0x518] sm:$0xff]
    %v2759 = vld [vmem:[#allocation13 + $0x520] sm:$0xff]
    %v2760 = vld [vmem:[#allocation13 + $0x528] sm:$0xff]
    %v2761 = vld [vmem:[#allocation13 + $0x530] sm:$0xff]
    %v2762 = vld [vmem:[#allocation13 + $0x538] sm:$0xff]
    %v2763 = vld [vmem:[#allocation13 + $0x540] sm:$0xff]
    %v2764 = vld [vmem:[#allocation13 + $0x548] sm:$0xff]
    %v2765 = vld [vmem:[#allocation13 + $0x550] sm:$0xff]
    %v2766 = vld [vmem:[#allocation13 + $0x558] sm:$0xff]
    %v2767 = vld [vmem:[#allocation13 + $0x560] sm:$0xff]
    %v2768 = vld [vmem:[#allocation13 + $0x568] sm:$0xff]
    %v2769 = vld [vmem:[#allocation13 + $0x570] sm:$0xff]
    %v2770 = vld [vmem:[#allocation13 + $0x578] sm:$0xff]
    %v2771 = vld [vmem:[#allocation13 + $0x580] sm:$0xff]
    %v2772 = vld [vmem:[#allocation13 + $0x588] sm:$0xff]
    %v2773 = vld [vmem:[#allocation13 + $0x590] sm:$0xff]
    %v2774 = vld [vmem:[#allocation13 + $0x598] sm:$0xff]
    %v2775 = vld [vmem:[#allocation13 + $0x5a0] sm:$0xff]
    %v2776 = vld [vmem:[#allocation13 + $0x5a8] sm:$0xff]
    %v2777 = vld [vmem:[#allocation13 + $0x5b0] sm:$0xff]
    %v2778 = vld [vmem:[#allocation13 + $0x5b8] sm:$0xff]
    %v2779 = vld [vmem:[#allocation13 + $0x5c0] sm:$0xff]
    %v2780 = vld [vmem:[#allocation13 + $0x5c8] sm:$0xff]
    %v2781 = vld [vmem:[#allocation13 + $0x5d0] sm:$0xff]
    %v2782 = vld [vmem:[#allocation13 + $0x5d8] sm:$0xff]
    %v2783 = vld [vmem:[#allocation13 + $0x5e0] sm:$0xff]
    %v2784 = vld [vmem:[#allocation13 + $0x5e8] sm:$0xff]
    %v2785 = vld [vmem:[#allocation13 + $0x5f0] sm:$0xff]
    %v2786 = vld [vmem:[#allocation13 + $0x5f8] sm:$0xff]
    %v2787 = vld [vmem:[#allocation13 + $0x600] sm:$0xff]
    %v2788 = vld [vmem:[#allocation13 + $0x608] sm:$0xff]
    %v2789 = vld [vmem:[#allocation13 + $0x610] sm:$0xff]
    %v2790 = vld [vmem:[#allocation13 + $0x618] sm:$0xff]
    %v2791 = vld [vmem:[#allocation13 + $0x620] sm:$0xff]
    %v2792 = vld [vmem:[#allocation13 + $0x628] sm:$0xff]
    %v2793 = vld [vmem:[#allocation13 + $0x630] sm:$0xff]
    %v2794 = vld [vmem:[#allocation13 + $0x638] sm:$0xff]
    %v2795 = vld [vmem:[#allocation13 + $0x640] sm:$0xff]
    %v2796 = vld [vmem:[#allocation13 + $0x648] sm:$0xff]
    %v2797 = vld [vmem:[#allocation13 + $0x650] sm:$0xff]
    %v2798 = vld [vmem:[#allocation13 + $0x658] sm:$0xff]
    %v2799 = vld [vmem:[#allocation13 + $0x660] sm:$0xff]
    %v2800 = vld [vmem:[#allocation13 + $0x668] sm:$0xff]
    %v2801 = vld [vmem:[#allocation13 + $0x670] sm:$0xff]
    %v2802 = vld [vmem:[#allocation13 + $0x678] sm:$0xff]
    %v2803 = vld [vmem:[#allocation13 + $0x680] sm:$0xff]
    %v2804 = vld [vmem:[#allocation13 + $0x688] sm:$0xff]
    %v2805 = vld [vmem:[#allocation13 + $0x690] sm:$0xff]
    %v2806 = vld [vmem:[#allocation13 + $0x698] sm:$0xff]
    %v2807 = vld [vmem:[#allocation13 + $0x6a0] sm:$0xff]
    %v2808 = vld [vmem:[#allocation13 + $0x6a8] sm:$0xff]
    %v2809 = vld [vmem:[#allocation13 + $0x6b0] sm:$0xff]
    %v2810 = vld [vmem:[#allocation13 + $0x6b8] sm:$0xff]
    %v2811 = vld [vmem:[#allocation13 + $0x6c0] sm:$0xff]
    %v2812 = vld [vmem:[#allocation13 + $0x6c8] sm:$0xff]
    %v2813 = vld [vmem:[#allocation13 + $0x6d0] sm:$0xff]
    %v2814 = vld [vmem:[#allocation13 + $0x6d8] sm:$0xff]
    %v2815 = vld [vmem:[#allocation13 + $0x6e0] sm:$0xff]
    %v2816 = vld [vmem:[#allocation13 + $0x6e8] sm:$0xff]
    %v2817 = vld [vmem:[#allocation13 + $0x6f0] sm:$0xff]
    %v2818 = vld [vmem:[#allocation13 + $0x6f8] sm:$0xff]
    %v2819 = vld [vmem:[#allocation13 + $0x700] sm:$0xff]
    %v2820 = vld [vmem:[#allocation13 + $0x708] sm:$0xff]
    %v2821 = vld [vmem:[#allocation13 + $0x710] sm:$0xff]
    %v2822 = vld [vmem:[#allocation13 + $0x718] sm:$0xff]
    %v2823 = vld [vmem:[#allocation13 + $0x720] sm:$0xff]
    %v2824 = vld [vmem:[#allocation13 + $0x728] sm:$0xff]
    %v2825 = vld [vmem:[#allocation13 + $0x730] sm:$0xff]
    %v2826 = vld [vmem:[#allocation13 + $0x738] sm:$0xff]
    %v2827 = vld [vmem:[#allocation13 + $0x740] sm:$0xff]
    %v2828 = vld [vmem:[#allocation13 + $0x748] sm:$0xff]
    %v2829 = vld [vmem:[#allocation13 + $0x750] sm:$0xff]
    %v2830 = vld [vmem:[#allocation13 + $0x758] sm:$0xff]
    %v2831 = vld [vmem:[#allocation13 + $0x760] sm:$0xff]
    %v2832 = vld [vmem:[#allocation13 + $0x768] sm:$0xff]
    %v2833 = vld [vmem:[#allocation13 + $0x770] sm:$0xff]
    %v2834 = vld [vmem:[#allocation13 + $0x778] sm:$0xff]
    %v2835 = vld [vmem:[#allocation13 + $0x780] sm:$0xff]
    %v2836 = vld [vmem:[#allocation13 + $0x788] sm:$0xff]
    %v2837 = vld [vmem:[#allocation13 + $0x790] sm:$0xff]
    %v2838 = vld [vmem:[#allocation13 + $0x798] sm:$0xff]
    %v2839 = vld [vmem:[#allocation13 + $0x7a0] sm:$0xff]
    %v2840 = vld [vmem:[#allocation13 + $0x7a8] sm:$0xff]
    %v2841 = vld [vmem:[#allocation13 + $0x7b0] sm:$0xff]
    %v2842 = vld [vmem:[#allocation13 + $0x7b8] sm:$0xff]
    %v2843 = vld [vmem:[#allocation13 + $0x7c0] sm:$0xff]
    %v2844 = vld [vmem:[#allocation13 + $0x7c8] sm:$0xff]
    %v2845 = vld [vmem:[#allocation13 + $0x7d0] sm:$0xff]
    %v2846 = vld [vmem:[#allocation13 + $0x7d8] sm:$0xff]
    %v2847 = vld [vmem:[#allocation13 + $0x7e0] sm:$0xff]
    %v2848 = vld [vmem:[#allocation13 + $0x7e8] sm:$0xff]
    %v2849 = vld [vmem:[#allocation13 + $0x7f0] sm:$0xff]
    %v2850 = vld [vmem:[#allocation13 + $0x7f8] sm:$0xff]
    %v2851 = vld [vmem:[#allocation13 + $0x800] sm:$0xff]
    %v2852 = vld [vmem:[#allocation13 + $0x808] sm:$0xff]
    %v2853 = vld [vmem:[#allocation13 + $0x810] sm:$0xff]
    %v2854 = vld [vmem:[#allocation13 + $0x818] sm:$0xff]
    %v2855 = vld [vmem:[#allocation13 + $0x820] sm:$0xff]
    %v2856 = vld [vmem:[#allocation13 + $0x828] sm:$0xff]
    %v2857 = vld [vmem:[#allocation13 + $0x830] sm:$0xff]
    %v2858 = vld [vmem:[#allocation13 + $0x838] sm:$0xff]
    %v2859 = vld [vmem:[#allocation13 + $0x840] sm:$0xff]
    %v2860 = vld [vmem:[#allocation13 + $0x848] sm:$0xff]
    %v2861 = vld [vmem:[#allocation13 + $0x850] sm:$0xff]
    %v2862 = vld [vmem:[#allocation13 + $0x858] sm:$0xff]
    %v2863 = vld [vmem:[#allocation13 + $0x860] sm:$0xff]
    %v2864 = vld [vmem:[#allocation13 + $0x868] sm:$0xff]
    %v2865 = vld [vmem:[#allocation13 + $0x870] sm:$0xff]
    %v2866 = vld [vmem:[#allocation13 + $0x878] sm:$0xff]
    %v2867 = vld [vmem:[#allocation13 + $0x880] sm:$0xff]
    %v2868 = vld [vmem:[#allocation13 + $0x888] sm:$0xff]
    %v2869 = vld [vmem:[#allocation13 + $0x890] sm:$0xff]
    %v2870 = vld [vmem:[#allocation13 + $0x898] sm:$0xff]
    %v2871 = vld [vmem:[#allocation13 + $0x8a0] sm:$0xff]
    %v2872 = vld [vmem:[#allocation13 + $0x8a8] sm:$0xff]
    %v2873 = vld [vmem:[#allocation13 + $0x8b0] sm:$0xff]
    %v2874 = vld [vmem:[#allocation13 + $0x8b8] sm:$0xff]
    %v2875 = vld [vmem:[#allocation13 + $0x8c0] sm:$0xff]
    %v2876 = vld [vmem:[#allocation13 + $0x8c8] sm:$0xff]
    %v2877 = vld [vmem:[#allocation13 + $0x8d0] sm:$0xff]
    %v2878 = vld [vmem:[#allocation13 + $0x8d8] sm:$0xff]
    %v2879 = vld [vmem:[#allocation13 + $0x8e0] sm:$0xff]
    %v2880 = vld [vmem:[#allocation13 + $0x8e8] sm:$0xff]
    %v2881 = vld [vmem:[#allocation13 + $0x8f0] sm:$0xff]
    %v2882 = vld [vmem:[#allocation13 + $0x8f8] sm:$0xff]
    %v2883 = vld [vmem:[#allocation13 + $0x900] sm:$0xff]
    %v2884 = vld [vmem:[#allocation13 + $0x908] sm:$0xff]
    %v2885 = vld [vmem:[#allocation13 + $0x910] sm:$0xff]
    %v2886 = vld [vmem:[#allocation13 + $0x918] sm:$0xff]
    %v2887 = vld [vmem:[#allocation13 + $0x920] sm:$0xff]
    %v2888 = vld [vmem:[#allocation13 + $0x928] sm:$0xff]
    %v2889 = vld [vmem:[#allocation13 + $0x930] sm:$0xff]
    %v2890 = vld [vmem:[#allocation13 + $0x938] sm:$0xff]
    %v2891 = vld [vmem:[#allocation13 + $0x940] sm:$0xff]
    %v2892 = vld [vmem:[#allocation13 + $0x948] sm:$0xff]
    %v2893 = vld [vmem:[#allocation13 + $0x950] sm:$0xff]
    %v2894 = vld [vmem:[#allocation13 + $0x958] sm:$0xff]
    %v2895 = vld [vmem:[#allocation13 + $0x960] sm:$0xff]
    %v2896 = vld [vmem:[#allocation13 + $0x968] sm:$0xff]
    %v2897 = vld [vmem:[#allocation13 + $0x970] sm:$0xff]
    %v2898 = vld [vmem:[#allocation13 + $0x978] sm:$0xff]
    %v2899 = vld [vmem:[#allocation13 + $0x980] sm:$0xff]
    %v2900 = vld [vmem:[#allocation13 + $0x988] sm:$0xff]
    %v2901 = vld [vmem:[#allocation13 + $0x990] sm:$0xff]
    %v2902 = vld [vmem:[#allocation13 + $0x998] sm:$0xff]
    %v2903 = vld [vmem:[#allocation13 + $0x9a0] sm:$0xff]
    %v2904 = vld [vmem:[#allocation13 + $0x9a8] sm:$0xff]
    %v2905 = vld [vmem:[#allocation13 + $0x9b0] sm:$0xff]
    %v2906 = vld [vmem:[#allocation13 + $0x9b8] sm:$0xff]
    %v2907 = vld [vmem:[#allocation13 + $0x9c0] sm:$0xff]
    %v2908 = vld [vmem:[#allocation13 + $0x9c8] sm:$0xff]
    %v2909 = vld [vmem:[#allocation13 + $0x9d0] sm:$0xff]
    %v2910 = vld [vmem:[#allocation13 + $0x9d8] sm:$0xff]
    %v2911 = vld [vmem:[#allocation13 + $0x9e0] sm:$0xff]
    %v2912 = vld [vmem:[#allocation13 + $0x9e8] sm:$0xff]
    %v2913 = vld [vmem:[#allocation13 + $0x9f0] sm:$0xff]
    %v2914 = vld [vmem:[#allocation13 + $0x9f8] sm:$0xff]
    %v2915 = vld [vmem:[#allocation13 + $0xa00] sm:$0xff]
    %v2916 = vld [vmem:[#allocation13 + $0xa08] sm:$0xff]
    %v2917 = vld [vmem:[#allocation13 + $0xa10] sm:$0xff]
    %v2918 = vld [vmem:[#allocation13 + $0xa18] sm:$0xff]
    %v2919 = vld [vmem:[#allocation13 + $0xa20] sm:$0xff]
    %v2920 = vld [vmem:[#allocation13 + $0xa28] sm:$0xff]
    %v2921 = vld [vmem:[#allocation13 + $0xa30] sm:$0xff]
    %v2922 = vld [vmem:[#allocation13 + $0xa38] sm:$0xff]
    %v2923 = vld [vmem:[#allocation13 + $0xa40] sm:$0xff]
    %v2924 = vld [vmem:[#allocation13 + $0xa48] sm:$0xff]
    %v2925 = vld [vmem:[#allocation13 + $0xa50] sm:$0xff]
    %v2926 = vld [vmem:[#allocation13 + $0xa58] sm:$0xff]
    %v2927 = vld [vmem:[#allocation13 + $0xa60] sm:$0xff]
    %v2928 = vld [vmem:[#allocation13 + $0xa68] sm:$0xff]
    %v2929 = vld [vmem:[#allocation13 + $0xa70] sm:$0xff]
    %v2930 = vld [vmem:[#allocation13 + $0xa78] sm:$0xff]
    %v2931 = vld [vmem:[#allocation13 + $0xa80] sm:$0xff]
    %v2932 = vld [vmem:[#allocation13 + $0xa88] sm:$0xff]
    %v2933 = vld [vmem:[#allocation13 + $0xa90] sm:$0xff]
    %v2934 = vld [vmem:[#allocation13 + $0xa98] sm:$0xff]
    %v2935 = vld [vmem:[#allocation13 + $0xaa0] sm:$0xff]
    %v2936 = vld [vmem:[#allocation13 + $0xaa8] sm:$0xff]
    %v2937 = vld [vmem:[#allocation13 + $0xab0] sm:$0xff]
    %v2938 = vld [vmem:[#allocation13 + $0xab8] sm:$0xff]
    %v2939 = vld [vmem:[#allocation13 + $0xac0] sm:$0xff]
    %v2940 = vld [vmem:[#allocation13 + $0xac8] sm:$0xff]
    %v2941 = vld [vmem:[#allocation13 + $0xad0] sm:$0xff]
    %v2942 = vld [vmem:[#allocation13 + $0xad8] sm:$0xff]
    %v2943 = vld [vmem:[#allocation13 + $0xae0] sm:$0xff]
    %v2944 = vld [vmem:[#allocation13 + $0xae8] sm:$0xff]
    %v2945 = vld [vmem:[#allocation13 + $0xaf0] sm:$0xff]
    %v2946 = vld [vmem:[#allocation13 + $0xaf8] sm:$0xff]
    %v2947 = vld [vmem:[#allocation13 + $0xb00] sm:$0xff]
    %v2948 = vld [vmem:[#allocation13 + $0xb08] sm:$0xff]
    %v2949 = vld [vmem:[#allocation13 + $0xb10] sm:$0xff]
    %v2950 = vld [vmem:[#allocation13 + $0xb18] sm:$0xff]
    %v2951 = vld [vmem:[#allocation13 + $0xb20] sm:$0xff]
    %v2952 = vld [vmem:[#allocation13 + $0xb28] sm:$0xff]
    %v2953 = vld [vmem:[#allocation13 + $0xb30] sm:$0xff]
    %v2954 = vld [vmem:[#allocation13 + $0xb38] sm:$0xff]
    %v2955 = vld [vmem:[#allocation13 + $0xb40] sm:$0xff]
    %v2956 = vld [vmem:[#allocation13 + $0xb48] sm:$0xff]
    %v2957 = vld [vmem:[#allocation13 + $0xb50] sm:$0xff]
    %v2958 = vld [vmem:[#allocation13 + $0xb58] sm:$0xff]
    %v2959 = vld [vmem:[#allocation13 + $0xb60] sm:$0xff]
    %v2960 = vld [vmem:[#allocation13 + $0xb68] sm:$0xff]
    %v2961 = vld [vmem:[#allocation13 + $0xb70] sm:$0xff]
    %v2962 = vld [vmem:[#allocation13 + $0xb78] sm:$0xff]
    %v2963 = vld [vmem:[#allocation13 + $0xb80] sm:$0xff]
    %v2964 = vld [vmem:[#allocation13 + $0xb88] sm:$0xff]
    %v2965 = vld [vmem:[#allocation13 + $0xb90] sm:$0xff]
    %v2966 = vld [vmem:[#allocation13 + $0xb98] sm:$0xff]
    %v2967 = vld [vmem:[#allocation13 + $0xba0] sm:$0xff]
    %v2968 = vld [vmem:[#allocation13 + $0xba8] sm:$0xff]
    %v2969 = vld [vmem:[#allocation13 + $0xbb0] sm:$0xff]
    %v2970 = vld [vmem:[#allocation13 + $0xbb8] sm:$0xff]
    %v2971 = vld [vmem:[#allocation13 + $0xbc0] sm:$0xff]
    %v2972 = vld [vmem:[#allocation13 + $0xbc8] sm:$0xff]
    %v2973 = vld [vmem:[#allocation13 + $0xbd0] sm:$0xff]
    %v2974 = vld [vmem:[#allocation13 + $0xbd8] sm:$0xff]
    %v2975 = vld [vmem:[#allocation13 + $0xbe0] sm:$0xff]
    %v2976 = vld [vmem:[#allocation13 + $0xbe8] sm:$0xff]
    %v2977 = vld [vmem:[#allocation13 + $0xbf0] sm:$0xff]
    %v2978 = vld [vmem:[#allocation13 + $0xbf8] sm:$0xff]
    %v3363 = vunpack.c.l.b16 %v2595
    %v3364 = vunpack.c.h.b16 %v2595
    %v3365 = vunpack.c.l.b16 %v2596
    %v3366 = vunpack.c.h.b16 %v2596
    %v3367 = vunpack.c.l.b16 %v2597
    %v3368 = vunpack.c.h.b16 %v2597
    %v3369 = vunpack.c.l.b16 %v2598
    %v3370 = vunpack.c.h.b16 %v2598
    %v3371 = vunpack.c.l.b16 %v2599
    %v3372 = vunpack.c.h.b16 %v2599
    %v3373 = vunpack.c.l.b16 %v2600
    %v3374 = vunpack.c.h.b16 %v2600
    %v3375 = vunpack.c.l.b16 %v2601
    %v3376 = vunpack.c.h.b16 %v2601
    %v3377 = vunpack.c.l.b16 %v2602
    %v3378 = vunpack.c.h.b16 %v2602
    %v3379 = vunpack.c.l.b16 %v2603
    %v3380 = vunpack.c.h.b16 %v2603
    %v3381 = vunpack.c.l.b16 %v2604
    %v3382 = vunpack.c.h.b16 %v2604
    %v3383 = vunpack.c.l.b16 %v2605
    %v3384 = vunpack.c.h.b16 %v2605
    %v3385 = vunpack.c.l.b16 %v2606
    %v3386 = vunpack.c.h.b16 %v2606
    %v3387 = vunpack.c.l.b16 %v2607
    %v3388 = vunpack.c.h.b16 %v2607
    %v3389 = vunpack.c.l.b16 %v2608
    %v3390 = vunpack.c.h.b16 %v2608
    %v3391 = vunpack.c.l.b16 %v2609
    %v3392 = vunpack.c.h.b16 %v2609
    %v3393 = vunpack.c.l.b16 %v2610
    %v3394 = vunpack.c.h.b16 %v2610
    %v3395 = vunpack.c.l.b16 %v2611
    %v3396 = vunpack.c.h.b16 %v2611
    %v3397 = vunpack.c.l.b16 %v2612
    %v3398 = vunpack.c.h.b16 %v2612
    %v3399 = vunpack.c.l.b16 %v2613
    %v3400 = vunpack.c.h.b16 %v2613
    %v3401 = vunpack.c.l.b16 %v2614
    %v3402 = vunpack.c.h.b16 %v2614
    %v3403 = vunpack.c.l.b16 %v2615
    %v3404 = vunpack.c.h.b16 %v2615
    %v3405 = vunpack.c.l.b16 %v2616
    %v3406 = vunpack.c.h.b16 %v2616
    %v3407 = vunpack.c.l.b16 %v2617
    %v3408 = vunpack.c.h.b16 %v2617
    %v3409 = vunpack.c.l.b16 %v2618
    %v3410 = vunpack.c.h.b16 %v2618
    %v3411 = vunpack.c.l.b16 %v2619
    %v3412 = vunpack.c.h.b16 %v2619
    %v3413 = vunpack.c.l.b16 %v2620
    %v3414 = vunpack.c.h.b16 %v2620
    %v3415 = vunpack.c.l.b16 %v2621
    %v3416 = vunpack.c.h.b16 %v2621
    %v3417 = vunpack.c.l.b16 %v2622
    %v3418 = vunpack.c.h.b16 %v2622
    %v3419 = vunpack.c.l.b16 %v2623
    %v3420 = vunpack.c.h.b16 %v2623
    %v3421 = vunpack.c.l.b16 %v2624
    %v3422 = vunpack.c.h.b16 %v2624
    %v3423 = vunpack.c.l.b16 %v2625
    %v3424 = vunpack.c.h.b16 %v2625
    %v3425 = vunpack.c.l.b16 %v2626
    %v3426 = vunpack.c.h.b16 %v2626
    %v3427 = vunpack.c.l.b16 %v2627
    %v3428 = vunpack.c.h.b16 %v2627
    %v3429 = vunpack.c.l.b16 %v2628
    %v3430 = vunpack.c.h.b16 %v2628
    %v3431 = vunpack.c.l.b16 %v2629
    %v3432 = vunpack.c.h.b16 %v2629
    %v3433 = vunpack.c.l.b16 %v2630
    %v3434 = vunpack.c.h.b16 %v2630
    %v3435 = vunpack.c.l.b16 %v2631
    %v3436 = vunpack.c.h.b16 %v2631
    %v3437 = vunpack.c.l.b16 %v2632
    %v3438 = vunpack.c.h.b16 %v2632
    %v3439 = vunpack.c.l.b16 %v2633
    %v3440 = vunpack.c.h.b16 %v2633
    %v3441 = vunpack.c.l.b16 %v2634
    %v3442 = vunpack.c.h.b16 %v2634
    %v3443 = vunpack.c.l.b16 %v2635
    %v3444 = vunpack.c.h.b16 %v2635
    %v3445 = vunpack.c.l.b16 %v2636
    %v3446 = vunpack.c.h.b16 %v2636
    %v3447 = vunpack.c.l.b16 %v2637
    %v3448 = vunpack.c.h.b16 %v2637
    %v3449 = vunpack.c.l.b16 %v2638
    %v3450 = vunpack.c.h.b16 %v2638
    %v3451 = vunpack.c.l.b16 %v2639
    %v3452 = vunpack.c.h.b16 %v2639
    %v3453 = vunpack.c.l.b16 %v2640
    %v3454 = vunpack.c.h.b16 %v2640
    %v3455 = vunpack.c.l.b16 %v2641
    %v3456 = vunpack.c.h.b16 %v2641
    %v3457 = vunpack.c.l.b16 %v2642
    %v3458 = vunpack.c.h.b16 %v2642
    %v3459 = vunpack.c.l.b16 %v2643
    %v3460 = vunpack.c.h.b16 %v2643
    %v3461 = vunpack.c.l.b16 %v2644
    %v3462 = vunpack.c.h.b16 %v2644
    %v3463 = vunpack.c.l.b16 %v2645
    %v3464 = vunpack.c.h.b16 %v2645
    %v3465 = vunpack.c.l.b16 %v2646
    %v3466 = vunpack.c.h.b16 %v2646
    %v3467 = vunpack.c.l.b16 %v2647
    %v3468 = vunpack.c.h.b16 %v2647
    %v3469 = vunpack.c.l.b16 %v2648
    %v3470 = vunpack.c.h.b16 %v2648
    %v3471 = vunpack.c.l.b16 %v2649
    %v3472 = vunpack.c.h.b16 %v2649
    %v3473 = vunpack.c.l.b16 %v2650
    %v3474 = vunpack.c.h.b16 %v2650
    %v3475 = vunpack.c.l.b16 %v2651
    %v3476 = vunpack.c.h.b16 %v2651
    %v3477 = vunpack.c.l.b16 %v2652
    %v3478 = vunpack.c.h.b16 %v2652
    %v3479 = vunpack.c.l.b16 %v2653
    %v3480 = vunpack.c.h.b16 %v2653
    %v3481 = vunpack.c.l.b16 %v2654
    %v3482 = vunpack.c.h.b16 %v2654
    %v3483 = vunpack.c.l.b16 %v2655
    %v3484 = vunpack.c.h.b16 %v2655
    %v3485 = vunpack.c.l.b16 %v2656
    %v3486 = vunpack.c.h.b16 %v2656
    %v3487 = vunpack.c.l.b16 %v2657
    %v3488 = vunpack.c.h.b16 %v2657
    %v3489 = vunpack.c.l.b16 %v2658
    %v3490 = vunpack.c.h.b16 %v2658
    %v3491 = vunpack.c.l.b16 %v2659
    %v3492 = vunpack.c.h.b16 %v2659
    %v3493 = vunpack.c.l.b16 %v2660
    %v3494 = vunpack.c.h.b16 %v2660
    %v3495 = vunpack.c.l.b16 %v2661
    %v3496 = vunpack.c.h.b16 %v2661
    %v3497 = vunpack.c.l.b16 %v2662
    %v3498 = vunpack.c.h.b16 %v2662
    %v3499 = vunpack.c.l.b16 %v2663
    %v3500 = vunpack.c.h.b16 %v2663
    %v3501 = vunpack.c.l.b16 %v2664
    %v3502 = vunpack.c.h.b16 %v2664
    %v3503 = vunpack.c.l.b16 %v2665
    %v3504 = vunpack.c.h.b16 %v2665
    %v3505 = vunpack.c.l.b16 %v2666
    %v3506 = vunpack.c.h.b16 %v2666
    %v3507 = vunpack.c.l.b16 %v2667
    %v3508 = vunpack.c.h.b16 %v2667
    %v3509 = vunpack.c.l.b16 %v2668
    %v3510 = vunpack.c.h.b16 %v2668
    %v3511 = vunpack.c.l.b16 %v2669
    %v3512 = vunpack.c.h.b16 %v2669
    %v3513 = vunpack.c.l.b16 %v2670
    %v3514 = vunpack.c.h.b16 %v2670
    %v3515 = vunpack.c.l.b16 %v2671
    %v3516 = vunpack.c.h.b16 %v2671
    %v3517 = vunpack.c.l.b16 %v2672
    %v3518 = vunpack.c.h.b16 %v2672
    %v3519 = vunpack.c.l.b16 %v2673
    %v3520 = vunpack.c.h.b16 %v2673
    %v3521 = vunpack.c.l.b16 %v2674
    %v3522 = vunpack.c.h.b16 %v2674
    %v3523 = vunpack.c.l.b16 %v2675
    %v3524 = vunpack.c.h.b16 %v2675
    %v3525 = vunpack.c.l.b16 %v2676
    %v3526 = vunpack.c.h.b16 %v2676
    %v3527 = vunpack.c.l.b16 %v2677
    %v3528 = vunpack.c.h.b16 %v2677
    %v3529 = vunpack.c.l.b16 %v2678
    %v3530 = vunpack.c.h.b16 %v2678
    %v3531 = vunpack.c.l.b16 %v2679
    %v3532 = vunpack.c.h.b16 %v2679
    %v3533 = vunpack.c.l.b16 %v2680
    %v3534 = vunpack.c.h.b16 %v2680
    %v3535 = vunpack.c.l.b16 %v2681
    %v3536 = vunpack.c.h.b16 %v2681
    %v3537 = vunpack.c.l.b16 %v2682
    %v3538 = vunpack.c.h.b16 %v2682
    %v3539 = vunpack.c.l.b16 %v2683
    %v3540 = vunpack.c.h.b16 %v2683
    %v3541 = vunpack.c.l.b16 %v2684
    %v3542 = vunpack.c.h.b16 %v2684
    %v3543 = vunpack.c.l.b16 %v2685
    %v3544 = vunpack.c.h.b16 %v2685
    %v3545 = vunpack.c.l.b16 %v2686
    %v3546 = vunpack.c.h.b16 %v2686
    %v3547 = vunpack.c.l.b16 %v2687
    %v3548 = vunpack.c.h.b16 %v2687
    %v3549 = vunpack.c.l.b16 %v2688
    %v3550 = vunpack.c.h.b16 %v2688
    %v3551 = vunpack.c.l.b16 %v2689
    %v3552 = vunpack.c.h.b16 %v2689
    %v3553 = vunpack.c.l.b16 %v2690
    %v3554 = vunpack.c.h.b16 %v2690
    %v3555 = vunpack.c.l.b16 %v2691
    %v3556 = vunpack.c.h.b16 %v2691
    %v3557 = vunpack.c.l.b16 %v2692
    %v3558 = vunpack.c.h.b16 %v2692
    %v3559 = vunpack.c.l.b16 %v2693
    %v3560 = vunpack.c.h.b16 %v2693
    %v3561 = vunpack.c.l.b16 %v2694
    %v3562 = vunpack.c.h.b16 %v2694
    %v3563 = vunpack.c.l.b16 %v2695
    %v3564 = vunpack.c.h.b16 %v2695
    %v3565 = vunpack.c.l.b16 %v2696
    %v3566 = vunpack.c.h.b16 %v2696
    %v3567 = vunpack.c.l.b16 %v2697
    %v3568 = vunpack.c.h.b16 %v2697
    %v3569 = vunpack.c.l.b16 %v2698
    %v3570 = vunpack.c.h.b16 %v2698
    %v3571 = vunpack.c.l.b16 %v2699
    %v3572 = vunpack.c.h.b16 %v2699
    %v3573 = vunpack.c.l.b16 %v2700
    %v3574 = vunpack.c.h.b16 %v2700
    %v3575 = vunpack.c.l.b16 %v2701
    %v3576 = vunpack.c.h.b16 %v2701
    %v3577 = vunpack.c.l.b16 %v2702
    %v3578 = vunpack.c.h.b16 %v2702
    %v3579 = vunpack.c.l.b16 %v2703
    %v3580 = vunpack.c.h.b16 %v2703
    %v3581 = vunpack.c.l.b16 %v2704
    %v3582 = vunpack.c.h.b16 %v2704
    %v3583 = vunpack.c.l.b16 %v2705
    %v3584 = vunpack.c.h.b16 %v2705
    %v3585 = vunpack.c.l.b16 %v2706
    %v3586 = vunpack.c.h.b16 %v2706
    %v3587 = vunpack.c.l.b16 %v2707
    %v3588 = vunpack.c.h.b16 %v2707
    %v3589 = vunpack.c.l.b16 %v2708
    %v3590 = vunpack.c.h.b16 %v2708
    %v3591 = vunpack.c.l.b16 %v2709
    %v3592 = vunpack.c.h.b16 %v2709
    %v3593 = vunpack.c.l.b16 %v2710
    %v3594 = vunpack.c.h.b16 %v2710
    %v3595 = vunpack.c.l.b16 %v2711
    %v3596 = vunpack.c.h.b16 %v2711
    %v3597 = vunpack.c.l.b16 %v2712
    %v3598 = vunpack.c.h.b16 %v2712
    %v3599 = vunpack.c.l.b16 %v2713
    %v3600 = vunpack.c.h.b16 %v2713
    %v3601 = vunpack.c.l.b16 %v2714
    %v3602 = vunpack.c.h.b16 %v2714
    %v3603 = vunpack.c.l.b16 %v2715
    %v3604 = vunpack.c.h.b16 %v2715
    %v3605 = vunpack.c.l.b16 %v2716
    %v3606 = vunpack.c.h.b16 %v2716
    %v3607 = vunpack.c.l.b16 %v2717
    %v3608 = vunpack.c.h.b16 %v2717
    %v3609 = vunpack.c.l.b16 %v2718
    %v3610 = vunpack.c.h.b16 %v2718
    %v3611 = vunpack.c.l.b16 %v2719
    %v3612 = vunpack.c.h.b16 %v2719
    %v3613 = vunpack.c.l.b16 %v2720
    %v3614 = vunpack.c.h.b16 %v2720
    %v3615 = vunpack.c.l.b16 %v2721
    %v3616 = vunpack.c.h.b16 %v2721
    %v3617 = vunpack.c.l.b16 %v2722
    %v3618 = vunpack.c.h.b16 %v2722
    %v3619 = vunpack.c.l.b16 %v2723
    %v3620 = vunpack.c.h.b16 %v2723
    %v3621 = vunpack.c.l.b16 %v2724
    %v3622 = vunpack.c.h.b16 %v2724
    %v3623 = vunpack.c.l.b16 %v2725
    %v3624 = vunpack.c.h.b16 %v2725
    %v3625 = vunpack.c.l.b16 %v2726
    %v3626 = vunpack.c.h.b16 %v2726
    %v3627 = vunpack.c.l.b16 %v2727
    %v3628 = vunpack.c.h.b16 %v2727
    %v3629 = vunpack.c.l.b16 %v2728
    %v3630 = vunpack.c.h.b16 %v2728
    %v3631 = vunpack.c.l.b16 %v2729
    %v3632 = vunpack.c.h.b16 %v2729
    %v3633 = vunpack.c.l.b16 %v2730
    %v3634 = vunpack.c.h.b16 %v2730
    %v3635 = vunpack.c.l.b16 %v2731
    %v3636 = vunpack.c.h.b16 %v2731
    %v3637 = vunpack.c.l.b16 %v2732
    %v3638 = vunpack.c.h.b16 %v2732
    %v3639 = vunpack.c.l.b16 %v2733
    %v3640 = vunpack.c.h.b16 %v2733
    %v3641 = vunpack.c.l.b16 %v2734
    %v3642 = vunpack.c.h.b16 %v2734
    %v3643 = vunpack.c.l.b16 %v2735
    %v3644 = vunpack.c.h.b16 %v2735
    %v3645 = vunpack.c.l.b16 %v2736
    %v3646 = vunpack.c.h.b16 %v2736
    %v3647 = vunpack.c.l.b16 %v2737
    %v3648 = vunpack.c.h.b16 %v2737
    %v3649 = vunpack.c.l.b16 %v2738
    %v3650 = vunpack.c.h.b16 %v2738
    %v3651 = vunpack.c.l.b16 %v2739
    %v3652 = vunpack.c.h.b16 %v2739
    %v3653 = vunpack.c.l.b16 %v2740
    %v3654 = vunpack.c.h.b16 %v2740
    %v3655 = vunpack.c.l.b16 %v2741
    %v3656 = vunpack.c.h.b16 %v2741
    %v3657 = vunpack.c.l.b16 %v2742
    %v3658 = vunpack.c.h.b16 %v2742
    %v3659 = vunpack.c.l.b16 %v2743
    %v3660 = vunpack.c.h.b16 %v2743
    %v3661 = vunpack.c.l.b16 %v2744
    %v3662 = vunpack.c.h.b16 %v2744
    %v3663 = vunpack.c.l.b16 %v2745
    %v3664 = vunpack.c.h.b16 %v2745
    %v3665 = vunpack.c.l.b16 %v2746
    %v3666 = vunpack.c.h.b16 %v2746
    %v3667 = vunpack.c.l.b16 %v2747
    %v3668 = vunpack.c.h.b16 %v2747
    %v3669 = vunpack.c.l.b16 %v2748
    %v3670 = vunpack.c.h.b16 %v2748
    %v3671 = vunpack.c.l.b16 %v2749
    %v3672 = vunpack.c.h.b16 %v2749
    %v3673 = vunpack.c.l.b16 %v2750
    %v3674 = vunpack.c.h.b16 %v2750
    %v3675 = vunpack.c.l.b16 %v2751
    %v3676 = vunpack.c.h.b16 %v2751
    %v3677 = vunpack.c.l.b16 %v2752
    %v3678 = vunpack.c.h.b16 %v2752
    %v3679 = vunpack.c.l.b16 %v2753
    %v3680 = vunpack.c.h.b16 %v2753
    %v3681 = vunpack.c.l.b16 %v2754
    %v3682 = vunpack.c.h.b16 %v2754
    %v3683 = vunpack.c.l.b16 %v2755
    %v3684 = vunpack.c.h.b16 %v2755
    %v3685 = vunpack.c.l.b16 %v2756
    %v3686 = vunpack.c.h.b16 %v2756
    %v3687 = vunpack.c.l.b16 %v2757
    %v3688 = vunpack.c.h.b16 %v2757
    %v3689 = vunpack.c.l.b16 %v2758
    %v3690 = vunpack.c.h.b16 %v2758
    %v3691 = vunpack.c.l.b16 %v2759
    %v3692 = vunpack.c.h.b16 %v2759
    %v3693 = vunpack.c.l.b16 %v2760
    %v3694 = vunpack.c.h.b16 %v2760
    %v3695 = vunpack.c.l.b16 %v2761
    %v3696 = vunpack.c.h.b16 %v2761
    %v3697 = vunpack.c.l.b16 %v2762
    %v3698 = vunpack.c.h.b16 %v2762
    %v3699 = vunpack.c.l.b16 %v2763
    %v3700 = vunpack.c.h.b16 %v2763
    %v3701 = vunpack.c.l.b16 %v2764
    %v3702 = vunpack.c.h.b16 %v2764
    %v3703 = vunpack.c.l.b16 %v2765
    %v3704 = vunpack.c.h.b16 %v2765
    %v3705 = vunpack.c.l.b16 %v2766
    %v3706 = vunpack.c.h.b16 %v2766
    %v3707 = vunpack.c.l.b16 %v2767
    %v3708 = vunpack.c.h.b16 %v2767
    %v3709 = vunpack.c.l.b16 %v2768
    %v3710 = vunpack.c.h.b16 %v2768
    %v3711 = vunpack.c.l.b16 %v2769
    %v3712 = vunpack.c.h.b16 %v2769
    %v3713 = vunpack.c.l.b16 %v2770
    %v3714 = vunpack.c.h.b16 %v2770
    %v3715 = vunpack.c.l.b16 %v2771
    %v3716 = vunpack.c.h.b16 %v2771
    %v3717 = vunpack.c.l.b16 %v2772
    %v3718 = vunpack.c.h.b16 %v2772
    %v3719 = vunpack.c.l.b16 %v2773
    %v3720 = vunpack.c.h.b16 %v2773
    %v3721 = vunpack.c.l.b16 %v2774
    %v3722 = vunpack.c.h.b16 %v2774
    %v3723 = vunpack.c.l.b16 %v2775
    %v3724 = vunpack.c.h.b16 %v2775
    %v3725 = vunpack.c.l.b16 %v2776
    %v3726 = vunpack.c.h.b16 %v2776
    %v3727 = vunpack.c.l.b16 %v2777
    %v3728 = vunpack.c.h.b16 %v2777
    %v3729 = vunpack.c.l.b16 %v2778
    %v3730 = vunpack.c.h.b16 %v2778
    %v3731 = vunpack.c.l.b16 %v2779
    %v3732 = vunpack.c.h.b16 %v2779
    %v3733 = vunpack.c.l.b16 %v2780
    %v3734 = vunpack.c.h.b16 %v2780
    %v3735 = vunpack.c.l.b16 %v2781
    %v3736 = vunpack.c.h.b16 %v2781
    %v3737 = vunpack.c.l.b16 %v2782
    %v3738 = vunpack.c.h.b16 %v2782
    %v3739 = vunpack.c.l.b16 %v2783
    %v3740 = vunpack.c.h.b16 %v2783
    %v3741 = vunpack.c.l.b16 %v2784
    %v3742 = vunpack.c.h.b16 %v2784
    %v3743 = vunpack.c.l.b16 %v2785
    %v3744 = vunpack.c.h.b16 %v2785
    %v3745 = vunpack.c.l.b16 %v2786
    %v3746 = vunpack.c.h.b16 %v2786
    %v3747 = vunpack.c.l.b16 %v2787
    %v3748 = vunpack.c.h.b16 %v2787
    %v3749 = vunpack.c.l.b16 %v2788
    %v3750 = vunpack.c.h.b16 %v2788
    %v3751 = vunpack.c.l.b16 %v2789
    %v3752 = vunpack.c.h.b16 %v2789
    %v3753 = vunpack.c.l.b16 %v2790
    %v3754 = vunpack.c.h.b16 %v2790
    %v3755 = vunpack.c.l.b16 %v2791
    %v3756 = vunpack.c.h.b16 %v2791
    %v3757 = vunpack.c.l.b16 %v2792
    %v3758 = vunpack.c.h.b16 %v2792
    %v3759 = vunpack.c.l.b16 %v2793
    %v3760 = vunpack.c.h.b16 %v2793
    %v3761 = vunpack.c.l.b16 %v2794
    %v3762 = vunpack.c.h.b16 %v2794
    %v3763 = vunpack.c.l.b16 %v2795
    %v3764 = vunpack.c.h.b16 %v2795
    %v3765 = vunpack.c.l.b16 %v2796
    %v3766 = vunpack.c.h.b16 %v2796
    %v3767 = vunpack.c.l.b16 %v2797
    %v3768 = vunpack.c.h.b16 %v2797
    %v3769 = vunpack.c.l.b16 %v2798
    %v3770 = vunpack.c.h.b16 %v2798
    %v3771 = vunpack.c.l.b16 %v2799
    %v3772 = vunpack.c.h.b16 %v2799
    %v3773 = vunpack.c.l.b16 %v2800
    %v3774 = vunpack.c.h.b16 %v2800
    %v3775 = vunpack.c.l.b16 %v2801
    %v3776 = vunpack.c.h.b16 %v2801
    %v3777 = vunpack.c.l.b16 %v2802
    %v3778 = vunpack.c.h.b16 %v2802
    %v3779 = vunpack.c.l.b16 %v2803
    %v3780 = vunpack.c.h.b16 %v2803
    %v3781 = vunpack.c.l.b16 %v2804
    %v3782 = vunpack.c.h.b16 %v2804
    %v3783 = vunpack.c.l.b16 %v2805
    %v3784 = vunpack.c.h.b16 %v2805
    %v3785 = vunpack.c.l.b16 %v2806
    %v3786 = vunpack.c.h.b16 %v2806
    %v3787 = vunpack.c.l.b16 %v2807
    %v3788 = vunpack.c.h.b16 %v2807
    %v3789 = vunpack.c.l.b16 %v2808
    %v3790 = vunpack.c.h.b16 %v2808
    %v3791 = vunpack.c.l.b16 %v2809
    %v3792 = vunpack.c.h.b16 %v2809
    %v3793 = vunpack.c.l.b16 %v2810
    %v3794 = vunpack.c.h.b16 %v2810
    %v3795 = vunpack.c.l.b16 %v2811
    %v3796 = vunpack.c.h.b16 %v2811
    %v3797 = vunpack.c.l.b16 %v2812
    %v3798 = vunpack.c.h.b16 %v2812
    %v3799 = vunpack.c.l.b16 %v2813
    %v3800 = vunpack.c.h.b16 %v2813
    %v3801 = vunpack.c.l.b16 %v2814
    %v3802 = vunpack.c.h.b16 %v2814
    %v3803 = vunpack.c.l.b16 %v2815
    %v3804 = vunpack.c.h.b16 %v2815
    %v3805 = vunpack.c.l.b16 %v2816
    %v3806 = vunpack.c.h.b16 %v2816
    %v3807 = vunpack.c.l.b16 %v2817
    %v3808 = vunpack.c.h.b16 %v2817
    %v3809 = vunpack.c.l.b16 %v2818
    %v3810 = vunpack.c.h.b16 %v2818
    %v3811 = vunpack.c.l.b16 %v2819
    %v3812 = vunpack.c.h.b16 %v2819
    %v3813 = vunpack.c.l.b16 %v2820
    %v3814 = vunpack.c.h.b16 %v2820
    %v3815 = vunpack.c.l.b16 %v2821
    %v3816 = vunpack.c.h.b16 %v2821
    %v3817 = vunpack.c.l.b16 %v2822
    %v3818 = vunpack.c.h.b16 %v2822
    %v3819 = vunpack.c.l.b16 %v2823
    %v3820 = vunpack.c.h.b16 %v2823
    %v3821 = vunpack.c.l.b16 %v2824
    %v3822 = vunpack.c.h.b16 %v2824
    %v3823 = vunpack.c.l.b16 %v2825
    %v3824 = vunpack.c.h.b16 %v2825
    %v3825 = vunpack.c.l.b16 %v2826
    %v3826 = vunpack.c.h.b16 %v2826
    %v3827 = vunpack.c.l.b16 %v2827
    %v3828 = vunpack.c.h.b16 %v2827
    %v3829 = vunpack.c.l.b16 %v2828
    %v3830 = vunpack.c.h.b16 %v2828
    %v3831 = vunpack.c.l.b16 %v2829
    %v3832 = vunpack.c.h.b16 %v2829
    %v3833 = vunpack.c.l.b16 %v2830
    %v3834 = vunpack.c.h.b16 %v2830
    %v3835 = vunpack.c.l.b16 %v2831
    %v3836 = vunpack.c.h.b16 %v2831
    %v3837 = vunpack.c.l.b16 %v2832
    %v3838 = vunpack.c.h.b16 %v2832
    %v3839 = vunpack.c.l.b16 %v2833
    %v3840 = vunpack.c.h.b16 %v2833
    %v3841 = vunpack.c.l.b16 %v2834
    %v3842 = vunpack.c.h.b16 %v2834
    %v3843 = vunpack.c.l.b16 %v2835
    %v3844 = vunpack.c.h.b16 %v2835
    %v3845 = vunpack.c.l.b16 %v2836
    %v3846 = vunpack.c.h.b16 %v2836
    %v3847 = vunpack.c.l.b16 %v2837
    %v3848 = vunpack.c.h.b16 %v2837
    %v3849 = vunpack.c.l.b16 %v2838
    %v3850 = vunpack.c.h.b16 %v2838
    %v3851 = vunpack.c.l.b16 %v2839
    %v3852 = vunpack.c.h.b16 %v2839
    %v3853 = vunpack.c.l.b16 %v2840
    %v3854 = vunpack.c.h.b16 %v2840
    %v3855 = vunpack.c.l.b16 %v2841
    %v3856 = vunpack.c.h.b16 %v2841
    %v3857 = vunpack.c.l.b16 %v2842
    %v3858 = vunpack.c.h.b16 %v2842
    %v3859 = vunpack.c.l.b16 %v2843
    %v3860 = vunpack.c.h.b16 %v2843
    %v3861 = vunpack.c.l.b16 %v2844
    %v3862 = vunpack.c.h.b16 %v2844
    %v3863 = vunpack.c.l.b16 %v2845
    %v3864 = vunpack.c.h.b16 %v2845
    %v3865 = vunpack.c.l.b16 %v2846
    %v3866 = vunpack.c.h.b16 %v2846
    %v3867 = vunpack.c.l.b16 %v2847
    %v3868 = vunpack.c.h.b16 %v2847
    %v3869 = vunpack.c.l.b16 %v2848
    %v3870 = vunpack.c.h.b16 %v2848
    %v3871 = vunpack.c.l.b16 %v2849
    %v3872 = vunpack.c.h.b16 %v2849
    %v3873 = vunpack.c.l.b16 %v2850
    %v3874 = vunpack.c.h.b16 %v2850
    %v3875 = vunpack.c.l.b16 %v2851
    %v3876 = vunpack.c.h.b16 %v2851
    %v3877 = vunpack.c.l.b16 %v2852
    %v3878 = vunpack.c.h.b16 %v2852
    %v3879 = vunpack.c.l.b16 %v2853
    %v3880 = vunpack.c.h.b16 %v2853
    %v3881 = vunpack.c.l.b16 %v2854
    %v3882 = vunpack.c.h.b16 %v2854
    %v3883 = vunpack.c.l.b16 %v2855
    %v3884 = vunpack.c.h.b16 %v2855
    %v3885 = vunpack.c.l.b16 %v2856
    %v3886 = vunpack.c.h.b16 %v2856
    %v3887 = vunpack.c.l.b16 %v2857
    %v3888 = vunpack.c.h.b16 %v2857
    %v3889 = vunpack.c.l.b16 %v2858
    %v3890 = vunpack.c.h.b16 %v2858
    %v3891 = vunpack.c.l.b16 %v2859
    %v3892 = vunpack.c.h.b16 %v2859
    %v3893 = vunpack.c.l.b16 %v2860
    %v3894 = vunpack.c.h.b16 %v2860
    %v3895 = vunpack.c.l.b16 %v2861
    %v3896 = vunpack.c.h.b16 %v2861
    %v3897 = vunpack.c.l.b16 %v2862
    %v3898 = vunpack.c.h.b16 %v2862
    %v3899 = vunpack.c.l.b16 %v2863
    %v3900 = vunpack.c.h.b16 %v2863
    %v3901 = vunpack.c.l.b16 %v2864
    %v3902 = vunpack.c.h.b16 %v2864
    %v3903 = vunpack.c.l.b16 %v2865
    %v3904 = vunpack.c.h.b16 %v2865
    %v3905 = vunpack.c.l.b16 %v2866
    %v3906 = vunpack.c.h.b16 %v2866
    %v3907 = vunpack.c.l.b16 %v2867
    %v3908 = vunpack.c.h.b16 %v2867
    %v3909 = vunpack.c.l.b16 %v2868
    %v3910 = vunpack.c.h.b16 %v2868
    %v3911 = vunpack.c.l.b16 %v2869
    %v3912 = vunpack.c.h.b16 %v2869
    %v3913 = vunpack.c.l.b16 %v2870
    %v3914 = vunpack.c.h.b16 %v2870
    %v3915 = vunpack.c.l.b16 %v2871
    %v3916 = vunpack.c.h.b16 %v2871
    %v3917 = vunpack.c.l.b16 %v2872
    %v3918 = vunpack.c.h.b16 %v2872
    %v3919 = vunpack.c.l.b16 %v2873
    %v3920 = vunpack.c.h.b16 %v2873
    %v3921 = vunpack.c.l.b16 %v2874
    %v3922 = vunpack.c.h.b16 %v2874
    %v3923 = vunpack.c.l.b16 %v2875
    %v3924 = vunpack.c.h.b16 %v2875
    %v3925 = vunpack.c.l.b16 %v2876
    %v3926 = vunpack.c.h.b16 %v2876
    %v3927 = vunpack.c.l.b16 %v2877
    %v3928 = vunpack.c.h.b16 %v2877
    %v3929 = vunpack.c.l.b16 %v2878
    %v3930 = vunpack.c.h.b16 %v2878
    %v3931 = vunpack.c.l.b16 %v2879
    %v3932 = vunpack.c.h.b16 %v2879
    %v3933 = vunpack.c.l.b16 %v2880
    %v3934 = vunpack.c.h.b16 %v2880
    %v3935 = vunpack.c.l.b16 %v2881
    %v3936 = vunpack.c.h.b16 %v2881
    %v3937 = vunpack.c.l.b16 %v2882
    %v3938 = vunpack.c.h.b16 %v2882
    %v3939 = vunpack.c.l.b16 %v2883
    %v3940 = vunpack.c.h.b16 %v2883
    %v3941 = vunpack.c.l.b16 %v2884
    %v3942 = vunpack.c.h.b16 %v2884
    %v3943 = vunpack.c.l.b16 %v2885
    %v3944 = vunpack.c.h.b16 %v2885
    %v3945 = vunpack.c.l.b16 %v2886
    %v3946 = vunpack.c.h.b16 %v2886
    %v3947 = vunpack.c.l.b16 %v2887
    %v3948 = vunpack.c.h.b16 %v2887
    %v3949 = vunpack.c.l.b16 %v2888
    %v3950 = vunpack.c.h.b16 %v2888
    %v3951 = vunpack.c.l.b16 %v2889
    %v3952 = vunpack.c.h.b16 %v2889
    %v3953 = vunpack.c.l.b16 %v2890
    %v3954 = vunpack.c.h.b16 %v2890
    %v3955 = vunpack.c.l.b16 %v2891
    %v3956 = vunpack.c.h.b16 %v2891
    %v3957 = vunpack.c.l.b16 %v2892
    %v3958 = vunpack.c.h.b16 %v2892
    %v3959 = vunpack.c.l.b16 %v2893
    %v3960 = vunpack.c.h.b16 %v2893
    %v3961 = vunpack.c.l.b16 %v2894
    %v3962 = vunpack.c.h.b16 %v2894
    %v3963 = vunpack.c.l.b16 %v2895
    %v3964 = vunpack.c.h.b16 %v2895
    %v3965 = vunpack.c.l.b16 %v2896
    %v3966 = vunpack.c.h.b16 %v2896
    %v3967 = vunpack.c.l.b16 %v2897
    %v3968 = vunpack.c.h.b16 %v2897
    %v3969 = vunpack.c.l.b16 %v2898
    %v3970 = vunpack.c.h.b16 %v2898
    %v3971 = vunpack.c.l.b16 %v2899
    %v3972 = vunpack.c.h.b16 %v2899
    %v3973 = vunpack.c.l.b16 %v2900
    %v3974 = vunpack.c.h.b16 %v2900
    %v3975 = vunpack.c.l.b16 %v2901
    %v3976 = vunpack.c.h.b16 %v2901
    %v3977 = vunpack.c.l.b16 %v2902
    %v3978 = vunpack.c.h.b16 %v2902
    %v3979 = vunpack.c.l.b16 %v2903
    %v3980 = vunpack.c.h.b16 %v2903
    %v3981 = vunpack.c.l.b16 %v2904
    %v3982 = vunpack.c.h.b16 %v2904
    %v3983 = vunpack.c.l.b16 %v2905
    %v3984 = vunpack.c.h.b16 %v2905
    %v3985 = vunpack.c.l.b16 %v2906
    %v3986 = vunpack.c.h.b16 %v2906
    %v3987 = vunpack.c.l.b16 %v2907
    %v3988 = vunpack.c.h.b16 %v2907
    %v3989 = vunpack.c.l.b16 %v2908
    %v3990 = vunpack.c.h.b16 %v2908
    %v3991 = vunpack.c.l.b16 %v2909
    %v3992 = vunpack.c.h.b16 %v2909
    %v3993 = vunpack.c.l.b16 %v2910
    %v3994 = vunpack.c.h.b16 %v2910
    %v3995 = vunpack.c.l.b16 %v2911
    %v3996 = vunpack.c.h.b16 %v2911
    %v3997 = vunpack.c.l.b16 %v2912
    %v3998 = vunpack.c.h.b16 %v2912
    %v3999 = vunpack.c.l.b16 %v2913
    %v4000 = vunpack.c.h.b16 %v2913
    %v4001 = vunpack.c.l.b16 %v2914
    %v4002 = vunpack.c.h.b16 %v2914
    %v4003 = vunpack.c.l.b16 %v2915
    %v4004 = vunpack.c.h.b16 %v2915
    %v4005 = vunpack.c.l.b16 %v2916
    %v4006 = vunpack.c.h.b16 %v2916
    %v4007 = vunpack.c.l.b16 %v2917
    %v4008 = vunpack.c.h.b16 %v2917
    %v4009 = vunpack.c.l.b16 %v2918
    %v4010 = vunpack.c.h.b16 %v2918
    %v4011 = vunpack.c.l.b16 %v2919
    %v4012 = vunpack.c.h.b16 %v2919
    %v4013 = vunpack.c.l.b16 %v2920
    %v4014 = vunpack.c.h.b16 %v2920
    %v4015 = vunpack.c.l.b16 %v2921
    %v4016 = vunpack.c.h.b16 %v2921
    %v4017 = vunpack.c.l.b16 %v2922
    %v4018 = vunpack.c.h.b16 %v2922
    %v4019 = vunpack.c.l.b16 %v2923
    %v4020 = vunpack.c.h.b16 %v2923
    %v4021 = vunpack.c.l.b16 %v2924
    %v4022 = vunpack.c.h.b16 %v2924
    %v4023 = vunpack.c.l.b16 %v2925
    %v4024 = vunpack.c.h.b16 %v2925
    %v4025 = vunpack.c.l.b16 %v2926
    %v4026 = vunpack.c.h.b16 %v2926
    %v4027 = vunpack.c.l.b16 %v2927
    %v4028 = vunpack.c.h.b16 %v2927
    %v4029 = vunpack.c.l.b16 %v2928
    %v4030 = vunpack.c.h.b16 %v2928
    %v4031 = vunpack.c.l.b16 %v2929
    %v4032 = vunpack.c.h.b16 %v2929
    %v4033 = vunpack.c.l.b16 %v2930
    %v4034 = vunpack.c.h.b16 %v2930
    %v4035 = vunpack.c.l.b16 %v2931
    %v4036 = vunpack.c.h.b16 %v2931
    %v4037 = vunpack.c.l.b16 %v2932
    %v4038 = vunpack.c.h.b16 %v2932
    %v4039 = vunpack.c.l.b16 %v2933
    %v4040 = vunpack.c.h.b16 %v2933
    %v4041 = vunpack.c.l.b16 %v2934
    %v4042 = vunpack.c.h.b16 %v2934
    %v4043 = vunpack.c.l.b16 %v2935
    %v4044 = vunpack.c.h.b16 %v2935
    %v4045 = vunpack.c.l.b16 %v2936
    %v4046 = vunpack.c.h.b16 %v2936
    %v4047 = vunpack.c.l.b16 %v2937
    %v4048 = vunpack.c.h.b16 %v2937
    %v4049 = vunpack.c.l.b16 %v2938
    %v4050 = vunpack.c.h.b16 %v2938
    %v4051 = vunpack.c.l.b16 %v2939
    %v4052 = vunpack.c.h.b16 %v2939
    %v4053 = vunpack.c.l.b16 %v2940
    %v4054 = vunpack.c.h.b16 %v2940
    %v4055 = vunpack.c.l.b16 %v2941
    %v4056 = vunpack.c.h.b16 %v2941
    %v4057 = vunpack.c.l.b16 %v2942
    %v4058 = vunpack.c.h.b16 %v2942
    %v4059 = vunpack.c.l.b16 %v2943
    %v4060 = vunpack.c.h.b16 %v2943
    %v4061 = vunpack.c.l.b16 %v2944
    %v4062 = vunpack.c.h.b16 %v2944
    %v4063 = vunpack.c.l.b16 %v2945
    %v4064 = vunpack.c.h.b16 %v2945
    %v4065 = vunpack.c.l.b16 %v2946
    %v4066 = vunpack.c.h.b16 %v2946
    %v4067 = vunpack.c.l.b16 %v2947
    %v4068 = vunpack.c.h.b16 %v2947
    %v4069 = vunpack.c.l.b16 %v2948
    %v4070 = vunpack.c.h.b16 %v2948
    %v4071 = vunpack.c.l.b16 %v2949
    %v4072 = vunpack.c.h.b16 %v2949
    %v4073 = vunpack.c.l.b16 %v2950
    %v4074 = vunpack.c.h.b16 %v2950
    %v4075 = vunpack.c.l.b16 %v2951
    %v4076 = vunpack.c.h.b16 %v2951
    %v4077 = vunpack.c.l.b16 %v2952
    %v4078 = vunpack.c.h.b16 %v2952
    %v4079 = vunpack.c.l.b16 %v2953
    %v4080 = vunpack.c.h.b16 %v2953
    %v4081 = vunpack.c.l.b16 %v2954
    %v4082 = vunpack.c.h.b16 %v2954
    %v4083 = vunpack.c.l.b16 %v2955
    %v4084 = vunpack.c.h.b16 %v2955
    %v4085 = vunpack.c.l.b16 %v2956
    %v4086 = vunpack.c.h.b16 %v2956
    %v4087 = vunpack.c.l.b16 %v2957
    %v4088 = vunpack.c.h.b16 %v2957
    %v4089 = vunpack.c.l.b16 %v2958
    %v4090 = vunpack.c.h.b16 %v2958
    %v4091 = vunpack.c.l.b16 %v2959
    %v4092 = vunpack.c.h.b16 %v2959
    %v4093 = vunpack.c.l.b16 %v2960
    %v4094 = vunpack.c.h.b16 %v2960
    %v4095 = vunpack.c.l.b16 %v2961
    %v4096 = vunpack.c.h.b16 %v2961
    %v4097 = vunpack.c.l.b16 %v2962
    %v4098 = vunpack.c.h.b16 %v2962
    %v4099 = vunpack.c.l.b16 %v2963
    %v4100 = vunpack.c.h.b16 %v2963
    %v4101 = vunpack.c.l.b16 %v2964
    %v4102 = vunpack.c.h.b16 %v2964
    %v4103 = vunpack.c.l.b16 %v2965
    %v4104 = vunpack.c.h.b16 %v2965
    %v4105 = vunpack.c.l.b16 %v2966
    %v4106 = vunpack.c.h.b16 %v2966
    %v4107 = vunpack.c.l.b16 %v2967
    %v4108 = vunpack.c.h.b16 %v2967
    %v4109 = vunpack.c.l.b16 %v2968
    %v4110 = vunpack.c.h.b16 %v2968
    %v4111 = vunpack.c.l.b16 %v2969
    %v4112 = vunpack.c.h.b16 %v2969
    %v4113 = vunpack.c.l.b16 %v2970
    %v4114 = vunpack.c.h.b16 %v2970
    %v4115 = vunpack.c.l.b16 %v2971
    %v4116 = vunpack.c.h.b16 %v2971
    %v4117 = vunpack.c.l.b16 %v2972
    %v4118 = vunpack.c.h.b16 %v2972
    %v4119 = vunpack.c.l.b16 %v2973
    %v4120 = vunpack.c.h.b16 %v2973
    %v4121 = vunpack.c.l.b16 %v2974
    %v4122 = vunpack.c.h.b16 %v2974
    %v4123 = vunpack.c.l.b16 %v2975
    %v4124 = vunpack.c.h.b16 %v2975
    %v4125 = vunpack.c.l.b16 %v2976
    %v4126 = vunpack.c.h.b16 %v2976
    %v4127 = vunpack.c.l.b16 %v2977
    %v4128 = vunpack.c.h.b16 %v2977
    %v4129 = vunpack.c.l.b16 %v2978
    %v4130 = vunpack.c.h.b16 %v2978
    %v4131 = vpack.c.b16 %v3367, %v3363
    %v4132 = vpack.c.b16 %v3368, %v3364
    %v4133 = vpack.c.b16 %v3369, %v3365
    %v4134 = vpack.c.b16 %v3370, %v3366
    %v4135 = vpack.c.b16 %v3375, %v3371
    %v4136 = vpack.c.b16 %v3376, %v3372
    %v4137 = vpack.c.b16 %v3377, %v3373
    %v4138 = vpack.c.b16 %v3378, %v3374
    %v4139 = vpack.c.b16 %v3383, %v3379
    %v4140 = vpack.c.b16 %v3384, %v3380
    %v4141 = vpack.c.b16 %v3385, %v3381
    %v4142 = vpack.c.b16 %v3386, %v3382
    %v4143 = vpack.c.b16 %v3391, %v3387
    %v4144 = vpack.c.b16 %v3392, %v3388
    %v4145 = vpack.c.b16 %v3393, %v3389
    %v4146 = vpack.c.b16 %v3394, %v3390
    %v4147 = vpack.c.b16 %v3399, %v3395
    %v4148 = vpack.c.b16 %v3400, %v3396
    %v4149 = vpack.c.b16 %v3401, %v3397
    %v4150 = vpack.c.b16 %v3402, %v3398
    %v4151 = vpack.c.b16 %v3407, %v3403
    %v4152 = vpack.c.b16 %v3408, %v3404
    %v4153 = vpack.c.b16 %v3409, %v3405
    %v4154 = vpack.c.b16 %v3410, %v3406
    %v4155 = vpack.c.b16 %v3415, %v3411
    %v4156 = vpack.c.b16 %v3416, %v3412
    %v4157 = vpack.c.b16 %v3417, %v3413
    %v4158 = vpack.c.b16 %v3418, %v3414
    %v4159 = vpack.c.b16 %v3423, %v3419
    %v4160 = vpack.c.b16 %v3424, %v3420
    %v4161 = vpack.c.b16 %v3425, %v3421
    %v4162 = vpack.c.b16 %v3426, %v3422
    %v4163 = vpack.c.b16 %v3431, %v3427
    %v4164 = vpack.c.b16 %v3432, %v3428
    %v4165 = vpack.c.b16 %v3433, %v3429
    %v4166 = vpack.c.b16 %v3434, %v3430
    %v4167 = vpack.c.b16 %v3439, %v3435
    %v4168 = vpack.c.b16 %v3440, %v3436
    %v4169 = vpack.c.b16 %v3441, %v3437
    %v4170 = vpack.c.b16 %v3442, %v3438
    %v4171 = vpack.c.b16 %v3447, %v3443
    %v4172 = vpack.c.b16 %v3448, %v3444
    %v4173 = vpack.c.b16 %v3449, %v3445
    %v4174 = vpack.c.b16 %v3450, %v3446
    %v4175 = vpack.c.b16 %v3455, %v3451
    %v4176 = vpack.c.b16 %v3456, %v3452
    %v4177 = vpack.c.b16 %v3457, %v3453
    %v4178 = vpack.c.b16 %v3458, %v3454
    %v4179 = vpack.c.b16 %v3463, %v3459
    %v4180 = vpack.c.b16 %v3464, %v3460
    %v4181 = vpack.c.b16 %v3465, %v3461
    %v4182 = vpack.c.b16 %v3466, %v3462
    %v4183 = vpack.c.b16 %v3471, %v3467
    %v4184 = vpack.c.b16 %v3472, %v3468
    %v4185 = vpack.c.b16 %v3473, %v3469
    %v4186 = vpack.c.b16 %v3474, %v3470
    %v4187 = vpack.c.b16 %v3479, %v3475
    %v4188 = vpack.c.b16 %v3480, %v3476
    %v4189 = vpack.c.b16 %v3481, %v3477
    %v4190 = vpack.c.b16 %v3482, %v3478
    %v4191 = vpack.c.b16 %v3487, %v3483
    %v4192 = vpack.c.b16 %v3488, %v3484
    %v4193 = vpack.c.b16 %v3489, %v3485
    %v4194 = vpack.c.b16 %v3490, %v3486
    %v4195 = vpack.c.b16 %v3495, %v3491
    %v4196 = vpack.c.b16 %v3496, %v3492
    %v4197 = vpack.c.b16 %v3497, %v3493
    %v4198 = vpack.c.b16 %v3498, %v3494
    %v4199 = vpack.c.b16 %v3503, %v3499
    %v4200 = vpack.c.b16 %v3504, %v3500
    %v4201 = vpack.c.b16 %v3505, %v3501
    %v4202 = vpack.c.b16 %v3506, %v3502
    %v4203 = vpack.c.b16 %v3511, %v3507
    %v4204 = vpack.c.b16 %v3512, %v3508
    %v4205 = vpack.c.b16 %v3513, %v3509
    %v4206 = vpack.c.b16 %v3514, %v3510
    %v4207 = vpack.c.b16 %v3519, %v3515
    %v4208 = vpack.c.b16 %v3520, %v3516
    %v4209 = vpack.c.b16 %v3521, %v3517
    %v4210 = vpack.c.b16 %v3522, %v3518
    %v4211 = vpack.c.b16 %v3527, %v3523
    %v4212 = vpack.c.b16 %v3528, %v3524
    %v4213 = vpack.c.b16 %v3529, %v3525
    %v4214 = vpack.c.b16 %v3530, %v3526
    %v4215 = vpack.c.b16 %v3535, %v3531
    %v4216 = vpack.c.b16 %v3536, %v3532
    %v4217 = vpack.c.b16 %v3537, %v3533
    %v4218 = vpack.c.b16 %v3538, %v3534
    %v4219 = vpack.c.b16 %v3543, %v3539
    %v4220 = vpack.c.b16 %v3544, %v3540
    %v4221 = vpack.c.b16 %v3545, %v3541
    %v4222 = vpack.c.b16 %v3546, %v3542
    %v4223 = vpack.c.b16 %v3551, %v3547
    %v4224 = vpack.c.b16 %v3552, %v3548
    %v4225 = vpack.c.b16 %v3553, %v3549
    %v4226 = vpack.c.b16 %v3554, %v3550
    %v4227 = vpack.c.b16 %v3559, %v3555
    %v4228 = vpack.c.b16 %v3560, %v3556
    %v4229 = vpack.c.b16 %v3561, %v3557
    %v4230 = vpack.c.b16 %v3562, %v3558
    %v4231 = vpack.c.b16 %v3567, %v3563
    %v4232 = vpack.c.b16 %v3568, %v3564
    %v4233 = vpack.c.b16 %v3569, %v3565
    %v4234 = vpack.c.b16 %v3570, %v3566
    %v4235 = vpack.c.b16 %v3575, %v3571
    %v4236 = vpack.c.b16 %v3576, %v3572
    %v4237 = vpack.c.b16 %v3577, %v3573
    %v4238 = vpack.c.b16 %v3578, %v3574
    %v4239 = vpack.c.b16 %v3583, %v3579
    %v4240 = vpack.c.b16 %v3584, %v3580
    %v4241 = vpack.c.b16 %v3585, %v3581
    %v4242 = vpack.c.b16 %v3586, %v3582
    %v4243 = vpack.c.b16 %v3591, %v3587
    %v4244 = vpack.c.b16 %v3592, %v3588
    %v4245 = vpack.c.b16 %v3593, %v3589
    %v4246 = vpack.c.b16 %v3594, %v3590
    %v4247 = vpack.c.b16 %v3599, %v3595
    %v4248 = vpack.c.b16 %v3600, %v3596
    %v4249 = vpack.c.b16 %v3601, %v3597
    %v4250 = vpack.c.b16 %v3602, %v3598
    %v4251 = vpack.c.b16 %v3607, %v3603
    %v4252 = vpack.c.b16 %v3608, %v3604
    %v4253 = vpack.c.b16 %v3609, %v3605
    %v4254 = vpack.c.b16 %v3610, %v3606
    %v4255 = vpack.c.b16 %v3615, %v3611
    %v4256 = vpack.c.b16 %v3616, %v3612
    %v4257 = vpack.c.b16 %v3617, %v3613
    %v4258 = vpack.c.b16 %v3618, %v3614
    %v4259 = vpack.c.b16 %v3623, %v3619
    %v4260 = vpack.c.b16 %v3624, %v3620
    %v4261 = vpack.c.b16 %v3625, %v3621
    %v4262 = vpack.c.b16 %v3626, %v3622
    %v4263 = vpack.c.b16 %v3631, %v3627
    %v4264 = vpack.c.b16 %v3632, %v3628
    %v4265 = vpack.c.b16 %v3633, %v3629
    %v4266 = vpack.c.b16 %v3634, %v3630
    %v4267 = vpack.c.b16 %v3639, %v3635
    %v4268 = vpack.c.b16 %v3640, %v3636
    %v4269 = vpack.c.b16 %v3641, %v3637
    %v4270 = vpack.c.b16 %v3642, %v3638
    %v4271 = vpack.c.b16 %v3647, %v3643
    %v4272 = vpack.c.b16 %v3648, %v3644
    %v4273 = vpack.c.b16 %v3649, %v3645
    %v4274 = vpack.c.b16 %v3650, %v3646
    %v4275 = vpack.c.b16 %v3655, %v3651
    %v4276 = vpack.c.b16 %v3656, %v3652
    %v4277 = vpack.c.b16 %v3657, %v3653
    %v4278 = vpack.c.b16 %v3658, %v3654
    %v4279 = vpack.c.b16 %v3663, %v3659
    %v4280 = vpack.c.b16 %v3664, %v3660
    %v4281 = vpack.c.b16 %v3665, %v3661
    %v4282 = vpack.c.b16 %v3666, %v3662
    %v4283 = vpack.c.b16 %v3671, %v3667
    %v4284 = vpack.c.b16 %v3672, %v3668
    %v4285 = vpack.c.b16 %v3673, %v3669
    %v4286 = vpack.c.b16 %v3674, %v3670
    %v4287 = vpack.c.b16 %v3679, %v3675
    %v4288 = vpack.c.b16 %v3680, %v3676
    %v4289 = vpack.c.b16 %v3681, %v3677
    %v4290 = vpack.c.b16 %v3682, %v3678
    %v4291 = vpack.c.b16 %v3687, %v3683
    %v4292 = vpack.c.b16 %v3688, %v3684
    %v4293 = vpack.c.b16 %v3689, %v3685
    %v4294 = vpack.c.b16 %v3690, %v3686
    %v4295 = vpack.c.b16 %v3695, %v3691
    %v4296 = vpack.c.b16 %v3696, %v3692
    %v4297 = vpack.c.b16 %v3697, %v3693
    %v4298 = vpack.c.b16 %v3698, %v3694
    %v4299 = vpack.c.b16 %v3703, %v3699
    %v4300 = vpack.c.b16 %v3704, %v3700
    %v4301 = vpack.c.b16 %v3705, %v3701
    %v4302 = vpack.c.b16 %v3706, %v3702
    %v4303 = vpack.c.b16 %v3711, %v3707
    %v4304 = vpack.c.b16 %v3712, %v3708
    %v4305 = vpack.c.b16 %v3713, %v3709
    %v4306 = vpack.c.b16 %v3714, %v3710
    %v4307 = vpack.c.b16 %v3719, %v3715
    %v4308 = vpack.c.b16 %v3720, %v3716
    %v4309 = vpack.c.b16 %v3721, %v3717
    %v4310 = vpack.c.b16 %v3722, %v3718
    %v4311 = vpack.c.b16 %v3727, %v3723
    %v4312 = vpack.c.b16 %v3728, %v3724
    %v4313 = vpack.c.b16 %v3729, %v3725
    %v4314 = vpack.c.b16 %v3730, %v3726
    %v4315 = vpack.c.b16 %v3735, %v3731
    %v4316 = vpack.c.b16 %v3736, %v3732
    %v4317 = vpack.c.b16 %v3737, %v3733
    %v4318 = vpack.c.b16 %v3738, %v3734
    %v4319 = vpack.c.b16 %v3743, %v3739
    %v4320 = vpack.c.b16 %v3744, %v3740
    %v4321 = vpack.c.b16 %v3745, %v3741
    %v4322 = vpack.c.b16 %v3746, %v3742
    %v4323 = vpack.c.b16 %v3751, %v3747
    %v4324 = vpack.c.b16 %v3752, %v3748
    %v4325 = vpack.c.b16 %v3753, %v3749
    %v4326 = vpack.c.b16 %v3754, %v3750
    %v4327 = vpack.c.b16 %v3759, %v3755
    %v4328 = vpack.c.b16 %v3760, %v3756
    %v4329 = vpack.c.b16 %v3761, %v3757
    %v4330 = vpack.c.b16 %v3762, %v3758
    %v4331 = vpack.c.b16 %v3767, %v3763
    %v4332 = vpack.c.b16 %v3768, %v3764
    %v4333 = vpack.c.b16 %v3769, %v3765
    %v4334 = vpack.c.b16 %v3770, %v3766
    %v4335 = vpack.c.b16 %v3775, %v3771
    %v4336 = vpack.c.b16 %v3776, %v3772
    %v4337 = vpack.c.b16 %v3777, %v3773
    %v4338 = vpack.c.b16 %v3778, %v3774
    %v4339 = vpack.c.b16 %v3783, %v3779
    %v4340 = vpack.c.b16 %v3784, %v3780
    %v4341 = vpack.c.b16 %v3785, %v3781
    %v4342 = vpack.c.b16 %v3786, %v3782
    %v4343 = vpack.c.b16 %v3791, %v3787
    %v4344 = vpack.c.b16 %v3792, %v3788
    %v4345 = vpack.c.b16 %v3793, %v3789
    %v4346 = vpack.c.b16 %v3794, %v3790
    %v4347 = vpack.c.b16 %v3799, %v3795
    %v4348 = vpack.c.b16 %v3800, %v3796
    %v4349 = vpack.c.b16 %v3801, %v3797
    %v4350 = vpack.c.b16 %v3802, %v3798
    %v4351 = vpack.c.b16 %v3807, %v3803
    %v4352 = vpack.c.b16 %v3808, %v3804
    %v4353 = vpack.c.b16 %v3809, %v3805
    %v4354 = vpack.c.b16 %v3810, %v3806
    %v4355 = vpack.c.b16 %v3815, %v3811
    %v4356 = vpack.c.b16 %v3816, %v3812
    %v4357 = vpack.c.b16 %v3817, %v3813
    %v4358 = vpack.c.b16 %v3818, %v3814
    %v4359 = vpack.c.b16 %v3823, %v3819
    %v4360 = vpack.c.b16 %v3824, %v3820
    %v4361 = vpack.c.b16 %v3825, %v3821
    %v4362 = vpack.c.b16 %v3826, %v3822
    %v4363 = vpack.c.b16 %v3831, %v3827
    %v4364 = vpack.c.b16 %v3832, %v3828
    %v4365 = vpack.c.b16 %v3833, %v3829
    %v4366 = vpack.c.b16 %v3834, %v3830
    %v4367 = vpack.c.b16 %v3839, %v3835
    %v4368 = vpack.c.b16 %v3840, %v3836
    %v4369 = vpack.c.b16 %v3841, %v3837
    %v4370 = vpack.c.b16 %v3842, %v3838
    %v4371 = vpack.c.b16 %v3847, %v3843
    %v4372 = vpack.c.b16 %v3848, %v3844
    %v4373 = vpack.c.b16 %v3849, %v3845
    %v4374 = vpack.c.b16 %v3850, %v3846
    %v4375 = vpack.c.b16 %v3855, %v3851
    %v4376 = vpack.c.b16 %v3856, %v3852
    %v4377 = vpack.c.b16 %v3857, %v3853
    %v4378 = vpack.c.b16 %v3858, %v3854
    %v4379 = vpack.c.b16 %v3863, %v3859
    %v4380 = vpack.c.b16 %v3864, %v3860
    %v4381 = vpack.c.b16 %v3865, %v3861
    %v4382 = vpack.c.b16 %v3866, %v3862
    %v4383 = vpack.c.b16 %v3871, %v3867
    %v4384 = vpack.c.b16 %v3872, %v3868
    %v4385 = vpack.c.b16 %v3873, %v3869
    %v4386 = vpack.c.b16 %v3874, %v3870
    %v4387 = vpack.c.b16 %v3879, %v3875
    %v4388 = vpack.c.b16 %v3880, %v3876
    %v4389 = vpack.c.b16 %v3881, %v3877
    %v4390 = vpack.c.b16 %v3882, %v3878
    %v4391 = vpack.c.b16 %v3887, %v3883
    %v4392 = vpack.c.b16 %v3888, %v3884
    %v4393 = vpack.c.b16 %v3889, %v3885
    %v4394 = vpack.c.b16 %v3890, %v3886
    %v4395 = vpack.c.b16 %v3895, %v3891
    %v4396 = vpack.c.b16 %v3896, %v3892
    %v4397 = vpack.c.b16 %v3897, %v3893
    %v4398 = vpack.c.b16 %v3898, %v3894
    %v4399 = vpack.c.b16 %v3903, %v3899
    %v4400 = vpack.c.b16 %v3904, %v3900
    %v4401 = vpack.c.b16 %v3905, %v3901
    %v4402 = vpack.c.b16 %v3906, %v3902
    %v4403 = vpack.c.b16 %v3911, %v3907
    %v4404 = vpack.c.b16 %v3912, %v3908
    %v4405 = vpack.c.b16 %v3913, %v3909
    %v4406 = vpack.c.b16 %v3914, %v3910
    %v4407 = vpack.c.b16 %v3919, %v3915
    %v4408 = vpack.c.b16 %v3920, %v3916
    %v4409 = vpack.c.b16 %v3921, %v3917
    %v4410 = vpack.c.b16 %v3922, %v3918
    %v4411 = vpack.c.b16 %v3927, %v3923
    %v4412 = vpack.c.b16 %v3928, %v3924
    %v4413 = vpack.c.b16 %v3929, %v3925
    %v4414 = vpack.c.b16 %v3930, %v3926
    %v4415 = vpack.c.b16 %v3935, %v3931
    %v4416 = vpack.c.b16 %v3936, %v3932
    %v4417 = vpack.c.b16 %v3937, %v3933
    %v4418 = vpack.c.b16 %v3938, %v3934
    %v4419 = vpack.c.b16 %v3943, %v3939
    %v4420 = vpack.c.b16 %v3944, %v3940
    %v4421 = vpack.c.b16 %v3945, %v3941
    %v4422 = vpack.c.b16 %v3946, %v3942
    %v4423 = vpack.c.b16 %v3951, %v3947
    %v4424 = vpack.c.b16 %v3952, %v3948
    %v4425 = vpack.c.b16 %v3953, %v3949
    %v4426 = vpack.c.b16 %v3954, %v3950
    %v4427 = vpack.c.b16 %v3959, %v3955
    %v4428 = vpack.c.b16 %v3960, %v3956
    %v4429 = vpack.c.b16 %v3961, %v3957
    %v4430 = vpack.c.b16 %v3962, %v3958
    %v4431 = vpack.c.b16 %v3967, %v3963
    %v4432 = vpack.c.b16 %v3968, %v3964
    %v4433 = vpack.c.b16 %v3969, %v3965
    %v4434 = vpack.c.b16 %v3970, %v3966
    %v4435 = vpack.c.b16 %v3975, %v3971
    %v4436 = vpack.c.b16 %v3976, %v3972
    %v4437 = vpack.c.b16 %v3977, %v3973
    %v4438 = vpack.c.b16 %v3978, %v3974
    %v4439 = vpack.c.b16 %v3983, %v3979
    %v4440 = vpack.c.b16 %v3984, %v3980
    %v4441 = vpack.c.b16 %v3985, %v3981
    %v4442 = vpack.c.b16 %v3986, %v3982
    %v4443 = vpack.c.b16 %v3991, %v3987
    %v4444 = vpack.c.b16 %v3992, %v3988
    %v4445 = vpack.c.b16 %v3993, %v3989
    %v4446 = vpack.c.b16 %v3994, %v3990
    %v4447 = vpack.c.b16 %v3999, %v3995
    %v4448 = vpack.c.b16 %v4000, %v3996
    %v4449 = vpack.c.b16 %v4001, %v3997
    %v4450 = vpack.c.b16 %v4002, %v3998
    %v4451 = vpack.c.b16 %v4007, %v4003
    %v4452 = vpack.c.b16 %v4008, %v4004
    %v4453 = vpack.c.b16 %v4009, %v4005
    %v4454 = vpack.c.b16 %v4010, %v4006
    %v4455 = vpack.c.b16 %v4015, %v4011
    %v4456 = vpack.c.b16 %v4016, %v4012
    %v4457 = vpack.c.b16 %v4017, %v4013
    %v4458 = vpack.c.b16 %v4018, %v4014
    %v4459 = vpack.c.b16 %v4023, %v4019
    %v4460 = vpack.c.b16 %v4024, %v4020
    %v4461 = vpack.c.b16 %v4025, %v4021
    %v4462 = vpack.c.b16 %v4026, %v4022
    %v4463 = vpack.c.b16 %v4031, %v4027
    %v4464 = vpack.c.b16 %v4032, %v4028
    %v4465 = vpack.c.b16 %v4033, %v4029
    %v4466 = vpack.c.b16 %v4034, %v4030
    %v4467 = vpack.c.b16 %v4039, %v4035
    %v4468 = vpack.c.b16 %v4040, %v4036
    %v4469 = vpack.c.b16 %v4041, %v4037
    %v4470 = vpack.c.b16 %v4042, %v4038
    %v4471 = vpack.c.b16 %v4047, %v4043
    %v4472 = vpack.c.b16 %v4048, %v4044
    %v4473 = vpack.c.b16 %v4049, %v4045
    %v4474 = vpack.c.b16 %v4050, %v4046
    %v4475 = vpack.c.b16 %v4055, %v4051
    %v4476 = vpack.c.b16 %v4056, %v4052
    %v4477 = vpack.c.b16 %v4057, %v4053
    %v4478 = vpack.c.b16 %v4058, %v4054
    %v4479 = vpack.c.b16 %v4063, %v4059
    %v4480 = vpack.c.b16 %v4064, %v4060
    %v4481 = vpack.c.b16 %v4065, %v4061
    %v4482 = vpack.c.b16 %v4066, %v4062
    %v4483 = vpack.c.b16 %v4071, %v4067
    %v4484 = vpack.c.b16 %v4072, %v4068
    %v4485 = vpack.c.b16 %v4073, %v4069
    %v4486 = vpack.c.b16 %v4074, %v4070
    %v4487 = vpack.c.b16 %v4079, %v4075
    %v4488 = vpack.c.b16 %v4080, %v4076
    %v4489 = vpack.c.b16 %v4081, %v4077
    %v4490 = vpack.c.b16 %v4082, %v4078
    %v4491 = vpack.c.b16 %v4087, %v4083
    %v4492 = vpack.c.b16 %v4088, %v4084
    %v4493 = vpack.c.b16 %v4089, %v4085
    %v4494 = vpack.c.b16 %v4090, %v4086
    %v4495 = vpack.c.b16 %v4095, %v4091
    %v4496 = vpack.c.b16 %v4096, %v4092
    %v4497 = vpack.c.b16 %v4097, %v4093
    %v4498 = vpack.c.b16 %v4098, %v4094
    %v4499 = vpack.c.b16 %v4103, %v4099
    %v4500 = vpack.c.b16 %v4104, %v4100
    %v4501 = vpack.c.b16 %v4105, %v4101
    %v4502 = vpack.c.b16 %v4106, %v4102
    %v4503 = vpack.c.b16 %v4111, %v4107
    %v4504 = vpack.c.b16 %v4112, %v4108
    %v4505 = vpack.c.b16 %v4113, %v4109
    %v4506 = vpack.c.b16 %v4114, %v4110
    %v4507 = vpack.c.b16 %v4119, %v4115
    %v4508 = vpack.c.b16 %v4120, %v4116
    %v4509 = vpack.c.b16 %v4121, %v4117
    %v4510 = vpack.c.b16 %v4122, %v4118
    %v4511 = vpack.c.b16 %v4127, %v4123
    %v4512 = vpack.c.b16 %v4128, %v4124
    %v4513 = vpack.c.b16 %v4129, %v4125
    %v4514 = vpack.c.b16 %v4130, %v4126
    %4899 = vmatprep.subr.bf16.mxu0 %v4132
    %4900 = vmatpush1.bf16.msra.mxu0 %v4131
    %4901 = vmatprep.subr.bf16.mxu0 %v4136
    %4902 = vmatpush1.bf16.msra.mxu0 %v4135
    %4903 = vmatprep.subr.bf16.mxu0 %v4140
    %4904 = vmatpush1.bf16.msra.mxu0 %v4139
    %4905 = vmatprep.subr.bf16.mxu0 %v4144
    %4906 = vmatpush1.bf16.msra.mxu0 %v4143
    %4907 = vmatprep.subr.bf16.mxu0 %v4148
    %4908 = vmatpush1.bf16.msra.mxu0 %v4147
    %4909 = vmatprep.subr.bf16.mxu0 %v4152
    %4910 = vmatpush1.bf16.msra.mxu0 %v4151
    %4911 = vmatprep.subr.bf16.mxu0 %v4156
    %4912 = vmatpush1.bf16.msra.mxu0 %v4155
    %4913 = vmatprep.subr.bf16.mxu0 %v4160
    %4914 = vmatpush1.bf16.msra.mxu0 %v4159
    %4915 = vmatprep.subr.bf16.mxu0 %v4164
    %4916 = vmatpush1.bf16.msra.mxu0 %v4163
    %4917 = vmatprep.subr.bf16.mxu0 %v4168
    %4918 = vmatpush1.bf16.msra.mxu0 %v4167
    %4919 = vmatprep.subr.bf16.mxu0 %v4172
    %4920 = vmatpush1.bf16.msra.mxu0 %v4171
    %4921 = vmatprep.subr.bf16.mxu0 %v4176
    %4922 = vmatpush1.bf16.msra.mxu0 %v4175
    %4923 = vmatprep.subr.bf16.mxu0 %v4180
    %4924 = vmatpush1.bf16.msra.mxu0 %v4179
    %4925 = vmatprep.subr.bf16.mxu0 %v4184
    %4926 = vmatpush1.bf16.msra.mxu0 %v4183
    %4927 = vmatprep.subr.bf16.mxu0 %v4188
    %4928 = vmatpush1.bf16.msra.mxu0 %v4187
    %4929 = vmatprep.subr.bf16.mxu0 %v4192
    %4930 = vmatpush1.bf16.msra.mxu0 %v4191
    %4931 = vmatprep.mubr.bf16.mxu0 %v2548
    %4932 = vmatmul.mubr.bf16.gmra.mrb[0].mxu0 %v2547
    %v4933 = vpop.f32.mrb[0].mxu0
    %v4934 = vadd.f32 0.0, %v4933
    %v4935 = vpop.f32.mrb[0].mxu0
    %v4936 = vadd.f32 0.0, %v4935
    %v4937 = vpop.f32.mrb[0].mxu0
    %v4938 = vadd.f32 0.0, %v4937
    %v4939 = vpop.f32.mrb[0].mxu0
    %v4940 = vadd.f32 0.0, %v4939
    %4941 = vmatprep.mubr.bf16.mxu0 %v2552
    %4942 = vmatmul.mubr.bf16.gmra.mrb[0].mxu0 %v2551
    %v4943 = vpop.f32.mrb[0].mxu0
    %v4944 = vadd.f32 0.0, %v4943
    %v4945 = vpop.f32.mrb[0].mxu0
    %v4946 = vadd.f32 0.0, %v4945
    %v4947 = vpop.f32.mrb[0].mxu0
    %v4948 = vadd.f32 0.0, %v4947
    %v4949 = vpop.f32.mrb[0].mxu0
    %v4950 = vadd.f32 0.0, %v4949
    %4951 = vdwg.mxu0
    %4952 = vmatprep.subr.bf16.mxu0 %v4196
    %4953 = vmatpush1.bf16.msra.mxu0 %v4195
    %4954 = vmatprep.subr.bf16.mxu0 %v4200
    %4955 = vmatpush1.bf16.msra.mxu0 %v4199
    %4956 = vmatprep.subr.bf16.mxu0 %v4204
    %4957 = vmatpush1.bf16.msra.mxu0 %v4203
    %4958 = vmatprep.subr.bf16.mxu0 %v4208
    %4959 = vmatpush1.bf16.msra.mxu0 %v4207
    %4960 = vmatprep.subr.bf16.mxu0 %v4212
    %4961 = vmatpush1.bf16.msra.mxu0 %v4211
    %4962 = vmatprep.subr.bf16.mxu0 %v4216
    %4963 = vmatpush1.bf16.msra.mxu0 %v4215
    %4964 = vmatprep.subr.bf16.mxu0 %v4220
    %4965 = vmatpush1.bf16.msra.mxu0 %v4219
    %4966 = vmatprep.subr.bf16.mxu0 %v4224
    %4967 = vmatpush1.bf16.msra.mxu0 %v4223
    %4968 = vmatprep.subr.bf16.mxu0 %v4228
    %4969 = vmatpush1.bf16.msra.mxu0 %v4227
    %4970 = vmatprep.subr.bf16.mxu0 %v4232
    %4971 = vmatpush1.bf16.msra.mxu0 %v4231
    %4972 = vmatprep.subr.bf16.mxu0 %v4236
    %4973 = vmatpush1.bf16.msra.mxu0 %v4235
    %4974 = vmatprep.subr.bf16.mxu0 %v4240
    %4975 = vmatpush1.bf16.msra.mxu0 %v4239
    %4976 = vmatprep.subr.bf16.mxu0 %v4244
    %4977 = vmatpush1.bf16.msra.mxu0 %v4243
    %4978 = vmatprep.subr.bf16.mxu0 %v4248
    %4979 = vmatpush1.bf16.msra.mxu0 %v4247
    %4980 = vmatprep.subr.bf16.mxu0 %v4252
    %4981 = vmatpush1.bf16.msra.mxu0 %v4251
    %4982 = vmatprep.subr.bf16.mxu0 %v4256
    %4983 = vmatpush1.bf16.msra.mxu0 %v4255
    %4984 = vmatprep.mubr.bf16.mxu0 %v2550
    %4985 = vmatmul.mubr.bf16.gmra.mrb[0].mxu0 %v2549
    %v4986 = vpop.f32.mrb[0].mxu0
    %v4987 = vadd.f32 %v4934, %v4986
    %v4988 = vpop.f32.mrb[0].mxu0
    %v4989 = vadd.f32 %v4936, %v4988
    %v4990 = vpop.f32.mrb[0].mxu0
    %v4991 = vadd.f32 %v4938, %v4990
    %v4992 = vpop.f32.mrb[0].mxu0
    %v4993 = vadd.f32 %v4940, %v4992
    %4994 = vmatprep.mubr.bf16.mxu0 %v2554
    %4995 = vmatmul.mubr.bf16.gmra.mrb[0].mxu0 %v2553
    %v4996 = vpop.f32.mrb[0].mxu0
    %v4997 = vadd.f32 %v4944, %v4996
    %v4998 = vpop.f32.mrb[0].mxu0
    %v4999 = vadd.f32 %v4946, %v4998
    %v5000 = vpop.f32.mrb[0].mxu0
    %v5001 = vadd.f32 %v4948, %v5000
    %v5002 = vpop.f32.mrb[0].mxu0
    %v5003 = vadd.f32 %v4950, %v5002
    %5004 = vdwg.mxu0
    %5005 = vmatprep.subr.bf16.mxu0 %v4260
    %5006 = vmatpush1.bf16.msra.mxu0 %v4259
    %5007 = vmatprep.subr.bf16.mxu0 %v4264
    %5008 = vmatpush1.bf16.msra.mxu0 %v4263
    %5009 = vmatprep.subr.bf16.mxu0 %v4268
    %5010 = vmatpush1.bf16.msra.mxu0 %v4267
    %5011 = vmatprep.subr.bf16.mxu0 %v4272
    %5012 = vmatpush1.bf16.msra.mxu0 %v4271
    %5013 = vmatprep.subr.bf16.mxu0 %v4276
    %5014 = vmatpush1.bf16.msra.mxu0 %v4275
    %5015 = vmatprep.subr.bf16.mxu0 %v4280
    %5016 = vmatpush1.bf16.msra.mxu0 %v4279
    %5017 = vmatprep.subr.bf16.mxu0 %v4284
    %5018 = vmatpush1.bf16.msra.mxu0 %v4283
    %5019 = vmatprep.subr.bf16.mxu0 %v4288
    %5020 = vmatpush1.bf16.msra.mxu0 %v4287
    %5021 = vmatprep.subr.bf16.mxu0 %v4292
    %5022 = vmatpush1.bf16.msra.mxu0 %v4291
    %5023 = vmatprep.subr.bf16.mxu0 %v4296
    %5024 = vmatpush1.bf16.msra.mxu0 %v4295
    %5025 = vmatprep.subr.bf16.mxu0 %v4300
    %5026 = vmatpush1.bf16.msra.mxu0 %v4299
    %5027 = vmatprep.subr.bf16.mxu0 %v4304
    %5028 = vmatpush1.bf16.msra.mxu0 %v4303
    %5029 = vmatprep.subr.bf16.mxu0 %v4308
    %5030 = vmatpush1.bf16.msra.mxu0 %v4307
    %5031 = vmatprep.subr.bf16.mxu0 %v4312
    %5032 = vmatpush1.bf16.msra.mxu0 %v4311
    %5033 = vmatprep.subr.bf16.mxu0 %v4316
    %5034 = vmatpush1.bf16.msra.mxu0 %v4315
    %5035 = vmatprep.subr.bf16.mxu0 %v4320
    %5036 = vmatpush1.bf16.msra.mxu0 %v4319
    %5037 = vmatprep.mubr.bf16.mxu0 %v2468
    %5038 = vmatmul.mubr.bf16.gmra.mrb[0].mxu0 %v2467
    %v5039 = vpop.f32.mrb[0].mxu0
    %v5040 = vadd.f32 %v4987, %v5039
    %v5041 = vpop.f32.mrb[0].mxu0
    %v5042 = vadd.f32 %v4989, %v5041
    %v5043 = vpop.f32.mrb[0].mxu0
    %v5044 = vadd.f32 %v4991, %v5043
    %v5045 = vpop.f32.mrb[0].mxu0
    %v5046 = vadd.f32 %v4993, %v5045
    %5047 = vmatprep.mubr.bf16.mxu0 %v2472
    %5048 = vmatmul.mubr.bf16.gmra.mrb[0].mxu0 %v2471
    %v5049 = vpop.f32.mrb[0].mxu0
    %v5050 = vadd.f32 %v4997, %v5049
    %v5051 = vpop.f32.mrb[0].mxu0
    %v5052 = vadd.f32 %v4999, %v5051
    %v5053 = vpop.f32.mrb[0].mxu0
    %v5054 = vadd.f32 %v5001, %v5053
    %v5055 = vpop.f32.mrb[0].mxu0
    %v5056 = vadd.f32 %v5003, %v5055
    %5057 = vdwg.mxu0
    %5058 = vmatprep.subr.bf16.mxu0 %v4324
    %5059 = vmatpush1.bf16.msra.mxu0 %v4323
    %5060 = vmatprep.subr.bf16.mxu0 %v4328
    %5061 = vmatpush1.bf16.msra.mxu0 %v4327
    %5062 = vmatprep.subr.bf16.mxu0 %v4332
    %5063 = vmatpush1.bf16.msra.mxu0 %v4331
    %5064 = vmatprep.subr.bf16.mxu0 %v4336
    %5065 = vmatpush1.bf16.msra.mxu0 %v4335
    %5066 = vmatprep.subr.bf16.mxu0 %v4340
    %5067 = vmatpush1.bf16.msra.mxu0 %v4339
    %5068 = vmatprep.subr.bf16.mxu0 %v4344
    %5069 = vmatpush1.bf16.msra.mxu0 %v4343
    %5070 = vmatprep.subr.bf16.mxu0 %v4348
    %5071 = vmatpush1.bf16.msra.mxu0 %v4347
    %5072 = vmatprep.subr.bf16.mxu0 %v4352
    %5073 = vmatpush1.bf16.msra.mxu0 %v4351
    %5074 = vmatprep.subr.bf16.mxu0 %v4356
    %5075 = vmatpush1.bf16.msra.mxu0 %v4355
    %5076 = vmatprep.subr.bf16.mxu0 %v4360
    %5077 = vmatpush1.bf16.msra.mxu0 %v4359
    %5078 = vmatprep.subr.bf16.mxu0 %v4364
    %5079 = vmatpush1.bf16.msra.mxu0 %v4363
    %5080 = vmatprep.subr.bf16.mxu0 %v4368
    %5081 = vmatpush1.bf16.msra.mxu0 %v4367
    %5082 = vmatprep.subr.bf16.mxu0 %v4372
    %5083 = vmatpush1.bf16.msra.mxu0 %v4371
    %5084 = vmatprep.subr.bf16.mxu0 %v4376
    %5085 = vmatpush1.bf16.msra.mxu0 %v4375
    %5086 = vmatprep.subr.bf16.mxu0 %v4380
    %5087 = vmatpush1.bf16.msra.mxu0 %v4379
    %5088 = vmatprep.subr.bf16.mxu0 %v4384
    %5089 = vmatpush1.bf16.msra.mxu0 %v4383
    %5090 = vmatprep.mubr.bf16.mxu0 %v2470
    %5091 = vmatmul.mubr.bf16.gmra.mrb[0].mxu0 %v2469
    %v5092 = vpop.f32.mrb[0].mxu0
    %v5093 = vadd.f32 %v5040, %v5092
    %v5094 = vpop.f32.mrb[0].mxu0
    %v5095 = vadd.f32 %v5042, %v5094
    %v5096 = vpop.f32.mrb[0].mxu0
    %v5097 = vadd.f32 %v5044, %v5096
    %v5098 = vpop.f32.mrb[0].mxu0
    %v5099 = vadd.f32 %v5046, %v5098
    %5100 = vmatprep.mubr.bf16.mxu0 %v2474
    %5101 = vmatmul.mubr.bf16.gmra.mrb[0].mxu0 %v2473
    %v5102 = vpop.f32.mrb[0].mxu0
    %v5103 = vadd.f32 %v5050, %v5102
    %v5104 = vpop.f32.mrb[0].mxu0
    %v5105 = vadd.f32 %v5052, %v5104
    %v5106 = vpop.f32.mrb[0].mxu0
    %v5107 = vadd.f32 %v5054, %v5106
    %v5108 = vpop.f32.mrb[0].mxu0
    %v5109 = vadd.f32 %v5056, %v5108
    %5110 = vdwg.mxu0
    %5111 = vmatprep.subr.bf16.mxu0 %v4388
    %5112 = vmatpush1.bf16.msra.mxu0 %v4387
    %5113 = vmatprep.subr.bf16.mxu0 %v4392
    %5114 = vmatpush1.bf16.msra.mxu0 %v4391
    %5115 = vmatprep.subr.bf16.mxu0 %v4396
    %5116 = vmatpush1.bf16.msra.mxu0 %v4395
    %5117 = vmatprep.subr.bf16.mxu0 %v4400
    %5118 = vmatpush1.bf16.msra.mxu0 %v4399
    %5119 = vmatprep.subr.bf16.mxu0 %v4404
    %5120 = vmatpush1.bf16.msra.mxu0 %v4403
    %5121 = vmatprep.subr.bf16.mxu0 %v4408
    %5122 = vmatpush1.bf16.msra.mxu0 %v4407
    %5123 = vmatprep.subr.bf16.mxu0 %v4412
    %5124 = vmatpush1.bf16.msra.mxu0 %v4411
    %5125 = vmatprep.subr.bf16.mxu0 %v4416
    %5126 = vmatpush1.bf16.msra.mxu0 %v4415
    %5127 = vmatprep.subr.bf16.mxu0 %v4420
    %5128 = vmatpush1.bf16.msra.mxu0 %v4419
    %5129 = vmatprep.subr.bf16.mxu0 %v4424
    %5130 = vmatpush1.bf16.msra.mxu0 %v4423
    %5131 = vmatprep.subr.bf16.mxu0 %v4428
    %5132 = vmatpush1.bf16.msra.mxu0 %v4427
    %5133 = vmatprep.subr.bf16.mxu0 %v4432
    %5134 = vmatpush1.bf16.msra.mxu0 %v4431
    %5135 = vmatprep.subr.bf16.mxu0 %v4436
    %5136 = vmatpush1.bf16.msra.mxu0 %v4435
    %5137 = vmatprep.subr.bf16.mxu0 %v4440
    %5138 = vmatpush1.bf16.msra.mxu0 %v4439
    %5139 = vmatprep.subr.bf16.mxu0 %v4444
    %5140 = vmatpush1.bf16.msra.mxu0 %v4443
    %5141 = vmatprep.subr.bf16.mxu0 %v4448
    %5142 = vmatpush1.bf16.msra.mxu0 %v4447
    %5143 = vmatprep.mubr.bf16.mxu0 %v2588
    %5144 = vmatmul.mubr.bf16.gmra.mrb[0].mxu0 %v2587
    %v5145 = vpop.f32.mrb[0].mxu0
    %v5146 = vadd.f32 %v5093, %v5145
    %v5147 = vpop.f32.mrb[0].mxu0
    %v5148 = vadd.f32 %v5095, %v5147
    %v5149 = vpop.f32.mrb[0].mxu0
    %v5150 = vadd.f32 %v5097, %v5149
    %v5151 = vpop.f32.mrb[0].mxu0
    %v5152 = vadd.f32 %v5099, %v5151
    %5153 = vmatprep.mubr.bf16.mxu0 %v2592
    %5154 = vmatmul.mubr.bf16.gmra.mrb[0].mxu0 %v2591
    %v5155 = vpop.f32.mrb[0].mxu0
    %v5156 = vadd.f32 %v5103, %v5155
    %v5157 = vpop.f32.mrb[0].mxu0
    %v5158 = vadd.f32 %v5105, %v5157
    %v5159 = vpop.f32.mrb[0].mxu0
    %v5160 = vadd.f32 %v5107, %v5159
    %v5161 = vpop.f32.mrb[0].mxu0
    %v5162 = vadd.f32 %v5109, %v5161
    %5163 = vdwg.mxu0
    %5164 = vmatprep.subr.bf16.mxu0 %v4452
    %5165 = vmatpush1.bf16.msra.mxu0 %v4451
    %5166 = vmatprep.subr.bf16.mxu0 %v4456
    %5167 = vmatpush1.bf16.msra.mxu0 %v4455
    %5168 = vmatprep.subr.bf16.mxu0 %v4460
    %5169 = vmatpush1.bf16.msra.mxu0 %v4459
    %5170 = vmatprep.subr.bf16.mxu0 %v4464
    %5171 = vmatpush1.bf16.msra.mxu0 %v4463
    %5172 = vmatprep.subr.bf16.mxu0 %v4468
    %5173 = vmatpush1.bf16.msra.mxu0 %v4467
    %5174 = vmatprep.subr.bf16.mxu0 %v4472
    %5175 = vmatpush1.bf16.msra.mxu0 %v4471
    %5176 = vmatprep.subr.bf16.mxu0 %v4476
    %5177 = vmatpush1.bf16.msra.mxu0 %v4475
    %5178 = vmatprep.subr.bf16.mxu0 %v4480
    %5179 = vmatpush1.bf16.msra.mxu0 %v4479
    %5180 = vmatprep.subr.bf16.mxu0 %v4484
    %5181 = vmatpush1.bf16.msra.mxu0 %v4483
    %5182 = vmatprep.subr.bf16.mxu0 %v4488
    %5183 = vmatpush1.bf16.msra.mxu0 %v4487
    %5184 = vmatprep.subr.bf16.mxu0 %v4492
    %5185 = vmatpush1.bf16.msra.mxu0 %v4491
    %5186 = vmatprep.subr.bf16.mxu0 %v4496
    %5187 = vmatpush1.bf16.msra.mxu0 %v4495
    %5188 = vmatprep.subr.bf16.mxu0 %v4500
    %5189 = vmatpush1.bf16.msra.mxu0 %v4499
    %5190 = vmatprep.subr.bf16.mxu0 %v4504
    %5191 = vmatpush1.bf16.msra.mxu0 %v4503
    %5192 = vmatprep.subr.bf16.mxu0 %v4508
    %5193 = vmatpush1.bf16.msra.mxu0 %v4507
    %5194 = vmatprep.subr.bf16.mxu0 %v4512
    %5195 = vmatpush1.bf16.msra.mxu0 %v4511
    %5196 = vmatprep.mubr.bf16.mxu0 %v2590
    %5197 = vmatmul.mubr.bf16.gmra.mrb[0].mxu0 %v2589
    %v5198 = vpop.f32.mrb[0].mxu0
    %v5199 = vadd.f32 %v5146, %v5198
    %v5200 = vpop.f32.mrb[0].mxu0
    %v5201 = vadd.f32 %v5148, %v5200
    %v5202 = vpop.f32.mrb[0].mxu0
    %v5203 = vadd.f32 %v5150, %v5202
    %v5204 = vpop.f32.mrb[0].mxu0
    %v5205 = vadd.f32 %v5152, %v5204
    %5206 = vmatprep.mubr.bf16.mxu0 %v2594
    %5207 = vmatmul.mubr.bf16.gmra.mrb[0].mxu0 %v2593
    %v5208 = vpop.f32.mrb[0].mxu0
    %v5209 = vadd.f32 %v5156, %v5208
    %v5210 = vpop.f32.mrb[0].mxu0
    %v5211 = vadd.f32 %v5158, %v5210
    %v5212 = vpop.f32.mrb[0].mxu0
    %v5213 = vadd.f32 %v5160, %v5212
    %v5214 = vpop.f32.mrb[0].mxu0
    %v5215 = vadd.f32 %v5162, %v5214
    %5216 = vdwg.mxu0
    %5217 = vmatprep.subr.bf16.mxu0 %v4134
    %5218 = vmatpush1.bf16.msra.mxu0 %v4133
    %5219 = vmatprep.subr.bf16.mxu0 %v4138
    %5220 = vmatpush1.bf16.msra.mxu0 %v4137
    %5221 = vmatprep.subr.bf16.mxu0 %v4142
    %5222 = vmatpush1.bf16.msra.mxu0 %v4141
    %5223 = vmatprep.subr.bf16.mxu0 %v4146
    %5224 = vmatpush1.bf16.msra.mxu0 %v4145
    %5225 = vmatprep.subr.bf16.mxu0 %v4150
    %5226 = vmatpush1.bf16.msra.mxu0 %v4149
    %5227 = vmatprep.subr.bf16.mxu0 %v4154
    %5228 = vmatpush1.bf16.msra.mxu0 %v4153
    %5229 = vmatprep.subr.bf16.mxu0 %v4158
    %5230 = vmatpush1.bf16.msra.mxu0 %v4157
    %5231 = vmatprep.subr.bf16.mxu0 %v4162
    %5232 = vmatpush1.bf16.msra.mxu0 %v4161
    %5233 = vmatprep.subr.bf16.mxu0 %v4166
    %5234 = vmatpush1.bf16.msra.mxu0 %v4165
    %5235 = vmatprep.subr.bf16.mxu0 %v4170
    %5236 = vmatpush1.bf16.msra.mxu0 %v4169
    %5237 = vmatprep.subr.bf16.mxu0 %v4174
    %5238 = vmatpush1.bf16.msra.mxu0 %v4173
    %5239 = vmatprep.subr.bf16.mxu0 %v4178
    %5240 = vmatpush1.bf16.msra.mxu0 %v4177
    %5241 = vmatprep.subr.bf16.mxu0 %v4182
    %5242 = vmatpush1.bf16.msra.mxu0 %v4181
    %5243 = vmatprep.subr.bf16.mxu0 %v4186
    %5244 = vmatpush1.bf16.msra.mxu0 %v4185
    %5245 = vmatprep.subr.bf16.mxu0 %v4190
    %5246 = vmatpush1.bf16.msra.mxu0 %v4189
    %5247 = vmatprep.subr.bf16.mxu0 %v4194
    %5248 = vmatpush1.bf16.msra.mxu0 %v4193
    %5249 = vmatprep.mubr.bf16.mxu0 %v2548
    %5250 = vmatmul.mubr.bf16.gmra.mrb[0].mxu0 %v2547
    %v5251 = vpop.f32.mrb[0].mxu0
    %v5252 = vadd.f32 0.0, %v5251
    %v5253 = vpop.f32.mrb[0].mxu0
    %v5254 = vadd.f32 0.0, %v5253
    %v5255 = vpop.f32.mrb[0].mxu0
    %v5256 = vadd.f32 0.0, %v5255
    %v5257 = vpop.f32.mrb[0].mxu0
    %v5258 = vadd.f32 0.0, %v5257
    %5259 = vmatprep.mubr.bf16.mxu0 %v2552
    %5260 = vmatmul.mubr.bf16.gmra.mrb[0].mxu0 %v2551
    %v5261 = vpop.f32.mrb[0].mxu0
    %v5262 = vadd.f32 0.0, %v5261
    %v5263 = vpop.f32.mrb[0].mxu0
    %v5264 = vadd.f32 0.0, %v5263
    %v5265 = vpop.f32.mrb[0].mxu0
    %v5266 = vadd.f32 0.0, %v5265
    %v5267 = vpop.f32.mrb[0].mxu0
    %v5268 = vadd.f32 0.0, %v5267
    %5269 = vdwg.mxu0
    %5270 = vmatprep.subr.bf16.mxu0 %v4198
    %5271 = vmatpush1.bf16.msra.mxu0 %v4197
    %5272 = vmatprep.subr.bf16.mxu0 %v4202
    %5273 = vmatpush1.bf16.msra.mxu0 %v4201
    %5274 = vmatprep.subr.bf16.mxu0 %v4206
    %5275 = vmatpush1.bf16.msra.mxu0 %v4205
    %5276 = vmatprep.subr.bf16.mxu0 %v4210
    %5277 = vmatpush1.bf16.msra.mxu0 %v4209
    %5278 = vmatprep.subr.bf16.mxu0 %v4214
    %5279 = vmatpush1.bf16.msra.mxu0 %v4213
    %5280 = vmatprep.subr.bf16.mxu0 %v4218
    %5281 = vmatpush1.bf16.msra.mxu0 %v4217
    %5282 = vmatprep.subr.bf16.mxu0 %v4222
    %5283 = vmatpush1.bf16.msra.mxu0 %v4221
    %5284 = vmatprep.subr.bf16.mxu0 %v4226
    %5285 = vmatpush1.bf16.msra.mxu0 %v4225
    %5286 = vmatprep.subr.bf16.mxu0 %v4230
    %5287 = vmatpush1.bf16.msra.mxu0 %v4229
    %5288 = vmatprep.subr.bf16.mxu0 %v4234
    %5289 = vmatpush1.bf16.msra.mxu0 %v4233
    %5290 = vmatprep.subr.bf16.mxu0 %v4238
    %5291 = vmatpush1.bf16.msra.mxu0 %v4237
    %5292 = vmatprep.subr.bf16.mxu0 %v4242
    %5293 = vmatpush1.bf16.msra.mxu0 %v4241
    %5294 = vmatprep.subr.bf16.mxu0 %v4246
    %5295 = vmatpush1.bf16.msra.mxu0 %v4245
    %5296 = vmatprep.subr.bf16.mxu0 %v4250
    %5297 = vmatpush1.bf16.msra.mxu0 %v4249
    %5298 = vmatprep.subr.bf16.mxu0 %v4254
    %5299 = vmatpush1.bf16.msra.mxu0 %v4253
    %5300 = vmatprep.subr.bf16.mxu0 %v4258
    %5301 = vmatpush1.bf16.msra.mxu0 %v4257
    %5302 = vmatprep.mubr.bf16.mxu0 %v2550
    %5303 = vmatmul.mubr.bf16.gmra.mrb[0].mxu0 %v2549
    %v5304 = vpop.f32.mrb[0].mxu0
    %v5305 = vadd.f32 %v5252, %v5304
    %v5306 = vpop.f32.mrb[0].mxu0
    %v5307 = vadd.f32 %v5254, %v5306
    %v5308 = vpop.f32.mrb[0].mxu0
    %v5309 = vadd.f32 %v5256, %v5308
    %v5310 = vpop.f32.mrb[0].mxu0
    %v5311 = vadd.f32 %v5258, %v5310
    %5312 = vmatprep.mubr.bf16.mxu0 %v2554
    %5313 = vmatmul.mubr.bf16.gmra.mrb[0].mxu0 %v2553
    %v5314 = vpop.f32.mrb[0].mxu0
    %v5315 = vadd.f32 %v5262, %v5314
    %v5316 = vpop.f32.mrb[0].mxu0
    %v5317 = vadd.f32 %v5264, %v5316
    %v5318 = vpop.f32.mrb[0].mxu0
    %v5319 = vadd.f32 %v5266, %v5318
    %v5320 = vpop.f32.mrb[0].mxu0
    %v5321 = vadd.f32 %v5268, %v5320
    %5322 = vdwg.mxu0
    %5323 = vmatprep.subr.bf16.mxu0 %v4262
    %5324 = vmatpush1.bf16.msra.mxu0 %v4261
    %5325 = vmatprep.subr.bf16.mxu0 %v4266
    %5326 = vmatpush1.bf16.msra.mxu0 %v4265
    %5327 = vmatprep.subr.bf16.mxu0 %v4270
    %5328 = vmatpush1.bf16.msra.mxu0 %v4269
    %5329 = vmatprep.subr.bf16.mxu0 %v4274
    %5330 = vmatpush1.bf16.msra.mxu0 %v4273
    %5331 = vmatprep.subr.bf16.mxu0 %v4278
    %5332 = vmatpush1.bf16.msra.mxu0 %v4277
    %5333 = vmatprep.subr.bf16.mxu0 %v4282
    %5334 = vmatpush1.bf16.msra.mxu0 %v4281
    %5335 = vmatprep.subr.bf16.mxu0 %v4286
    %5336 = vmatpush1.bf16.msra.mxu0 %v4285
    %5337 = vmatprep.subr.bf16.mxu0 %v4290
    %5338 = vmatpush1.bf16.msra.mxu0 %v4289
    %5339 = vmatprep.subr.bf16.mxu0 %v4294
    %5340 = vmatpush1.bf16.msra.mxu0 %v4293
    %5341 = vmatprep.subr.bf16.mxu0 %v4298
    %5342 = vmatpush1.bf16.msra.mxu0 %v4297
    %5343 = vmatprep.subr.bf16.mxu0 %v4302
    %5344 = vmatpush1.bf16.msra.mxu0 %v4301
    %5345 = vmatprep.subr.bf16.mxu0 %v4306
    %5346 = vmatpush1.bf16.msra.mxu0 %v4305
    %5347 = vmatprep.subr.bf16.mxu0 %v4310
    %5348 = vmatpush1.bf16.msra.mxu0 %v4309
    %5349 = vmatprep.subr.bf16.mxu0 %v4314
    %5350 = vmatpush1.bf16.msra.mxu0 %v4313
    %5351 = vmatprep.subr.bf16.mxu0 %v4318
    %5352 = vmatpush1.bf16.msra.mxu0 %v4317
    %5353 = vmatprep.subr.bf16.mxu0 %v4322
    %5354 = vmatpush1.bf16.msra.mxu0 %v4321
    %5355 = vmatprep.mubr.bf16.mxu0 %v2468
    %5356 = vmatmul.mubr.bf16.gmra.mrb[0].mxu0 %v2467
    %v5357 = vpop.f32.mrb[0].mxu0
    %v5358 = vadd.f32 %v5305, %v5357
    %v5359 = vpop.f32.mrb[0].mxu0
    %v5360 = vadd.f32 %v5307, %v5359
    %v5361 = vpop.f32.mrb[0].mxu0
    %v5362 = vadd.f32 %v5309, %v5361
    %v5363 = vpop.f32.mrb[0].mxu0
    %v5364 = vadd.f32 %v5311, %v5363
    %5365 = vmatprep.mubr.bf16.mxu0 %v2472
    %5366 = vmatmul.mubr.bf16.gmra.mrb[0].mxu0 %v2471
    %v5367 = vpop.f32.mrb[0].mxu0
    %v5368 = vadd.f32 %v5315, %v5367
    %v5369 = vpop.f32.mrb[0].mxu0
    %v5370 = vadd.f32 %v5317, %v5369
    %v5371 = vpop.f32.mrb[0].mxu0
    %v5372 = vadd.f32 %v5319, %v5371
    %v5373 = vpop.f32.mrb[0].mxu0
    %v5374 = vadd.f32 %v5321, %v5373
    %5375 = vdwg.mxu0
    %5376 = vmatprep.subr.bf16.mxu0 %v4326
    %5377 = vmatpush1.bf16.msra.mxu0 %v4325
    %5378 = vmatprep.subr.bf16.mxu0 %v4330
    %5379 = vmatpush1.bf16.msra.mxu0 %v4329
    %5380 = vmatprep.subr.bf16.mxu0 %v4334
    %5381 = vmatpush1.bf16.msra.mxu0 %v4333
    %5382 = vmatprep.subr.bf16.mxu0 %v4338
    %5383 = vmatpush1.bf16.msra.mxu0 %v4337
    %5384 = vmatprep.subr.bf16.mxu0 %v4342
    %5385 = vmatpush1.bf16.msra.mxu0 %v4341
    %5386 = vmatprep.subr.bf16.mxu0 %v4346
    %5387 = vmatpush1.bf16.msra.mxu0 %v4345
    %5388 = vmatprep.subr.bf16.mxu0 %v4350
    %5389 = vmatpush1.bf16.msra.mxu0 %v4349
    %5390 = vmatprep.subr.bf16.mxu0 %v4354
    %5391 = vmatpush1.bf16.msra.mxu0 %v4353
    %5392 = vmatprep.subr.bf16.mxu0 %v4358
    %5393 = vmatpush1.bf16.msra.mxu0 %v4357
    %5394 = vmatprep.subr.bf16.mxu0 %v4362
    %5395 = vmatpush1.bf16.msra.mxu0 %v4361
    %5396 = vmatprep.subr.bf16.mxu0 %v4366
    %5397 = vmatpush1.bf16.msra.mxu0 %v4365
    %5398 = vmatprep.subr.bf16.mxu0 %v4370
    %5399 = vmatpush1.bf16.msra.mxu0 %v4369
    %5400 = vmatprep.subr.bf16.mxu0 %v4374
    %5401 = vmatpush1.bf16.msra.mxu0 %v4373
    %5402 = vmatprep.subr.bf16.mxu0 %v4378
    %5403 = vmatpush1.bf16.msra.mxu0 %v4377
    %5404 = vmatprep.subr.bf16.mxu0 %v4382
    %5405 = vmatpush1.bf16.msra.mxu0 %v4381
    %5406 = vmatprep.subr.bf16.mxu0 %v4386
    %5407 = vmatpush1.bf16.msra.mxu0 %v4385
    %5408 = vmatprep.mubr.bf16.mxu0 %v2470
    %5409 = vmatmul.mubr.bf16.gmra.mrb[0].mxu0 %v2469
    %v5410 = vpop.f32.mrb[0].mxu0
    %v5411 = vadd.f32 %v5358, %v5410
    %v5412 = vpop.f32.mrb[0].mxu0
    %v5413 = vadd.f32 %v5360, %v5412
    %v5414 = vpop.f32.mrb[0].mxu0
    %v5415 = vadd.f32 %v5362, %v5414
    %v5416 = vpop.f32.mrb[0].mxu0
    %v5417 = vadd.f32 %v5364, %v5416
    %5418 = vmatprep.mubr.bf16.mxu0 %v2474
    %5419 = vmatmul.mubr.bf16.gmra.mrb[0].mxu0 %v2473
    %v5420 = vpop.f32.mrb[0].mxu0
    %v5421 = vadd.f32 %v5368, %v5420
    %v5422 = vpop.f32.mrb[0].mxu0
    %v5423 = vadd.f32 %v5370, %v5422
    %v5424 = vpop.f32.mrb[0].mxu0
    %v5425 = vadd.f32 %v5372, %v5424
    %v5426 = vpop.f32.mrb[0].mxu0
    %v5427 = vadd.f32 %v5374, %v5426
    %5428 = vdwg.mxu0
    %5429 = vmatprep.subr.bf16.mxu0 %v4390
    %5430 = vmatpush1.bf16.msra.mxu0 %v4389
    %5431 = vmatprep.subr.bf16.mxu0 %v4394
    %5432 = vmatpush1.bf16.msra.mxu0 %v4393
    %5433 = vmatprep.subr.bf16.mxu0 %v4398
    %5434 = vmatpush1.bf16.msra.mxu0 %v4397
    %5435 = vmatprep.subr.bf16.mxu0 %v4402
    %5436 = vmatpush1.bf16.msra.mxu0 %v4401
    %5437 = vmatprep.subr.bf16.mxu0 %v4406
    %5438 = vmatpush1.bf16.msra.mxu0 %v4405
    %5439 = vmatprep.subr.bf16.mxu0 %v4410
    %5440 = vmatpush1.bf16.msra.mxu0 %v4409
    %5441 = vmatprep.subr.bf16.mxu0 %v4414
    %5442 = vmatpush1.bf16.msra.mxu0 %v4413
    %5443 = vmatprep.subr.bf16.mxu0 %v4418
    %5444 = vmatpush1.bf16.msra.mxu0 %v4417
    %5445 = vmatprep.subr.bf16.mxu0 %v4422
    %5446 = vmatpush1.bf16.msra.mxu0 %v4421
    %5447 = vmatprep.subr.bf16.mxu0 %v4426
    %5448 = vmatpush1.bf16.msra.mxu0 %v4425
    %5449 = vmatprep.subr.bf16.mxu0 %v4430
    %5450 = vmatpush1.bf16.msra.mxu0 %v4429
    %5451 = vmatprep.subr.bf16.mxu0 %v4434
    %5452 = vmatpush1.bf16.msra.mxu0 %v4433
    %5453 = vmatprep.subr.bf16.mxu0 %v4438
    %5454 = vmatpush1.bf16.msra.mxu0 %v4437
    %5455 = vmatprep.subr.bf16.mxu0 %v4442
    %5456 = vmatpush1.bf16.msra.mxu0 %v4441
    %5457 = vmatprep.subr.bf16.mxu0 %v4446
    %5458 = vmatpush1.bf16.msra.mxu0 %v4445
    %5459 = vmatprep.subr.bf16.mxu0 %v4450
    %5460 = vmatpush1.bf16.msra.mxu0 %v4449
    %5461 = vmatprep.mubr.bf16.mxu0 %v2588
    %5462 = vmatmul.mubr.bf16.gmra.mrb[0].mxu0 %v2587
    %v5463 = vpop.f32.mrb[0].mxu0
    %v5464 = vadd.f32 %v5411, %v5463
    %v5465 = vpop.f32.mrb[0].mxu0
    %v5466 = vadd.f32 %v5413, %v5465
    %v5467 = vpop.f32.mrb[0].mxu0
    %v5468 = vadd.f32 %v5415, %v5467
    %v5469 = vpop.f32.mrb[0].mxu0
    %v5470 = vadd.f32 %v5417, %v5469
    %5471 = vmatprep.mubr.bf16.mxu0 %v2592
    %5472 = vmatmul.mubr.bf16.gmra.mrb[0].mxu0 %v2591
    %v5473 = vpop.f32.mrb[0].mxu0
    %v5474 = vadd.f32 %v5421, %v5473
    %v5475 = vpop.f32.mrb[0].mxu0
    %v5476 = vadd.f32 %v5423, %v5475
    %v5477 = vpop.f32.mrb[0].mxu0
    %v5478 = vadd.f32 %v5425, %v5477
    %v5479 = vpop.f32.mrb[0].mxu0
    %v5480 = vadd.f32 %v5427, %v5479
    %5481 = vdwg.mxu0
    %5482 = vmatprep.subr.bf16.mxu0 %v4454
    %5483 = vmatpush1.bf16.msra.mxu0 %v4453
    %5484 = vmatprep.subr.bf16.mxu0 %v4458
    %5485 = vmatpush1.bf16.msra.mxu0 %v4457
    %5486 = vmatprep.subr.bf16.mxu0 %v4462
    %5487 = vmatpush1.bf16.msra.mxu0 %v4461
    %5488 = vmatprep.subr.bf16.mxu0 %v4466
    %5489 = vmatpush1.bf16.msra.mxu0 %v4465
    %5490 = vmatprep.subr.bf16.mxu0 %v4470
    %5491 = vmatpush1.bf16.msra.mxu0 %v4469
    %5492 = vmatprep.subr.bf16.mxu0 %v4474
    %5493 = vmatpush1.bf16.msra.mxu0 %v4473
    %5494 = vmatprep.subr.bf16.mxu0 %v4478
    %5495 = vmatpush1.bf16.msra.mxu0 %v4477
    %5496 = vmatprep.subr.bf16.mxu0 %v4482
    %5497 = vmatpush1.bf16.msra.mxu0 %v4481
    %5498 = vmatprep.subr.bf16.mxu0 %v4486
    %5499 = vmatpush1.bf16.msra.mxu0 %v4485
    %5500 = vmatprep.subr.bf16.mxu0 %v4490
    %5501 = vmatpush1.bf16.msra.mxu0 %v4489
    %5502 = vmatprep.subr.bf16.mxu0 %v4494
    %5503 = vmatpush1.bf16.msra.mxu0 %v4493
    %5504 = vmatprep.subr.bf16.mxu0 %v4498
    %5505 = vmatpush1.bf16.msra.mxu0 %v4497
    %5506 = vmatprep.subr.bf16.mxu0 %v4502
    %5507 = vmatpush1.bf16.msra.mxu0 %v4501
    %5508 = vmatprep.subr.bf16.mxu0 %v4506
    %5509 = vmatpush1.bf16.msra.mxu0 %v4505
    %5510 = vmatprep.subr.bf16.mxu0 %v4510
    %5511 = vmatpush1.bf16.msra.mxu0 %v4509
    %5512 = vmatprep.subr.bf16.mxu0 %v4514
    %5513 = vmatpush1.bf16.msra.mxu0 %v4513
    %5514 = vmatprep.mubr.bf16.mxu0 %v2590
    %5515 = vmatmul.mubr.bf16.gmra.mrb[0].mxu0 %v2589
    %v5516 = vpop.f32.mrb[0].mxu0
    %v5517 = vadd.f32 %v5464, %v5516
    %v5518 = vpop.f32.mrb[0].mxu0
    %v5519 = vadd.f32 %v5466, %v5518
    %v5520 = vpop.f32.mrb[0].mxu0
    %v5521 = vadd.f32 %v5468, %v5520
    %v5522 = vpop.f32.mrb[0].mxu0
    %v5523 = vadd.f32 %v5470, %v5522
    %5524 = vmatprep.mubr.bf16.mxu0 %v2594
    %5525 = vmatmul.mubr.bf16.gmra.mrb[0].mxu0 %v2593
    %v5526 = vpop.f32.mrb[0].mxu0
    %v5527 = vadd.f32 %v5474, %v5526
    %v5528 = vpop.f32.mrb[0].mxu0
    %v5529 = vadd.f32 %v5476, %v5528
    %v5530 = vpop.f32.mrb[0].mxu0
    %v5531 = vadd.f32 %v5478, %v5530
    %v5532 = vpop.f32.mrb[0].mxu0
    %v5533 = vadd.f32 %v5480, %v5532
    %5534 = vdwg.mxu0
    %v5535 = vadd.f32 %v5199, %v5203
    %v5536 = vrot.slane %v5535, 4
    %v5537 = vadd.f32 %v5535, %v5536
    %v5538 = vrot.slane %v5537, 2
    %v5539 = vadd.f32 %v5537, %v5538
    %v5540 = vrot.slane %v5539, 1
    %v5541 = vadd.f32 %v5539, %v5540
    %v5542 = vadd.f32 %v5201, %v5205
    %v5543 = vrot.slane %v5542, 4
    %v5544 = vadd.f32 %v5542, %v5543
    %v5545 = vrot.slane %v5544, 2
    %v5546 = vadd.f32 %v5544, %v5545
    %v5547 = vrot.slane %v5546, 1
    %v5548 = vadd.f32 %v5546, %v5547
    %v5549 = vadd.f32 %v5517, %v5521
    %v5550 = vrot.slane %v5549, 4
    %v5551 = vadd.f32 %v5549, %v5550
    %v5552 = vrot.slane %v5551, 2
    %v5553 = vadd.f32 %v5551, %v5552
    %v5554 = vrot.slane %v5553, 1
    %v5555 = vadd.f32 %v5553, %v5554
    %v5556 = vadd.f32 %v5519, %v5523
    %v5557 = vrot.slane %v5556, 4
    %v5558 = vadd.f32 %v5556, %v5557
    %v5559 = vrot.slane %v5558, 2
    %v5560 = vadd.f32 %v5558, %v5559
    %v5561 = vrot.slane %v5560, 1
    %v5562 = vadd.f32 %v5560, %v5561
    %v5563 = vadd.f32 %v5209, %v5213
    %v5564 = vrot.slane %v5563, 4
    %v5565 = vadd.f32 %v5563, %v5564
    %v5566 = vrot.slane %v5565, 2
    %v5567 = vadd.f32 %v5565, %v5566
    %v5568 = vrot.slane %v5567, 1
    %v5569 = vadd.f32 %v5567, %v5568
    %v5570 = vadd.f32 %v5211, %v5215
    %v5571 = vrot.slane %v5570, 4
    %v5572 = vadd.f32 %v5570, %v5571
    %v5573 = vrot.slane %v5572, 2
    %v5574 = vadd.f32 %v5572, %v5573
    %v5575 = vrot.slane %v5574, 1
    %v5576 = vadd.f32 %v5574, %v5575
    %v5577 = vadd.f32 %v5527, %v5531
    %v5578 = vrot.slane %v5577, 4
    %v5579 = vadd.f32 %v5577, %v5578
    %v5580 = vrot.slane %v5579, 2
    %v5581 = vadd.f32 %v5579, %v5580
    %v5582 = vrot.slane %v5581, 1
    %v5583 = vadd.f32 %v5581, %v5582
    %v5584 = vadd.f32 %v5529, %v5533
    %v5585 = vrot.slane %v5584, 4
    %v5586 = vadd.f32 %v5584, %v5585
    %v5587 = vrot.slane %v5586, 2
    %v5588 = vadd.f32 %v5586, %v5587
    %v5589 = vrot.slane %v5588, 1
    %v5590 = vadd.f32 %v5588, %v5589
    %v5591 = vrcp.pop 16.0
    %v5592 = vmul.f32 %v5541, %v5591
    %v5593 = vmul.f32 %v5548, %v5591
    %v5594 = vmul.f32 %v5555, %v5591
    %v5595 = vmul.f32 %v5562, %v5591
    %v5596 = vmul.f32 %v5569, %v5591
    %v5597 = vmul.f32 %v5576, %v5591
    %v5598 = vmul.f32 %v5583, %v5591
    %v5599 = vmul.f32 %v5590, %v5591
    %v5600 = vld [vmem:[%s8] sm:$0xff]
    %v5601 = vld [vmem:[%s8 + $0x8] sm:$0xff]
    %v5602 = vld [vmem:[%s8 + $0x10] sm:$0xff]
    %v5603 = vld [vmem:[%s8 + $0x18] sm:$0xff]
    %v5604 = vld [vmem:[%s8 + $0x20] sm:$0xff]
    %v5605 = vld [vmem:[%s8 + $0x28] sm:$0xff]
    %v5606 = vld [vmem:[%s8 + $0x30] sm:$0xff]
    %v5607 = vld [vmem:[%s8 + $0x38] sm:$0xff]
    %v5608 = vld [vmem:[%s8 + $0x40] sm:$0xff]
    %v5609 = vld [vmem:[%s8 + $0x48] sm:$0xff]
    %v5610 = vld [vmem:[%s8 + $0x50] sm:$0xff]
    %v5611 = vld [vmem:[%s8 + $0x58] sm:$0xff]
    %v5612 = vld [vmem:[%s8 + $0x60] sm:$0xff]
    %v5613 = vld [vmem:[%s8 + $0x68] sm:$0xff]
    %v5614 = vld [vmem:[%s8 + $0x70] sm:$0xff]
    %v5615 = vld [vmem:[%s8 + $0x78] sm:$0xff]
    %v5616 = vld [vmem:[%s8 + $0x80] sm:$0xff]
    %v5617 = vld [vmem:[%s8 + $0x88] sm:$0xff]
    %v5618 = vld [vmem:[%s8 + $0x90] sm:$0xff]
    %v5619 = vld [vmem:[%s8 + $0x98] sm:$0xff]
    %v5620 = vld [vmem:[%s8 + $0xa0] sm:$0xff]
    %v5621 = vld [vmem:[%s8 + $0xa8] sm:$0xff]
    %v5622 = vld [vmem:[%s8 + $0xb0] sm:$0xff]
    %v5623 = vld [vmem:[%s8 + $0xb8] sm:$0xff]
    %v5624 = vld [vmem:[%s8 + $0xc0] sm:$0xff]
    %v5625 = vld [vmem:[%s8 + $0xc8] sm:$0xff]
    %v5626 = vld [vmem:[%s8 + $0xd0] sm:$0xff]
    %v5627 = vld [vmem:[%s8 + $0xd8] sm:$0xff]
    %v5628 = vld [vmem:[%s8 + $0xe0] sm:$0xff]
    %v5629 = vld [vmem:[%s8 + $0xe8] sm:$0xff]
    %v5630 = vld [vmem:[%s8 + $0xf0] sm:$0xff]
    %v5631 = vld [vmem:[%s8 + $0xf8] sm:$0xff]
    %v5632 = vld [vmem:[%s8 + $0x100] sm:$0xff]
    %v5633 = vld [vmem:[%s8 + $0x108] sm:$0xff]
    %v5634 = vld [vmem:[%s8 + $0x110] sm:$0xff]
    %v5635 = vld [vmem:[%s8 + $0x118] sm:$0xff]
    %v5636 = vld [vmem:[%s8 + $0x120] sm:$0xff]
    %v5637 = vld [vmem:[%s8 + $0x128] sm:$0xff]
    %v5638 = vld [vmem:[%s8 + $0x130] sm:$0xff]
    %v5639 = vld [vmem:[%s8 + $0x138] sm:$0xff]
    %v5640 = vld [vmem:[%s8 + $0x140] sm:$0xff]
    %v5641 = vld [vmem:[%s8 + $0x148] sm:$0xff]
    %v5642 = vld [vmem:[%s8 + $0x150] sm:$0xff]
    %v5643 = vld [vmem:[%s8 + $0x158] sm:$0xff]
    %v5644 = vld [vmem:[%s8 + $0x160] sm:$0xff]
    %v5645 = vld [vmem:[%s8 + $0x168] sm:$0xff]
    %v5646 = vld [vmem:[%s8 + $0x170] sm:$0xff]
    %v5647 = vld [vmem:[%s8 + $0x178] sm:$0xff]
    %v5648 = vld [vmem:[%s8 + $0x180] sm:$0xff]
    %v5649 = vld [vmem:[%s8 + $0x188] sm:$0xff]
    %v5650 = vld [vmem:[%s8 + $0x190] sm:$0xff]
    %v5651 = vld [vmem:[%s8 + $0x198] sm:$0xff]
    %v5652 = vld [vmem:[%s8 + $0x1a0] sm:$0xff]
    %v5653 = vld [vmem:[%s8 + $0x1a8] sm:$0xff]
    %v5654 = vld [vmem:[%s8 + $0x1b0] sm:$0xff]
    %v5655 = vld [vmem:[%s8 + $0x1b8] sm:$0xff]
    %v5656 = vld [vmem:[%s8 + $0x1c0] sm:$0xff]
    %v5657 = vld [vmem:[%s8 + $0x1c8] sm:$0xff]
    %v5658 = vld [vmem:[%s8 + $0x1d0] sm:$0xff]
    %v5659 = vld [vmem:[%s8 + $0x1d8] sm:$0xff]
    %v5660 = vld [vmem:[%s8 + $0x1e0] sm:$0xff]
    %v5661 = vld [vmem:[%s8 + $0x1e8] sm:$0xff]
    %v5662 = vld [vmem:[%s8 + $0x1f0] sm:$0xff]
    %v5663 = vld [vmem:[%s8 + $0x1f8] sm:$0xff]
    %v5664 = vld [vmem:[#allocation16] sm:$0x1]
    %v5666 = vlaneseq
    %v5667 = vshrl.u32 %v5666, 7
    %v5668 = vsub.s32 0, %v5667
    %v5669 = vrot.slane %v5664, %v5668
    %vm5679 = vcmask 1041409
    %v5680 = vsel %vm5679, %v5596, %v5592
    %v5681 = vsel %vm5679, %v5597, %v5593
    %v5682 = vsel %vm5679, %v5598, %v5594
    %v5683 = vsel %vm5679, %v5599, %v5595
    %5688 = vmatprep.subr.mxu0 0.0
    %5689 = vmatpush1.msra.mxu0 %v5600
    %5690 = vmatprep.subr.mxu0 0.0
    %5691 = vmatpush1.msra.mxu0 %v5601
    %5692 = vmatprep.subr.mxu0 0.0
    %5693 = vmatpush1.msra.mxu0 %v5602
    %5694 = vmatprep.subr.mxu0 0.0
    %5695 = vmatpush1.msra.mxu0 %v5603
    %5696 = vmatprep.subr.mxu0 0.0
    %5697 = vmatpush1.msra.mxu0 %v5604
    %5698 = vmatprep.subr.mxu0 0.0
    %5699 = vmatpush1.msra.mxu0 %v5605
    %5700 = vmatprep.subr.mxu0 0.0
    %5701 = vmatpush1.msra.mxu0 %v5606
    %5702 = vmatprep.subr.mxu0 0.0
    %5703 = vmatpush1.msra.mxu0 %v5607
    %5704 = vmatprep.subr.mxu0 0.0
    %5705 = vmatpush1.msra.mxu0 %v5608
    %5706 = vmatprep.subr.mxu0 0.0
    %5707 = vmatpush1.msra.mxu0 %v5609
    %5708 = vmatprep.subr.mxu0 0.0
    %5709 = vmatpush1.msra.mxu0 %v5610
    %5710 = vmatprep.subr.mxu0 0.0
    %5711 = vmatpush1.msra.mxu0 %v5611
    %5712 = vmatprep.subr.mxu0 0.0
    %5713 = vmatpush1.msra.mxu0 %v5612
    %5714 = vmatprep.subr.mxu0 0.0
    %5715 = vmatpush1.msra.mxu0 %v5613
    %5716 = vmatprep.subr.mxu0 0.0
    %5717 = vmatpush1.msra.mxu0 %v5614
    %5718 = vmatprep.subr.mxu0 0.0
    %5719 = vmatpush1.msra.mxu0 %v5615
    %5720 = vmatprep.subr.mxu0 0.0
    %5721 = vmatpush1.msra.mxu0 %v5616
    %5722 = vmatprep.subr.mxu0 0.0
    %5723 = vmatpush1.msra.mxu0 %v5617
    %5724 = vmatprep.subr.mxu0 0.0
    %5725 = vmatpush1.msra.mxu0 %v5618
    %5726 = vmatprep.subr.mxu0 0.0
    %5727 = vmatpush1.msra.mxu0 %v5619
    %5728 = vmatprep.subr.mxu0 0.0
    %5729 = vmatpush1.msra.mxu0 %v5620
    %5730 = vmatprep.subr.mxu0 0.0
    %5731 = vmatpush1.msra.mxu0 %v5621
    %5732 = vmatprep.subr.mxu0 0.0
    %5733 = vmatpush1.msra.mxu0 %v5622
    %5734 = vmatprep.subr.mxu0 0.0
    %5735 = vmatpush1.msra.mxu0 %v5623
    %5736 = vmatprep.subr.mxu0 0.0
    %5737 = vmatpush1.msra.mxu0 %v5624
    %5738 = vmatprep.subr.mxu0 0.0
    %5739 = vmatpush1.msra.mxu0 %v5625
    %5740 = vmatprep.subr.mxu0 0.0
    %5741 = vmatpush1.msra.mxu0 %v5626
    %5742 = vmatprep.subr.mxu0 0.0
    %5743 = vmatpush1.msra.mxu0 %v5627
    %5744 = vmatprep.subr.mxu0 0.0
    %5745 = vmatpush1.msra.mxu0 %v5628
    %5746 = vmatprep.subr.mxu0 0.0
    %5747 = vmatpush1.msra.mxu0 %v5629
    %5748 = vmatprep.subr.mxu0 0.0
    %5749 = vmatpush1.msra.mxu0 %v5630
    %5750 = vmatprep.subr.mxu0 0.0
    %5751 = vmatpush1.msra.mxu0 %v5631
    %5752 = vmatprep.mubr.f32.mxu0 %v5681
    %5753 = vmatmul.mubr.f32.gmra.mrb[0].mxu0 %v5680
    %v5754 = vpop.f32.mrb[0].mxu0
    %v5755 = vadd.f32 %v5669, %v5754
    %v5756 = vpop.f32.mrb[0].mxu0
    %5757 = vdwg.mxu0
    %5758 = vmatprep.subr.mxu0 0.0
    %5759 = vmatpush1.msra.mxu0 %v5632
    %5760 = vmatprep.subr.mxu0 0.0
    %5761 = vmatpush1.msra.mxu0 %v5633
    %5762 = vmatprep.subr.mxu0 0.0
    %5763 = vmatpush1.msra.mxu0 %v5634
    %5764 = vmatprep.subr.mxu0 0.0
    %5765 = vmatpush1.msra.mxu0 %v5635
    %5766 = vmatprep.subr.mxu0 0.0
    %5767 = vmatpush1.msra.mxu0 %v5636
    %5768 = vmatprep.subr.mxu0 0.0
    %5769 = vmatpush1.msra.mxu0 %v5637
    %5770 = vmatprep.subr.mxu0 0.0
    %5771 = vmatpush1.msra.mxu0 %v5638
    %5772 = vmatprep.subr.mxu0 0.0
    %5773 = vmatpush1.msra.mxu0 %v5639
    %5774 = vmatprep.subr.mxu0 0.0
    %5775 = vmatpush1.msra.mxu0 %v5640
    %5776 = vmatprep.subr.mxu0 0.0
    %5777 = vmatpush1.msra.mxu0 %v5641
    %5778 = vmatprep.subr.mxu0 0.0
    %5779 = vmatpush1.msra.mxu0 %v5642
    %5780 = vmatprep.subr.mxu0 0.0
    %5781 = vmatpush1.msra.mxu0 %v5643
    %5782 = vmatprep.subr.mxu0 0.0
    %5783 = vmatpush1.msra.mxu0 %v5644
    %5784 = vmatprep.subr.mxu0 0.0
    %5785 = vmatpush1.msra.mxu0 %v5645
    %5786 = vmatprep.subr.mxu0 0.0
    %5787 = vmatpush1.msra.mxu0 %v5646
    %5788 = vmatprep.subr.mxu0 0.0
    %5789 = vmatpush1.msra.mxu0 %v5647
    %5790 = vmatprep.subr.mxu0 0.0
    %5791 = vmatpush1.msra.mxu0 %v5648
    %5792 = vmatprep.subr.mxu0 0.0
    %5793 = vmatpush1.msra.mxu0 %v5649
    %5794 = vmatprep.subr.mxu0 0.0
    %5795 = vmatpush1.msra.mxu0 %v5650
    %5796 = vmatprep.subr.mxu0 0.0
    %5797 = vmatpush1.msra.mxu0 %v5651
    %5798 = vmatprep.subr.mxu0 0.0
    %5799 = vmatpush1.msra.mxu0 %v5652
    %5800 = vmatprep.subr.mxu0 0.0
    %5801 = vmatpush1.msra.mxu0 %v5653
    %5802 = vmatprep.subr.mxu0 0.0
    %5803 = vmatpush1.msra.mxu0 %v5654
    %5804 = vmatprep.subr.mxu0 0.0
    %5805 = vmatpush1.msra.mxu0 %v5655
    %5806 = vmatprep.subr.mxu0 0.0
    %5807 = vmatpush1.msra.mxu0 %v5656
    %5808 = vmatprep.subr.mxu0 0.0
    %5809 = vmatpush1.msra.mxu0 %v5657
    %5810 = vmatprep.subr.mxu0 0.0
    %5811 = vmatpush1.msra.mxu0 %v5658
    %5812 = vmatprep.subr.mxu0 0.0
    %5813 = vmatpush1.msra.mxu0 %v5659
    %5814 = vmatprep.subr.mxu0 0.0
    %5815 = vmatpush1.msra.mxu0 %v5660
    %5816 = vmatprep.subr.mxu0 0.0
    %5817 = vmatpush1.msra.mxu0 %v5661
    %5818 = vmatprep.subr.mxu0 0.0
    %5819 = vmatpush1.msra.mxu0 %v5662
    %5820 = vmatprep.subr.mxu0 0.0
    %5821 = vmatpush1.msra.mxu0 %v5663
    %5822 = vmatprep.mubr.f32.mxu0 %v5683
    %5823 = vmatmul.mubr.f32.gmra.mrb[0].mxu0 %v5682
    %v5824 = vpop.f32.mrb[0].mxu0
    %v5825 = vadd.f32 %v5755, %v5824
    %v5826 = vpop.f32.mrb[0].mxu0
    %5827 = vdwg.mxu0
    %v5828 = vmax.f32 %v5825, 0.0
    %v5829 = vld [vmem:[#allocation17] sm:$0xff]
    %v5830 = vld [vmem:[#allocation17 + $0x8] sm:$0xff]
    %v5831 = vld [vmem:[#allocation17 + $0x10] sm:$0xff]
    %v5832 = vld [vmem:[#allocation17 + $0x18] sm:$0xff]
    %v5833 = vld [vmem:[#allocation19] sm:$0xf]
    %v5835 = vlaneseq
    %v5836 = vshrl.u32 %v5835, 7
    %v5837 = vsub.s32 0, %v5836
    %v5838 = vrot.slane %v5833, %v5837
    %v5839 = vlaneseq
    %v5840 = vshrl.u32 %v5839, 7
    %v5841 = vsub.s32 1, %v5840
    %v5842 = vrot.slane %v5833, %v5841
    %v5843 = vlaneseq
    %v5844 = vshrl.u32 %v5843, 7
    %v5845 = vsub.s32 2, %v5844
    %v5846 = vrot.slane %v5833, %v5845
    %v5847 = vlaneseq
    %v5848 = vshrl.u32 %v5847, 7
    %v5849 = vsub.s32 3, %v5848
    %v5850 = vrot.slane %v5833, %v5849
    %vm5855 = vcmask 64512
    %v5857 = vsel %vm5855, %v5828, 0
    %5859 = vmatprep.subr.mxu0 %v5830
    %5860 = vmatpush1.msra.mxu0 %v5829
    %5861 = vmatprep.subr.mxu0 0.0
    %5862 = vmatpush1.msra.mxu0 0.0
    %5863 = vmatprep.subr.mxu0 0.0
    %5864 = vmatpush1.msra.mxu0 0.0
    %5865 = vmatprep.subr.mxu0 0.0
    %5866 = vmatpush1.msra.mxu0 0.0
    %5867 = vmatprep.subr.mxu0 0.0
    %5868 = vmatpush1.msra.mxu0 0.0
    %5869 = vmatprep.subr.mxu0 0.0
    %5870 = vmatpush1.msra.mxu0 0.0
    %5871 = vmatprep.subr.mxu0 0.0
    %5872 = vmatpush1.msra.mxu0 0.0
    %5873 = vmatprep.subr.mxu0 0.0
    %5874 = vmatpush1.msra.mxu0 0.0
    %5875 = vmatprep.subr.mxu0 0.0
    %5876 = vmatpush1.msra.mxu0 0.0
    %5877 = vmatprep.subr.mxu0 0.0
    %5878 = vmatpush1.msra.mxu0 0.0
    %5879 = vmatprep.subr.mxu0 0.0
    %5880 = vmatpush1.msra.mxu0 0.0
    %5881 = vmatprep.subr.mxu0 0.0
    %5882 = vmatpush1.msra.mxu0 0.0
    %5883 = vmatprep.subr.mxu0 0.0
    %5884 = vmatpush1.msra.mxu0 0.0
    %5885 = vmatprep.subr.mxu0 0.0
    %5886 = vmatpush1.msra.mxu0 0.0
    %5887 = vmatprep.subr.mxu0 0.0
    %5888 = vmatpush1.msra.mxu0 0.0
    %5889 = vmatprep.subr.mxu0 0.0
    %5890 = vmatpush1.msra.mxu0 0.0
    %5891 = vmatprep.subr.mxu0 0.0
    %5892 = vmatpush1.msra.mxu0 0.0
    %5893 = vmatprep.subr.mxu0 0.0
    %5894 = vmatpush1.msra.mxu0 0.0
    %5895 = vmatprep.subr.mxu0 0.0
    %5896 = vmatpush1.msra.mxu0 0.0
    %5897 = vmatprep.subr.mxu0 0.0
    %5898 = vmatpush1.msra.mxu0 0.0
    %5899 = vmatprep.subr.mxu0 0.0
    %5900 = vmatpush1.msra.mxu0 0.0
    %5901 = vmatprep.subr.mxu0 0.0
    %5902 = vmatpush1.msra.mxu0 0.0
    %5903 = vmatprep.subr.mxu0 0.0
    %5904 = vmatpush1.msra.mxu0 0.0
    %5905 = vmatprep.subr.mxu0 0.0
    %5906 = vmatpush1.msra.mxu0 0.0
    %5907 = vmatprep.subr.mxu0 0.0
    %5908 = vmatpush1.msra.mxu0 0.0
    %5909 = vmatprep.subr.mxu0 0.0
    %5910 = vmatpush1.msra.mxu0 0.0
    %5911 = vmatprep.subr.mxu0 0.0
    %5912 = vmatpush1.msra.mxu0 0.0
    %5913 = vmatprep.subr.mxu0 0.0
    %5914 = vmatpush1.msra.mxu0 0.0
    %5915 = vmatprep.subr.mxu0 0.0
    %5916 = vmatpush1.msra.mxu0 0.0
    %5917 = vmatprep.subr.mxu0 0.0
    %5918 = vmatpush1.msra.mxu0 0.0
    %5919 = vmatprep.subr.mxu0 0.0
    %5920 = vmatpush1.msra.mxu0 0.0
    %5921 = vmatprep.subr.mxu0 0.0
    %5922 = vmatpush1.msra.mxu0 0.0
    %5923 = vmatprep.mubr.f32.mxu0 0.0
    %5924 = vmatmul.mubr.f32.gmra.mrb[0].mxu0 %v5857
    %v5925 = vpop.f32.mrb[0].mxu0
    %v5926 = vadd.f32 %v5838, %v5925
    %v5927 = vpop.f32.mrb[0].mxu0
    %v5928 = vadd.f32 %v5842, %v5927
    %5929 = vdwg.mxu0
    %5930 = vmatprep.subr.mxu0 %v5832
    %5931 = vmatpush1.msra.mxu0 %v5831
    %5932 = vmatprep.subr.mxu0 0.0
    %5933 = vmatpush1.msra.mxu0 0.0
    %5934 = vmatprep.subr.mxu0 0.0
    %5935 = vmatpush1.msra.mxu0 0.0
    %5936 = vmatprep.subr.mxu0 0.0
    %5937 = vmatpush1.msra.mxu0 0.0
    %5938 = vmatprep.subr.mxu0 0.0
    %5939 = vmatpush1.msra.mxu0 0.0
    %5940 = vmatprep.subr.mxu0 0.0
    %5941 = vmatpush1.msra.mxu0 0.0
    %5942 = vmatprep.subr.mxu0 0.0
    %5943 = vmatpush1.msra.mxu0 0.0
    %5944 = vmatprep.subr.mxu0 0.0
    %5945 = vmatpush1.msra.mxu0 0.0
    %5946 = vmatprep.subr.mxu0 0.0
    %5947 = vmatpush1.msra.mxu0 0.0
    %5948 = vmatprep.subr.mxu0 0.0
    %5949 = vmatpush1.msra.mxu0 0.0
    %5950 = vmatprep.subr.mxu0 0.0
    %5951 = vmatpush1.msra.mxu0 0.0
    %5952 = vmatprep.subr.mxu0 0.0
    %5953 = vmatpush1.msra.mxu0 0.0
    %5954 = vmatprep.subr.mxu0 0.0
    %5955 = vmatpush1.msra.mxu0 0.0
    %5956 = vmatprep.subr.mxu0 0.0
    %5957 = vmatpush1.msra.mxu0 0.0
    %5958 = vmatprep.subr.mxu0 0.0
    %5959 = vmatpush1.msra.mxu0 0.0
    %5960 = vmatprep.subr.mxu0 0.0
    %5961 = vmatpush1.msra.mxu0 0.0
    %5962 = vmatprep.subr.mxu0 0.0
    %5963 = vmatpush1.msra.mxu0 0.0
    %5964 = vmatprep.subr.mxu0 0.0
    %5965 = vmatpush1.msra.mxu0 0.0
    %5966 = vmatprep.subr.mxu0 0.0
    %5967 = vmatpush1.msra.mxu0 0.0
    %5968 = vmatprep.subr.mxu0 0.0
    %5969 = vmatpush1.msra.mxu0 0.0
    %5970 = vmatprep.subr.mxu0 0.0
    %5971 = vmatpush1.msra.mxu0 0.0
    %5972 = vmatprep.subr.mxu0 0.0
    %5973 = vmatpush1.msra.mxu0 0.0
    %5974 = vmatprep.subr.mxu0 0.0
    %5975 = vmatpush1.msra.mxu0 0.0
    %5976 = vmatprep.subr.mxu0 0.0
    %5977 = vmatpush1.msra.mxu0 0.0
    %5978 = vmatprep.subr.mxu0 0.0
    %5979 = vmatpush1.msra.mxu0 0.0
    %5980 = vmatprep.subr.mxu0 0.0
    %5981 = vmatpush1.msra.mxu0 0.0
    %5982 = vmatprep.subr.mxu0 0.0
    %5983 = vmatpush1.msra.mxu0 0.0
    %5984 = vmatprep.subr.mxu0 0.0
    %5985 = vmatpush1.msra.mxu0 0.0
    %5986 = vmatprep.subr.mxu0 0.0
    %5987 = vmatpush1.msra.mxu0 0.0
    %5988 = vmatprep.subr.mxu0 0.0
    %5989 = vmatpush1.msra.mxu0 0.0
    %5990 = vmatprep.subr.mxu0 0.0
    %5991 = vmatpush1.msra.mxu0 0.0
    %5992 = vmatprep.subr.mxu0 0.0
    %5993 = vmatpush1.msra.mxu0 0.0
    %5994 = vmatprep.mubr.f32.mxu0 0.0
    %5995 = vmatmul.mubr.f32.gmra.mrb[0].mxu0 %v5857
    %v5996 = vpop.f32.mrb[0].mxu0
    %v5997 = vadd.f32 %v5846, %v5996
    %v5998 = vpop.f32.mrb[0].mxu0
    %v5999 = vadd.f32 %v5850, %v5998
    %6000 = vdwg.mxu0
    %v6001 = vsub.f32 0.0, %v5926
    %v6002 = vsub.f32 0.0, %v5928
    %v6003 = vsub.f32 0.0, %v5997
    %v6004 = vsub.f32 0.0, %v5999
    %v6005 = vmul.f32 %v6001, 1.442695
    %v6006 = vpow.pop %v6005
    %v6007 = vmul.f32 %v6002, 1.442695
    %v6008 = vpow.pop %v6007
    %v6009 = vmul.f32 %v6003, 1.442695
    %v6010 = vpow.pop %v6009
    %v6011 = vmul.f32 %v6004, 1.442695
    %v6012 = vpow.pop %v6011
    %v6013 = vadd.f32 %v6006, 1.0
    %v6014 = vadd.f32 %v6008, 1.0
    %v6015 = vadd.f32 %v6010, 1.0
    %v6016 = vadd.f32 %v6012, 1.0
    %v6017 = vrcp.pop %v6013
    %v6018 = vmul.f32 1.0, %v6017
    %v6019 = vrcp.pop %v6014
    %v6020 = vmul.f32 1.0, %v6019
    %v6021 = vrcp.pop %v6015
    %v6022 = vmul.f32 1.0, %v6021
    %v6023 = vrcp.pop %v6016
    %v6024 = vmul.f32 1.0, %v6023
    %v6029 = vcombine.low %v6018, %v6020
    %v6030 = vcombine.low %v6022, %v6024
    %v6032 = vunpack.c.l.s4 1966171168
    %v6033 = vunpack.c.0.s8 %v6032
    %v6034 = vlaneseq
    %v6035 = vshrl.u32 %v6034, 7
    %v6036 = vsub.s32 %v6033, %v6035
    %v6037 = vrot.slane %v6029, %v6036
    %v6039 = vunpack.c.l.s4 1966171168
    %v6040 = vunpack.c.0.s8 %v6039
    %v6041 = vlaneseq
    %v6042 = vshrl.u32 %v6041, 7
    %v6043 = vsub.s32 %v6040, %v6042
    %v6044 = vrot.slane %v6030, %v6043
    %v6045 = vcombine.low %v6037, %v6044
    %v6046 = vcombine.high %v6037, %v6044
    %v6048 = vunpack.c.l.s4 1966171168
    %v6049 = vunpack.c.0.s8 %v6048
    %v6050 = vlaneseq
    %v6051 = vshrl.u32 %v6050, 7
    %v6052 = vsub.s32 %v6049, %v6051
    %v6053 = vrot.slane %v6045, %v6052
    %v6055 = vunpack.c.l.s4 1966171168
    %v6056 = vunpack.c.0.s8 %v6055
    %v6057 = vlaneseq
    %v6058 = vshrl.u32 %v6057, 7
    %v6059 = vsub.s32 %v6056, %v6058
    %v6060 = vrot.slane %v6046, %v6059
    %v6061 = vlaneseq
    %v6062 = vshrl.u32 %v6061, 7
    %v6063 = vsub.s32 0, %v6062
    %v6064 = vrot.slane %v6053, %v6063
    %v6065 = vlaneseq
    %v6066 = vshrl.u32 %v6065, 7
    %v6067 = vsub.s32 1, %v6066
    %v6068 = vrot.slane %v6053, %v6067
    %v6069 = vlaneseq
    %v6070 = vshrl.u32 %v6069, 7
    %v6071 = vsub.s32 2, %v6070
    %v6072 = vrot.slane %v6053, %v6071
    %v6073 = vlaneseq
    %v6074 = vshrl.u32 %v6073, 7
    %v6075 = vsub.s32 3, %v6074
    %v6076 = vrot.slane %v6053, %v6075
    %v6077 = vlaneseq
    %v6078 = vshrl.u32 %v6077, 7
    %v6079 = vsub.s32 0, %v6078
    %v6080 = vrot.slane %v6060, %v6079
    %v6081 = vlaneseq
    %v6082 = vshrl.u32 %v6081, 7
    %v6083 = vsub.s32 1, %v6082
    %v6084 = vrot.slane %v6060, %v6083
    %v6085 = vlaneseq
    %v6086 = vshrl.u32 %v6085, 7
    %v6087 = vsub.s32 2, %v6086
    %v6088 = vrot.slane %v6060, %v6087
    %v6089 = vlaneseq
    %v6090 = vshrl.u32 %v6089, 7
    %v6091 = vsub.s32 3, %v6090
    %v6092 = vrot.slane %v6060, %v6091
    %v6101 = vmul.f32 %v5199, %v6064
    %v6102 = vmul.f32 %v5201, %v6068
    %v6103 = vmul.f32 %v5517, %v6072
    %v6104 = vmul.f32 %v5519, %v6076
    %v6105 = vmul.f32 %v5203, %v6064
    %v6106 = vmul.f32 %v5205, %v6068
    %v6107 = vmul.f32 %v5521, %v6072
    %v6108 = vmul.f32 %v5523, %v6076
    %v6109 = vmul.f32 %v5209, %v6080
    %v6110 = vmul.f32 %v5211, %v6084
    %v6111 = vmul.f32 %v5527, %v6088
    %v6112 = vmul.f32 %v5529, %v6092
    %v6113 = vmul.f32 %v5213, %v6080
    %v6114 = vmul.f32 %v5215, %v6084
    %v6115 = vmul.f32 %v5531, %v6088
    %v6116 = vmul.f32 %v5533, %v6092
    %v6117 = vadd.f32 %v6101, %v659
    %v6118 = vadd.f32 %v6102, %v661
    %v6119 = vadd.f32 %v6103, %v712
    %v6120 = vadd.f32 %v6104, %v714
    %v6121 = vadd.f32 %v6105, %v663
    %v6122 = vadd.f32 %v6106, %v665
    %v6123 = vadd.f32 %v6107, %v716
    %v6124 = vadd.f32 %v6108, %v718
    %v6125 = vadd.f32 %v6109, %v669
    %v6126 = vadd.f32 %v6110, %v671
    %v6127 = vadd.f32 %v6111, %v722
    %v6128 = vadd.f32 %v6112, %v724
    %v6129 = vadd.f32 %v6113, %v673
    %v6130 = vadd.f32 %v6114, %v675
    %v6131 = vadd.f32 %v6115, %v726
    %v6132 = vadd.f32 %v6116, %v728
    %6133 = vst [vmem:[#allocation20] sm:$0xff] %v6117
    %6134 = vst [vmem:[#allocation20 + $0x8] sm:$0xff] %v6118
    %6135 = vst [vmem:[#allocation20 + $0x10] sm:$0xff] %v6119
    %6136 = vst [vmem:[#allocation20 + $0x18] sm:$0xff] %v6120
    %6137 = vst [vmem:[#allocation20 + $0x20] sm:$0xff] %v6121
    %6138 = vst [vmem:[#allocation20 + $0x28] sm:$0xff] %v6122
    %6139 = vst [vmem:[#allocation20 + $0x30] sm:$0xff] %v6123
    %6140 = vst [vmem:[#allocation20 + $0x38] sm:$0xff] %v6124
    %6141 = vst [vmem:[#allocation20 + $0x40] sm:$0xff] %v6125
    %6142 = vst [vmem:[#allocation20 + $0x48] sm:$0xff] %v6126
    %6143 = vst [vmem:[#allocation20 + $0x50] sm:$0xff] %v6127
    %6144 = vst [vmem:[#allocation20 + $0x58] sm:$0xff] %v6128
    %6145 = vst [vmem:[#allocation20 + $0x60] sm:$0xff] %v6129
    %6146 = vst [vmem:[#allocation20 + $0x68] sm:$0xff] %v6130
    %6147 = vst [vmem:[#allocation20 + $0x70] sm:$0xff] %v6131
    %6148 = vst [vmem:[#allocation20 + $0x78] sm:$0xff] %v6132
    // Predicated region
    $region94: #{tpu_custom_call.1} parent=1 // pred_check
      _
    $region95: #{tpu_custom_call.1} parent=1 // pred_check_branch
      %6150 = sbr.rel (0) target = $region97
    $region96: #{tpu_custom_call.1} parent=1 // pred_region
      %s6152 = ssub.s32 2048, 2048
      %6153 = vsyncadd [#allocation4], %s6152
      %s6154 = sshll.u32 [#allocation20], 4
      %s6155 = int_to_ptr.vmem [resolvable:$true] %s6154
      %6160 = dma.vmem_to_hbm [thread:$0]  %s6155, 2048, %s12, [#allocation4], 512, 512, 32
    $region97: #{tpu_custom_call.1} parent=1 // pred_fallthru
      _
    // Predicated region
    $region98: #{tpu_custom_call.1} parent=1 // pred_check
      _
    $region99: #{tpu_custom_call.1} parent=1 // pred_check_branch
      %6162 = sbr.rel (0) target = $region101
    $region100: #{tpu_custom_call.1} parent=1 // pred_region
      %6163 = dma.done [#allocation4], 2048
    $region101: #{tpu_custom_call.1} parent=1 // pred_fallthru
      _
    %6164 = vsyncpa [#allocation3], 1
    %6165 = vsyncpa [#allocation6], 1
    %6166 = vsyncpa [#allocation9], 1
    %6167 = vsyncpa [#allocation12], 1
    %6168 = vsyncpa [#allocation15], 1
    %6169 = vsyncpa [#allocation18], 1
    %6170 = vsyncpa [#allocation4], 1

// kernel: tpu_custom_call.1
$region0: #{tpu_custom_call.1}
  #allocation0 [shape = 'u32[]', space=smem, size = 0x4, offset = 0x4, fixed_abs, tag = 'smem constant byte address 0x4 - core index']
  #allocation1 [shape = 'u32[144,128]{1,0:T(1,128)}', space=vmem, size = 0x12000, scoped, tag = 'internal scratch']
  %s0 = inlined_call_operand.hbm [shape: f32[32,256], index: 0, kind: input, shape index: {}]
  %s1 = inlined_call_operand.hbm [shape: f32[1,256], index: 1, kind: input, shape index: {}]
  %s2 = inlined_call_operand.hbm [shape: f32[1,256], index: 2, kind: input, shape index: {}]
  %s3 = inlined_call_operand.hbm [shape: f32[1,512], index: 3, kind: input, shape index: {}]
  %s4 = inlined_call_operand.hbm [shape: f32[1,512], index: 4, kind: input, shape index: {}]
  %s5 = inlined_call_operand.hbm [shape: bf16[768,512], index: 5, kind: input, shape index: {}]
  %s6 = inlined_call_operand.hbm [shape: bf16[1536,512], index: 6, kind: input, shape index: {}]
  %s7 = inlined_call_operand.hbm [shape: bf16[256,512], index: 7, kind: input, shape index: {}]
  %s8 = inlined_call_operand.vmem [shape: f32[512,8], index: 8, kind: input, shape index: {}]
  %s9 = inlined_call_operand.hbm [shape: f32[1,8], index: 9, kind: input, shape index: {}]
  %s10 = inlined_call_operand.hbm [shape: f32[8,512], index: 10, kind: input, shape index: {}]
  %s11 = inlined_call_operand.hbm [shape: f32[1,512], index: 11, kind: input, shape index: {}]
  %s12 = inlined_call_operand.hbm [shape: f32[32,512], index: 12, kind: output, shape index: {}]
  %s13 = sld [smem:[#allocation0]]
  $region102: #{tpu_custom_call.1} parent=0
    _
  %s15 = ssub.s32 1, %s13
  %s16 = scalar_select 0, %s15, %s13
  $region1: #{tpu_custom_call.1} parent=0
    #allocation2 [shape = 'u8[32768]{0}', space=vmem, size = 0x8000, scoped, tag = 'input window, operand 0, single buffered']
    #allocation3 [shape = 's32[1]{0}', space=sflag, size = 0x4, scoped, tag = 'scoped memory for tpu_custom_call.1']
    #allocation4 [shape = 's32[1]{0}', space=sflag, size = 0x4, scoped, tag = 'scoped memory for tpu_custom_call.1']
    #allocation5 [shape = 'u8[1024]{0}', space=vmem, size = 0x400, scoped, tag = 'input window, operand 1, single buffered']
    #allocation6 [shape = 's32[1]{0}', space=sflag, size = 0x4, scoped, tag = 'scoped memory for tpu_custom_call.1']
    #allocation7 [shape = 'u8[1024]{0}', space=vmem, size = 0x400, scoped, tag = 'input window, operand 2, single buffered']
    #allocation8 [shape = 'u8[2048]{0}', space=vmem, size = 0x800, scoped, tag = 'input window, operand 3, single buffered']
    #allocation9 [shape = 's32[1]{0}', space=sflag, size = 0x4, scoped, tag = 'scoped memory for tpu_custom_call.1']
    #allocation10 [shape = 'u8[2048]{0}', space=vmem, size = 0x800, scoped, tag = 'input window, operand 4, single buffered']
    #allocation11 [shape = 'u8[786432]{0}', space=vmem, size = 0xc0000, scoped, tag = 'input window, operand 5, single buffered']
    #allocation12 [shape = 's32[1]{0}', space=sflag, size = 0x4, scoped, tag = 'scoped memory for tpu_custom_call.1']
    #allocation13 [shape = 'u8[1572864]{0}', space=vmem, size = 0x180000, scoped, tag = 'input window, operand 6, single buffered']
    #allocation14 [shape = 'u8[262144]{0}', space=vmem, size = 0x40000, scoped, tag = 'input window, operand 7, single buffered']
    #allocation15 [shape = 's32[1]{0}', space=sflag, size = 0x4, scoped, tag = 'scoped memory for tpu_custom_call.1']
    #allocation16 [shape = 'u8[512]{0}', space=vmem, size = 0x400, scoped, tag = 'input window, operand 9, single buffered']
    #allocation17 [shape = 'u8[16384]{0}', space=vmem, size = 0x4000, scoped, tag = 'input window, operand 10, single buffered']
    #allocation18 [shape = 's32[1]{0}', space=sflag, size = 0x4, scoped, tag = 'scoped memory for tpu_custom_call.1']
    #allocation19 [shape = 'u8[2048]{0}', space=vmem, size = 0x800, scoped, tag = 'input window, operand 11, single buffered']
    #allocation20 [shape = 'u8[65536]{0}', space=vmem, size = 0x10000, scoped, tag = 'output window, operand 0, single buffered']
    %17 = vsyncpa [#allocation3], 0
    %18 = vsyncpa [#allocation6], 0
    %19 = vsyncpa [#allocation9], 0
    %20 = vsyncpa [#allocation12], 0
    %21 = vsyncpa [#allocation15], 0
    %22 = vsyncpa [#allocation18], 0
    %23 = vsyncpa [#allocation4], 0
    // Predicated region
    $region2: #{tpu_custom_call.1} parent=1 // pred_check
      _
    $region3: #{tpu_custom_call.1} parent=1 // pred_check_branch
      %25 = sbr.rel (0) target = $region5
    $region4: #{tpu_custom_call.1} parent=1 // pred_region
      %s27 = ssub.s32 1024, 1024
      %28 = vsyncadd [#allocation3], %s27
      %s29 = sshll.u32 [#allocation2], 4
      %s30 = int_to_ptr.vmem [resolvable:$true] %s29
      %35 = dma.hbm_to_vmem [thread:$0]  %s0, 1024, %s30, [#allocation3], 256, 256, 16
    $region5: #{tpu_custom_call.1} parent=1 // pred_fallthru
      _
    // Predicated region
    $region6: #{tpu_custom_call.1} parent=1 // pred_check
      _
    $region7: #{tpu_custom_call.1} parent=1 // pred_check_branch
      %37 = sbr.rel (0) target = $region9
    $region8: #{tpu_custom_call.1} parent=1 // pred_region
      %s39 = ssub.s32 32, 32
      %40 = vsyncadd [#allocation6], %s39
      %s42 = sshll.u32 [#allocation5], 4
      %s43 = int_to_ptr.vmem [resolvable:$true] %s42
      %45 = dma.hbm_to_vmem [thread:$0]  %s1, 32, %s43, [#allocation6]
    $region9: #{tpu_custom_call.1} parent=1 // pred_fallthru
      _
    // Predicated region
    $region10: #{tpu_custom_call.1} parent=1 // pred_check
      _
    $region11: #{tpu_custom_call.1} parent=1 // pred_check_branch
      %47 = sbr.rel (0) target = $region13
    $region12: #{tpu_custom_call.1} parent=1 // pred_region
      %s49 = ssub.s32 32, 32
      %50 = vsyncadd [#allocation6], %s49
      %s52 = sshll.u32 [#allocation7], 4
      %s53 = int_to_ptr.vmem [resolvable:$true] %s52
      %55 = dma.hbm_to_vmem [thread:$0]  %s2, 32, %s53, [#allocation6]
    $region13: #{tpu_custom_call.1} parent=1 // pred_fallthru
      _
    // Predicated region
    $region14: #{tpu_custom_call.1} parent=1 // pred_check
      _
    $region15: #{tpu_custom_call.1} parent=1 // pred_check_branch
      %57 = sbr.rel (0) target = $region17
    $region16: #{tpu_custom_call.1} parent=1 // pred_region
      %s59 = ssub.s32 64, 64
      %60 = vsyncadd [#allocation9], %s59
      %s62 = sshll.u32 [#allocation8], 4
      %s63 = int_to_ptr.vmem [resolvable:$true] %s62
      %65 = dma.hbm_to_vmem [thread:$0]  %s3, 64, %s63, [#allocation9]
    $region17: #{tpu_custom_call.1} parent=1 // pred_fallthru
      _
    // Predicated region
    $region18: #{tpu_custom_call.1} parent=1 // pred_check
      _
    $region19: #{tpu_custom_call.1} parent=1 // pred_check_branch
      %67 = sbr.rel (0) target = $region21
    $region20: #{tpu_custom_call.1} parent=1 // pred_region
      %s69 = ssub.s32 64, 64
      %70 = vsyncadd [#allocation9], %s69
      %s72 = sshll.u32 [#allocation10], 4
      %s73 = int_to_ptr.vmem [resolvable:$true] %s72
      %75 = dma.hbm_to_vmem [thread:$0]  %s4, 64, %s73, [#allocation9]
    $region21: #{tpu_custom_call.1} parent=1 // pred_fallthru
      _
    // Predicated region
    $region22: #{tpu_custom_call.1} parent=1 // pred_check
      _
    $region23: #{tpu_custom_call.1} parent=1 // pred_check_branch
      %77 = sbr.rel (0) target = $region25
    $region24: #{tpu_custom_call.1} parent=1 // pred_region
      %s79 = ssub.s32 24576, 24576
      %80 = vsyncadd [#allocation12], %s79
      %s81 = sshll.u32 [#allocation11], 4
      %s82 = int_to_ptr.vmem [resolvable:$true] %s81
      %87 = dma.hbm_to_vmem [thread:$0]  %s5, 24576, %s82, [#allocation12], 256, 256, 16
    $region25: #{tpu_custom_call.1} parent=1 // pred_fallthru
      _
    // Predicated region
    $region26: #{tpu_custom_call.1} parent=1 // pred_check
      _
    $region27: #{tpu_custom_call.1} parent=1 // pred_check_branch
      %89 = sbr.rel (0) target = $region29
    $region28: #{tpu_custom_call.1} parent=1 // pred_region
      %s91 = ssub.s32 49152, 49152
      %92 = vsyncadd [#allocation12], %s91
      %s93 = sshll.u32 [#allocation13], 4
      %s94 = int_to_ptr.vmem [resolvable:$true] %s93
      %99 = dma.hbm_to_vmem [thread:$0]  %s6, 49152, %s94, [#allocation12], 256, 256, 16
    $region29: #{tpu_custom_call.1} parent=1 // pred_fallthru
      _
    // Predicated region
    $region30: #{tpu_custom_call.1} parent=1 // pred_check
      _
    $region31: #{tpu_custom_call.1} parent=1 // pred_check_branch
      %101 = sbr.rel (0) target = $region33
    $region32: #{tpu_custom_call.1} parent=1 // pred_region
      %s103 = ssub.s32 8192, 8192
      %104 = vsyncadd [#allocation15], %s103
      %s105 = sshll.u32 [#allocation14], 4
      %s106 = int_to_ptr.vmem [resolvable:$true] %s105
      %111 = dma.hbm_to_vmem [thread:$0]  %s7, 8192, %s106, [#allocation15], 256, 256, 16
    $region33: #{tpu_custom_call.1} parent=1 // pred_fallthru
      _
    // Predicated region
    $region34: #{tpu_custom_call.1} parent=1 // pred_check
      _
    $region35: #{tpu_custom_call.1} parent=1 // pred_check_branch
      %113 = sbr.rel (0) target = $region37
    $region36: #{tpu_custom_call.1} parent=1 // pred_region
      _
    $region37: #{tpu_custom_call.1} parent=1 // pred_fallthru
      _
    // Predicated region
    $region38: #{tpu_custom_call.1} parent=1 // pred_check
      _
    $region39: #{tpu_custom_call.1} parent=1 // pred_check_branch
      %115 = sbr.rel (0) target = $region41
    $region40: #{tpu_custom_call.1} parent=1 // pred_region
      %s117 = ssub.s32 16, 16
      %118 = vsyncadd [#allocation15], %s117
      %s120 = sshll.u32 [#allocation16], 4
      %s121 = int_to_ptr.vmem [resolvable:$true] %s120
      %123 = dma.hbm_to_vmem [thread:$0]  %s9, 16, %s121, [#allocation15]
    $region41: #{tpu_custom_call.1} parent=1 // pred_fallthru
      _
    // Predicated region
    $region42: #{tpu_custom_call.1} parent=1 // pred_check
      _
    $region43: #{tpu_custom_call.1} parent=1 // pred_check_branch
      %125 = sbr.rel (0) target = $region45
    $region44: #{tpu_custom_call.1} parent=1 // pred_region
      %s127 = ssub.s32 512, 512
      %128 = vsyncadd [#allocation18], %s127
      %s130 = sshll.u32 [#allocation17], 4
      %s131 = int_to_ptr.vmem [resolvable:$true] %s130
      %133 = dma.hbm_to_vmem [thread:$0]  %s10, 512, %s131, [#allocation18]
    $region45: #{tpu_custom_call.1} parent=1 // pred_fallthru
      _
    // Predicated region
    $region46: #{tpu_custom_call.1} parent=1 // pred_check
      _
    $region47: #{tpu_custom_call.1} parent=1 // pred_check_branch
      %135 = sbr.rel (0) target = $region49
    $region48: #{tpu_custom_call.1} parent=1 // pred_region
      %s137 = ssub.s32 64, 64
      %138 = vsyncadd [#allocation18], %s137
      %s140 = sshll.u32 [#allocation19], 4
      %s141 = int_to_ptr.vmem [resolvable:$true] %s140
      %143 = dma.hbm_to_vmem [thread:$0]  %s11, 64, %s141, [#allocation18]
    $region49: #{tpu_custom_call.1} parent=1 // pred_fallthru
      _
    // Predicated region
    $region50: #{tpu_custom_call.1} parent=1 // pred_check
      _
    $region51: #{tpu_custom_call.1} parent=1 // pred_check_branch
      %145 = sbr.rel (0) target = $region53
    $region52: #{tpu_custom_call.1} parent=1 // pred_region
      %146 = dma.done [#allocation3], 1024
    $region53: #{tpu_custom_call.1} parent=1 // pred_fallthru
      _
    // Predicated region
    $region54: #{tpu_custom_call.1} parent=1 // pred_check
      _
    $region55: #{tpu_custom_call.1} parent=1 // pred_check_branch
      %148 = sbr.rel (0) target = $region57
    $region56: #{tpu_custom_call.1} parent=1 // pred_region
      %149 = dma.done [#allocation6], 32
    $region57: #{tpu_custom_call.1} parent=1 // pred_fallthru
      _
    // Predicated region
    $region58: #{tpu_custom_call.1} parent=1 // pred_check
      _
    $region59: #{tpu_custom_call.1} parent=1 // pred_check_branch
      %151 = sbr.rel (0) target = $region61
    $region60: #{tpu_custom_call.1} parent=1 // pred_region
      %152 = dma.done [#allocation6], 32
    $region61: #{tpu_custom_call.1} parent=1 // pred_fallthru
      _
    // Predicated region
    $region62: #{tpu_custom_call.1} parent=1 // pred_check
      _
    $region63: #{tpu_custom_call.1} parent=1 // pred_check_branch
      %154 = sbr.rel (0) target = $region65
    $region64: #{tpu_custom_call.1} parent=1 // pred_region
      %155 = dma.done [#allocation9], 64
    $region65: #{tpu_custom_call.1} parent=1 // pred_fallthru
      _
    // Predicated region
    $region66: #{tpu_custom_call.1} parent=1 // pred_check
      _
    $region67: #{tpu_custom_call.1} parent=1 // pred_check_branch
      %157 = sbr.rel (0) target = $region69
    $region68: #{tpu_custom_call.1} parent=1 // pred_region
      %158 = dma.done [#allocation9], 64
    $region69: #{tpu_custom_call.1} parent=1 // pred_fallthru
      _
    // Predicated region
    $region70: #{tpu_custom_call.1} parent=1 // pred_check
      _
    $region71: #{tpu_custom_call.1} parent=1 // pred_check_branch
      %160 = sbr.rel (0) target = $region73
    $region72: #{tpu_custom_call.1} parent=1 // pred_region
      %161 = dma.done [#allocation12], 24576
    $region73: #{tpu_custom_call.1} parent=1 // pred_fallthru
      _
    // Predicated region
    $region74: #{tpu_custom_call.1} parent=1 // pred_check
      _
    $region75: #{tpu_custom_call.1} parent=1 // pred_check_branch
      %163 = sbr.rel (0) target = $region77
    $region76: #{tpu_custom_call.1} parent=1 // pred_region
      %164 = dma.done [#allocation12], 49152
    $region77: #{tpu_custom_call.1} parent=1 // pred_fallthru
      _
    // Predicated region
    $region78: #{tpu_custom_call.1} parent=1 // pred_check
      _
    $region79: #{tpu_custom_call.1} parent=1 // pred_check_branch
      %166 = sbr.rel (0) target = $region81
    $region80: #{tpu_custom_call.1} parent=1 // pred_region
      %167 = dma.done [#allocation15], 8192
    $region81: #{tpu_custom_call.1} parent=1 // pred_fallthru
      _
    // Predicated region
    $region82: #{tpu_custom_call.1} parent=1 // pred_check
      _
    $region83: #{tpu_custom_call.1} parent=1 // pred_check_branch
      %169 = sbr.rel (0) target = $region85
    $region84: #{tpu_custom_call.1} parent=1 // pred_region
      %170 = dma.done [#allocation15], 16
    $region85: #{tpu_custom_call.1} parent=1 // pred_fallthru
      _
    // Predicated region
    $region86: #{tpu_custom_call.1} parent=1 // pred_check
      _
    $region87: #{tpu_custom_call.1} parent=1 // pred_check_branch
      %172 = sbr.rel (0) target = $region89
    $region88: #{tpu_custom_call.1} parent=1 // pred_region
      %173 = dma.done [#allocation18], 512
    $region89: #{tpu_custom_call.1} parent=1 // pred_fallthru
      _
    // Predicated region
    $region90: #{tpu_custom_call.1} parent=1 // pred_check
      _
    $region91: #{tpu_custom_call.1} parent=1 // pred_check_branch
      %175 = sbr.rel (0) target = $region93
    $region92: #{tpu_custom_call.1} parent=1 // pred_region
      %176 = dma.done [#allocation18], 64
    $region93: #{tpu_custom_call.1} parent=1 // pred_fallthru
      _
    %v180 = vld [vmem:[#allocation2] sm:$0xff]
    %v181 = vld [vmem:[#allocation2 + $0x8] sm:$0xff]
    %v182 = vld [vmem:[#allocation2 + $0x10] sm:$0xff]
    %v183 = vld [vmem:[#allocation2 + $0x18] sm:$0xff]
    %v184 = vld [vmem:[#allocation2 + $0x20] sm:$0xff]
    %v185 = vld [vmem:[#allocation2 + $0x28] sm:$0xff]
    %v186 = vld [vmem:[#allocation2 + $0x30] sm:$0xff]
    %v187 = vld [vmem:[#allocation2 + $0x38] sm:$0xff]
    %v188 = vld [vmem:[#allocation5] sm:$0x3]
    %v190 = vlaneseq
    %v191 = vshrl.u32 %v190, 7
    %v192 = vsub.s32 0, %v191
    %v193 = vrot.slane %v188, %v192
    %v194 = vlaneseq
    %v195 = vshrl.u32 %v194, 7
    %v196 = vsub.s32 1, %v195
    %v197 = vrot.slane %v188, %v196
    %v200 = vmul.f32 %v180, %v193
    %v201 = vmul.f32 %v181, %v197
    %v202 = vmul.f32 %v182, %v193
    %v203 = vmul.f32 %v183, %v197
    %v204 = vmul.f32 %v184, %v193
    %v205 = vmul.f32 %v185, %v197
    %v206 = vmul.f32 %v186, %v193
    %v207 = vmul.f32 %v187, %v197
    %v208 = vld [vmem:[#allocation7] sm:$0x3]
    %v210 = vlaneseq
    %v211 = vshrl.u32 %v210, 7
    %v212 = vsub.s32 0, %v211
    %v213 = vrot.slane %v208, %v212
    %v214 = vlaneseq
    %v215 = vshrl.u32 %v214, 7
    %v216 = vsub.s32 1, %v215
    %v217 = vrot.slane %v208, %v216
    %v220 = vadd.f32 %v200, %v213
    %v221 = vadd.f32 %v201, %v217
    %v222 = vadd.f32 %v202, %v213
    %v223 = vadd.f32 %v203, %v217
    %v224 = vadd.f32 %v204, %v213
    %v225 = vadd.f32 %v205, %v217
    %v226 = vadd.f32 %v206, %v213
    %v227 = vadd.f32 %v207, %v217
    %v228 = vmax.f32 %v220, 0.0
    %v229 = vmax.f32 %v221, 0.0
    %v230 = vmax.f32 %v222, 0.0
    %v231 = vmax.f32 %v223, 0.0
    %v232 = vmax.f32 %v224, 0.0
    %v233 = vmax.f32 %v225, 0.0
    %v234 = vmax.f32 %v226, 0.0
    %v235 = vmax.f32 %v227, 0.0
    %v236 = vpack.c.bf16 %v230, %v228
    %v237 = vpack.c.bf16 %v231, %v229
    %v238 = vpack.c.bf16 %v234, %v232
    %v239 = vpack.c.bf16 %v235, %v233
    %v240 = vld [vmem:[#allocation14] sm:$0xff]
    %v241 = vld [vmem:[#allocation14 + $0x8] sm:$0xff]
    %v242 = vld [vmem:[#allocation14 + $0x10] sm:$0xff]
    %v243 = vld [vmem:[#allocation14 + $0x18] sm:$0xff]
    %v244 = vld [vmem:[#allocation14 + $0x20] sm:$0xff]
    %v245 = vld [vmem:[#allocation14 + $0x28] sm:$0xff]
    %v246 = vld [vmem:[#allocation14 + $0x30] sm:$0xff]
    %v247 = vld [vmem:[#allocation14 + $0x38] sm:$0xff]
    %v248 = vld [vmem:[#allocation14 + $0x40] sm:$0xff]
    %v249 = vld [vmem:[#allocation14 + $0x48] sm:$0xff]
    %v250 = vld [vmem:[#allocation14 + $0x50] sm:$0xff]
    %v251 = vld [vmem:[#allocation14 + $0x58] sm:$0xff]
    %v252 = vld [vmem:[#allocation14 + $0x60] sm:$0xff]
    %v253 = vld [vmem:[#allocation14 + $0x68] sm:$0xff]
    %v254 = vld [vmem:[#allocation14 + $0x70] sm:$0xff]
    %v255 = vld [vmem:[#allocation14 + $0x78] sm:$0xff]
    %v256 = vld [vmem:[#allocation14 + $0x80] sm:$0xff]
    %v257 = vld [vmem:[#allocation14 + $0x88] sm:$0xff]
    %v258 = vld [vmem:[#allocation14 + $0x90] sm:$0xff]
    %v259 = vld [vmem:[#allocation14 + $0x98] sm:$0xff]
    %v260 = vld [vmem:[#allocation14 + $0xa0] sm:$0xff]
    %v261 = vld [vmem:[#allocation14 + $0xa8] sm:$0xff]
    %v262 = vld [vmem:[#allocation14 + $0xb0] sm:$0xff]
    %v263 = vld [vmem:[#allocation14 + $0xb8] sm:$0xff]
    %v264 = vld [vmem:[#allocation14 + $0xc0] sm:$0xff]
    %v265 = vld [vmem:[#allocation14 + $0xc8] sm:$0xff]
    %v266 = vld [vmem:[#allocation14 + $0xd0] sm:$0xff]
    %v267 = vld [vmem:[#allocation14 + $0xd8] sm:$0xff]
    %v268 = vld [vmem:[#allocation14 + $0xe0] sm:$0xff]
    %v269 = vld [vmem:[#allocation14 + $0xe8] sm:$0xff]
    %v270 = vld [vmem:[#allocation14 + $0xf0] sm:$0xff]
    %v271 = vld [vmem:[#allocation14 + $0xf8] sm:$0xff]
    %v272 = vld [vmem:[#allocation14 + $0x100] sm:$0xff]
    %v273 = vld [vmem:[#allocation14 + $0x108] sm:$0xff]
    %v274 = vld [vmem:[#allocation14 + $0x110] sm:$0xff]
    %v275 = vld [vmem:[#allocation14 + $0x118] sm:$0xff]
    %v276 = vld [vmem:[#allocation14 + $0x120] sm:$0xff]
    %v277 = vld [vmem:[#allocation14 + $0x128] sm:$0xff]
    %v278 = vld [vmem:[#allocation14 + $0x130] sm:$0xff]
    %v279 = vld [vmem:[#allocation14 + $0x138] sm:$0xff]
    %v280 = vld [vmem:[#allocation14 + $0x140] sm:$0xff]
    %v281 = vld [vmem:[#allocation14 + $0x148] sm:$0xff]
    %v282 = vld [vmem:[#allocation14 + $0x150] sm:$0xff]
    %v283 = vld [vmem:[#allocation14 + $0x158] sm:$0xff]
    %v284 = vld [vmem:[#allocation14 + $0x160] sm:$0xff]
    %v285 = vld [vmem:[#allocation14 + $0x168] sm:$0xff]
    %v286 = vld [vmem:[#allocation14 + $0x170] sm:$0xff]
    %v287 = vld [vmem:[#allocation14 + $0x178] sm:$0xff]
    %v288 = vld [vmem:[#allocation14 + $0x180] sm:$0xff]
    %v289 = vld [vmem:[#allocation14 + $0x188] sm:$0xff]
    %v290 = vld [vmem:[#allocation14 + $0x190] sm:$0xff]
    %v291 = vld [vmem:[#allocation14 + $0x198] sm:$0xff]
    %v292 = vld [vmem:[#allocation14 + $0x1a0] sm:$0xff]
    %v293 = vld [vmem:[#allocation14 + $0x1a8] sm:$0xff]
    %v294 = vld [vmem:[#allocation14 + $0x1b0] sm:$0xff]
    %v295 = vld [vmem:[#allocation14 + $0x1b8] sm:$0xff]
    %v296 = vld [vmem:[#allocation14 + $0x1c0] sm:$0xff]
    %v297 = vld [vmem:[#allocation14 + $0x1c8] sm:$0xff]
    %v298 = vld [vmem:[#allocation14 + $0x1d0] sm:$0xff]
    %v299 = vld [vmem:[#allocation14 + $0x1d8] sm:$0xff]
    %v300 = vld [vmem:[#allocation14 + $0x1e0] sm:$0xff]
    %v301 = vld [vmem:[#allocation14 + $0x1e8] sm:$0xff]
    %v302 = vld [vmem:[#allocation14 + $0x1f0] sm:$0xff]
    %v303 = vld [vmem:[#allocation14 + $0x1f8] sm:$0xff]
    %v368 = vunpack.c.l.b16 %v240
    %v369 = vunpack.c.h.b16 %v240
    %v370 = vunpack.c.l.b16 %v241
    %v371 = vunpack.c.h.b16 %v241
    %v372 = vunpack.c.l.b16 %v242
    %v373 = vunpack.c.h.b16 %v242
    %v374 = vunpack.c.l.b16 %v243
    %v375 = vunpack.c.h.b16 %v243
    %v376 = vunpack.c.l.b16 %v244
    %v377 = vunpack.c.h.b16 %v244
    %v378 = vunpack.c.l.b16 %v245
    %v379 = vunpack.c.h.b16 %v245
    %v380 = vunpack.c.l.b16 %v246
    %v381 = vunpack.c.h.b16 %v246
    %v382 = vunpack.c.l.b16 %v247
    %v383 = vunpack.c.h.b16 %v247
    %v384 = vunpack.c.l.b16 %v248
    %v385 = vunpack.c.h.b16 %v248
    %v386 = vunpack.c.l.b16 %v249
    %v387 = vunpack.c.h.b16 %v249
    %v388 = vunpack.c.l.b16 %v250
    %v389 = vunpack.c.h.b16 %v250
    %v390 = vunpack.c.l.b16 %v251
    %v391 = vunpack.c.h.b16 %v251
    %v392 = vunpack.c.l.b16 %v252
    %v393 = vunpack.c.h.b16 %v252
    %v394 = vunpack.c.l.b16 %v253
    %v395 = vunpack.c.h.b16 %v253
    %v396 = vunpack.c.l.b16 %v254
    %v397 = vunpack.c.h.b16 %v254
    %v398 = vunpack.c.l.b16 %v255
    %v399 = vunpack.c.h.b16 %v255
    %v400 = vunpack.c.l.b16 %v256
    %v401 = vunpack.c.h.b16 %v256
    %v402 = vunpack.c.l.b16 %v257
    %v403 = vunpack.c.h.b16 %v257
    %v404 = vunpack.c.l.b16 %v258
    %v405 = vunpack.c.h.b16 %v258
    %v406 = vunpack.c.l.b16 %v259
    %v407 = vunpack.c.h.b16 %v259
    %v408 = vunpack.c.l.b16 %v260
    %v409 = vunpack.c.h.b16 %v260
    %v410 = vunpack.c.l.b16 %v261
    %v411 = vunpack.c.h.b16 %v261
    %v412 = vunpack.c.l.b16 %v262
    %v413 = vunpack.c.h.b16 %v262
    %v414 = vunpack.c.l.b16 %v263
    %v415 = vunpack.c.h.b16 %v263
    %v416 = vunpack.c.l.b16 %v264
    %v417 = vunpack.c.h.b16 %v264
    %v418 = vunpack.c.l.b16 %v265
    %v419 = vunpack.c.h.b16 %v265
    %v420 = vunpack.c.l.b16 %v266
    %v421 = vunpack.c.h.b16 %v266
    %v422 = vunpack.c.l.b16 %v267
    %v423 = vunpack.c.h.b16 %v267
    %v424 = vunpack.c.l.b16 %v268
    %v425 = vunpack.c.h.b16 %v268
    %v426 = vunpack.c.l.b16 %v269
    %v427 = vunpack.c.h.b16 %v269
    %v428 = vunpack.c.l.b16 %v270
    %v429 = vunpack.c.h.b16 %v270
    %v430 = vunpack.c.l.b16 %v271
    %v431 = vunpack.c.h.b16 %v271
    %v432 = vunpack.c.l.b16 %v272
    %v433 = vunpack.c.h.b16 %v272
    %v434 = vunpack.c.l.b16 %v273
    %v435 = vunpack.c.h.b16 %v273
    %v436 = vunpack.c.l.b16 %v274
    %v437 = vunpack.c.h.b16 %v274
    %v438 = vunpack.c.l.b16 %v275
    %v439 = vunpack.c.h.b16 %v275
    %v440 = vunpack.c.l.b16 %v276
    %v441 = vunpack.c.h.b16 %v276
    %v442 = vunpack.c.l.b16 %v277
    %v443 = vunpack.c.h.b16 %v277
    %v444 = vunpack.c.l.b16 %v278
    %v445 = vunpack.c.h.b16 %v278
    %v446 = vunpack.c.l.b16 %v279
    %v447 = vunpack.c.h.b16 %v279
    %v448 = vunpack.c.l.b16 %v280
    %v449 = vunpack.c.h.b16 %v280
    %v450 = vunpack.c.l.b16 %v281
    %v451 = vunpack.c.h.b16 %v281
    %v452 = vunpack.c.l.b16 %v282
    %v453 = vunpack.c.h.b16 %v282
    %v454 = vunpack.c.l.b16 %v283
    %v455 = vunpack.c.h.b16 %v283
    %v456 = vunpack.c.l.b16 %v284
    %v457 = vunpack.c.h.b16 %v284
    %v458 = vunpack.c.l.b16 %v285
    %v459 = vunpack.c.h.b16 %v285
    %v460 = vunpack.c.l.b16 %v286
    %v461 = vunpack.c.h.b16 %v286
    %v462 = vunpack.c.l.b16 %v287
    %v463 = vunpack.c.h.b16 %v287
    %v464 = vunpack.c.l.b16 %v288
    %v465 = vunpack.c.h.b16 %v288
    %v466 = vunpack.c.l.b16 %v289
    %v467 = vunpack.c.h.b16 %v289
    %v468 = vunpack.c.l.b16 %v290
    %v469 = vunpack.c.h.b16 %v290
    %v470 = vunpack.c.l.b16 %v291
    %v471 = vunpack.c.h.b16 %v291
    %v472 = vunpack.c.l.b16 %v292
    %v473 = vunpack.c.h.b16 %v292
    %v474 = vunpack.c.l.b16 %v293
    %v475 = vunpack.c.h.b16 %v293
    %v476 = vunpack.c.l.b16 %v294
    %v477 = vunpack.c.h.b16 %v294
    %v478 = vunpack.c.l.b16 %v295
    %v479 = vunpack.c.h.b16 %v295
    %v480 = vunpack.c.l.b16 %v296
    %v481 = vunpack.c.h.b16 %v296
    %v482 = vunpack.c.l.b16 %v297
    %v483 = vunpack.c.h.b16 %v297
    %v484 = vunpack.c.l.b16 %v298
    %v485 = vunpack.c.h.b16 %v298
    %v486 = vunpack.c.l.b16 %v299
    %v487 = vunpack.c.h.b16 %v299
    %v488 = vunpack.c.l.b16 %v300
    %v489 = vunpack.c.h.b16 %v300
    %v490 = vunpack.c.l.b16 %v301
    %v491 = vunpack.c.h.b16 %v301
    %v492 = vunpack.c.l.b16 %v302
    %v493 = vunpack.c.h.b16 %v302
    %v494 = vunpack.c.l.b16 %v303
    %v495 = vunpack.c.h.b16 %v303
    %v496 = vpack.c.b16 %v372, %v368
    %v497 = vpack.c.b16 %v373, %v369
    %v498 = vpack.c.b16 %v374, %v370
    %v499 = vpack.c.b16 %v375, %v371
    %v500 = vpack.c.b16 %v380, %v376
    %v501 = vpack.c.b16 %v381, %v377
    %v502 = vpack.c.b16 %v382, %v378
    %v503 = vpack.c.b16 %v383, %v379
    %v504 = vpack.c.b16 %v388, %v384
    %v505 = vpack.c.b16 %v389, %v385
    %v506 = vpack.c.b16 %v390, %v386
    %v507 = vpack.c.b16 %v391, %v387
    %v508 = vpack.c.b16 %v396, %v392
    %v509 = vpack.c.b16 %v397, %v393
    %v510 = vpack.c.b16 %v398, %v394
    %v511 = vpack.c.b16 %v399, %v395
    %v512 = vpack.c.b16 %v404, %v400
    %v513 = vpack.c.b16 %v405, %v401
    %v514 = vpack.c.b16 %v406, %v402
    %v515 = vpack.c.b16 %v407, %v403
    %v516 = vpack.c.b16 %v412, %v408
    %v517 = vpack.c.b16 %v413, %v409
    %v518 = vpack.c.b16 %v414, %v410
    %v519 = vpack.c.b16 %v415, %v411
    %v520 = vpack.c.b16 %v420, %v416
    %v521 = vpack.c.b16 %v421, %v417
    %v522 = vpack.c.b16 %v422, %v418
    %v523 = vpack.c.b16 %v423, %v419
    %v524 = vpack.c.b16 %v428, %v424
    %v525 = vpack.c.b16 %v429, %v425
    %v526 = vpack.c.b16 %v430, %v426
    %v527 = vpack.c.b16 %v431, %v427
    %v528 = vpack.c.b16 %v436, %v432
    %v529 = vpack.c.b16 %v437, %v433
    %v530 = vpack.c.b16 %v438, %v434
    %v531 = vpack.c.b16 %v439, %v435
    %v532 = vpack.c.b16 %v444, %v440
    %v533 = vpack.c.b16 %v445, %v441
    %v534 = vpack.c.b16 %v446, %v442
    %v535 = vpack.c.b16 %v447, %v443
    %v536 = vpack.c.b16 %v452, %v448
    %v537 = vpack.c.b16 %v453, %v449
    %v538 = vpack.c.b16 %v454, %v450
    %v539 = vpack.c.b16 %v455, %v451
    %v540 = vpack.c.b16 %v460, %v456
    %v541 = vpack.c.b16 %v461, %v457
    %v542 = vpack.c.b16 %v462, %v458
    %v543 = vpack.c.b16 %v463, %v459
    %v544 = vpack.c.b16 %v468, %v464
    %v545 = vpack.c.b16 %v469, %v465
    %v546 = vpack.c.b16 %v470, %v466
    %v547 = vpack.c.b16 %v471, %v467
    %v548 = vpack.c.b16 %v476, %v472
    %v549 = vpack.c.b16 %v477, %v473
    %v550 = vpack.c.b16 %v478, %v474
    %v551 = vpack.c.b16 %v479, %v475
    %v552 = vpack.c.b16 %v484, %v480
    %v553 = vpack.c.b16 %v485, %v481
    %v554 = vpack.c.b16 %v486, %v482
    %v555 = vpack.c.b16 %v487, %v483
    %v556 = vpack.c.b16 %v492, %v488
    %v557 = vpack.c.b16 %v493, %v489
    %v558 = vpack.c.b16 %v494, %v490
    %v559 = vpack.c.b16 %v495, %v491
    %624 = vmatprep.subr.bf16.mxu0 %v497
    %625 = vmatpush1.bf16.msra.mxu0 %v496
    %626 = vmatprep.subr.bf16.mxu0 %v501
    %627 = vmatpush1.bf16.msra.mxu0 %v500
    %628 = vmatprep.subr.bf16.mxu0 %v505
    %629 = vmatpush1.bf16.msra.mxu0 %v504
    %630 = vmatprep.subr.bf16.mxu0 %v509
    %631 = vmatpush1.bf16.msra.mxu0 %v508
    %632 = vmatprep.subr.bf16.mxu0 %v513
    %633 = vmatpush1.bf16.msra.mxu0 %v512
    %634 = vmatprep.subr.bf16.mxu0 %v517
    %635 = vmatpush1.bf16.msra.mxu0 %v516
    %636 = vmatprep.subr.bf16.mxu0 %v521
    %637 = vmatpush1.bf16.msra.mxu0 %v520
    %638 = vmatprep.subr.bf16.mxu0 %v525
    %639 = vmatpush1.bf16.msra.mxu0 %v524
    %640 = vmatprep.subr.bf16.mxu0 %v529
    %641 = vmatpush1.bf16.msra.mxu0 %v528
    %642 = vmatprep.subr.bf16.mxu0 %v533
    %643 = vmatpush1.bf16.msra.mxu0 %v532
    %644 = vmatprep.subr.bf16.mxu0 %v537
    %645 = vmatpush1.bf16.msra.mxu0 %v536
    %646 = vmatprep.subr.bf16.mxu0 %v541
    %647 = vmatpush1.bf16.msra.mxu0 %v540
    %648 = vmatprep.subr.bf16.mxu0 %v545
    %649 = vmatpush1.bf16.msra.mxu0 %v544
    %650 = vmatprep.subr.bf16.mxu0 %v549
    %651 = vmatpush1.bf16.msra.mxu0 %v548
    %652 = vmatprep.subr.bf16.mxu0 %v553
    %653 = vmatpush1.bf16.msra.mxu0 %v552
    %654 = vmatprep.subr.bf16.mxu0 %v557
    %655 = vmatpush1.bf16.msra.mxu0 %v556
    %656 = vmatprep.mubr.bf16.mxu0 %v237
    %657 = vmatmul.mubr.bf16.gmra.mrb[0].mxu0 %v236
    %v658 = vpop.f32.mrb[0].mxu0
    %v659 = vadd.f32 0.0, %v658
    %v660 = vpop.f32.mrb[0].mxu0
    %v661 = vadd.f32 0.0, %v660
    %v662 = vpop.f32.mrb[0].mxu0
    %v663 = vadd.f32 0.0, %v662
    %v664 = vpop.f32.mrb[0].mxu0
    %v665 = vadd.f32 0.0, %v664
    %666 = vmatprep.mubr.bf16.mxu0 %v239
    %667 = vmatmul.mubr.bf16.gmra.mrb[0].mxu0 %v238
    %v668 = vpop.f32.mrb[0].mxu0
    %v669 = vadd.f32 0.0, %v668
    %v670 = vpop.f32.mrb[0].mxu0
    %v671 = vadd.f32 0.0, %v670
    %v672 = vpop.f32.mrb[0].mxu0
    %v673 = vadd.f32 0.0, %v672
    %v674 = vpop.f32.mrb[0].mxu0
    %v675 = vadd.f32 0.0, %v674
    %676 = vdwg.mxu0
    %677 = vmatprep.subr.bf16.mxu0 %v499
    %678 = vmatpush1.bf16.msra.mxu0 %v498
    %679 = vmatprep.subr.bf16.mxu0 %v503
    %680 = vmatpush1.bf16.msra.mxu0 %v502
    %681 = vmatprep.subr.bf16.mxu0 %v507
    %682 = vmatpush1.bf16.msra.mxu0 %v506
    %683 = vmatprep.subr.bf16.mxu0 %v511
    %684 = vmatpush1.bf16.msra.mxu0 %v510
    %685 = vmatprep.subr.bf16.mxu0 %v515
    %686 = vmatpush1.bf16.msra.mxu0 %v514
    %687 = vmatprep.subr.bf16.mxu0 %v519
    %688 = vmatpush1.bf16.msra.mxu0 %v518
    %689 = vmatprep.subr.bf16.mxu0 %v523
    %690 = vmatpush1.bf16.msra.mxu0 %v522
    %691 = vmatprep.subr.bf16.mxu0 %v527
    %692 = vmatpush1.bf16.msra.mxu0 %v526
    %693 = vmatprep.subr.bf16.mxu0 %v531
    %694 = vmatpush1.bf16.msra.mxu0 %v530
    %695 = vmatprep.subr.bf16.mxu0 %v535
    %696 = vmatpush1.bf16.msra.mxu0 %v534
    %697 = vmatprep.subr.bf16.mxu0 %v539
    %698 = vmatpush1.bf16.msra.mxu0 %v538
    %699 = vmatprep.subr.bf16.mxu0 %v543
    %700 = vmatpush1.bf16.msra.mxu0 %v542
    %701 = vmatprep.subr.bf16.mxu0 %v547
    %702 = vmatpush1.bf16.msra.mxu0 %v546
    %703 = vmatprep.subr.bf16.mxu0 %v551
    %704 = vmatpush1.bf16.msra.mxu0 %v550
    %705 = vmatprep.subr.bf16.mxu0 %v555
    %706 = vmatpush1.bf16.msra.mxu0 %v554
    %707 = vmatprep.subr.bf16.mxu0 %v559
    %708 = vmatpush1.bf16.msra.mxu0 %v558
    %709 = vmatprep.mubr.bf16.mxu0 %v237
    %710 = vmatmul.mubr.bf16.gmra.mrb[0].mxu0 %v236
    %v711 = vpop.f32.mrb[0].mxu0
    %v712 = vadd.f32 0.0, %v711
    %v713 = vpop.f32.mrb[0].mxu0
    %v714 = vadd.f32 0.0, %v713
    %v715 = vpop.f32.mrb[0].mxu0
    %v716 = vadd.f32 0.0, %v715
    %v717 = vpop.f32.mrb[0].mxu0
    %v718 = vadd.f32 0.0, %v717
    %719 = vmatprep.mubr.bf16.mxu0 %v239
    %720 = vmatmul.mubr.bf16.gmra.mrb[0].mxu0 %v238
    %v721 = vpop.f32.mrb[0].mxu0
    %v722 = vadd.f32 0.0, %v721
    %v723 = vpop.f32.mrb[0].mxu0
    %v724 = vadd.f32 0.0, %v723
    %v725 = vpop.f32.mrb[0].mxu0
    %v726 = vadd.f32 0.0, %v725
    %v727 = vpop.f32.mrb[0].mxu0
    %v728 = vadd.f32 0.0, %v727
    %729 = vdwg.mxu0
    %v730 = vlaneseq
    %v731 = vshrl.u32 %v730, 7
    %v732 = vadd.s32 %v731, 8
    %v733 = vadd.s32 %v731, 16
    %v734 = vadd.s32 %v731, 24
    %vm735 = vcmp.lt.s32.totalorder %v731, 0
    %v736 = vsub.s32 0, %v731
    %v737 = vsel %vm735, %v736, %v731
    %v738 = vshrl.u32 %v737, 4
    %v739 = vand.u32 %v737, 15
    %v740 = vsub.s32 0, %v739
    %v741 = vsel %vm735, %v740, %v739
    %vm742 = vcmp.lt.s32.totalorder %v732, 0
    %v743 = vsub.s32 0, %v732
    %v744 = vsel %vm742, %v743, %v732
    %v745 = vshrl.u32 %v744, 4
    %v746 = vand.u32 %v744, 15
    %v747 = vsub.s32 0, %v746
    %v748 = vsel %vm742, %v747, %v746
    %vm749 = vcmp.lt.s32.totalorder %v733, 0
    %v750 = vsub.s32 0, %v733
    %v751 = vsel %vm749, %v750, %v733
    %v752 = vshrl.u32 %v751, 4
    %v753 = vand.u32 %v751, 15
    %v754 = vsub.s32 0, %v753
    %v755 = vsel %vm749, %v754, %v753
    %vm756 = vcmp.lt.s32.totalorder %v734, 0
    %v757 = vsub.s32 0, %v734
    %v758 = vsel %vm756, %v757, %v734
    %v759 = vshrl.u32 %v758, 4
    %v760 = vand.u32 %v758, 15
    %v761 = vsub.s32 0, %v760
    %v762 = vsel %vm756, %v761, %v760
    %vm763 = vcmp.ne.s32.totalorder %v741, 0
    %vm764 = vcmp.ne.s32.totalorder %v748, 0
    %vm765 = vcmp.ne.s32.totalorder %v755, 0
    %vm766 = vcmp.ne.s32.totalorder %v762, 0
    %vm767 = vcmp.lt.s32.totalorder %v741, 0
    %vm768 = vcmp.lt.s32.totalorder %v748, 0
    %vm769 = vcmp.lt.s32.totalorder %v755, 0
    %vm770 = vcmp.lt.s32.totalorder %v762, 0
    %vm771 = vmand %vm767, %vm763
    %vm772 = vmand %vm768, %vm764
    %vm773 = vmand %vm769, %vm765
    %vm774 = vmand %vm770, %vm766
    %v775 = vadd.s32 %v741, 16
    %v776 = vadd.s32 %v748, 16
    %v777 = vadd.s32 %v755, 16
    %v778 = vadd.s32 %v762, 16
    %v779 = vsel %vm771, %v775, %v741
    %v780 = vsel %vm772, %v776, %v748
    %v781 = vsel %vm773, %v777, %v755
    %v782 = vsel %vm774, %v778, %v762
    %vm783 = vcmp.eq.s32.totalorder %v779, 0
    %vm784 = vcmp.eq.s32.totalorder %v780, 0
    %vm785 = vcmp.eq.s32.totalorder %v781, 0
    %vm786 = vcmp.eq.s32.totalorder %v782, 0
    %vm787 = vsmask.f32 256
    %v789 = vshrl.u32 %v236, 16
    %v791 = vrot.slane %v789, 7
    %v792 = vshll.u32 %v236, 16
    %v794 = vor.u32 %v791, %v792
    %v796 = vshrl.u32 %v237, 16
    %v798 = vrot.slane %v796, 7
    %v799 = vshll.u32 %v237, 16
    %v801 = vor.u32 %v798, %v799
    %v803 = vshrl.u32 %v238, 16
    %v805 = vrot.slane %v803, 7
    %v806 = vshll.u32 %v238, 16
    %v808 = vor.u32 %v805, %v806
    %v809 = vsel %vm787, %v791, %v808
    %v811 = vshrl.u32 %v239, 16
    %v813 = vrot.slane %v811, 7
    %v814 = vshll.u32 %v239, 16
    %v816 = vor.u32 %v813, %v814
    %v817 = vsel %vm787, %v798, %v816
    %vm822 = vcmask 1040384
    %vm823 = vmand %vm822, %vm787
    %v824 = vsel %vm823, 0, %v794
    %v825 = vsel %vm823, 0, %v801
    %v826 = vsel %vm783, 1, 0
    %v827 = vsel %vm784, 1, 0
    %v828 = vsel %vm785, 1, 0
    %v829 = vsel %vm786, 1, 0
    %vm830 = vcmp.eq.s32.totalorder %v826, 1
    %vm831 = vcmp.eq.s32.totalorder %v827, 1
    %vm832 = vcmp.eq.s32.totalorder %v828, 1
    %vm833 = vcmp.eq.s32.totalorder %v829, 1
    %vm834 = vmpackc.low %vm830, %vm830
    %vm835 = vmpackc.low %vm831, %vm831
    %vm836 = vmpackc.low %vm832, %vm832
    %vm837 = vmpackc.low %vm833, %vm833
    %v838 = vsel %vm834, 65537, 0
    %v839 = vsel %vm835, 65537, 0
    %v840 = vsel %vm836, 65537, 0
    %v841 = vsel %vm837, 65537, 0
    %v842 = vunpack.c.l.b16 %v838
    %v843 = vunpack.c.l.b16 %v839
    %v844 = vunpack.c.l.b16 %v840
    %v845 = vunpack.c.l.b16 %v841
    %v846 = vpack.c.b16 %v843, %v842
    %v847 = vpack.c.b16 %v845, %v844
    %vm848 = vcmp.ne.s16.totalorder %v846, 0
    %vm849 = vcmp.ne.s16.totalorder %v847, 0
    %v850 = vsel %vm848, 0, %v824
    %v851 = vsel %vm848, 0, %v825
    %v852 = vsel %vm849, 0, %v809
    %v853 = vsel %vm849, 0, %v817
    %vm854 = vcmp.eq.s32.totalorder %v779, 15
    %vm855 = vcmp.eq.s32.totalorder %v780, 15
    %vm856 = vcmp.eq.s32.totalorder %v781, 15
    %vm857 = vcmp.eq.s32.totalorder %v782, 15
    %vm858 = vsmask.f32 7424
    %v859 = vrot.slane %v792, 1
    %v860 = vor.u32 %v789, %v859
    %v861 = vrot.slane %v806, 1
    %v862 = vsel %vm858, %v860, %v861
    %v863 = vrot.slane %v799, 1
    %v864 = vor.u32 %v796, %v863
    %v865 = vrot.slane %v814, 1
    %v866 = vsel %vm858, %v864, %v865
    %v867 = vor.u32 %v803, %v861
    %v868 = vor.u32 %v811, %v865
    %vm873 = vcmask 1047552
    %vm874 = vmand %vm873, %vm858
    %v875 = vsel %vm874, %v867, 0
    %v876 = vsel %vm874, %v868, 0
    %v877 = vsel %vm854, 1, 0
    %v878 = vsel %vm855, 1, 0
    %v879 = vsel %vm856, 1, 0
    %v880 = vsel %vm857, 1, 0
    %vm881 = vcmp.eq.s32.totalorder %v877, 1
    %vm882 = vcmp.eq.s32.totalorder %v878, 1
    %vm883 = vcmp.eq.s32.totalorder %v879, 1
    %vm884 = vcmp.eq.s32.totalorder %v880, 1
    %vm885 = vmpackc.low %vm881, %vm881
    %vm886 = vmpackc.low %vm882, %vm882
    %vm887 = vmpackc.low %vm883, %vm883
    %vm888 = vmpackc.low %vm884, %vm884
    %v889 = vsel %vm885, 65537, 0
    %v890 = vsel %vm886, 65537, 0
    %v891 = vsel %vm887, 65537, 0
    %v892 = vsel %vm888, 65537, 0
    %v893 = vunpack.c.l.b16 %v889
    %v894 = vunpack.c.l.b16 %v890
    %v895 = vunpack.c.l.b16 %v891
    %v896 = vunpack.c.l.b16 %v892
    %v897 = vpack.c.b16 %v894, %v893
    %v898 = vpack.c.b16 %v896, %v895
    %vm899 = vcmp.ne.s16.totalorder %v897, 0
    %vm900 = vcmp.ne.s16.totalorder %v898, 0
    %v901 = vsel %vm899, 0, %v862
    %v902 = vsel %vm899, 0, %v866
    %v903 = vsel %vm900, 0, %v875
    %v904 = vsel %vm900, 0, %v876
    %v905 = vld [vmem:[#allocation11] sm:$0xff]
    %v906 = vld [vmem:[#allocation11 + $0x8] sm:$0xff]
    %v907 = vld [vmem:[#allocation11 + $0x10] sm:$0xff]
    %v908 = vld [vmem:[#allocation11 + $0x18] sm:$0xff]
    %v909 = vld [vmem:[#allocation11 + $0x20] sm:$0xff]
    %v910 = vld [vmem:[#allocation11 + $0x28] sm:$0xff]
    %v911 = vld [vmem:[#allocation11 + $0x30] sm:$0xff]
    %v912 = vld [vmem:[#allocation11 + $0x38] sm:$0xff]
    %v913 = vld [vmem:[#allocation11 + $0x40] sm:$0xff]
    %v914 = vld [vmem:[#allocation11 + $0x48] sm:$0xff]
    %v915 = vld [vmem:[#allocation11 + $0x50] sm:$0xff]
    %v916 = vld [vmem:[#allocation11 + $0x58] sm:$0xff]
    %v917 = vld [vmem:[#allocation11 + $0x60] sm:$0xff]
    %v918 = vld [vmem:[#allocation11 + $0x68] sm:$0xff]
    %v919 = vld [vmem:[#allocation11 + $0x70] sm:$0xff]
    %v920 = vld [vmem:[#allocation11 + $0x78] sm:$0xff]
    %v921 = vld [vmem:[#allocation11 + $0x80] sm:$0xff]
    %v922 = vld [vmem:[#allocation11 + $0x88] sm:$0xff]
    %v923 = vld [vmem:[#allocation11 + $0x90] sm:$0xff]
    %v924 = vld [vmem:[#allocation11 + $0x98] sm:$0xff]
    %v925 = vld [vmem:[#allocation11 + $0xa0] sm:$0xff]
    %v926 = vld [vmem:[#allocation11 + $0xa8] sm:$0xff]
    %v927 = vld [vmem:[#allocation11 + $0xb0] sm:$0xff]
    %v928 = vld [vmem:[#allocation11 + $0xb8] sm:$0xff]
    %v929 = vld [vmem:[#allocation11 + $0xc0] sm:$0xff]
    %v930 = vld [vmem:[#allocation11 + $0xc8] sm:$0xff]
    %v931 = vld [vmem:[#allocation11 + $0xd0] sm:$0xff]
    %v932 = vld [vmem:[#allocation11 + $0xd8] sm:$0xff]
    %v933 = vld [vmem:[#allocation11 + $0xe0] sm:$0xff]
    %v934 = vld [vmem:[#allocation11 + $0xe8] sm:$0xff]
    %v935 = vld [vmem:[#allocation11 + $0xf0] sm:$0xff]
    %v936 = vld [vmem:[#allocation11 + $0xf8] sm:$0xff]
    %v937 = vld [vmem:[#allocation11 + $0x100] sm:$0xff]
    %v938 = vld [vmem:[#allocation11 + $0x108] sm:$0xff]
    %v939 = vld [vmem:[#allocation11 + $0x110] sm:$0xff]
    %v940 = vld [vmem:[#allocation11 + $0x118] sm:$0xff]
    %v941 = vld [vmem:[#allocation11 + $0x120] sm:$0xff]
    %v942 = vld [vmem:[#allocation11 + $0x128] sm:$0xff]
    %v943 = vld [vmem:[#allocation11 + $0x130] sm:$0xff]
    %v944 = vld [vmem:[#allocation11 + $0x138] sm:$0xff]
    %v945 = vld [vmem:[#allocation11 + $0x140] sm:$0xff]
    %v946 = vld [vmem:[#allocation11 + $0x148] sm:$0xff]
    %v947 = vld [vmem:[#allocation11 + $0x150] sm:$0xff]
    %v948 = vld [vmem:[#allocation11 + $0x158] sm:$0xff]
    %v949 = vld [vmem:[#allocation11 + $0x160] sm:$0xff]
    %v950 = vld [vmem:[#allocation11 + $0x168] sm:$0xff]
    %v951 = vld [vmem:[#allocation11 + $0x170] sm:$0xff]
    %v952 = vld [vmem:[#allocation11 + $0x178] sm:$0xff]
    %v953 = vld [vmem:[#allocation11 + $0x180] sm:$0xff]
    %v954 = vld [vmem:[#allocation11 + $0x188] sm:$0xff]
    %v955 = vld [vmem:[#allocation11 + $0x190] sm:$0xff]
    %v956 = vld [vmem:[#allocation11 + $0x198] sm:$0xff]
    %v957 = vld [vmem:[#allocation11 + $0x1a0] sm:$0xff]
    %v958 = vld [vmem:[#allocation11 + $0x1a8] sm:$0xff]
    %v959 = vld [vmem:[#allocation11 + $0x1b0] sm:$0xff]
    %v960 = vld [vmem:[#allocation11 + $0x1b8] sm:$0xff]
    %v961 = vld [vmem:[#allocation11 + $0x1c0] sm:$0xff]
    %v962 = vld [vmem:[#allocation11 + $0x1c8] sm:$0xff]
    %v963 = vld [vmem:[#allocation11 + $0x1d0] sm:$0xff]
    %v964 = vld [vmem:[#allocation11 + $0x1d8] sm:$0xff]
    %v965 = vld [vmem:[#allocation11 + $0x1e0] sm:$0xff]
    %v966 = vld [vmem:[#allocation11 + $0x1e8] sm:$0xff]
    %v967 = vld [vmem:[#allocation11 + $0x1f0] sm:$0xff]
    %v968 = vld [vmem:[#allocation11 + $0x1f8] sm:$0xff]
    %v969 = vld [vmem:[#allocation11 + $0x200] sm:$0xff]
    %v970 = vld [vmem:[#allocation11 + $0x208] sm:$0xff]
    %v971 = vld [vmem:[#allocation11 + $0x210] sm:$0xff]
    %v972 = vld [vmem:[#allocation11 + $0x218] sm:$0xff]
    %v973 = vld [vmem:[#allocation11 + $0x220] sm:$0xff]
    %v974 = vld [vmem:[#allocation11 + $0x228] sm:$0xff]
    %v975 = vld [vmem:[#allocation11 + $0x230] sm:$0xff]
    %v976 = vld [vmem:[#allocation11 + $0x238] sm:$0xff]
    %v977 = vld [vmem:[#allocation11 + $0x240] sm:$0xff]
    %v978 = vld [vmem:[#allocation11 + $0x248] sm:$0xff]
    %v979 = vld [vmem:[#allocation11 + $0x250] sm:$0xff]
    %v980 = vld [vmem:[#allocation11 + $0x258] sm:$0xff]
    %v981 = vld [vmem:[#allocation11 + $0x260] sm:$0xff]
    %v982 = vld [vmem:[#allocation11 + $0x268] sm:$0xff]
    %v983 = vld [vmem:[#allocation11 + $0x270] sm:$0xff]
    %v984 = vld [vmem:[#allocation11 + $0x278] sm:$0xff]
    %v985 = vld [vmem:[#allocation11 + $0x280] sm:$0xff]
    %v986 = vld [vmem:[#allocation11 + $0x288] sm:$0xff]
    %v987 = vld [vmem:[#allocation11 + $0x290] sm:$0xff]
    %v988 = vld [vmem:[#allocation11 + $0x298] sm:$0xff]
    %v989 = vld [vmem:[#allocation11 + $0x2a0] sm:$0xff]
    %v990 = vld [vmem:[#allocation11 + $0x2a8] sm:$0xff]
    %v991 = vld [vmem:[#allocation11 + $0x2b0] sm:$0xff]
    %v992 = vld [vmem:[#allocation11 + $0x2b8] sm:$0xff]
    %v993 = vld [vmem:[#allocation11 + $0x2c0] sm:$0xff]
    %v994 = vld [vmem:[#allocation11 + $0x2c8] sm:$0xff]
    %v995 = vld [vmem:[#allocation11 + $0x2d0] sm:$0xff]
    %v996 = vld [vmem:[#allocation11 + $0x2d8] sm:$0xff]
    %v997 = vld [vmem:[#allocation11 + $0x2e0] sm:$0xff]
    %v998 = vld [vmem:[#allocation11 + $0x2e8] sm:$0xff]
    %v999 = vld [vmem:[#allocation11 + $0x2f0] sm:$0xff]
    %v1000 = vld [vmem:[#allocation11 + $0x2f8] sm:$0xff]
    %v1001 = vld [vmem:[#allocation11 + $0x300] sm:$0xff]
    %v1002 = vld [vmem:[#allocation11 + $0x308] sm:$0xff]
    %v1003 = vld [vmem:[#allocation11 + $0x310] sm:$0xff]
    %v1004 = vld [vmem:[#allocation11 + $0x318] sm:$0xff]
    %v1005 = vld [vmem:[#allocation11 + $0x320] sm:$0xff]
    %v1006 = vld [vmem:[#allocation11 + $0x328] sm:$0xff]
    %v1007 = vld [vmem:[#allocation11 + $0x330] sm:$0xff]
    %v1008 = vld [vmem:[#allocation11 + $0x338] sm:$0xff]
    %v1009 = vld [vmem:[#allocation11 + $0x340] sm:$0xff]
    %v1010 = vld [vmem:[#allocation11 + $0x348] sm:$0xff]
    %v1011 = vld [vmem:[#allocation11 + $0x350] sm:$0xff]
    %v1012 = vld [vmem:[#allocation11 + $0x358] sm:$0xff]
    %v1013 = vld [vmem:[#allocation11 + $0x360] sm:$0xff]
    %v1014 = vld [vmem:[#allocation11 + $0x368] sm:$0xff]
    %v1015 = vld [vmem:[#allocation11 + $0x370] sm:$0xff]
    %v1016 = vld [vmem:[#allocation11 + $0x378] sm:$0xff]
    %v1017 = vld [vmem:[#allocation11 + $0x380] sm:$0xff]
    %v1018 = vld [vmem:[#allocation11 + $0x388] sm:$0xff]
    %v1019 = vld [vmem:[#allocation11 + $0x390] sm:$0xff]
    %v1020 = vld [vmem:[#allocation11 + $0x398] sm:$0xff]
    %v1021 = vld [vmem:[#allocation11 + $0x3a0] sm:$0xff]
    %v1022 = vld [vmem:[#allocation11 + $0x3a8] sm:$0xff]
    %v1023 = vld [vmem:[#allocation11 + $0x3b0] sm:$0xff]
    %v1024 = vld [vmem:[#allocation11 + $0x3b8] sm:$0xff]
    %v1025 = vld [vmem:[#allocation11 + $0x3c0] sm:$0xff]
    %v1026 = vld [vmem:[#allocation11 + $0x3c8] sm:$0xff]
    %v1027 = vld [vmem:[#allocation11 + $0x3d0] sm:$0xff]
    %v1028 = vld [vmem:[#allocation11 + $0x3d8] sm:$0xff]
    %v1029 = vld [vmem:[#allocation11 + $0x3e0] sm:$0xff]
    %v1030 = vld [vmem:[#allocation11 + $0x3e8] sm:$0xff]
    %v1031 = vld [vmem:[#allocation11 + $0x3f0] sm:$0xff]
    %v1032 = vld [vmem:[#allocation11 + $0x3f8] sm:$0xff]
    %v1033 = vld [vmem:[#allocation11 + $0x400] sm:$0xff]
    %v1034 = vld [vmem:[#allocation11 + $0x408] sm:$0xff]
    %v1035 = vld [vmem:[#allocation11 + $0x410] sm:$0xff]
    %v1036 = vld [vmem:[#allocation11 + $0x418] sm:$0xff]
    %v1037 = vld [vmem:[#allocation11 + $0x420] sm:$0xff]
    %v1038 = vld [vmem:[#allocation11 + $0x428] sm:$0xff]
    %v1039 = vld [vmem:[#allocation11 + $0x430] sm:$0xff]
    %v1040 = vld [vmem:[#allocation11 + $0x438] sm:$0xff]
    %v1041 = vld [vmem:[#allocation11 + $0x440] sm:$0xff]
    %v1042 = vld [vmem:[#allocation11 + $0x448] sm:$0xff]
    %v1043 = vld [vmem:[#allocation11 + $0x450] sm:$0xff]
    %v1044 = vld [vmem:[#allocation11 + $0x458] sm:$0xff]
    %v1045 = vld [vmem:[#allocation11 + $0x460] sm:$0xff]
    %v1046 = vld [vmem:[#allocation11 + $0x468] sm:$0xff]
    %v1047 = vld [vmem:[#allocation11 + $0x470] sm:$0xff]
    %v1048 = vld [vmem:[#allocation11 + $0x478] sm:$0xff]
    %v1049 = vld [vmem:[#allocation11 + $0x480] sm:$0xff]
    %v1050 = vld [vmem:[#allocation11 + $0x488] sm:$0xff]
    %v1051 = vld [vmem:[#allocation11 + $0x490] sm:$0xff]
    %v1052 = vld [vmem:[#allocation11 + $0x498] sm:$0xff]
    %v1053 = vld [vmem:[#allocation11 + $0x4a0] sm:$0xff]
    %v1054 = vld [vmem:[#allocation11 + $0x4a8] sm:$0xff]
    %v1055 = vld [vmem:[#allocation11 + $0x4b0] sm:$0xff]
    %v1056 = vld [vmem:[#allocation11 + $0x4b8] sm:$0xff]
    %v1057 = vld [vmem:[#allocation11 + $0x4c0] sm:$0xff]
    %v1058 = vld [vmem:[#allocation11 + $0x4c8] sm:$0xff]
    %v1059 = vld [vmem:[#allocation11 + $0x4d0] sm:$0xff]
    %v1060 = vld [vmem:[#allocation11 + $0x4d8] sm:$0xff]
    %v1061 = vld [vmem:[#allocation11 + $0x4e0] sm:$0xff]
    %v1062 = vld [vmem:[#allocation11 + $0x4e8] sm:$0xff]
    %v1063 = vld [vmem:[#allocation11 + $0x4f0] sm:$0xff]
    %v1064 = vld [vmem:[#allocation11 + $0x4f8] sm:$0xff]
    %v1065 = vld [vmem:[#allocation11 + $0x500] sm:$0xff]
    %v1066 = vld [vmem:[#allocation11 + $0x508] sm:$0xff]
    %v1067 = vld [vmem:[#allocation11 + $0x510] sm:$0xff]
    %v1068 = vld [vmem:[#allocation11 + $0x518] sm:$0xff]
    %v1069 = vld [vmem:[#allocation11 + $0x520] sm:$0xff]
    %v1070 = vld [vmem:[#allocation11 + $0x528] sm:$0xff]
    %v1071 = vld [vmem:[#allocation11 + $0x530] sm:$0xff]
    %v1072 = vld [vmem:[#allocation11 + $0x538] sm:$0xff]
    %v1073 = vld [vmem:[#allocation11 + $0x540] sm:$0xff]
    %v1074 = vld [vmem:[#allocation11 + $0x548] sm:$0xff]
    %v1075 = vld [vmem:[#allocation11 + $0x550] sm:$0xff]
    %v1076 = vld [vmem:[#allocation11 + $0x558] sm:$0xff]
    %v1077 = vld [vmem:[#allocation11 + $0x560] sm:$0xff]
    %v1078 = vld [vmem:[#allocation11 + $0x568] sm:$0xff]
    %v1079 = vld [vmem:[#allocation11 + $0x570] sm:$0xff]
    %v1080 = vld [vmem:[#allocation11 + $0x578] sm:$0xff]
    %v1081 = vld [vmem:[#allocation11 + $0x580] sm:$0xff]
    %v1082 = vld [vmem:[#allocation11 + $0x588] sm:$0xff]
    %v1083 = vld [vmem:[#allocation11 + $0x590] sm:$0xff]
    %v1084 = vld [vmem:[#allocation11 + $0x598] sm:$0xff]
    %v1085 = vld [vmem:[#allocation11 + $0x5a0] sm:$0xff]
    %v1086 = vld [vmem:[#allocation11 + $0x5a8] sm:$0xff]
    %v1087 = vld [vmem:[#allocation11 + $0x5b0] sm:$0xff]
    %v1088 = vld [vmem:[#allocation11 + $0x5b8] sm:$0xff]
    %v1089 = vld [vmem:[#allocation11 + $0x5c0] sm:$0xff]
    %v1090 = vld [vmem:[#allocation11 + $0x5c8] sm:$0xff]
    %v1091 = vld [vmem:[#allocation11 + $0x5d0] sm:$0xff]
    %v1092 = vld [vmem:[#allocation11 + $0x5d8] sm:$0xff]
    %v1093 = vld [vmem:[#allocation11 + $0x5e0] sm:$0xff]
    %v1094 = vld [vmem:[#allocation11 + $0x5e8] sm:$0xff]
    %v1095 = vld [vmem:[#allocation11 + $0x5f0] sm:$0xff]
    %v1096 = vld [vmem:[#allocation11 + $0x5f8] sm:$0xff]
    %v1289 = vunpack.c.l.b16 %v905
    %v1290 = vunpack.c.h.b16 %v905
    %v1291 = vunpack.c.l.b16 %v906
    %v1292 = vunpack.c.h.b16 %v906
    %v1293 = vunpack.c.l.b16 %v907
    %v1294 = vunpack.c.h.b16 %v907
    %v1295 = vunpack.c.l.b16 %v908
    %v1296 = vunpack.c.h.b16 %v908
    %v1297 = vunpack.c.l.b16 %v909
    %v1298 = vunpack.c.h.b16 %v909
    %v1299 = vunpack.c.l.b16 %v910
    %v1300 = vunpack.c.h.b16 %v910
    %v1301 = vunpack.c.l.b16 %v911
    %v1302 = vunpack.c.h.b16 %v911
    %v1303 = vunpack.c.l.b16 %v912
    %v1304 = vunpack.c.h.b16 %v912
    %v1305 = vunpack.c.l.b16 %v913
    %v1306 = vunpack.c.h.b16 %v913
    %v1307 = vunpack.c.l.b16 %v914
    %v1308 = vunpack.c.h.b16 %v914
    %v1309 = vunpack.c.l.b16 %v915
    %v1310 = vunpack.c.h.b16 %v915
    %v1311 = vunpack.c.l.b16 %v916
    %v1312 = vunpack.c.h.b16 %v916
    %v1313 = vunpack.c.l.b16 %v917
    %v1314 = vunpack.c.h.b16 %v917
    %v1315 = vunpack.c.l.b16 %v918
    %v1316 = vunpack.c.h.b16 %v918
    %v1317 = vunpack.c.l.b16 %v919
    %v1318 = vunpack.c.h.b16 %v919
    %v1319 = vunpack.c.l.b16 %v920
    %v1320 = vunpack.c.h.b16 %v920
    %v1321 = vunpack.c.l.b16 %v921
    %v1322 = vunpack.c.h.b16 %v921
    %v1323 = vunpack.c.l.b16 %v922
    %v1324 = vunpack.c.h.b16 %v922
    %v1325 = vunpack.c.l.b16 %v923
    %v1326 = vunpack.c.h.b16 %v923
    %v1327 = vunpack.c.l.b16 %v924
    %v1328 = vunpack.c.h.b16 %v924
    %v1329 = vunpack.c.l.b16 %v925
    %v1330 = vunpack.c.h.b16 %v925
    %v1331 = vunpack.c.l.b16 %v926
    %v1332 = vunpack.c.h.b16 %v926
    %v1333 = vunpack.c.l.b16 %v927
    %v1334 = vunpack.c.h.b16 %v927
    %v1335 = vunpack.c.l.b16 %v928
    %v1336 = vunpack.c.h.b16 %v928
    %v1337 = vunpack.c.l.b16 %v929
    %v1338 = vunpack.c.h.b16 %v929
    %v1339 = vunpack.c.l.b16 %v930
    %v1340 = vunpack.c.h.b16 %v930
    %v1341 = vunpack.c.l.b16 %v931
    %v1342 = vunpack.c.h.b16 %v931
    %v1343 = vunpack.c.l.b16 %v932
    %v1344 = vunpack.c.h.b16 %v932
    %v1345 = vunpack.c.l.b16 %v933
    %v1346 = vunpack.c.h.b16 %v933
    %v1347 = vunpack.c.l.b16 %v934
    %v1348 = vunpack.c.h.b16 %v934
    %v1349 = vunpack.c.l.b16 %v935
    %v1350 = vunpack.c.h.b16 %v935
    %v1351 = vunpack.c.l.b16 %v936
    %v1352 = vunpack.c.h.b16 %v936
    %v1353 = vunpack.c.l.b16 %v937
    %v1354 = vunpack.c.h.b16 %v937
    %v1355 = vunpack.c.l.b16 %v938
    %v1356 = vunpack.c.h.b16 %v938
    %v1357 = vunpack.c.l.b16 %v939
    %v1358 = vunpack.c.h.b16 %v939
    %v1359 = vunpack.c.l.b16 %v940
    %v1360 = vunpack.c.h.b16 %v940
    %v1361 = vunpack.c.l.b16 %v941
    %v1362 = vunpack.c.h.b16 %v941
    %v1363 = vunpack.c.l.b16 %v942
    %v1364 = vunpack.c.h.b16 %v942
    %v1365 = vunpack.c.l.b16 %v943
    %v1366 = vunpack.c.h.b16 %v943
    %v1367 = vunpack.c.l.b16 %v944
    %v1368 = vunpack.c.h.b16 %v944
    %v1369 = vunpack.c.l.b16 %v945
    %v1370 = vunpack.c.h.b16 %v945
    %v1371 = vunpack.c.l.b16 %v946
    %v1372 = vunpack.c.h.b16 %v946
    %v1373 = vunpack.c.l.b16 %v947
    %v1374 = vunpack.c.h.b16 %v947
    %v1375 = vunpack.c.l.b16 %v948
    %v1376 = vunpack.c.h.b16 %v948
    %v1377 = vunpack.c.l.b16 %v949
    %v1378 = vunpack.c.h.b16 %v949
    %v1379 = vunpack.c.l.b16 %v950
    %v1380 = vunpack.c.h.b16 %v950
    %v1381 = vunpack.c.l.b16 %v951
    %v1382 = vunpack.c.h.b16 %v951
    %v1383 = vunpack.c.l.b16 %v952
    %v1384 = vunpack.c.h.b16 %v952
    %v1385 = vunpack.c.l.b16 %v953
    %v1386 = vunpack.c.h.b16 %v953
    %v1387 = vunpack.c.l.b16 %v954
    %v1388 = vunpack.c.h.b16 %v954
    %v1389 = vunpack.c.l.b16 %v955
    %v1390 = vunpack.c.h.b16 %v955
    %v1391 = vunpack.c.l.b16 %v956
    %v1392 = vunpack.c.h.b16 %v956
    %v1393 = vunpack.c.l.b16 %v957
    %v1394 = vunpack.c.h.b16 %v957
    %v1395 = vunpack.c.l.b16 %v958
    %v1396 = vunpack.c.h.b16 %v958
    %v1397 = vunpack.c.l.b16 %v959
    %v1398 = vunpack.c.h.b16 %v959
    %v1399 = vunpack.c.l.b16 %v960
    %v1400 = vunpack.c.h.b16 %v960
    %v1401 = vunpack.c.l.b16 %v961
    %v1402 = vunpack.c.h.b16 %v961
    %v1403 = vunpack.c.l.b16 %v962
    %v1404 = vunpack.c.h.b16 %v962
    %v1405 = vunpack.c.l.b16 %v963
    %v1406 = vunpack.c.h.b16 %v963
    %v1407 = vunpack.c.l.b16 %v964
    %v1408 = vunpack.c.h.b16 %v964
    %v1409 = vunpack.c.l.b16 %v965
    %v1410 = vunpack.c.h.b16 %v965
    %v1411 = vunpack.c.l.b16 %v966
    %v1412 = vunpack.c.h.b16 %v966
    %v1413 = vunpack.c.l.b16 %v967
    %v1414 = vunpack.c.h.b16 %v967
    %v1415 = vunpack.c.l.b16 %v968
    %v1416 = vunpack.c.h.b16 %v968
    %v1417 = vunpack.c.l.b16 %v969
    %v1418 = vunpack.c.h.b16 %v969
    %v1419 = vunpack.c.l.b16 %v970
    %v1420 = vunpack.c.h.b16 %v970
    %v1421 = vunpack.c.l.b16 %v971
    %v1422 = vunpack.c.h.b16 %v971
    %v1423 = vunpack.c.l.b16 %v972
    %v1424 = vunpack.c.h.b16 %v972
    %v1425 = vunpack.c.l.b16 %v973
    %v1426 = vunpack.c.h.b16 %v973
    %v1427 = vunpack.c.l.b16 %v974
    %v1428 = vunpack.c.h.b16 %v974
    %v1429 = vunpack.c.l.b16 %v975
    %v1430 = vunpack.c.h.b16 %v975
    %v1431 = vunpack.c.l.b16 %v976
    %v1432 = vunpack.c.h.b16 %v976
    %v1433 = vunpack.c.l.b16 %v977
    %v1434 = vunpack.c.h.b16 %v977
    %v1435 = vunpack.c.l.b16 %v978
    %v1436 = vunpack.c.h.b16 %v978
    %v1437 = vunpack.c.l.b16 %v979
    %v1438 = vunpack.c.h.b16 %v979
    %v1439 = vunpack.c.l.b16 %v980
    %v1440 = vunpack.c.h.b16 %v980
    %v1441 = vunpack.c.l.b16 %v981
    %v1442 = vunpack.c.h.b16 %v981
    %v1443 = vunpack.c.l.b16 %v982
    %v1444 = vunpack.c.h.b16 %v982
    %v1445 = vunpack.c.l.b16 %v983
    %v1446 = vunpack.c.h.b16 %v983
    %v1447 = vunpack.c.l.b16 %v984
    %v1448 = vunpack.c.h.b16 %v984
    %v1449 = vunpack.c.l.b16 %v985
    %v1450 = vunpack.c.h.b16 %v985
    %v1451 = vunpack.c.l.b16 %v986
    %v1452 = vunpack.c.h.b16 %v986
    %v1453 = vunpack.c.l.b16 %v987
    %v1454 = vunpack.c.h.b16 %v987
    %v1455 = vunpack.c.l.b16 %v988
    %v1456 = vunpack.c.h.b16 %v988
    %v1457 = vunpack.c.l.b16 %v989
    %v1458 = vunpack.c.h.b16 %v989
    %v1459 = vunpack.c.l.b16 %v990
    %v1460 = vunpack.c.h.b16 %v990
    %v1461 = vunpack.c.l.b16 %v991
    %v1462 = vunpack.c.h.b16 %v991
    %v1463 = vunpack.c.l.b16 %v992
    %v1464 = vunpack.c.h.b16 %v992
    %v1465 = vunpack.c.l.b16 %v993
    %v1466 = vunpack.c.h.b16 %v993
    %v1467 = vunpack.c.l.b16 %v994
    %v1468 = vunpack.c.h.b16 %v994
    %v1469 = vunpack.c.l.b16 %v995
    %v1470 = vunpack.c.h.b16 %v995
    %v1471 = vunpack.c.l.b16 %v996
    %v1472 = vunpack.c.h.b16 %v996
    %v1473 = vunpack.c.l.b16 %v997
    %v1474 = vunpack.c.h.b16 %v997
    %v1475 = vunpack.c.l.b16 %v998
    %v1476 = vunpack.c.h.b16 %v998
    %v1477 = vunpack.c.l.b16 %v999
    %v1478 = vunpack.c.h.b16 %v999
    %v1479 = vunpack.c.l.b16 %v1000
    %v1480 = vunpack.c.h.b16 %v1000
    %v1481 = vunpack.c.l.b16 %v1001
    %v1482 = vunpack.c.h.b16 %v1001
    %v1483 = vunpack.c.l.b16 %v1002
    %v1484 = vunpack.c.h.b16 %v1002
    %v1485 = vunpack.c.l.b16 %v1003
    %v1486 = vunpack.c.h.b16 %v1003
    %v1487 = vunpack.c.l.b16 %v1004
    %v1488 = vunpack.c.h.b16 %v1004
    %v1489 = vunpack.c.l.b16 %v1005
    %v1490 = vunpack.c.h.b16 %v1005
    %v1491 = vunpack.c.l.b16 %v1006
    %v1492 = vunpack.c.h.b16 %v1006
    %v1493 = vunpack.c.l.b16 %v1007
    %v1494 = vunpack.c.h.b16 %v1007
    %v1495 = vunpack.c.l.b16 %v1008
    %v1496 = vunpack.c.h.b16 %v1008
    %v1497 = vunpack.c.l.b16 %v1009
    %v1498 = vunpack.c.h.b16 %v1009
    %v1499 = vunpack.c.l.b16 %v1010
    %v1500 = vunpack.c.h.b16 %v1010
    %v1501 = vunpack.c.l.b16 %v1011
    %v1502 = vunpack.c.h.b16 %v1011
    %v1503 = vunpack.c.l.b16 %v1012
    %v1504 = vunpack.c.h.b16 %v1012
    %v1505 = vunpack.c.l.b16 %v1013
    %v1506 = vunpack.c.h.b16 %v1013
    %v1507 = vunpack.c.l.b16 %v1014
    %v1508 = vunpack.c.h.b16 %v1014
    %v1509 = vunpack.c.l.b16 %v1015
    %v1510 = vunpack.c.h.b16 %v1015
    %v1511 = vunpack.c.l.b16 %v1016
    %v1512 = vunpack.c.h.b16 %v1016
    %v1513 = vunpack.c.l.b16 %v1017
    %v1514 = vunpack.c.h.b16 %v1017
    %v1515 = vunpack.c.l.b16 %v1018
    %v1516 = vunpack.c.h.b16 %v1018
    %v1517 = vunpack.c.l.b16 %v1019
    %v1518 = vunpack.c.h.b16 %v1019
    %v1519 = vunpack.c.l.b16 %v1020
    %v1520 = vunpack.c.h.b16 %v1020
    %v1521 = vunpack.c.l.b16 %v1021
    %v1522 = vunpack.c.h.b16 %v1021
    %v1523 = vunpack.c.l.b16 %v1022
    %v1524 = vunpack.c.h.b16 %v1022
    %v1525 = vunpack.c.l.b16 %v1023
    %v1526 = vunpack.c.h.b16 %v1023
    %v1527 = vunpack.c.l.b16 %v1024
    %v1528 = vunpack.c.h.b16 %v1024
    %v1529 = vunpack.c.l.b16 %v1025
    %v1530 = vunpack.c.h.b16 %v1025
    %v1531 = vunpack.c.l.b16 %v1026
    %v1532 = vunpack.c.h.b16 %v1026
    %v1533 = vunpack.c.l.b16 %v1027
    %v1534 = vunpack.c.h.b16 %v1027
    %v1535 = vunpack.c.l.b16 %v1028
    %v1536 = vunpack.c.h.b16 %v1028
    %v1537 = vunpack.c.l.b16 %v1029
    %v1538 = vunpack.c.h.b16 %v1029
    %v1539 = vunpack.c.l.b16 %v1030
    %v1540 = vunpack.c.h.b16 %v1030
    %v1541 = vunpack.c.l.b16 %v1031
    %v1542 = vunpack.c.h.b16 %v1031
    %v1543 = vunpack.c.l.b16 %v1032
    %v1544 = vunpack.c.h.b16 %v1032
    %v1545 = vunpack.c.l.b16 %v1033
    %v1546 = vunpack.c.h.b16 %v1033
    %v1547 = vunpack.c.l.b16 %v1034
    %v1548 = vunpack.c.h.b16 %v1034
    %v1549 = vunpack.c.l.b16 %v1035
    %v1550 = vunpack.c.h.b16 %v1035
    %v1551 = vunpack.c.l.b16 %v1036
    %v1552 = vunpack.c.h.b16 %v1036
    %v1553 = vunpack.c.l.b16 %v1037
    %v1554 = vunpack.c.h.b16 %v1037
    %v1555 = vunpack.c.l.b16 %v1038
    %v1556 = vunpack.c.h.b16 %v1038
    %v1557 = vunpack.c.l.b16 %v1039
    %v1558 = vunpack.c.h.b16 %v1039
    %v1559 = vunpack.c.l.b16 %v1040
    %v1560 = vunpack.c.h.b16 %v1040
    %v1561 = vunpack.c.l.b16 %v1041
    %v1562 = vunpack.c.h.b16 %v1041
    %v1563 = vunpack.c.l.b16 %v1042
    %v1564 = vunpack.c.h.b16 %v1042
    %v1565 = vunpack.c.l.b16 %v1043
    %v1566 = vunpack.c.h.b16 %v1043
    %v1567 = vunpack.c.l.b16 %v1044
    %v1568 = vunpack.c.h.b16 %v1044
    %v1569 = vunpack.c.l.b16 %v1045
    %v1570 = vunpack.c.h.b16 %v1045
    %v1571 = vunpack.c.l.b16 %v1046
    %v1572 = vunpack.c.h.b16 %v1046
    %v1573 = vunpack.c.l.b16 %v1047
    %v1574 = vunpack.c.h.b16 %v1047
    %v1575 = vunpack.c.l.b16 %v1048
    %v1576 = vunpack.c.h.b16 %v1048
    %v1577 = vunpack.c.l.b16 %v1049
    %v1578 = vunpack.c.h.b16 %v1049
    %v1579 = vunpack.c.l.b16 %v1050
    %v1580 = vunpack.c.h.b16 %v1050
    %v1581 = vunpack.c.l.b16 %v1051
    %v1582 = vunpack.c.h.b16 %v1051
    %v1583 = vunpack.c.l.b16 %v1052
    %v1584 = vunpack.c.h.b16 %v1052
    %v1585 = vunpack.c.l.b16 %v1053
    %v1586 = vunpack.c.h.b16 %v1053
    %v1587 = vunpack.c.l.b16 %v1054
    %v1588 = vunpack.c.h.b16 %v1054
    %v1589 = vunpack.c.l.b16 %v1055
    %v1590 = vunpack.c.h.b16 %v1055
    %v1591 = vunpack.c.l.b16 %v1056
    %v1592 = vunpack.c.h.b16 %v1056
    %v1593 = vunpack.c.l.b16 %v1057
    %v1594 = vunpack.c.h.b16 %v1057
    %v1595 = vunpack.c.l.b16 %v1058
    %v1596 = vunpack.c.h.b16 %v1058
    %v1597 = vunpack.c.l.b16 %v1059
    %v1598 = vunpack.c.h.b16 %v1059
    %v1599 = vunpack.c.l.b16 %v1060
    %v1600 = vunpack.c.h.b16 %v1060
    %v1601 = vunpack.c.l.b16 %v1061
    %v1602 = vunpack.c.h.b16 %v1061
    %v1603 = vunpack.c.l.b16 %v1062
    %v1604 = vunpack.c.h.b16 %v1062
    %v1605 = vunpack.c.l.b16 %v1063
    %v1606 = vunpack.c.h.b16 %v1063
    %v1607 = vunpack.c.l.b16 %v1064
    %v1608 = vunpack.c.h.b16 %v1064
    %v1609 = vunpack.c.l.b16 %v1065
    %v1610 = vunpack.c.h.b16 %v1065
    %v1611 = vunpack.c.l.b16 %v1066
    %v1612 = vunpack.c.h.b16 %v1066
    %v1613 = vunpack.c.l.b16 %v1067
    %v1614 = vunpack.c.h.b16 %v1067
    %v1615 = vunpack.c.l.b16 %v1068
    %v1616 = vunpack.c.h.b16 %v1068
    %v1617 = vunpack.c.l.b16 %v1069
    %v1618 = vunpack.c.h.b16 %v1069
    %v1619 = vunpack.c.l.b16 %v1070
    %v1620 = vunpack.c.h.b16 %v1070
    %v1621 = vunpack.c.l.b16 %v1071
    %v1622 = vunpack.c.h.b16 %v1071
    %v1623 = vunpack.c.l.b16 %v1072
    %v1624 = vunpack.c.h.b16 %v1072
    %v1625 = vunpack.c.l.b16 %v1073
    %v1626 = vunpack.c.h.b16 %v1073
    %v1627 = vunpack.c.l.b16 %v1074
    %v1628 = vunpack.c.h.b16 %v1074
    %v1629 = vunpack.c.l.b16 %v1075
    %v1630 = vunpack.c.h.b16 %v1075
    %v1631 = vunpack.c.l.b16 %v1076
    %v1632 = vunpack.c.h.b16 %v1076
    %v1633 = vunpack.c.l.b16 %v1077
    %v1634 = vunpack.c.h.b16 %v1077
    %v1635 = vunpack.c.l.b16 %v1078
    %v1636 = vunpack.c.h.b16 %v1078
    %v1637 = vunpack.c.l.b16 %v1079
    %v1638 = vunpack.c.h.b16 %v1079
    %v1639 = vunpack.c.l.b16 %v1080
    %v1640 = vunpack.c.h.b16 %v1080
    %v1641 = vunpack.c.l.b16 %v1081
    %v1642 = vunpack.c.h.b16 %v1081
    %v1643 = vunpack.c.l.b16 %v1082
    %v1644 = vunpack.c.h.b16 %v1082
    %v1645 = vunpack.c.l.b16 %v1083
    %v1646 = vunpack.c.h.b16 %v1083
    %v1647 = vunpack.c.l.b16 %v1084
    %v1648 = vunpack.c.h.b16 %v1084
    %v1649 = vunpack.c.l.b16 %v1085
    %v1650 = vunpack.c.h.b16 %v1085
    %v1651 = vunpack.c.l.b16 %v1086
    %v1652 = vunpack.c.h.b16 %v1086
    %v1653 = vunpack.c.l.b16 %v1087
    %v1654 = vunpack.c.h.b16 %v1087
    %v1655 = vunpack.c.l.b16 %v1088
    %v1656 = vunpack.c.h.b16 %v1088
    %v1657 = vunpack.c.l.b16 %v1089
    %v1658 = vunpack.c.h.b16 %v1089
    %v1659 = vunpack.c.l.b16 %v1090
    %v1660 = vunpack.c.h.b16 %v1090
    %v1661 = vunpack.c.l.b16 %v1091
    %v1662 = vunpack.c.h.b16 %v1091
    %v1663 = vunpack.c.l.b16 %v1092
    %v1664 = vunpack.c.h.b16 %v1092
    %v1665 = vunpack.c.l.b16 %v1093
    %v1666 = vunpack.c.h.b16 %v1093
    %v1667 = vunpack.c.l.b16 %v1094
    %v1668 = vunpack.c.h.b16 %v1094
    %v1669 = vunpack.c.l.b16 %v1095
    %v1670 = vunpack.c.h.b16 %v1095
    %v1671 = vunpack.c.l.b16 %v1096
    %v1672 = vunpack.c.h.b16 %v1096
    %v1673 = vpack.c.b16 %v1293, %v1289
    %v1674 = vpack.c.b16 %v1294, %v1290
    %v1675 = vpack.c.b16 %v1295, %v1291
    %v1676 = vpack.c.b16 %v1296, %v1292
    %v1677 = vpack.c.b16 %v1301, %v1297
    %v1678 = vpack.c.b16 %v1302, %v1298
    %v1679 = vpack.c.b16 %v1303, %v1299
    %v1680 = vpack.c.b16 %v1304, %v1300
    %v1681 = vpack.c.b16 %v1309, %v1305
    %v1682 = vpack.c.b16 %v1310, %v1306
    %v1683 = vpack.c.b16 %v1311, %v1307
    %v1684 = vpack.c.b16 %v1312, %v1308
    %v1685 = vpack.c.b16 %v1317, %v1313
    %v1686 = vpack.c.b16 %v1318, %v1314
    %v1687 = vpack.c.b16 %v1319, %v1315
    %v1688 = vpack.c.b16 %v1320, %v1316
    %v1689 = vpack.c.b16 %v1325, %v1321
    %v1690 = vpack.c.b16 %v1326, %v1322
    %v1691 = vpack.c.b16 %v1327, %v1323
    %v1692 = vpack.c.b16 %v1328, %v1324
    %v1693 = vpack.c.b16 %v1333, %v1329
    %v1694 = vpack.c.b16 %v1334, %v1330
    %v1695 = vpack.c.b16 %v1335, %v1331
    %v1696 = vpack.c.b16 %v1336, %v1332
    %v1697 = vpack.c.b16 %v1341, %v1337
    %v1698 = vpack.c.b16 %v1342, %v1338
    %v1699 = vpack.c.b16 %v1343, %v1339
    %v1700 = vpack.c.b16 %v1344, %v1340
    %v1701 = vpack.c.b16 %v1349, %v1345
    %v1702 = vpack.c.b16 %v1350, %v1346
    %v1703 = vpack.c.b16 %v1351, %v1347
    %v1704 = vpack.c.b16 %v1352, %v1348
    %v1705 = vpack.c.b16 %v1357, %v1353
    %v1706 = vpack.c.b16 %v1358, %v1354
    %v1707 = vpack.c.b16 %v1359, %v1355
    %v1708 = vpack.c.b16 %v1360, %v1356
    %v1709 = vpack.c.b16 %v1365, %v1361
    %v1710 = vpack.c.b16 %v1366, %v1362
    %v1711 = vpack.c.b16 %v1367, %v1363
    %v1712 = vpack.c.b16 %v1368, %v1364
    %v1713 = vpack.c.b16 %v1373, %v1369
    %v1714 = vpack.c.b16 %v1374, %v1370
    %v1715 = vpack.c.b16 %v1375, %v1371
    %v1716 = vpack.c.b16 %v1376, %v1372
    %v1717 = vpack.c.b16 %v1381, %v1377
    %v1718 = vpack.c.b16 %v1382, %v1378
    %v1719 = vpack.c.b16 %v1383, %v1379
    %v1720 = vpack.c.b16 %v1384, %v1380
    %v1721 = vpack.c.b16 %v1389, %v1385
    %v1722 = vpack.c.b16 %v1390, %v1386
    %v1723 = vpack.c.b16 %v1391, %v1387
    %v1724 = vpack.c.b16 %v1392, %v1388
    %v1725 = vpack.c.b16 %v1397, %v1393
    %v1726 = vpack.c.b16 %v1398, %v1394
    %v1727 = vpack.c.b16 %v1399, %v1395
    %v1728 = vpack.c.b16 %v1400, %v1396
    %v1729 = vpack.c.b16 %v1405, %v1401
    %v1730 = vpack.c.b16 %v1406, %v1402
    %v1731 = vpack.c.b16 %v1407, %v1403
    %v1732 = vpack.c.b16 %v1408, %v1404
    %v1733 = vpack.c.b16 %v1413, %v1409
    %v1734 = vpack.c.b16 %v1414, %v1410
    %v1735 = vpack.c.b16 %v1415, %v1411
    %v1736 = vpack.c.b16 %v1416, %v1412
    %v1737 = vpack.c.b16 %v1421, %v1417
    %v1738 = vpack.c.b16 %v1422, %v1418
    %v1739 = vpack.c.b16 %v1423, %v1419
    %v1740 = vpack.c.b16 %v1424, %v1420
    %v1741 = vpack.c.b16 %v1429, %v1425
    %v1742 = vpack.c.b16 %v1430, %v1426
    %v1743 = vpack.c.b16 %v1431, %v1427
    %v1744 = vpack.c.b16 %v1432, %v1428
    %v1745 = vpack.c.b16 %v1437, %v1433
    %v1746 = vpack.c.b16 %v1438, %v1434
    %v1747 = vpack.c.b16 %v1439, %v1435
    %v1748 = vpack.c.b16 %v1440, %v1436
    %v1749 = vpack.c.b16 %v1445, %v1441
    %v1750 = vpack.c.b16 %v1446, %v1442
    %v1751 = vpack.c.b16 %v1447, %v1443
    %v1752 = vpack.c.b16 %v1448, %v1444
    %v1753 = vpack.c.b16 %v1453, %v1449
    %v1754 = vpack.c.b16 %v1454, %v1450
    %v1755 = vpack.c.b16 %v1455, %v1451
    %v1756 = vpack.c.b16 %v1456, %v1452
    %v1757 = vpack.c.b16 %v1461, %v1457
    %v1758 = vpack.c.b16 %v1462, %v1458
    %v1759 = vpack.c.b16 %v1463, %v1459
    %v1760 = vpack.c.b16 %v1464, %v1460
    %v1761 = vpack.c.b16 %v1469, %v1465
    %v1762 = vpack.c.b16 %v1470, %v1466
    %v1763 = vpack.c.b16 %v1471, %v1467
    %v1764 = vpack.c.b16 %v1472, %v1468
    %v1765 = vpack.c.b16 %v1477, %v1473
    %v1766 = vpack.c.b16 %v1478, %v1474
    %v1767 = vpack.c.b16 %v1479, %v1475
    %v1768 = vpack.c.b16 %v1480, %v1476
    %v1769 = vpack.c.b16 %v1485, %v1481
    %v1770 = vpack.c.b16 %v1486, %v1482
    %v1771 = vpack.c.b16 %v1487, %v1483
    %v1772 = vpack.c.b16 %v1488, %v1484
    %v1773 = vpack.c.b16 %v1493, %v1489
    %v1774 = vpack.c.b16 %v1494, %v1490
    %v1775 = vpack.c.b16 %v1495, %v1491
    %v1776 = vpack.c.b16 %v1496, %v1492
    %v1777 = vpack.c.b16 %v1501, %v1497
    %v1778 = vpack.c.b16 %v1502, %v1498
    %v1779 = vpack.c.b16 %v1503, %v1499
    %v1780 = vpack.c.b16 %v1504, %v1500
    %v1781 = vpack.c.b16 %v1509, %v1505
    %v1782 = vpack.c.b16 %v1510, %v1506
    %v1783 = vpack.c.b16 %v1511, %v1507
    %v1784 = vpack.c.b16 %v1512, %v1508
    %v1785 = vpack.c.b16 %v1517, %v1513
    %v1786 = vpack.c.b16 %v1518, %v1514
    %v1787 = vpack.c.b16 %v1519, %v1515
    %v1788 = vpack.c.b16 %v1520, %v1516
    %v1789 = vpack.c.b16 %v1525, %v1521
    %v1790 = vpack.c.b16 %v1526, %v1522
    %v1791 = vpack.c.b16 %v1527, %v1523
    %v1792 = vpack.c.b16 %v1528, %v1524
    %v1793 = vpack.c.b16 %v1533, %v1529
    %v1794 = vpack.c.b16 %v1534, %v1530
    %v1795 = vpack.c.b16 %v1535, %v1531
    %v1796 = vpack.c.b16 %v1536, %v1532
    %v1797 = vpack.c.b16 %v1541, %v1537
    %v1798 = vpack.c.b16 %v1542, %v1538
    %v1799 = vpack.c.b16 %v1543, %v1539
    %v1800 = vpack.c.b16 %v1544, %v1540
    %v1801 = vpack.c.b16 %v1549, %v1545
    %v1802 = vpack.c.b16 %v1550, %v1546
    %v1803 = vpack.c.b16 %v1551, %v1547
    %v1804 = vpack.c.b16 %v1552, %v1548
    %v1805 = vpack.c.b16 %v1557, %v1553
    %v1806 = vpack.c.b16 %v1558, %v1554
    %v1807 = vpack.c.b16 %v1559, %v1555
    %v1808 = vpack.c.b16 %v1560, %v1556
    %v1809 = vpack.c.b16 %v1565, %v1561
    %v1810 = vpack.c.b16 %v1566, %v1562
    %v1811 = vpack.c.b16 %v1567, %v1563
    %v1812 = vpack.c.b16 %v1568, %v1564
    %v1813 = vpack.c.b16 %v1573, %v1569
    %v1814 = vpack.c.b16 %v1574, %v1570
    %v1815 = vpack.c.b16 %v1575, %v1571
    %v1816 = vpack.c.b16 %v1576, %v1572
    %v1817 = vpack.c.b16 %v1581, %v1577
    %v1818 = vpack.c.b16 %v1582, %v1578
    %v1819 = vpack.c.b16 %v1583, %v1579
    %v1820 = vpack.c.b16 %v1584, %v1580
    %v1821 = vpack.c.b16 %v1589, %v1585
    %v1822 = vpack.c.b16 %v1590, %v1586
    %v1823 = vpack.c.b16 %v1591, %v1587
    %v1824 = vpack.c.b16 %v1592, %v1588
    %v1825 = vpack.c.b16 %v1597, %v1593
    %v1826 = vpack.c.b16 %v1598, %v1594
    %v1827 = vpack.c.b16 %v1599, %v1595
    %v1828 = vpack.c.b16 %v1600, %v1596
    %v1829 = vpack.c.b16 %v1605, %v1601
    %v1830 = vpack.c.b16 %v1606, %v1602
    %v1831 = vpack.c.b16 %v1607, %v1603
    %v1832 = vpack.c.b16 %v1608, %v1604
    %v1833 = vpack.c.b16 %v1613, %v1609
    %v1834 = vpack.c.b16 %v1614, %v1610
    %v1835 = vpack.c.b16 %v1615, %v1611
    %v1836 = vpack.c.b16 %v1616, %v1612
    %v1837 = vpack.c.b16 %v1621, %v1617
    %v1838 = vpack.c.b16 %v1622, %v1618
    %v1839 = vpack.c.b16 %v1623, %v1619
    %v1840 = vpack.c.b16 %v1624, %v1620
    %v1841 = vpack.c.b16 %v1629, %v1625
    %v1842 = vpack.c.b16 %v1630, %v1626
    %v1843 = vpack.c.b16 %v1631, %v1627
    %v1844 = vpack.c.b16 %v1632, %v1628
    %v1845 = vpack.c.b16 %v1637, %v1633
    %v1846 = vpack.c.b16 %v1638, %v1634
    %v1847 = vpack.c.b16 %v1639, %v1635
    %v1848 = vpack.c.b16 %v1640, %v1636
    %v1849 = vpack.c.b16 %v1645, %v1641
    %v1850 = vpack.c.b16 %v1646, %v1642
    %v1851 = vpack.c.b16 %v1647, %v1643
    %v1852 = vpack.c.b16 %v1648, %v1644
    %v1853 = vpack.c.b16 %v1653, %v1649
    %v1854 = vpack.c.b16 %v1654, %v1650
    %v1855 = vpack.c.b16 %v1655, %v1651
    %v1856 = vpack.c.b16 %v1656, %v1652
    %v1857 = vpack.c.b16 %v1661, %v1657
    %v1858 = vpack.c.b16 %v1662, %v1658
    %v1859 = vpack.c.b16 %v1663, %v1659
    %v1860 = vpack.c.b16 %v1664, %v1660
    %v1861 = vpack.c.b16 %v1669, %v1665
    %v1862 = vpack.c.b16 %v1670, %v1666
    %v1863 = vpack.c.b16 %v1671, %v1667
    %v1864 = vpack.c.b16 %v1672, %v1668
    %2057 = vmatprep.subr.bf16.mxu0 %v1674
    %2058 = vmatpush1.bf16.msra.mxu0 %v1673
    %2059 = vmatprep.subr.bf16.mxu0 %v1678
    %2060 = vmatpush1.bf16.msra.mxu0 %v1677
    %2061 = vmatprep.subr.bf16.mxu0 %v1682
    %2062 = vmatpush1.bf16.msra.mxu0 %v1681
    %2063 = vmatprep.subr.bf16.mxu0 %v1686
    %2064 = vmatpush1.bf16.msra.mxu0 %v1685
    %2065 = vmatprep.subr.bf16.mxu0 %v1690
    %2066 = vmatpush1.bf16.msra.mxu0 %v1689
    %2067 = vmatprep.subr.bf16.mxu0 %v1694
    %2068 = vmatpush1.bf16.msra.mxu0 %v1693
    %2069 = vmatprep.subr.bf16.mxu0 %v1698
    %2070 = vmatpush1.bf16.msra.mxu0 %v1697
    %2071 = vmatprep.subr.bf16.mxu0 %v1702
    %2072 = vmatpush1.bf16.msra.mxu0 %v1701
    %2073 = vmatprep.subr.bf16.mxu0 %v1706
    %2074 = vmatpush1.bf16.msra.mxu0 %v1705
    %2075 = vmatprep.subr.bf16.mxu0 %v1710
    %2076 = vmatpush1.bf16.msra.mxu0 %v1709
    %2077 = vmatprep.subr.bf16.mxu0 %v1714
    %2078 = vmatpush1.bf16.msra.mxu0 %v1713
    %2079 = vmatprep.subr.bf16.mxu0 %v1718
    %2080 = vmatpush1.bf16.msra.mxu0 %v1717
    %2081 = vmatprep.subr.bf16.mxu0 %v1722
    %2082 = vmatpush1.bf16.msra.mxu0 %v1721
    %2083 = vmatprep.subr.bf16.mxu0 %v1726
    %2084 = vmatpush1.bf16.msra.mxu0 %v1725
    %2085 = vmatprep.subr.bf16.mxu0 %v1730
    %2086 = vmatpush1.bf16.msra.mxu0 %v1729
    %2087 = vmatprep.subr.bf16.mxu0 %v1734
    %2088 = vmatpush1.bf16.msra.mxu0 %v1733
    %2089 = vmatprep.mubr.bf16.mxu0 %v851
    %2090 = vmatmul.mubr.bf16.gmra.mrb[0].mxu0 %v850
    %v2091 = vpop.f32.mrb[0].mxu0
    %v2092 = vadd.f32 0.0, %v2091
    %v2093 = vpop.f32.mrb[0].mxu0
    %v2094 = vadd.f32 0.0, %v2093
    %v2095 = vpop.f32.mrb[0].mxu0
    %v2096 = vadd.f32 0.0, %v2095
    %v2097 = vpop.f32.mrb[0].mxu0
    %v2098 = vadd.f32 0.0, %v2097
    %2099 = vmatprep.mubr.bf16.mxu0 %v853
    %2100 = vmatmul.mubr.bf16.gmra.mrb[0].mxu0 %v852
    %v2101 = vpop.f32.mrb[0].mxu0
    %v2102 = vadd.f32 0.0, %v2101
    %v2103 = vpop.f32.mrb[0].mxu0
    %v2104 = vadd.f32 0.0, %v2103
    %v2105 = vpop.f32.mrb[0].mxu0
    %v2106 = vadd.f32 0.0, %v2105
    %v2107 = vpop.f32.mrb[0].mxu0
    %v2108 = vadd.f32 0.0, %v2107
    %2109 = vdwg.mxu0
    %2110 = vmatprep.subr.bf16.mxu0 %v1738
    %2111 = vmatpush1.bf16.msra.mxu0 %v1737
    %2112 = vmatprep.subr.bf16.mxu0 %v1742
    %2113 = vmatpush1.bf16.msra.mxu0 %v1741
    %2114 = vmatprep.subr.bf16.mxu0 %v1746
    %2115 = vmatpush1.bf16.msra.mxu0 %v1745
    %2116 = vmatprep.subr.bf16.mxu0 %v1750
    %2117 = vmatpush1.bf16.msra.mxu0 %v1749
    %2118 = vmatprep.subr.bf16.mxu0 %v1754
    %2119 = vmatpush1.bf16.msra.mxu0 %v1753
    %2120 = vmatprep.subr.bf16.mxu0 %v1758
    %2121 = vmatpush1.bf16.msra.mxu0 %v1757
    %2122 = vmatprep.subr.bf16.mxu0 %v1762
    %2123 = vmatpush1.bf16.msra.mxu0 %v1761
    %2124 = vmatprep.subr.bf16.mxu0 %v1766
    %2125 = vmatpush1.bf16.msra.mxu0 %v1765
    %2126 = vmatprep.subr.bf16.mxu0 %v1770
    %2127 = vmatpush1.bf16.msra.mxu0 %v1769
    %2128 = vmatprep.subr.bf16.mxu0 %v1774
    %2129 = vmatpush1.bf16.msra.mxu0 %v1773
    %2130 = vmatprep.subr.bf16.mxu0 %v1778
    %2131 = vmatpush1.bf16.msra.mxu0 %v1777
    %2132 = vmatprep.subr.bf16.mxu0 %v1782
    %2133 = vmatpush1.bf16.msra.mxu0 %v1781
    %2134 = vmatprep.subr.bf16.mxu0 %v1786
    %2135 = vmatpush1.bf16.msra.mxu0 %v1785
    %2136 = vmatprep.subr.bf16.mxu0 %v1790
    %2137 = vmatpush1.bf16.msra.mxu0 %v1789
    %2138 = vmatprep.subr.bf16.mxu0 %v1794
    %2139 = vmatpush1.bf16.msra.mxu0 %v1793
    %2140 = vmatprep.subr.bf16.mxu0 %v1798
    %2141 = vmatpush1.bf16.msra.mxu0 %v1797
    %2142 = vmatprep.mubr.bf16.mxu0 %v237
    %2143 = vmatmul.mubr.bf16.gmra.mrb[0].mxu0 %v236
    %v2144 = vpop.f32.mrb[0].mxu0
    %v2145 = vadd.f32 %v2092, %v2144
    %v2146 = vpop.f32.mrb[0].mxu0
    %v2147 = vadd.f32 %v2094, %v2146
    %v2148 = vpop.f32.mrb[0].mxu0
    %v2149 = vadd.f32 %v2096, %v2148
    %v2150 = vpop.f32.mrb[0].mxu0
    %v2151 = vadd.f32 %v2098, %v2150
    %2152 = vmatprep.mubr.bf16.mxu0 %v239
    %2153 = vmatmul.mubr.bf16.gmra.mrb[0].mxu0 %v238
    %v2154 = vpop.f32.mrb[0].mxu0
    %v2155 = vadd.f32 %v2102, %v2154
    %v2156 = vpop.f32.mrb[0].mxu0
    %v2157 = vadd.f32 %v2104, %v2156
    %v2158 = vpop.f32.mrb[0].mxu0
    %v2159 = vadd.f32 %v2106, %v2158
    %v2160 = vpop.f32.mrb[0].mxu0
    %v2161 = vadd.f32 %v2108, %v2160
    %2162 = vdwg.mxu0
    %2163 = vmatprep.subr.bf16.mxu0 %v1802
    %2164 = vmatpush1.bf16.msra.mxu0 %v1801
    %2165 = vmatprep.subr.bf16.mxu0 %v1806
    %2166 = vmatpush1.bf16.msra.mxu0 %v1805
    %2167 = vmatprep.subr.bf16.mxu0 %v1810
    %2168 = vmatpush1.bf16.msra.mxu0 %v1809
    %2169 = vmatprep.subr.bf16.mxu0 %v1814
    %2170 = vmatpush1.bf16.msra.mxu0 %v1813
    %2171 = vmatprep.subr.bf16.mxu0 %v1818
    %2172 = vmatpush1.bf16.msra.mxu0 %v1817
    %2173 = vmatprep.subr.bf16.mxu0 %v1822
    %2174 = vmatpush1.bf16.msra.mxu0 %v1821
    %2175 = vmatprep.subr.bf16.mxu0 %v1826
    %2176 = vmatpush1.bf16.msra.mxu0 %v1825
    %2177 = vmatprep.subr.bf16.mxu0 %v1830
    %2178 = vmatpush1.bf16.msra.mxu0 %v1829
    %2179 = vmatprep.subr.bf16.mxu0 %v1834
    %2180 = vmatpush1.bf16.msra.mxu0 %v1833
    %2181 = vmatprep.subr.bf16.mxu0 %v1838
    %2182 = vmatpush1.bf16.msra.mxu0 %v1837
    %2183 = vmatprep.subr.bf16.mxu0 %v1842
    %2184 = vmatpush1.bf16.msra.mxu0 %v1841
    %2185 = vmatprep.subr.bf16.mxu0 %v1846
    %2186 = vmatpush1.bf16.msra.mxu0 %v1845
    %2187 = vmatprep.subr.bf16.mxu0 %v1850
    %2188 = vmatpush1.bf16.msra.mxu0 %v1849
    %2189 = vmatprep.subr.bf16.mxu0 %v1854
    %2190 = vmatpush1.bf16.msra.mxu0 %v1853
    %2191 = vmatprep.subr.bf16.mxu0 %v1858
    %2192 = vmatpush1.bf16.msra.mxu0 %v1857
    %2193 = vmatprep.subr.bf16.mxu0 %v1862
    %2194 = vmatpush1.bf16.msra.mxu0 %v1861
    %2195 = vmatprep.mubr.bf16.mxu0 %v902
    %2196 = vmatmul.mubr.bf16.gmra.mrb[0].mxu0 %v901
    %v2197 = vpop.f32.mrb[0].mxu0
    %v2198 = vadd.f32 %v2145, %v2197
    %v2199 = vpop.f32.mrb[0].mxu0
    %v2200 = vadd.f32 %v2147, %v2199
    %v2201 = vpop.f32.mrb[0].mxu0
    %v2202 = vadd.f32 %v2149, %v2201
    %v2203 = vpop.f32.mrb[0].mxu0
    %v2204 = vadd.f32 %v2151, %v2203
    %2205 = vmatprep.mubr.bf16.mxu0 %v904
    %2206 = vmatmul.mubr.bf16.gmra.mrb[0].mxu0 %v903
    %v2207 = vpop.f32.mrb[0].mxu0
    %v2208 = vadd.f32 %v2155, %v2207
    %v2209 = vpop.f32.mrb[0].mxu0
    %v2210 = vadd.f32 %v2157, %v2209
    %v2211 = vpop.f32.mrb[0].mxu0
    %v2212 = vadd.f32 %v2159, %v2211
    %v2213 = vpop.f32.mrb[0].mxu0
    %v2214 = vadd.f32 %v2161, %v2213
    %2215 = vdwg.mxu0
    %2216 = vmatprep.subr.bf16.mxu0 %v1676
    %2217 = vmatpush1.bf16.msra.mxu0 %v1675
    %2218 = vmatprep.subr.bf16.mxu0 %v1680
    %2219 = vmatpush1.bf16.msra.mxu0 %v1679
    %2220 = vmatprep.subr.bf16.mxu0 %v1684
    %2221 = vmatpush1.bf16.msra.mxu0 %v1683
    %2222 = vmatprep.subr.bf16.mxu0 %v1688
    %2223 = vmatpush1.bf16.msra.mxu0 %v1687
    %2224 = vmatprep.subr.bf16.mxu0 %v1692
    %2225 = vmatpush1.bf16.msra.mxu0 %v1691
    %2226 = vmatprep.subr.bf16.mxu0 %v1696
    %2227 = vmatpush1.bf16.msra.mxu0 %v1695
    %2228 = vmatprep.subr.bf16.mxu0 %v1700
    %2229 = vmatpush1.bf16.msra.mxu0 %v1699
    %2230 = vmatprep.subr.bf16.mxu0 %v1704
    %2231 = vmatpush1.bf16.msra.mxu0 %v1703
    %2232 = vmatprep.subr.bf16.mxu0 %v1708
    %2233 = vmatpush1.bf16.msra.mxu0 %v1707
    %2234 = vmatprep.subr.bf16.mxu0 %v1712
    %2235 = vmatpush1.bf16.msra.mxu0 %v1711
    %2236 = vmatprep.subr.bf16.mxu0 %v1716
    %2237 = vmatpush1.bf16.msra.mxu0 %v1715
    %2238 = vmatprep.subr.bf16.mxu0 %v1720
    %2239 = vmatpush1.bf16.msra.mxu0 %v1719
    %2240 = vmatprep.subr.bf16.mxu0 %v1724
    %2241 = vmatpush1.bf16.msra.mxu0 %v1723
    %2242 = vmatprep.subr.bf16.mxu0 %v1728
    %2243 = vmatpush1.bf16.msra.mxu0 %v1727
    %2244 = vmatprep.subr.bf16.mxu0 %v1732
    %2245 = vmatpush1.bf16.msra.mxu0 %v1731
    %2246 = vmatprep.subr.bf16.mxu0 %v1736
    %2247 = vmatpush1.bf16.msra.mxu0 %v1735
    %2248 = vmatprep.mubr.bf16.mxu0 %v851
    %2249 = vmatmul.mubr.bf16.gmra.mrb[0].mxu0 %v850
    %v2250 = vpop.f32.mrb[0].mxu0
    %v2251 = vadd.f32 0.0, %v2250
    %v2252 = vpop.f32.mrb[0].mxu0
    %v2253 = vadd.f32 0.0, %v2252
    %v2254 = vpop.f32.mrb[0].mxu0
    %v2255 = vadd.f32 0.0, %v2254
    %v2256 = vpop.f32.mrb[0].mxu0
    %v2257 = vadd.f32 0.0, %v2256
    %2258 = vmatprep.mubr.bf16.mxu0 %v853
    %2259 = vmatmul.mubr.bf16.gmra.mrb[0].mxu0 %v852
    %v2260 = vpop.f32.mrb[0].mxu0
    %v2261 = vadd.f32 0.0, %v2260
    %v2262 = vpop.f32.mrb[0].mxu0
    %v2263 = vadd.f32 0.0, %v2262
    %v2264 = vpop.f32.mrb[0].mxu0
    %v2265 = vadd.f32 0.0, %v2264
    %v2266 = vpop.f32.mrb[0].mxu0
    %v2267 = vadd.f32 0.0, %v2266
    %2268 = vdwg.mxu0
    %2269 = vmatprep.subr.bf16.mxu0 %v1740
    %2270 = vmatpush1.bf16.msra.mxu0 %v1739
    %2271 = vmatprep.subr.bf16.mxu0 %v1744
    %2272 = vmatpush1.bf16.msra.mxu0 %v1743
    %2273 = vmatprep.subr.bf16.mxu0 %v1748
    %2274 = vmatpush1.bf16.msra.mxu0 %v1747
    %2275 = vmatprep.subr.bf16.mxu0 %v1752
    %2276 = vmatpush1.bf16.msra.mxu0 %v1751
    %2277 = vmatprep.subr.bf16.mxu0 %v1756
    %2278 = vmatpush1.bf16.msra.mxu0 %v1755
    %2279 = vmatprep.subr.bf16.mxu0 %v1760
    %2280 = vmatpush1.bf16.msra.mxu0 %v1759
    %2281 = vmatprep.subr.bf16.mxu0 %v1764
    %2282 = vmatpush1.bf16.msra.mxu0 %v1763
    %2283 = vmatprep.subr.bf16.mxu0 %v1768
    %2284 = vmatpush1.bf16.msra.mxu0 %v1767
    %2285 = vmatprep.subr.bf16.mxu0 %v1772
    %2286 = vmatpush1.bf16.msra.mxu0 %v1771
    %2287 = vmatprep.subr.bf16.mxu0 %v1776
    %2288 = vmatpush1.bf16.msra.mxu0 %v1775
    %2289 = vmatprep.subr.bf16.mxu0 %v1780
    %2290 = vmatpush1.bf16.msra.mxu0 %v1779
    %2291 = vmatprep.subr.bf16.mxu0 %v1784
    %2292 = vmatpush1.bf16.msra.mxu0 %v1783
    %2293 = vmatprep.subr.bf16.mxu0 %v1788
    %2294 = vmatpush1.bf16.msra.mxu0 %v1787
    %2295 = vmatprep.subr.bf16.mxu0 %v1792
    %2296 = vmatpush1.bf16.msra.mxu0 %v1791
    %2297 = vmatprep.subr.bf16.mxu0 %v1796
    %2298 = vmatpush1.bf16.msra.mxu0 %v1795
    %2299 = vmatprep.subr.bf16.mxu0 %v1800
    %2300 = vmatpush1.bf16.msra.mxu0 %v1799
    %2301 = vmatprep.mubr.bf16.mxu0 %v237
    %2302 = vmatmul.mubr.bf16.gmra.mrb[0].mxu0 %v236
    %v2303 = vpop.f32.mrb[0].mxu0
    %v2304 = vadd.f32 %v2251, %v2303
    %v2305 = vpop.f32.mrb[0].mxu0
    %v2306 = vadd.f32 %v2253, %v2305
    %v2307 = vpop.f32.mrb[0].mxu0
    %v2308 = vadd.f32 %v2255, %v2307
    %v2309 = vpop.f32.mrb[0].mxu0
    %v2310 = vadd.f32 %v2257, %v2309
    %2311 = vmatprep.mubr.bf16.mxu0 %v239
    %2312 = vmatmul.mubr.bf16.gmra.mrb[0].mxu0 %v238
    %v2313 = vpop.f32.mrb[0].mxu0
    %v2314 = vadd.f32 %v2261, %v2313
    %v2315 = vpop.f32.mrb[0].mxu0
    %v2316 = vadd.f32 %v2263, %v2315
    %v2317 = vpop.f32.mrb[0].mxu0
    %v2318 = vadd.f32 %v2265, %v2317
    %v2319 = vpop.f32.mrb[0].mxu0
    %v2320 = vadd.f32 %v2267, %v2319
    %2321 = vdwg.mxu0
    %2322 = vmatprep.subr.bf16.mxu0 %v1804
    %2323 = vmatpush1.bf16.msra.mxu0 %v1803
    %2324 = vmatprep.subr.bf16.mxu0 %v1808
    %2325 = vmatpush1.bf16.msra.mxu0 %v1807
    %2326 = vmatprep.subr.bf16.mxu0 %v1812
    %2327 = vmatpush1.bf16.msra.mxu0 %v1811
    %2328 = vmatprep.subr.bf16.mxu0 %v1816
    %2329 = vmatpush1.bf16.msra.mxu0 %v1815
    %2330 = vmatprep.subr.bf16.mxu0 %v1820
    %2331 = vmatpush1.bf16.msra.mxu0 %v1819
    %2332 = vmatprep.subr.bf16.mxu0 %v1824
    %2333 = vmatpush1.bf16.msra.mxu0 %v1823
    %2334 = vmatprep.subr.bf16.mxu0 %v1828
    %2335 = vmatpush1.bf16.msra.mxu0 %v1827
    %2336 = vmatprep.subr.bf16.mxu0 %v1832
    %2337 = vmatpush1.bf16.msra.mxu0 %v1831
    %2338 = vmatprep.subr.bf16.mxu0 %v1836
    %2339 = vmatpush1.bf16.msra.mxu0 %v1835
    %2340 = vmatprep.subr.bf16.mxu0 %v1840
    %2341 = vmatpush1.bf16.msra.mxu0 %v1839
    %2342 = vmatprep.subr.bf16.mxu0 %v1844
    %2343 = vmatpush1.bf16.msra.mxu0 %v1843
    %2344 = vmatprep.subr.bf16.mxu0 %v1848
    %2345 = vmatpush1.bf16.msra.mxu0 %v1847
    %2346 = vmatprep.subr.bf16.mxu0 %v1852
    %2347 = vmatpush1.bf16.msra.mxu0 %v1851
    %2348 = vmatprep.subr.bf16.mxu0 %v1856
    %2349 = vmatpush1.bf16.msra.mxu0 %v1855
    %2350 = vmatprep.subr.bf16.mxu0 %v1860
    %2351 = vmatpush1.bf16.msra.mxu0 %v1859
    %2352 = vmatprep.subr.bf16.mxu0 %v1864
    %2353 = vmatpush1.bf16.msra.mxu0 %v1863
    %2354 = vmatprep.mubr.bf16.mxu0 %v902
    %2355 = vmatmul.mubr.bf16.gmra.mrb[0].mxu0 %v901
    %v2356 = vpop.f32.mrb[0].mxu0
    %v2357 = vadd.f32 %v2304, %v2356
    %v2358 = vpop.f32.mrb[0].mxu0
    %v2359 = vadd.f32 %v2306, %v2358
    %v2360 = vpop.f32.mrb[0].mxu0
    %v2361 = vadd.f32 %v2308, %v2360
    %v2362 = vpop.f32.mrb[0].mxu0
    %v2363 = vadd.f32 %v2310, %v2362
    %2364 = vmatprep.mubr.bf16.mxu0 %v904
    %2365 = vmatmul.mubr.bf16.gmra.mrb[0].mxu0 %v903
    %v2366 = vpop.f32.mrb[0].mxu0
    %v2367 = vadd.f32 %v2314, %v2366
    %v2368 = vpop.f32.mrb[0].mxu0
    %v2369 = vadd.f32 %v2316, %v2368
    %v2370 = vpop.f32.mrb[0].mxu0
    %v2371 = vadd.f32 %v2318, %v2370
    %v2372 = vpop.f32.mrb[0].mxu0
    %v2373 = vadd.f32 %v2320, %v2372
    %2374 = vdwg.mxu0
    %v2375 = vld [vmem:[#allocation8] sm:$0xf]
    %v2377 = vlaneseq
    %v2378 = vshrl.u32 %v2377, 7
    %v2379 = vsub.s32 0, %v2378
    %v2380 = vrot.slane %v2375, %v2379
    %v2381 = vlaneseq
    %v2382 = vshrl.u32 %v2381, 7
    %v2383 = vsub.s32 1, %v2382
    %v2384 = vrot.slane %v2375, %v2383
    %v2385 = vlaneseq
    %v2386 = vshrl.u32 %v2385, 7
    %v2387 = vsub.s32 2, %v2386
    %v2388 = vrot.slane %v2375, %v2387
    %v2389 = vlaneseq
    %v2390 = vshrl.u32 %v2389, 7
    %v2391 = vsub.s32 3, %v2390
    %v2392 = vrot.slane %v2375, %v2391
    %v2397 = vmul.f32 %v2198, %v2380
    %v2398 = vmul.f32 %v2200, %v2384
    %v2399 = vmul.f32 %v2357, %v2388
    %v2400 = vmul.f32 %v2359, %v2392
    %v2401 = vmul.f32 %v2202, %v2380
    %v2402 = vmul.f32 %v2204, %v2384
    %v2403 = vmul.f32 %v2361, %v2388
    %v2404 = vmul.f32 %v2363, %v2392
    %v2405 = vmul.f32 %v2208, %v2380
    %v2406 = vmul.f32 %v2210, %v2384
    %v2407 = vmul.f32 %v2367, %v2388
    %v2408 = vmul.f32 %v2369, %v2392
    %v2409 = vmul.f32 %v2212, %v2380
    %v2410 = vmul.f32 %v2214, %v2384
    %v2411 = vmul.f32 %v2371, %v2388
    %v2412 = vmul.f32 %v2373, %v2392
    %v2413 = vld [vmem:[#allocation10] sm:$0xf]
    %v2415 = vlaneseq
    %v2416 = vshrl.u32 %v2415, 7
    %v2417 = vsub.s32 0, %v2416
    %v2418 = vrot.slane %v2413, %v2417
    %v2419 = vlaneseq
    %v2420 = vshrl.u32 %v2419, 7
    %v2421 = vsub.s32 1, %v2420
    %v2422 = vrot.slane %v2413, %v2421
    %v2423 = vlaneseq
    %v2424 = vshrl.u32 %v2423, 7
    %v2425 = vsub.s32 2, %v2424
    %v2426 = vrot.slane %v2413, %v2425
    %v2427 = vlaneseq
    %v2428 = vshrl.u32 %v2427, 7
    %v2429 = vsub.s32 3, %v2428
    %v2430 = vrot.slane %v2413, %v2429
    %v2435 = vadd.f32 %v2397, %v2418
    %v2436 = vadd.f32 %v2398, %v2422
    %v2437 = vadd.f32 %v2399, %v2426
    %v2438 = vadd.f32 %v2400, %v2430
    %v2439 = vadd.f32 %v2401, %v2418
    %v2440 = vadd.f32 %v2402, %v2422
    %v2441 = vadd.f32 %v2403, %v2426
    %v2442 = vadd.f32 %v2404, %v2430
    %v2443 = vadd.f32 %v2405, %v2418
    %v2444 = vadd.f32 %v2406, %v2422
    %v2445 = vadd.f32 %v2407, %v2426
    %v2446 = vadd.f32 %v2408, %v2430
    %v2447 = vadd.f32 %v2409, %v2418
    %v2448 = vadd.f32 %v2410, %v2422
    %v2449 = vadd.f32 %v2411, %v2426
    %v2450 = vadd.f32 %v2412, %v2430
    %v2451 = vmax.f32 %v2435, 0.0
    %v2452 = vmax.f32 %v2436, 0.0
    %v2453 = vmax.f32 %v2437, 0.0
    %v2454 = vmax.f32 %v2438, 0.0
    %v2455 = vmax.f32 %v2439, 0.0
    %v2456 = vmax.f32 %v2440, 0.0
    %v2457 = vmax.f32 %v2441, 0.0
    %v2458 = vmax.f32 %v2442, 0.0
    %v2459 = vmax.f32 %v2443, 0.0
    %v2460 = vmax.f32 %v2444, 0.0
    %v2461 = vmax.f32 %v2445, 0.0
    %v2462 = vmax.f32 %v2446, 0.0
    %v2463 = vmax.f32 %v2447, 0.0
    %v2464 = vmax.f32 %v2448, 0.0
    %v2465 = vmax.f32 %v2449, 0.0
    %v2466 = vmax.f32 %v2450, 0.0
    %v2467 = vpack.c.bf16 %v2455, %v2451
    %v2468 = vpack.c.bf16 %v2456, %v2452
    %v2469 = vpack.c.bf16 %v2457, %v2453
    %v2470 = vpack.c.bf16 %v2458, %v2454
    %v2471 = vpack.c.bf16 %v2463, %v2459
    %v2472 = vpack.c.bf16 %v2464, %v2460
    %v2473 = vpack.c.bf16 %v2465, %v2461
    %v2474 = vpack.c.bf16 %v2466, %v2462
    %v2476 = vshrl.u32 %v2467, 16
    %v2478 = vrot.slane %v2476, 7
    %v2479 = vshll.u32 %v2467, 16
    %v2481 = vor.u32 %v2478, %v2479
    %v2483 = vshrl.u32 %v2468, 16
    %v2485 = vrot.slane %v2483, 7
    %v2486 = vshll.u32 %v2468, 16
    %v2488 = vor.u32 %v2485, %v2486
    %v2490 = vshrl.u32 %v2469, 16
    %v2492 = vrot.slane %v2490, 7
    %v2493 = vshll.u32 %v2469, 16
    %v2495 = vor.u32 %v2492, %v2493
    %v2497 = vshrl.u32 %v2470, 16
    %v2499 = vrot.slane %v2497, 7
    %v2500 = vshll.u32 %v2470, 16
    %v2502 = vor.u32 %v2499, %v2500
    %v2504 = vshrl.u32 %v2471, 16
    %v2506 = vrot.slane %v2504, 7
    %v2507 = vshll.u32 %v2471, 16
    %v2509 = vor.u32 %v2506, %v2507
    %v2510 = vsel %vm787, %v2478, %v2509
    %v2512 = vshrl.u32 %v2472, 16
    %v2514 = vrot.slane %v2512, 7
    %v2515 = vshll.u32 %v2472, 16
    %v2517 = vor.u32 %v2514, %v2515
    %v2518 = vsel %vm787, %v2485, %v2517
    %v2520 = vshrl.u32 %v2473, 16
    %v2522 = vrot.slane %v2520, 7
    %v2523 = vshll.u32 %v2473, 16
    %v2525 = vor.u32 %v2522, %v2523
    %v2526 = vsel %vm787, %v2492, %v2525
    %v2528 = vshrl.u32 %v2474, 16
    %v2530 = vrot.slane %v2528, 7
    %v2531 = vshll.u32 %v2474, 16
    %v2533 = vor.u32 %v2530, %v2531
    %v2534 = vsel %vm787, %v2499, %v2533
    %v2543 = vsel %vm823, 0, %v2481
    %v2544 = vsel %vm823, 0, %v2488
    %v2545 = vsel %vm823, 0, %v2495
    %v2546 = vsel %vm823, 0, %v2502
    %v2547 = vsel %vm848, 0, %v2543
    %v2548 = vsel %vm848, 0, %v2544
    %v2549 = vsel %vm848, 0, %v2545
    %v2550 = vsel %vm848, 0, %v2546
    %v2551 = vsel %vm849, 0, %v2510
    %v2552 = vsel %vm849, 0, %v2518
    %v2553 = vsel %vm849, 0, %v2526
    %v2554 = vsel %vm849, 0, %v2534
    %v2555 = vrot.slane %v2479, 1
    %v2556 = vor.u32 %v2476, %v2555
    %v2557 = vrot.slane %v2507, 1
    %v2558 = vsel %vm858, %v2556, %v2557
    %v2559 = vrot.slane %v2486, 1
    %v2560 = vor.u32 %v2483, %v2559
    %v2561 = vrot.slane %v2515, 1
    %v2562 = vsel %vm858, %v2560, %v2561
    %v2563 = vrot.slane %v2493, 1
    %v2564 = vor.u32 %v2490, %v2563
    %v2565 = vrot.slane %v2523, 1
    %v2566 = vsel %vm858, %v2564, %v2565
    %v2567 = vrot.slane %v2500, 1
    %v2568 = vor.u32 %v2497, %v2567
    %v2569 = vrot.slane %v2531, 1
    %v2570 = vsel %vm858, %v2568, %v2569
    %v2571 = vor.u32 %v2504, %v2557
    %v2572 = vor.u32 %v2512, %v2561
    %v2573 = vor.u32 %v2520, %v2565
    %v2574 = vor.u32 %v2528, %v2569
    %v2583 = vsel %vm874, %v2571, 0
    %v2584 = vsel %vm874, %v2572, 0
    %v2585 = vsel %vm874, %v2573, 0
    %v2586 = vsel %vm874, %v2574, 0
    %v2587 = vsel %vm899, 0, %v2558
    %v2588 = vsel %vm899, 0, %v2562
    %v2589 = vsel %vm899, 0, %v2566
    %v2590 = vsel %vm899, 0, %v2570
    %v2591 = vsel %vm900, 0, %v2583
    %v2592 = vsel %vm900, 0, %v2584
    %v2593 = vsel %vm900, 0, %v2585
    %v2594 = vsel %vm900, 0, %v2586
    %v2595 = vld [vmem:[#allocation13] sm:$0xff]
    %v2596 = vld [vmem:[#allocation13 + $0x8] sm:$0xff]
    %v2597 = vld [vmem:[#allocation13 + $0x10] sm:$0xff]
    %v2598 = vld [vmem:[#allocation13 + $0x18] sm:$0xff]
    %v2599 = vld [vmem:[#allocation13 + $0x20] sm:$0xff]
    %v2600 = vld [vmem:[#allocation13 + $0x28] sm:$0xff]
    %v2601 = vld [vmem:[#allocation13 + $0x30] sm:$0xff]
    %v2602 = vld [vmem:[#allocation13 + $0x38] sm:$0xff]
    %v2603 = vld [vmem:[#allocation13 + $0x40] sm:$0xff]
    %v2604 = vld [vmem:[#allocation13 + $0x48] sm:$0xff]
    %v2605 = vld [vmem:[#allocation13 + $0x50] sm:$0xff]
    %v2606 = vld [vmem:[#allocation13 + $0x58] sm:$0xff]
    %v2607 = vld [vmem:[#allocation13 + $0x60] sm:$0xff]
    %v2608 = vld [vmem:[#allocation13 + $0x68] sm:$0xff]
    %v2609 = vld [vmem:[#allocation13 + $0x70] sm:$0xff]
    %v2610 = vld [vmem:[#allocation13 + $0x78] sm:$0xff]
    %v2611 = vld [vmem:[#allocation13 + $0x80] sm:$0xff]
    %v2612 = vld [vmem:[#allocation13 + $0x88] sm:$0xff]
    %v2613 = vld [vmem:[#allocation13 + $0x90] sm:$0xff]
    %v2614 = vld [vmem:[#allocation13 + $0x98] sm:$0xff]
    %v2615 = vld [vmem:[#allocation13 + $0xa0] sm:$0xff]
    %v2616 = vld [vmem:[#allocation13 + $0xa8] sm:$0xff]
    %v2617 = vld [vmem:[#allocation13 + $0xb0] sm:$0xff]
    %v2618 = vld [vmem:[#allocation13 + $0xb8] sm:$0xff]
    %v2619 = vld [vmem:[#allocation13 + $0xc0] sm:$0xff]
    %v2620 = vld [vmem:[#allocation13 + $0xc8] sm:$0xff]
    %v2621 = vld [vmem:[#allocation13 + $0xd0] sm:$0xff]
    %v2622 = vld [vmem:[#allocation13 + $0xd8] sm:$0xff]
    %v2623 = vld [vmem:[#allocation13 + $0xe0] sm:$0xff]
    %v2624 = vld [vmem:[#allocation13 + $0xe8] sm:$0xff]
    %v2625 = vld [vmem:[#allocation13 + $0xf0] sm:$0xff]
    %v2626 = vld [vmem:[#allocation13 + $0xf8] sm:$0xff]
    %v2627 = vld [vmem:[#allocation13 + $0x100] sm:$0xff]
    %v2628 = vld [vmem:[#allocation13 + $0x108] sm:$0xff]
    %v2629 = vld [vmem:[#allocation13 + $0x110] sm:$0xff]
    %v2630 = vld [vmem:[#allocation13 + $0x118] sm:$0xff]
    %v2631 = vld [vmem:[#allocation13 + $0x120] sm:$0xff]
    %v2632 = vld [vmem:[#allocation13 + $0x128] sm:$0xff]
    %v2633 = vld [vmem:[#allocation13 + $0x130] sm:$0xff]
    %v2634 = vld [vmem:[#allocation13 + $0x138] sm:$0xff]
    %v2635 = vld [vmem:[#allocation13 + $0x140] sm:$0xff]
    %v2636 = vld [vmem:[#allocation13 + $0x148] sm:$0xff]
    %v2637 = vld [vmem:[#allocation13 + $0x150] sm:$0xff]
    %v2638 = vld [vmem:[#allocation13 + $0x158] sm:$0xff]
    %v2639 = vld [vmem:[#allocation13 + $0x160] sm:$0xff]
    %v2640 = vld [vmem:[#allocation13 + $0x168] sm:$0xff]
    %v2641 = vld [vmem:[#allocation13 + $0x170] sm:$0xff]
    %v2642 = vld [vmem:[#allocation13 + $0x178] sm:$0xff]
    %v2643 = vld [vmem:[#allocation13 + $0x180] sm:$0xff]
    %v2644 = vld [vmem:[#allocation13 + $0x188] sm:$0xff]
    %v2645 = vld [vmem:[#allocation13 + $0x190] sm:$0xff]
    %v2646 = vld [vmem:[#allocation13 + $0x198] sm:$0xff]
    %v2647 = vld [vmem:[#allocation13 + $0x1a0] sm:$0xff]
    %v2648 = vld [vmem:[#allocation13 + $0x1a8] sm:$0xff]
    %v2649 = vld [vmem:[#allocation13 + $0x1b0] sm:$0xff]
    %v2650 = vld [vmem:[#allocation13 + $0x1b8] sm:$0xff]
    %v2651 = vld [vmem:[#allocation13 + $0x1c0] sm:$0xff]
    %v2652 = vld [vmem:[#allocation13 + $0x1c8] sm:$0xff]
    %v2653 = vld [vmem:[#allocation13 + $0x1d0] sm:$0xff]
    %v2654 = vld [vmem:[#allocation13 + $0x1d8] sm:$0xff]
    %v2655 = vld [vmem:[#allocation13 + $0x1e0] sm:$0xff]
    %v2656 = vld [vmem:[#allocation13 + $0x1e8] sm:$0xff]
    %v2657 = vld [vmem:[#allocation13 + $0x1f0] sm:$0xff]
    %v2658 = vld [vmem:[#allocation13 + $0x1f8] sm:$0xff]
    %v2659 = vld [vmem:[#allocation13 + $0x200] sm:$0xff]
    %v2660 = vld [vmem:[#allocation13 + $0x208] sm:$0xff]
    %v2661 = vld [vmem:[#allocation13 + $0x210] sm:$0xff]
    %v2662 = vld [vmem:[#allocation13 + $0x218] sm:$0xff]
    %v2663 = vld [vmem:[#allocation13 + $0x220] sm:$0xff]
    %v2664 = vld [vmem:[#allocation13 + $0x228] sm:$0xff]
    %v2665 = vld [vmem:[#allocation13 + $0x230] sm:$0xff]
    %v2666 = vld [vmem:[#allocation13 + $0x238] sm:$0xff]
    %v2667 = vld [vmem:[#allocation13 + $0x240] sm:$0xff]
    %v2668 = vld [vmem:[#allocation13 + $0x248] sm:$0xff]
    %v2669 = vld [vmem:[#allocation13 + $0x250] sm:$0xff]
    %v2670 = vld [vmem:[#allocation13 + $0x258] sm:$0xff]
    %v2671 = vld [vmem:[#allocation13 + $0x260] sm:$0xff]
    %v2672 = vld [vmem:[#allocation13 + $0x268] sm:$0xff]
    %v2673 = vld [vmem:[#allocation13 + $0x270] sm:$0xff]
    %v2674 = vld [vmem:[#allocation13 + $0x278] sm:$0xff]
    %v2675 = vld [vmem:[#allocation13 + $0x280] sm:$0xff]
    %v2676 = vld [vmem:[#allocation13 + $0x288] sm:$0xff]
    %v2677 = vld [vmem:[#allocation13 + $0x290] sm:$0xff]
    %v2678 = vld [vmem:[#allocation13 + $0x298] sm:$0xff]
    %v2679 = vld [vmem:[#allocation13 + $0x2a0] sm:$0xff]
    %v2680 = vld [vmem:[#allocation13 + $0x2a8] sm:$0xff]
    %v2681 = vld [vmem:[#allocation13 + $0x2b0] sm:$0xff]
    %v2682 = vld [vmem:[#allocation13 + $0x2b8] sm:$0xff]
    %v2683 = vld [vmem:[#allocation13 + $0x2c0] sm:$0xff]
    %v2684 = vld [vmem:[#allocation13 + $0x2c8] sm:$0xff]
    %v2685 = vld [vmem:[#allocation13 + $0x2d0] sm:$0xff]
    %v2686 = vld [vmem:[#allocation13 + $0x2d8] sm:$0xff]
    %v2687 = vld [vmem:[#allocation13 + $0x2e0] sm:$0xff]
    %v2688 = vld [vmem:[#allocation13 + $0x2e8] sm:$0xff]
    %v2689 = vld [vmem:[#allocation13 + $0x2f0] sm:$0xff]
    %v2690 = vld [vmem:[#allocation13 + $0x2f8] sm:$0xff]
    %v2691 = vld [vmem:[#allocation13 + $0x300] sm:$0xff]
    %v2692 = vld [vmem:[#allocation13 + $0x308] sm:$0xff]
    %v2693 = vld [vmem:[#allocation13 + $0x310] sm:$0xff]
    %v2694 = vld [vmem:[#allocation13 + $0x318] sm:$0xff]
    %v2695 = vld [vmem:[#allocation13 + $0x320] sm:$0xff]
    %v2696 = vld [vmem:[#allocation13 + $0x328] sm:$0xff]
    %v2697 = vld [vmem:[#allocation13 + $0x330] sm:$0xff]
    %v2698 = vld [vmem:[#allocation13 + $0x338] sm:$0xff]
    %v2699 = vld [vmem:[#allocation13 + $0x340] sm:$0xff]
    %v2700 = vld [vmem:[#allocation13 + $0x348] sm:$0xff]
    %v2701 = vld [vmem:[#allocation13 + $0x350] sm:$0xff]
    %v2702 = vld [vmem:[#allocation13 + $0x358] sm:$0xff]
    %v2703 = vld [vmem:[#allocation13 + $0x360] sm:$0xff]
    %v2704 = vld [vmem:[#allocation13 + $0x368] sm:$0xff]
    %v2705 = vld [vmem:[#allocation13 + $0x370] sm:$0xff]
    %v2706 = vld [vmem:[#allocation13 + $0x378] sm:$0xff]
    %v2707 = vld [vmem:[#allocation13 + $0x380] sm:$0xff]
    %v2708 = vld [vmem:[#allocation13 + $0x388] sm:$0xff]
    %v2709 = vld [vmem:[#allocation13 + $0x390] sm:$0xff]
    %v2710 = vld [vmem:[#allocation13 + $0x398] sm:$0xff]
    %v2711 = vld [vmem:[#allocation13 + $0x3a0] sm:$0xff]
    %v2712 = vld [vmem:[#allocation13 + $0x3a8] sm:$0xff]
    %v2713 = vld [vmem:[#allocation13 + $0x3b0] sm:$0xff]
    %v2714 = vld [vmem:[#allocation13 + $0x3b8] sm:$0xff]
    %v2715 = vld [vmem:[#allocation13 + $0x3c0] sm:$0xff]
    %v2716 = vld [vmem:[#allocation13 + $0x3c8] sm:$0xff]
    %v2717 = vld [vmem:[#allocation13 + $0x3d0] sm:$0xff]
    %v2718 = vld [vmem:[#allocation13 + $0x3d8] sm:$0xff]
    %v2719 = vld [vmem:[#allocation13 + $0x3e0] sm:$0xff]
    %v2720 = vld [vmem:[#allocation13 + $0x3e8] sm:$0xff]
    %v2721 = vld [vmem:[#allocation13 + $0x3f0] sm:$0xff]
    %v2722 = vld [vmem:[#allocation13 + $0x3f8] sm:$0xff]
    %v2723 = vld [vmem:[#allocation13 + $0x400] sm:$0xff]
    %v2724 = vld [vmem:[#allocation13 + $0x408] sm:$0xff]
    %v2725 = vld [vmem:[#allocation13 + $0x410] sm:$0xff]
    %v2726 = vld [vmem:[#allocation13 + $0x418] sm:$0xff]
    %v2727 = vld [vmem:[#allocation13 + $0x420] sm:$0xff]
    %v2728 = vld [vmem:[#allocation13 + $0x428] sm:$0xff]
    %v2729 = vld [vmem:[#allocation13 + $0x430] sm:$0xff]
    %v2730 = vld [vmem:[#allocation13 + $0x438] sm:$0xff]
    %v2731 = vld [vmem:[#allocation13 + $0x440] sm:$0xff]
    %v2732 = vld [vmem:[#allocation13 + $0x448] sm:$0xff]
    %v2733 = vld [vmem:[#allocation13 + $0x450] sm:$0xff]
    %v2734 = vld [vmem:[#allocation13 + $0x458] sm:$0xff]
    %v2735 = vld [vmem:[#allocation13 + $0x460] sm:$0xff]
    %v2736 = vld [vmem:[#allocation13 + $0x468] sm:$0xff]
    %v2737 = vld [vmem:[#allocation13 + $0x470] sm:$0xff]
    %v2738 = vld [vmem:[#allocation13 + $0x478] sm:$0xff]
    %v2739 = vld [vmem:[#allocation13 + $0x480] sm:$0xff]
    %v2740 = vld [vmem:[#allocation13 + $0x488] sm:$0xff]
    %v2741 = vld [vmem:[#allocation13 + $0x490] sm:$0xff]
    %v2742 = vld [vmem:[#allocation13 + $0x498] sm:$0xff]
    %v2743 = vld [vmem:[#allocation13 + $0x4a0] sm:$0xff]
    %v2744 = vld [vmem:[#allocation13 + $0x4a8] sm:$0xff]
    %v2745 = vld [vmem:[#allocation13 + $0x4b0] sm:$0xff]
    %v2746 = vld [vmem:[#allocation13 + $0x4b8] sm:$0xff]
    %v2747 = vld [vmem:[#allocation13 + $0x4c0] sm:$0xff]
    %v2748 = vld [vmem:[#allocation13 + $0x4c8] sm:$0xff]
    %v2749 = vld [vmem:[#allocation13 + $0x4d0] sm:$0xff]
    %v2750 = vld [vmem:[#allocation13 + $0x4d8] sm:$0xff]
    %v2751 = vld [vmem:[#allocation13 + $0x4e0] sm:$0xff]
    %v2752 = vld [vmem:[#allocation13 + $0x4e8] sm:$0xff]
    %v2753 = vld [vmem:[#allocation13 + $0x4f0] sm:$0xff]
    %v2754 = vld [vmem:[#allocation13 + $0x4f8] sm:$0xff]
    %v2755 = vld [vmem:[#allocation13 + $0x500] sm:$0xff]
    %v2756 = vld [vmem:[#allocation13 + $0x508] sm:$0xff]
    %v2757 = vld [vmem:[#allocation13 + $0x510] sm:$0xff]
    %v2758 = vld [vmem:[#allocation13 + $0x518] sm:$0xff]
    %v2759 = vld [vmem:[#allocation13 + $0x520] sm:$0xff]
    %v2760 = vld [vmem:[#allocation13 + $0x528] sm:$0xff]
    %v2761 = vld [vmem:[#allocation13 + $0x530] sm:$0xff]
    %v2762 = vld [vmem:[#allocation13 + $0x538] sm:$0xff]
    %v2763 = vld [vmem:[#allocation13 + $0x540] sm:$0xff]
    %v2764 = vld [vmem:[#allocation13 + $0x548] sm:$0xff]
    %v2765 = vld [vmem:[#allocation13 + $0x550] sm:$0xff]
    %v2766 = vld [vmem:[#allocation13 + $0x558] sm:$0xff]
    %v2767 = vld [vmem:[#allocation13 + $0x560] sm:$0xff]
    %v2768 = vld [vmem:[#allocation13 + $0x568] sm:$0xff]
    %v2769 = vld [vmem:[#allocation13 + $0x570] sm:$0xff]
    %v2770 = vld [vmem:[#allocation13 + $0x578] sm:$0xff]
    %v2771 = vld [vmem:[#allocation13 + $0x580] sm:$0xff]
    %v2772 = vld [vmem:[#allocation13 + $0x588] sm:$0xff]
    %v2773 = vld [vmem:[#allocation13 + $0x590] sm:$0xff]
    %v2774 = vld [vmem:[#allocation13 + $0x598] sm:$0xff]
    %v2775 = vld [vmem:[#allocation13 + $0x5a0] sm:$0xff]
    %v2776 = vld [vmem:[#allocation13 + $0x5a8] sm:$0xff]
    %v2777 = vld [vmem:[#allocation13 + $0x5b0] sm:$0xff]
    %v2778 = vld [vmem:[#allocation13 + $0x5b8] sm:$0xff]
    %v2779 = vld [vmem:[#allocation13 + $0x5c0] sm:$0xff]
    %v2780 = vld [vmem:[#allocation13 + $0x5c8] sm:$0xff]
    %v2781 = vld [vmem:[#allocation13 + $0x5d0] sm:$0xff]
    %v2782 = vld [vmem:[#allocation13 + $0x5d8] sm:$0xff]
    %v2783 = vld [vmem:[#allocation13 + $0x5e0] sm:$0xff]
    %v2784 = vld [vmem:[#allocation13 + $0x5e8] sm:$0xff]
    %v2785 = vld [vmem:[#allocation13 + $0x5f0] sm:$0xff]
    %v2786 = vld [vmem:[#allocation13 + $0x5f8] sm:$0xff]
    %v2787 = vld [vmem:[#allocation13 + $0x600] sm:$0xff]
    %v2788 = vld [vmem:[#allocation13 + $0x608] sm:$0xff]
    %v2789 = vld [vmem:[#allocation13 + $0x610] sm:$0xff]
    %v2790 = vld [vmem:[#allocation13 + $0x618] sm:$0xff]
    %v2791 = vld [vmem:[#allocation13 + $0x620] sm:$0xff]
    %v2792 = vld [vmem:[#allocation13 + $0x628] sm:$0xff]
    %v2793 = vld [vmem:[#allocation13 + $0x630] sm:$0xff]
    %v2794 = vld [vmem:[#allocation13 + $0x638] sm:$0xff]
    %v2795 = vld [vmem:[#allocation13 + $0x640] sm:$0xff]
    %v2796 = vld [vmem:[#allocation13 + $0x648] sm:$0xff]
    %v2797 = vld [vmem:[#allocation13 + $0x650] sm:$0xff]
    %v2798 = vld [vmem:[#allocation13 + $0x658] sm:$0xff]
    %v2799 = vld [vmem:[#allocation13 + $0x660] sm:$0xff]
    %v2800 = vld [vmem:[#allocation13 + $0x668] sm:$0xff]
    %v2801 = vld [vmem:[#allocation13 + $0x670] sm:$0xff]
    %v2802 = vld [vmem:[#allocation13 + $0x678] sm:$0xff]
    %v2803 = vld [vmem:[#allocation13 + $0x680] sm:$0xff]
    %v2804 = vld [vmem:[#allocation13 + $0x688] sm:$0xff]
    %v2805 = vld [vmem:[#allocation13 + $0x690] sm:$0xff]
    %v2806 = vld [vmem:[#allocation13 + $0x698] sm:$0xff]
    %v2807 = vld [vmem:[#allocation13 + $0x6a0] sm:$0xff]
    %v2808 = vld [vmem:[#allocation13 + $0x6a8] sm:$0xff]
    %v2809 = vld [vmem:[#allocation13 + $0x6b0] sm:$0xff]
    %v2810 = vld [vmem:[#allocation13 + $0x6b8] sm:$0xff]
    %v2811 = vld [vmem:[#allocation13 + $0x6c0] sm:$0xff]
    %v2812 = vld [vmem:[#allocation13 + $0x6c8] sm:$0xff]
    %v2813 = vld [vmem:[#allocation13 + $0x6d0] sm:$0xff]
    %v2814 = vld [vmem:[#allocation13 + $0x6d8] sm:$0xff]
    %v2815 = vld [vmem:[#allocation13 + $0x6e0] sm:$0xff]
    %v2816 = vld [vmem:[#allocation13 + $0x6e8] sm:$0xff]
    %v2817 = vld [vmem:[#allocation13 + $0x6f0] sm:$0xff]
    %v2818 = vld [vmem:[#allocation13 + $0x6f8] sm:$0xff]
    %v2819 = vld [vmem:[#allocation13 + $0x700] sm:$0xff]
    %v2820 = vld [vmem:[#allocation13 + $0x708] sm:$0xff]
    %v2821 = vld [vmem:[#allocation13 + $0x710] sm:$0xff]
    %v2822 = vld [vmem:[#allocation13 + $0x718] sm:$0xff]
    %v2823 = vld [vmem:[#allocation13 + $0x720] sm:$0xff]
    %v2824 = vld [vmem:[#allocation13 + $0x728] sm:$0xff]
    %v2825 = vld [vmem:[#allocation13 + $0x730] sm:$0xff]
    %v2826 = vld [vmem:[#allocation13 + $0x738] sm:$0xff]
    %v2827 = vld [vmem:[#allocation13 + $0x740] sm:$0xff]
    %v2828 = vld [vmem:[#allocation13 + $0x748] sm:$0xff]
    %v2829 = vld [vmem:[#allocation13 + $0x750] sm:$0xff]
    %v2830 = vld [vmem:[#allocation13 + $0x758] sm:$0xff]
    %v2831 = vld [vmem:[#allocation13 + $0x760] sm:$0xff]
    %v2832 = vld [vmem:[#allocation13 + $0x768] sm:$0xff]
    %v2833 = vld [vmem:[#allocation13 + $0x770] sm:$0xff]
    %v2834 = vld [vmem:[#allocation13 + $0x778] sm:$0xff]
    %v2835 = vld [vmem:[#allocation13 + $0x780] sm:$0xff]
    %v2836 = vld [vmem:[#allocation13 + $0x788] sm:$0xff]
    %v2837 = vld [vmem:[#allocation13 + $0x790] sm:$0xff]
    %v2838 = vld [vmem:[#allocation13 + $0x798] sm:$0xff]
    %v2839 = vld [vmem:[#allocation13 + $0x7a0] sm:$0xff]
    %v2840 = vld [vmem:[#allocation13 + $0x7a8] sm:$0xff]
    %v2841 = vld [vmem:[#allocation13 + $0x7b0] sm:$0xff]
    %v2842 = vld [vmem:[#allocation13 + $0x7b8] sm:$0xff]
    %v2843 = vld [vmem:[#allocation13 + $0x7c0] sm:$0xff]
    %v2844 = vld [vmem:[#allocation13 + $0x7c8] sm:$0xff]
    %v2845 = vld [vmem:[#allocation13 + $0x7d0] sm:$0xff]
    %v2846 = vld [vmem:[#allocation13 + $0x7d8] sm:$0xff]
    %v2847 = vld [vmem:[#allocation13 + $0x7e0] sm:$0xff]
    %v2848 = vld [vmem:[#allocation13 + $0x7e8] sm:$0xff]
    %v2849 = vld [vmem:[#allocation13 + $0x7f0] sm:$0xff]
    %v2850 = vld [vmem:[#allocation13 + $0x7f8] sm:$0xff]
    %v2851 = vld [vmem:[#allocation13 + $0x800] sm:$0xff]
    %v2852 = vld [vmem:[#allocation13 + $0x808] sm:$0xff]
    %v2853 = vld [vmem:[#allocation13 + $0x810] sm:$0xff]
    %v2854 = vld [vmem:[#allocation13 + $0x818] sm:$0xff]
    %v2855 = vld [vmem:[#allocation13 + $0x820] sm:$0xff]
    %v2856 = vld [vmem:[#allocation13 + $0x828] sm:$0xff]
    %v2857 = vld [vmem:[#allocation13 + $0x830] sm:$0xff]
    %v2858 = vld [vmem:[#allocation13 + $0x838] sm:$0xff]
    %v2859 = vld [vmem:[#allocation13 + $0x840] sm:$0xff]
    %v2860 = vld [vmem:[#allocation13 + $0x848] sm:$0xff]
    %v2861 = vld [vmem:[#allocation13 + $0x850] sm:$0xff]
    %v2862 = vld [vmem:[#allocation13 + $0x858] sm:$0xff]
    %v2863 = vld [vmem:[#allocation13 + $0x860] sm:$0xff]
    %v2864 = vld [vmem:[#allocation13 + $0x868] sm:$0xff]
    %v2865 = vld [vmem:[#allocation13 + $0x870] sm:$0xff]
    %v2866 = vld [vmem:[#allocation13 + $0x878] sm:$0xff]
    %v2867 = vld [vmem:[#allocation13 + $0x880] sm:$0xff]
    %v2868 = vld [vmem:[#allocation13 + $0x888] sm:$0xff]
    %v2869 = vld [vmem:[#allocation13 + $0x890] sm:$0xff]
    %v2870 = vld [vmem:[#allocation13 + $0x898] sm:$0xff]
    %v2871 = vld [vmem:[#allocation13 + $0x8a0] sm:$0xff]
    %v2872 = vld [vmem:[#allocation13 + $0x8a8] sm:$0xff]
    %v2873 = vld [vmem:[#allocation13 + $0x8b0] sm:$0xff]
    %v2874 = vld [vmem:[#allocation13 + $0x8b8] sm:$0xff]
    %v2875 = vld [vmem:[#allocation13 + $0x8c0] sm:$0xff]
    %v2876 = vld [vmem:[#allocation13 + $0x8c8] sm:$0xff]
    %v2877 = vld [vmem:[#allocation13 + $0x8d0] sm:$0xff]
    %v2878 = vld [vmem:[#allocation13 + $0x8d8] sm:$0xff]
    %v2879 = vld [vmem:[#allocation13 + $0x8e0] sm:$0xff]
    %v2880 = vld [vmem:[#allocation13 + $0x8e8] sm:$0xff]
    %v2881 = vld [vmem:[#allocation13 + $0x8f0] sm:$0xff]
    %v2882 = vld [vmem:[#allocation13 + $0x8f8] sm:$0xff]
    %v2883 = vld [vmem:[#allocation13 + $0x900] sm:$0xff]
    %v2884 = vld [vmem:[#allocation13 + $0x908] sm:$0xff]
    %v2885 = vld [vmem:[#allocation13 + $0x910] sm:$0xff]
    %v2886 = vld [vmem:[#allocation13 + $0x918] sm:$0xff]
    %v2887 = vld [vmem:[#allocation13 + $0x920] sm:$0xff]
    %v2888 = vld [vmem:[#allocation13 + $0x928] sm:$0xff]
    %v2889 = vld [vmem:[#allocation13 + $0x930] sm:$0xff]
    %v2890 = vld [vmem:[#allocation13 + $0x938] sm:$0xff]
    %v2891 = vld [vmem:[#allocation13 + $0x940] sm:$0xff]
    %v2892 = vld [vmem:[#allocation13 + $0x948] sm:$0xff]
    %v2893 = vld [vmem:[#allocation13 + $0x950] sm:$0xff]
    %v2894 = vld [vmem:[#allocation13 + $0x958] sm:$0xff]
    %v2895 = vld [vmem:[#allocation13 + $0x960] sm:$0xff]
    %v2896 = vld [vmem:[#allocation13 + $0x968] sm:$0xff]
    %v2897 = vld [vmem:[#allocation13 + $0x970] sm:$0xff]
    %v2898 = vld [vmem:[#allocation13 + $0x978] sm:$0xff]
    %v2899 = vld [vmem:[#allocation13 + $0x980] sm:$0xff]
    %v2900 = vld [vmem:[#allocation13 + $0x988] sm:$0xff]
    %v2901 = vld [vmem:[#allocation13 + $0x990] sm:$0xff]
    %v2902 = vld [vmem:[#allocation13 + $0x998] sm:$0xff]
    %v2903 = vld [vmem:[#allocation13 + $0x9a0] sm:$0xff]
    %v2904 = vld [vmem:[#allocation13 + $0x9a8] sm:$0xff]
    %v2905 = vld [vmem:[#allocation13 + $0x9b0] sm:$0xff]
    %v2906 = vld [vmem:[#allocation13 + $0x9b8] sm:$0xff]
    %v2907 = vld [vmem:[#allocation13 + $0x9c0] sm:$0xff]
    %v2908 = vld [vmem:[#allocation13 + $0x9c8] sm:$0xff]
    %v2909 = vld [vmem:[#allocation13 + $0x9d0] sm:$0xff]
    %v2910 = vld [vmem:[#allocation13 + $0x9d8] sm:$0xff]
    %v2911 = vld [vmem:[#allocation13 + $0x9e0] sm:$0xff]
    %v2912 = vld [vmem:[#allocation13 + $0x9e8] sm:$0xff]
    %v2913 = vld [vmem:[#allocation13 + $0x9f0] sm:$0xff]
    %v2914 = vld [vmem:[#allocation13 + $0x9f8] sm:$0xff]
    %v2915 = vld [vmem:[#allocation13 + $0xa00] sm:$0xff]
    %v2916 = vld [vmem:[#allocation13 + $0xa08] sm:$0xff]
    %v2917 = vld [vmem:[#allocation13 + $0xa10] sm:$0xff]
    %v2918 = vld [vmem:[#allocation13 + $0xa18] sm:$0xff]
    %v2919 = vld [vmem:[#allocation13 + $0xa20] sm:$0xff]
    %v2920 = vld [vmem:[#allocation13 + $0xa28] sm:$0xff]
    %v2921 = vld [vmem:[#allocation13 + $0xa30] sm:$0xff]
    %v2922 = vld [vmem:[#allocation13 + $0xa38] sm:$0xff]
    %v2923 = vld [vmem:[#allocation13 + $0xa40] sm:$0xff]
    %v2924 = vld [vmem:[#allocation13 + $0xa48] sm:$0xff]
    %v2925 = vld [vmem:[#allocation13 + $0xa50] sm:$0xff]
    %v2926 = vld [vmem:[#allocation13 + $0xa58] sm:$0xff]
    %v2927 = vld [vmem:[#allocation13 + $0xa60] sm:$0xff]
    %v2928 = vld [vmem:[#allocation13 + $0xa68] sm:$0xff]
    %v2929 = vld [vmem:[#allocation13 + $0xa70] sm:$0xff]
    %v2930 = vld [vmem:[#allocation13 + $0xa78] sm:$0xff]
    %v2931 = vld [vmem:[#allocation13 + $0xa80] sm:$0xff]
    %v2932 = vld [vmem:[#allocation13 + $0xa88] sm:$0xff]
    %v2933 = vld [vmem:[#allocation13 + $0xa90] sm:$0xff]
    %v2934 = vld [vmem:[#allocation13 + $0xa98] sm:$0xff]
    %v2935 = vld [vmem:[#allocation13 + $0xaa0] sm:$0xff]
    %v2936 = vld [vmem:[#allocation13 + $0xaa8] sm:$0xff]
    %v2937 = vld [vmem:[#allocation13 + $0xab0] sm:$0xff]
    %v2938 = vld [vmem:[#allocation13 + $0xab8] sm:$0xff]
    %v2939 = vld [vmem:[#allocation13 + $0xac0] sm:$0xff]
    %v2940 = vld [vmem:[#allocation13 + $0xac8] sm:$0xff]
    %v2941 = vld [vmem:[#allocation13 + $0xad0] sm:$0xff]
    %v2942 = vld [vmem:[#allocation13 + $0xad8] sm:$0xff]
    %v2943 = vld [vmem:[#allocation13 + $0xae0] sm:$0xff]
    %v2944 = vld [vmem:[#allocation13 + $0xae8] sm:$0xff]
    %v2945 = vld [vmem:[#allocation13 + $0xaf0] sm:$0xff]
    %v2946 = vld [vmem:[#allocation13 + $0xaf8] sm:$0xff]
    %v2947 = vld [vmem:[#allocation13 + $0xb00] sm:$0xff]
    %v2948 = vld [vmem:[#allocation13 + $0xb08] sm:$0xff]
    %v2949 = vld [vmem:[#allocation13 + $0xb10] sm:$0xff]
    %v2950 = vld [vmem:[#allocation13 + $0xb18] sm:$0xff]
    %v2951 = vld [vmem:[#allocation13 + $0xb20] sm:$0xff]
    %v2952 = vld [vmem:[#allocation13 + $0xb28] sm:$0xff]
    %v2953 = vld [vmem:[#allocation13 + $0xb30] sm:$0xff]
    %v2954 = vld [vmem:[#allocation13 + $0xb38] sm:$0xff]
    %v2955 = vld [vmem:[#allocation13 + $0xb40] sm:$0xff]
    %v2956 = vld [vmem:[#allocation13 + $0xb48] sm:$0xff]
    %v2957 = vld [vmem:[#allocation13 + $0xb50] sm:$0xff]
    %v2958 = vld [vmem:[#allocation13 + $0xb58] sm:$0xff]
    %v2959 = vld [vmem:[#allocation13 + $0xb60] sm:$0xff]
    %v2960 = vld [vmem:[#allocation13 + $0xb68] sm:$0xff]
    %v2961 = vld [vmem:[#allocation13 + $0xb70] sm:$0xff]
    %v2962 = vld [vmem:[#allocation13 + $0xb78] sm:$0xff]
    %v2963 = vld [vmem:[#allocation13 + $0xb80] sm:$0xff]
    %v2964 = vld [vmem:[#allocation13 + $0xb88] sm:$0xff]
    %v2965 = vld [vmem:[#allocation13 + $0xb90] sm:$0xff]
    %v2966 = vld [vmem:[#allocation13 + $0xb98] sm:$0xff]
    %v2967 = vld [vmem:[#allocation13 + $0xba0] sm:$0xff]
    %v2968 = vld [vmem:[#allocation13 + $0xba8] sm:$0xff]
    %v2969 = vld [vmem:[#allocation13 + $0xbb0] sm:$0xff]
    %v2970 = vld [vmem:[#allocation13 + $0xbb8] sm:$0xff]
    %v2971 = vld [vmem:[#allocation13 + $0xbc0] sm:$0xff]
    %v2972 = vld [vmem:[#allocation13 + $0xbc8] sm:$0xff]
    %v2973 = vld [vmem:[#allocation13 + $0xbd0] sm:$0xff]
    %v2974 = vld [vmem:[#allocation13 + $0xbd8] sm:$0xff]
    %v2975 = vld [vmem:[#allocation13 + $0xbe0] sm:$0xff]
    %v2976 = vld [vmem:[#allocation13 + $0xbe8] sm:$0xff]
    %v2977 = vld [vmem:[#allocation13 + $0xbf0] sm:$0xff]
    %v2978 = vld [vmem:[#allocation13 + $0xbf8] sm:$0xff]
    %v3363 = vunpack.c.l.b16 %v2595
    %v3364 = vunpack.c.h.b16 %v2595
    %v3365 = vunpack.c.l.b16 %v2596
    %v3366 = vunpack.c.h.b16 %v2596
    %v3367 = vunpack.c.l.b16 %v2597
    %v3368 = vunpack.c.h.b16 %v2597
    %v3369 = vunpack.c.l.b16 %v2598
    %v3370 = vunpack.c.h.b16 %v2598
    %v3371 = vunpack.c.l.b16 %v2599
    %v3372 = vunpack.c.h.b16 %v2599
    %v3373 = vunpack.c.l.b16 %v2600
    %v3374 = vunpack.c.h.b16 %v2600
    %v3375 = vunpack.c.l.b16 %v2601
    %v3376 = vunpack.c.h.b16 %v2601
    %v3377 = vunpack.c.l.b16 %v2602
    %v3378 = vunpack.c.h.b16 %v2602
    %v3379 = vunpack.c.l.b16 %v2603
    %v3380 = vunpack.c.h.b16 %v2603
    %v3381 = vunpack.c.l.b16 %v2604
    %v3382 = vunpack.c.h.b16 %v2604
    %v3383 = vunpack.c.l.b16 %v2605
    %v3384 = vunpack.c.h.b16 %v2605
    %v3385 = vunpack.c.l.b16 %v2606
    %v3386 = vunpack.c.h.b16 %v2606
    %v3387 = vunpack.c.l.b16 %v2607
    %v3388 = vunpack.c.h.b16 %v2607
    %v3389 = vunpack.c.l.b16 %v2608
    %v3390 = vunpack.c.h.b16 %v2608
    %v3391 = vunpack.c.l.b16 %v2609
    %v3392 = vunpack.c.h.b16 %v2609
    %v3393 = vunpack.c.l.b16 %v2610
    %v3394 = vunpack.c.h.b16 %v2610
    %v3395 = vunpack.c.l.b16 %v2611
    %v3396 = vunpack.c.h.b16 %v2611
    %v3397 = vunpack.c.l.b16 %v2612
    %v3398 = vunpack.c.h.b16 %v2612
    %v3399 = vunpack.c.l.b16 %v2613
    %v3400 = vunpack.c.h.b16 %v2613
    %v3401 = vunpack.c.l.b16 %v2614
    %v3402 = vunpack.c.h.b16 %v2614
    %v3403 = vunpack.c.l.b16 %v2615
    %v3404 = vunpack.c.h.b16 %v2615
    %v3405 = vunpack.c.l.b16 %v2616
    %v3406 = vunpack.c.h.b16 %v2616
    %v3407 = vunpack.c.l.b16 %v2617
    %v3408 = vunpack.c.h.b16 %v2617
    %v3409 = vunpack.c.l.b16 %v2618
    %v3410 = vunpack.c.h.b16 %v2618
    %v3411 = vunpack.c.l.b16 %v2619
    %v3412 = vunpack.c.h.b16 %v2619
    %v3413 = vunpack.c.l.b16 %v2620
    %v3414 = vunpack.c.h.b16 %v2620
    %v3415 = vunpack.c.l.b16 %v2621
    %v3416 = vunpack.c.h.b16 %v2621
    %v3417 = vunpack.c.l.b16 %v2622
    %v3418 = vunpack.c.h.b16 %v2622
    %v3419 = vunpack.c.l.b16 %v2623
    %v3420 = vunpack.c.h.b16 %v2623
    %v3421 = vunpack.c.l.b16 %v2624
    %v3422 = vunpack.c.h.b16 %v2624
    %v3423 = vunpack.c.l.b16 %v2625
    %v3424 = vunpack.c.h.b16 %v2625
    %v3425 = vunpack.c.l.b16 %v2626
    %v3426 = vunpack.c.h.b16 %v2626
    %v3427 = vunpack.c.l.b16 %v2627
    %v3428 = vunpack.c.h.b16 %v2627
    %v3429 = vunpack.c.l.b16 %v2628
    %v3430 = vunpack.c.h.b16 %v2628
    %v3431 = vunpack.c.l.b16 %v2629
    %v3432 = vunpack.c.h.b16 %v2629
    %v3433 = vunpack.c.l.b16 %v2630
    %v3434 = vunpack.c.h.b16 %v2630
    %v3435 = vunpack.c.l.b16 %v2631
    %v3436 = vunpack.c.h.b16 %v2631
    %v3437 = vunpack.c.l.b16 %v2632
    %v3438 = vunpack.c.h.b16 %v2632
    %v3439 = vunpack.c.l.b16 %v2633
    %v3440 = vunpack.c.h.b16 %v2633
    %v3441 = vunpack.c.l.b16 %v2634
    %v3442 = vunpack.c.h.b16 %v2634
    %v3443 = vunpack.c.l.b16 %v2635
    %v3444 = vunpack.c.h.b16 %v2635
    %v3445 = vunpack.c.l.b16 %v2636
    %v3446 = vunpack.c.h.b16 %v2636
    %v3447 = vunpack.c.l.b16 %v2637
    %v3448 = vunpack.c.h.b16 %v2637
    %v3449 = vunpack.c.l.b16 %v2638
    %v3450 = vunpack.c.h.b16 %v2638
    %v3451 = vunpack.c.l.b16 %v2639
    %v3452 = vunpack.c.h.b16 %v2639
    %v3453 = vunpack.c.l.b16 %v2640
    %v3454 = vunpack.c.h.b16 %v2640
    %v3455 = vunpack.c.l.b16 %v2641
    %v3456 = vunpack.c.h.b16 %v2641
    %v3457 = vunpack.c.l.b16 %v2642
    %v3458 = vunpack.c.h.b16 %v2642
    %v3459 = vunpack.c.l.b16 %v2643
    %v3460 = vunpack.c.h.b16 %v2643
    %v3461 = vunpack.c.l.b16 %v2644
    %v3462 = vunpack.c.h.b16 %v2644
    %v3463 = vunpack.c.l.b16 %v2645
    %v3464 = vunpack.c.h.b16 %v2645
    %v3465 = vunpack.c.l.b16 %v2646
    %v3466 = vunpack.c.h.b16 %v2646
    %v3467 = vunpack.c.l.b16 %v2647
    %v3468 = vunpack.c.h.b16 %v2647
    %v3469 = vunpack.c.l.b16 %v2648
    %v3470 = vunpack.c.h.b16 %v2648
    %v3471 = vunpack.c.l.b16 %v2649
    %v3472 = vunpack.c.h.b16 %v2649
    %v3473 = vunpack.c.l.b16 %v2650
    %v3474 = vunpack.c.h.b16 %v2650
    %v3475 = vunpack.c.l.b16 %v2651
    %v3476 = vunpack.c.h.b16 %v2651
    %v3477 = vunpack.c.l.b16 %v2652
    %v3478 = vunpack.c.h.b16 %v2652
    %v3479 = vunpack.c.l.b16 %v2653
    %v3480 = vunpack.c.h.b16 %v2653
    %v3481 = vunpack.c.l.b16 %v2654
    %v3482 = vunpack.c.h.b16 %v2654
    %v3483 = vunpack.c.l.b16 %v2655
    %v3484 = vunpack.c.h.b16 %v2655
    %v3485 = vunpack.c.l.b16 %v2656
    %v3486 = vunpack.c.h.b16 %v2656
    %v3487 = vunpack.c.l.b16 %v2657
    %v3488 = vunpack.c.h.b16 %v2657
    %v3489 = vunpack.c.l.b16 %v2658
    %v3490 = vunpack.c.h.b16 %v2658
    %v3491 = vunpack.c.l.b16 %v2659
    %v3492 = vunpack.c.h.b16 %v2659
    %v3493 = vunpack.c.l.b16 %v2660
    %v3494 = vunpack.c.h.b16 %v2660
    %v3495 = vunpack.c.l.b16 %v2661
    %v3496 = vunpack.c.h.b16 %v2661
    %v3497 = vunpack.c.l.b16 %v2662
    %v3498 = vunpack.c.h.b16 %v2662
    %v3499 = vunpack.c.l.b16 %v2663
    %v3500 = vunpack.c.h.b16 %v2663
    %v3501 = vunpack.c.l.b16 %v2664
    %v3502 = vunpack.c.h.b16 %v2664
    %v3503 = vunpack.c.l.b16 %v2665
    %v3504 = vunpack.c.h.b16 %v2665
    %v3505 = vunpack.c.l.b16 %v2666
    %v3506 = vunpack.c.h.b16 %v2666
    %v3507 = vunpack.c.l.b16 %v2667
    %v3508 = vunpack.c.h.b16 %v2667
    %v3509 = vunpack.c.l.b16 %v2668
    %v3510 = vunpack.c.h.b16 %v2668
    %v3511 = vunpack.c.l.b16 %v2669
    %v3512 = vunpack.c.h.b16 %v2669
    %v3513 = vunpack.c.l.b16 %v2670
    %v3514 = vunpack.c.h.b16 %v2670
    %v3515 = vunpack.c.l.b16 %v2671
    %v3516 = vunpack.c.h.b16 %v2671
    %v3517 = vunpack.c.l.b16 %v2672
    %v3518 = vunpack.c.h.b16 %v2672
    %v3519 = vunpack.c.l.b16 %v2673
    %v3520 = vunpack.c.h.b16 %v2673
    %v3521 = vunpack.c.l.b16 %v2674
    %v3522 = vunpack.c.h.b16 %v2674
    %v3523 = vunpack.c.l.b16 %v2675
    %v3524 = vunpack.c.h.b16 %v2675
    %v3525 = vunpack.c.l.b16 %v2676
    %v3526 = vunpack.c.h.b16 %v2676
    %v3527 = vunpack.c.l.b16 %v2677
    %v3528 = vunpack.c.h.b16 %v2677
    %v3529 = vunpack.c.l.b16 %v2678
    %v3530 = vunpack.c.h.b16 %v2678
    %v3531 = vunpack.c.l.b16 %v2679
    %v3532 = vunpack.c.h.b16 %v2679
    %v3533 = vunpack.c.l.b16 %v2680
    %v3534 = vunpack.c.h.b16 %v2680
    %v3535 = vunpack.c.l.b16 %v2681
    %v3536 = vunpack.c.h.b16 %v2681
    %v3537 = vunpack.c.l.b16 %v2682
    %v3538 = vunpack.c.h.b16 %v2682
    %v3539 = vunpack.c.l.b16 %v2683
    %v3540 = vunpack.c.h.b16 %v2683
    %v3541 = vunpack.c.l.b16 %v2684
    %v3542 = vunpack.c.h.b16 %v2684
    %v3543 = vunpack.c.l.b16 %v2685
    %v3544 = vunpack.c.h.b16 %v2685
    %v3545 = vunpack.c.l.b16 %v2686
    %v3546 = vunpack.c.h.b16 %v2686
    %v3547 = vunpack.c.l.b16 %v2687
    %v3548 = vunpack.c.h.b16 %v2687
    %v3549 = vunpack.c.l.b16 %v2688
    %v3550 = vunpack.c.h.b16 %v2688
    %v3551 = vunpack.c.l.b16 %v2689
    %v3552 = vunpack.c.h.b16 %v2689
    %v3553 = vunpack.c.l.b16 %v2690
    %v3554 = vunpack.c.h.b16 %v2690
    %v3555 = vunpack.c.l.b16 %v2691
    %v3556 = vunpack.c.h.b16 %v2691
    %v3557 = vunpack.c.l.b16 %v2692
    %v3558 = vunpack.c.h.b16 %v2692
    %v3559 = vunpack.c.l.b16 %v2693
    %v3560 = vunpack.c.h.b16 %v2693
    %v3561 = vunpack.c.l.b16 %v2694
    %v3562 = vunpack.c.h.b16 %v2694
    %v3563 = vunpack.c.l.b16 %v2695
    %v3564 = vunpack.c.h.b16 %v2695
    %v3565 = vunpack.c.l.b16 %v2696
    %v3566 = vunpack.c.h.b16 %v2696
    %v3567 = vunpack.c.l.b16 %v2697
    %v3568 = vunpack.c.h.b16 %v2697
    %v3569 = vunpack.c.l.b16 %v2698
    %v3570 = vunpack.c.h.b16 %v2698
    %v3571 = vunpack.c.l.b16 %v2699
    %v3572 = vunpack.c.h.b16 %v2699
    %v3573 = vunpack.c.l.b16 %v2700
    %v3574 = vunpack.c.h.b16 %v2700
    %v3575 = vunpack.c.l.b16 %v2701
    %v3576 = vunpack.c.h.b16 %v2701
    %v3577 = vunpack.c.l.b16 %v2702
    %v3578 = vunpack.c.h.b16 %v2702
    %v3579 = vunpack.c.l.b16 %v2703
    %v3580 = vunpack.c.h.b16 %v2703
    %v3581 = vunpack.c.l.b16 %v2704
    %v3582 = vunpack.c.h.b16 %v2704
    %v3583 = vunpack.c.l.b16 %v2705
    %v3584 = vunpack.c.h.b16 %v2705
    %v3585 = vunpack.c.l.b16 %v2706
    %v3586 = vunpack.c.h.b16 %v2706
    %v3587 = vunpack.c.l.b16 %v2707
    %v3588 = vunpack.c.h.b16 %v2707
    %v3589 = vunpack.c.l.b16 %v2708
    %v3590 = vunpack.c.h.b16 %v2708
    %v3591 = vunpack.c.l.b16 %v2709
    %v3592 = vunpack.c.h.b16 %v2709
    %v3593 = vunpack.c.l.b16 %v2710
    %v3594 = vunpack.c.h.b16 %v2710
    %v3595 = vunpack.c.l.b16 %v2711
    %v3596 = vunpack.c.h.b16 %v2711
    %v3597 = vunpack.c.l.b16 %v2712
    %v3598 = vunpack.c.h.b16 %v2712
    %v3599 = vunpack.c.l.b16 %v2713
    %v3600 = vunpack.c.h.b16 %v2713
    %v3601 = vunpack.c.l.b16 %v2714
    %v3602 = vunpack.c.h.b16 %v2714
    %v3603 = vunpack.c.l.b16 %v2715
    %v3604 = vunpack.c.h.b16 %v2715
    %v3605 = vunpack.c.l.b16 %v2716
    %v3606 = vunpack.c.h.b16 %v2716
    %v3607 = vunpack.c.l.b16 %v2717
    %v3608 = vunpack.c.h.b16 %v2717
    %v3609 = vunpack.c.l.b16 %v2718
    %v3610 = vunpack.c.h.b16 %v2718
    %v3611 = vunpack.c.l.b16 %v2719
    %v3612 = vunpack.c.h.b16 %v2719
    %v3613 = vunpack.c.l.b16 %v2720
    %v3614 = vunpack.c.h.b16 %v2720
    %v3615 = vunpack.c.l.b16 %v2721
    %v3616 = vunpack.c.h.b16 %v2721
    %v3617 = vunpack.c.l.b16 %v2722
    %v3618 = vunpack.c.h.b16 %v2722
    %v3619 = vunpack.c.l.b16 %v2723
    %v3620 = vunpack.c.h.b16 %v2723
    %v3621 = vunpack.c.l.b16 %v2724
    %v3622 = vunpack.c.h.b16 %v2724
    %v3623 = vunpack.c.l.b16 %v2725
    %v3624 = vunpack.c.h.b16 %v2725
    %v3625 = vunpack.c.l.b16 %v2726
    %v3626 = vunpack.c.h.b16 %v2726
    %v3627 = vunpack.c.l.b16 %v2727
    %v3628 = vunpack.c.h.b16 %v2727
    %v3629 = vunpack.c.l.b16 %v2728
    %v3630 = vunpack.c.h.b16 %v2728
    %v3631 = vunpack.c.l.b16 %v2729
    %v3632 = vunpack.c.h.b16 %v2729
    %v3633 = vunpack.c.l.b16 %v2730
    %v3634 = vunpack.c.h.b16 %v2730
    %v3635 = vunpack.c.l.b16 %v2731
    %v3636 = vunpack.c.h.b16 %v2731
    %v3637 = vunpack.c.l.b16 %v2732
    %v3638 = vunpack.c.h.b16 %v2732
    %v3639 = vunpack.c.l.b16 %v2733
    %v3640 = vunpack.c.h.b16 %v2733
    %v3641 = vunpack.c.l.b16 %v2734
    %v3642 = vunpack.c.h.b16 %v2734
    %v3643 = vunpack.c.l.b16 %v2735
    %v3644 = vunpack.c.h.b16 %v2735
    %v3645 = vunpack.c.l.b16 %v2736
    %v3646 = vunpack.c.h.b16 %v2736
    %v3647 = vunpack.c.l.b16 %v2737
    %v3648 = vunpack.c.h.b16 %v2737
    %v3649 = vunpack.c.l.b16 %v2738
    %v3650 = vunpack.c.h.b16 %v2738
    %v3651 = vunpack.c.l.b16 %v2739
    %v3652 = vunpack.c.h.b16 %v2739
    %v3653 = vunpack.c.l.b16 %v2740
    %v3654 = vunpack.c.h.b16 %v2740
    %v3655 = vunpack.c.l.b16 %v2741
    %v3656 = vunpack.c.h.b16 %v2741
    %v3657 = vunpack.c.l.b16 %v2742
    %v3658 = vunpack.c.h.b16 %v2742
    %v3659 = vunpack.c.l.b16 %v2743
    %v3660 = vunpack.c.h.b16 %v2743
    %v3661 = vunpack.c.l.b16 %v2744
    %v3662 = vunpack.c.h.b16 %v2744
    %v3663 = vunpack.c.l.b16 %v2745
    %v3664 = vunpack.c.h.b16 %v2745
    %v3665 = vunpack.c.l.b16 %v2746
    %v3666 = vunpack.c.h.b16 %v2746
    %v3667 = vunpack.c.l.b16 %v2747
    %v3668 = vunpack.c.h.b16 %v2747
    %v3669 = vunpack.c.l.b16 %v2748
    %v3670 = vunpack.c.h.b16 %v2748
    %v3671 = vunpack.c.l.b16 %v2749
    %v3672 = vunpack.c.h.b16 %v2749
    %v3673 = vunpack.c.l.b16 %v2750
    %v3674 = vunpack.c.h.b16 %v2750
    %v3675 = vunpack.c.l.b16 %v2751
    %v3676 = vunpack.c.h.b16 %v2751
    %v3677 = vunpack.c.l.b16 %v2752
    %v3678 = vunpack.c.h.b16 %v2752
    %v3679 = vunpack.c.l.b16 %v2753
    %v3680 = vunpack.c.h.b16 %v2753
    %v3681 = vunpack.c.l.b16 %v2754
    %v3682 = vunpack.c.h.b16 %v2754
    %v3683 = vunpack.c.l.b16 %v2755
    %v3684 = vunpack.c.h.b16 %v2755
    %v3685 = vunpack.c.l.b16 %v2756
    %v3686 = vunpack.c.h.b16 %v2756
    %v3687 = vunpack.c.l.b16 %v2757
    %v3688 = vunpack.c.h.b16 %v2757
    %v3689 = vunpack.c.l.b16 %v2758
    %v3690 = vunpack.c.h.b16 %v2758
    %v3691 = vunpack.c.l.b16 %v2759
    %v3692 = vunpack.c.h.b16 %v2759
    %v3693 = vunpack.c.l.b16 %v2760
    %v3694 = vunpack.c.h.b16 %v2760
    %v3695 = vunpack.c.l.b16 %v2761
    %v3696 = vunpack.c.h.b16 %v2761
    %v3697 = vunpack.c.l.b16 %v2762
    %v3698 = vunpack.c.h.b16 %v2762
    %v3699 = vunpack.c.l.b16 %v2763
    %v3700 = vunpack.c.h.b16 %v2763
    %v3701 = vunpack.c.l.b16 %v2764
    %v3702 = vunpack.c.h.b16 %v2764
    %v3703 = vunpack.c.l.b16 %v2765
    %v3704 = vunpack.c.h.b16 %v2765
    %v3705 = vunpack.c.l.b16 %v2766
    %v3706 = vunpack.c.h.b16 %v2766
    %v3707 = vunpack.c.l.b16 %v2767
    %v3708 = vunpack.c.h.b16 %v2767
    %v3709 = vunpack.c.l.b16 %v2768
    %v3710 = vunpack.c.h.b16 %v2768
    %v3711 = vunpack.c.l.b16 %v2769
    %v3712 = vunpack.c.h.b16 %v2769
    %v3713 = vunpack.c.l.b16 %v2770
    %v3714 = vunpack.c.h.b16 %v2770
    %v3715 = vunpack.c.l.b16 %v2771
    %v3716 = vunpack.c.h.b16 %v2771
    %v3717 = vunpack.c.l.b16 %v2772
    %v3718 = vunpack.c.h.b16 %v2772
    %v3719 = vunpack.c.l.b16 %v2773
    %v3720 = vunpack.c.h.b16 %v2773
    %v3721 = vunpack.c.l.b16 %v2774
    %v3722 = vunpack.c.h.b16 %v2774
    %v3723 = vunpack.c.l.b16 %v2775
    %v3724 = vunpack.c.h.b16 %v2775
    %v3725 = vunpack.c.l.b16 %v2776
    %v3726 = vunpack.c.h.b16 %v2776
    %v3727 = vunpack.c.l.b16 %v2777
    %v3728 = vunpack.c.h.b16 %v2777
    %v3729 = vunpack.c.l.b16 %v2778
    %v3730 = vunpack.c.h.b16 %v2778
    %v3731 = vunpack.c.l.b16 %v2779
    %v3732 = vunpack.c.h.b16 %v2779
    %v3733 = vunpack.c.l.b16 %v2780
    %v3734 = vunpack.c.h.b16 %v2780
    %v3735 = vunpack.c.l.b16 %v2781
    %v3736 = vunpack.c.h.b16 %v2781
    %v3737 = vunpack.c.l.b16 %v2782
    %v3738 = vunpack.c.h.b16 %v2782
    %v3739 = vunpack.c.l.b16 %v2783
    %v3740 = vunpack.c.h.b16 %v2783
    %v3741 = vunpack.c.l.b16 %v2784
    %v3742 = vunpack.c.h.b16 %v2784
    %v3743 = vunpack.c.l.b16 %v2785
    %v3744 = vunpack.c.h.b16 %v2785
    %v3745 = vunpack.c.l.b16 %v2786
    %v3746 = vunpack.c.h.b16 %v2786
    %v3747 = vunpack.c.l.b16 %v2787
    %v3748 = vunpack.c.h.b16 %v2787
    %v3749 = vunpack.c.l.b16 %v2788
    %v3750 = vunpack.c.h.b16 %v2788
    %v3751 = vunpack.c.l.b16 %v2789
    %v3752 = vunpack.c.h.b16 %v2789
    %v3753 = vunpack.c.l.b16 %v2790
    %v3754 = vunpack.c.h.b16 %v2790
    %v3755 = vunpack.c.l.b16 %v2791
    %v3756 = vunpack.c.h.b16 %v2791
    %v3757 = vunpack.c.l.b16 %v2792
    %v3758 = vunpack.c.h.b16 %v2792
    %v3759 = vunpack.c.l.b16 %v2793
    %v3760 = vunpack.c.h.b16 %v2793
    %v3761 = vunpack.c.l.b16 %v2794
    %v3762 = vunpack.c.h.b16 %v2794
    %v3763 = vunpack.c.l.b16 %v2795
    %v3764 = vunpack.c.h.b16 %v2795
    %v3765 = vunpack.c.l.b16 %v2796
    %v3766 = vunpack.c.h.b16 %v2796
    %v3767 = vunpack.c.l.b16 %v2797
    %v3768 = vunpack.c.h.b16 %v2797
    %v3769 = vunpack.c.l.b16 %v2798
    %v3770 = vunpack.c.h.b16 %v2798
    %v3771 = vunpack.c.l.b16 %v2799
    %v3772 = vunpack.c.h.b16 %v2799
    %v3773 = vunpack.c.l.b16 %v2800
    %v3774 = vunpack.c.h.b16 %v2800
    %v3775 = vunpack.c.l.b16 %v2801
    %v3776 = vunpack.c.h.b16 %v2801
    %v3777 = vunpack.c.l.b16 %v2802
    %v3778 = vunpack.c.h.b16 %v2802
    %v3779 = vunpack.c.l.b16 %v2803
    %v3780 = vunpack.c.h.b16 %v2803
    %v3781 = vunpack.c.l.b16 %v2804
    %v3782 = vunpack.c.h.b16 %v2804
    %v3783 = vunpack.c.l.b16 %v2805
    %v3784 = vunpack.c.h.b16 %v2805
    %v3785 = vunpack.c.l.b16 %v2806
    %v3786 = vunpack.c.h.b16 %v2806
    %v3787 = vunpack.c.l.b16 %v2807
    %v3788 = vunpack.c.h.b16 %v2807
    %v3789 = vunpack.c.l.b16 %v2808
    %v3790 = vunpack.c.h.b16 %v2808
    %v3791 = vunpack.c.l.b16 %v2809
    %v3792 = vunpack.c.h.b16 %v2809
    %v3793 = vunpack.c.l.b16 %v2810
    %v3794 = vunpack.c.h.b16 %v2810
    %v3795 = vunpack.c.l.b16 %v2811
    %v3796 = vunpack.c.h.b16 %v2811
    %v3797 = vunpack.c.l.b16 %v2812
    %v3798 = vunpack.c.h.b16 %v2812
    %v3799 = vunpack.c.l.b16 %v2813
    %v3800 = vunpack.c.h.b16 %v2813
    %v3801 = vunpack.c.l.b16 %v2814
    %v3802 = vunpack.c.h.b16 %v2814
    %v3803 = vunpack.c.l.b16 %v2815
    %v3804 = vunpack.c.h.b16 %v2815
    %v3805 = vunpack.c.l.b16 %v2816
    %v3806 = vunpack.c.h.b16 %v2816
    %v3807 = vunpack.c.l.b16 %v2817
    %v3808 = vunpack.c.h.b16 %v2817
    %v3809 = vunpack.c.l.b16 %v2818
    %v3810 = vunpack.c.h.b16 %v2818
    %v3811 = vunpack.c.l.b16 %v2819
    %v3812 = vunpack.c.h.b16 %v2819
    %v3813 = vunpack.c.l.b16 %v2820
    %v3814 = vunpack.c.h.b16 %v2820
    %v3815 = vunpack.c.l.b16 %v2821
    %v3816 = vunpack.c.h.b16 %v2821
    %v3817 = vunpack.c.l.b16 %v2822
    %v3818 = vunpack.c.h.b16 %v2822
    %v3819 = vunpack.c.l.b16 %v2823
    %v3820 = vunpack.c.h.b16 %v2823
    %v3821 = vunpack.c.l.b16 %v2824
    %v3822 = vunpack.c.h.b16 %v2824
    %v3823 = vunpack.c.l.b16 %v2825
    %v3824 = vunpack.c.h.b16 %v2825
    %v3825 = vunpack.c.l.b16 %v2826
    %v3826 = vunpack.c.h.b16 %v2826
    %v3827 = vunpack.c.l.b16 %v2827
    %v3828 = vunpack.c.h.b16 %v2827
    %v3829 = vunpack.c.l.b16 %v2828
    %v3830 = vunpack.c.h.b16 %v2828
    %v3831 = vunpack.c.l.b16 %v2829
    %v3832 = vunpack.c.h.b16 %v2829
    %v3833 = vunpack.c.l.b16 %v2830
    %v3834 = vunpack.c.h.b16 %v2830
    %v3835 = vunpack.c.l.b16 %v2831
    %v3836 = vunpack.c.h.b16 %v2831
    %v3837 = vunpack.c.l.b16 %v2832
    %v3838 = vunpack.c.h.b16 %v2832
    %v3839 = vunpack.c.l.b16 %v2833
    %v3840 = vunpack.c.h.b16 %v2833
    %v3841 = vunpack.c.l.b16 %v2834
    %v3842 = vunpack.c.h.b16 %v2834
    %v3843 = vunpack.c.l.b16 %v2835
    %v3844 = vunpack.c.h.b16 %v2835
    %v3845 = vunpack.c.l.b16 %v2836
    %v3846 = vunpack.c.h.b16 %v2836
    %v3847 = vunpack.c.l.b16 %v2837
    %v3848 = vunpack.c.h.b16 %v2837
    %v3849 = vunpack.c.l.b16 %v2838
    %v3850 = vunpack.c.h.b16 %v2838
    %v3851 = vunpack.c.l.b16 %v2839
    %v3852 = vunpack.c.h.b16 %v2839
    %v3853 = vunpack.c.l.b16 %v2840
    %v3854 = vunpack.c.h.b16 %v2840
    %v3855 = vunpack.c.l.b16 %v2841
    %v3856 = vunpack.c.h.b16 %v2841
    %v3857 = vunpack.c.l.b16 %v2842
    %v3858 = vunpack.c.h.b16 %v2842
    %v3859 = vunpack.c.l.b16 %v2843
    %v3860 = vunpack.c.h.b16 %v2843
    %v3861 = vunpack.c.l.b16 %v2844
    %v3862 = vunpack.c.h.b16 %v2844
    %v3863 = vunpack.c.l.b16 %v2845
    %v3864 = vunpack.c.h.b16 %v2845
    %v3865 = vunpack.c.l.b16 %v2846
    %v3866 = vunpack.c.h.b16 %v2846
    %v3867 = vunpack.c.l.b16 %v2847
    %v3868 = vunpack.c.h.b16 %v2847
    %v3869 = vunpack.c.l.b16 %v2848
    %v3870 = vunpack.c.h.b16 %v2848
    %v3871 = vunpack.c.l.b16 %v2849
    %v3872 = vunpack.c.h.b16 %v2849
    %v3873 = vunpack.c.l.b16 %v2850
    %v3874 = vunpack.c.h.b16 %v2850
    %v3875 = vunpack.c.l.b16 %v2851
    %v3876 = vunpack.c.h.b16 %v2851
    %v3877 = vunpack.c.l.b16 %v2852
    %v3878 = vunpack.c.h.b16 %v2852
    %v3879 = vunpack.c.l.b16 %v2853
    %v3880 = vunpack.c.h.b16 %v2853
    %v3881 = vunpack.c.l.b16 %v2854
    %v3882 = vunpack.c.h.b16 %v2854
    %v3883 = vunpack.c.l.b16 %v2855
    %v3884 = vunpack.c.h.b16 %v2855
    %v3885 = vunpack.c.l.b16 %v2856
    %v3886 = vunpack.c.h.b16 %v2856
    %v3887 = vunpack.c.l.b16 %v2857
    %v3888 = vunpack.c.h.b16 %v2857
    %v3889 = vunpack.c.l.b16 %v2858
    %v3890 = vunpack.c.h.b16 %v2858
    %v3891 = vunpack.c.l.b16 %v2859
    %v3892 = vunpack.c.h.b16 %v2859
    %v3893 = vunpack.c.l.b16 %v2860
    %v3894 = vunpack.c.h.b16 %v2860
    %v3895 = vunpack.c.l.b16 %v2861
    %v3896 = vunpack.c.h.b16 %v2861
    %v3897 = vunpack.c.l.b16 %v2862
    %v3898 = vunpack.c.h.b16 %v2862
    %v3899 = vunpack.c.l.b16 %v2863
    %v3900 = vunpack.c.h.b16 %v2863
    %v3901 = vunpack.c.l.b16 %v2864
    %v3902 = vunpack.c.h.b16 %v2864
    %v3903 = vunpack.c.l.b16 %v2865
    %v3904 = vunpack.c.h.b16 %v2865
    %v3905 = vunpack.c.l.b16 %v2866
    %v3906 = vunpack.c.h.b16 %v2866
    %v3907 = vunpack.c.l.b16 %v2867
    %v3908 = vunpack.c.h.b16 %v2867
    %v3909 = vunpack.c.l.b16 %v2868
    %v3910 = vunpack.c.h.b16 %v2868
    %v3911 = vunpack.c.l.b16 %v2869
    %v3912 = vunpack.c.h.b16 %v2869
    %v3913 = vunpack.c.l.b16 %v2870
    %v3914 = vunpack.c.h.b16 %v2870
    %v3915 = vunpack.c.l.b16 %v2871
    %v3916 = vunpack.c.h.b16 %v2871
    %v3917 = vunpack.c.l.b16 %v2872
    %v3918 = vunpack.c.h.b16 %v2872
    %v3919 = vunpack.c.l.b16 %v2873
    %v3920 = vunpack.c.h.b16 %v2873
    %v3921 = vunpack.c.l.b16 %v2874
    %v3922 = vunpack.c.h.b16 %v2874
    %v3923 = vunpack.c.l.b16 %v2875
    %v3924 = vunpack.c.h.b16 %v2875
    %v3925 = vunpack.c.l.b16 %v2876
    %v3926 = vunpack.c.h.b16 %v2876
    %v3927 = vunpack.c.l.b16 %v2877
    %v3928 = vunpack.c.h.b16 %v2877
    %v3929 = vunpack.c.l.b16 %v2878
    %v3930 = vunpack.c.h.b16 %v2878
    %v3931 = vunpack.c.l.b16 %v2879
    %v3932 = vunpack.c.h.b16 %v2879
    %v3933 = vunpack.c.l.b16 %v2880
    %v3934 = vunpack.c.h.b16 %v2880
    %v3935 = vunpack.c.l.b16 %v2881
    %v3936 = vunpack.c.h.b16 %v2881
    %v3937 = vunpack.c.l.b16 %v2882
    %v3938 = vunpack.c.h.b16 %v2882
    %v3939 = vunpack.c.l.b16 %v2883
    %v3940 = vunpack.c.h.b16 %v2883
    %v3941 = vunpack.c.l.b16 %v2884
    %v3942 = vunpack.c.h.b16 %v2884
    %v3943 = vunpack.c.l.b16 %v2885
    %v3944 = vunpack.c.h.b16 %v2885
    %v3945 = vunpack.c.l.b16 %v2886
    %v3946 = vunpack.c.h.b16 %v2886
    %v3947 = vunpack.c.l.b16 %v2887
    %v3948 = vunpack.c.h.b16 %v2887
    %v3949 = vunpack.c.l.b16 %v2888
    %v3950 = vunpack.c.h.b16 %v2888
    %v3951 = vunpack.c.l.b16 %v2889
    %v3952 = vunpack.c.h.b16 %v2889
    %v3953 = vunpack.c.l.b16 %v2890
    %v3954 = vunpack.c.h.b16 %v2890
    %v3955 = vunpack.c.l.b16 %v2891
    %v3956 = vunpack.c.h.b16 %v2891
    %v3957 = vunpack.c.l.b16 %v2892
    %v3958 = vunpack.c.h.b16 %v2892
    %v3959 = vunpack.c.l.b16 %v2893
    %v3960 = vunpack.c.h.b16 %v2893
    %v3961 = vunpack.c.l.b16 %v2894
    %v3962 = vunpack.c.h.b16 %v2894
    %v3963 = vunpack.c.l.b16 %v2895
    %v3964 = vunpack.c.h.b16 %v2895
    %v3965 = vunpack.c.l.b16 %v2896
    %v3966 = vunpack.c.h.b16 %v2896
    %v3967 = vunpack.c.l.b16 %v2897
    %v3968 = vunpack.c.h.b16 %v2897
    %v3969 = vunpack.c.l.b16 %v2898
    %v3970 = vunpack.c.h.b16 %v2898
    %v3971 = vunpack.c.l.b16 %v2899
    %v3972 = vunpack.c.h.b16 %v2899
    %v3973 = vunpack.c.l.b16 %v2900
    %v3974 = vunpack.c.h.b16 %v2900
    %v3975 = vunpack.c.l.b16 %v2901
    %v3976 = vunpack.c.h.b16 %v2901
    %v3977 = vunpack.c.l.b16 %v2902
    %v3978 = vunpack.c.h.b16 %v2902
    %v3979 = vunpack.c.l.b16 %v2903
    %v3980 = vunpack.c.h.b16 %v2903
    %v3981 = vunpack.c.l.b16 %v2904
    %v3982 = vunpack.c.h.b16 %v2904
    %v3983 = vunpack.c.l.b16 %v2905
    %v3984 = vunpack.c.h.b16 %v2905
    %v3985 = vunpack.c.l.b16 %v2906
    %v3986 = vunpack.c.h.b16 %v2906
    %v3987 = vunpack.c.l.b16 %v2907
    %v3988 = vunpack.c.h.b16 %v2907
    %v3989 = vunpack.c.l.b16 %v2908
    %v3990 = vunpack.c.h.b16 %v2908
    %v3991 = vunpack.c.l.b16 %v2909
    %v3992 = vunpack.c.h.b16 %v2909
    %v3993 = vunpack.c.l.b16 %v2910
    %v3994 = vunpack.c.h.b16 %v2910
    %v3995 = vunpack.c.l.b16 %v2911
    %v3996 = vunpack.c.h.b16 %v2911
    %v3997 = vunpack.c.l.b16 %v2912
    %v3998 = vunpack.c.h.b16 %v2912
    %v3999 = vunpack.c.l.b16 %v2913
    %v4000 = vunpack.c.h.b16 %v2913
    %v4001 = vunpack.c.l.b16 %v2914
    %v4002 = vunpack.c.h.b16 %v2914
    %v4003 = vunpack.c.l.b16 %v2915
    %v4004 = vunpack.c.h.b16 %v2915
    %v4005 = vunpack.c.l.b16 %v2916
    %v4006 = vunpack.c.h.b16 %v2916
    %v4007 = vunpack.c.l.b16 %v2917
    %v4008 = vunpack.c.h.b16 %v2917
    %v4009 = vunpack.c.l.b16 %v2918
    %v4010 = vunpack.c.h.b16 %v2918
    %v4011 = vunpack.c.l.b16 %v2919
    %v4012 = vunpack.c.h.b16 %v2919
    %v4013 = vunpack.c.l.b16 %v2920
    %v4014 = vunpack.c.h.b16 %v2920
    %v4015 = vunpack.c.l.b16 %v2921
    %v4016 = vunpack.c.h.b16 %v2921
    %v4017 = vunpack.c.l.b16 %v2922
    %v4018 = vunpack.c.h.b16 %v2922
    %v4019 = vunpack.c.l.b16 %v2923
    %v4020 = vunpack.c.h.b16 %v2923
    %v4021 = vunpack.c.l.b16 %v2924
    %v4022 = vunpack.c.h.b16 %v2924
    %v4023 = vunpack.c.l.b16 %v2925
    %v4024 = vunpack.c.h.b16 %v2925
    %v4025 = vunpack.c.l.b16 %v2926
    %v4026 = vunpack.c.h.b16 %v2926
    %v4027 = vunpack.c.l.b16 %v2927
    %v4028 = vunpack.c.h.b16 %v2927
    %v4029 = vunpack.c.l.b16 %v2928
    %v4030 = vunpack.c.h.b16 %v2928
    %v4031 = vunpack.c.l.b16 %v2929
    %v4032 = vunpack.c.h.b16 %v2929
    %v4033 = vunpack.c.l.b16 %v2930
    %v4034 = vunpack.c.h.b16 %v2930
    %v4035 = vunpack.c.l.b16 %v2931
    %v4036 = vunpack.c.h.b16 %v2931
    %v4037 = vunpack.c.l.b16 %v2932
    %v4038 = vunpack.c.h.b16 %v2932
    %v4039 = vunpack.c.l.b16 %v2933
    %v4040 = vunpack.c.h.b16 %v2933
    %v4041 = vunpack.c.l.b16 %v2934
    %v4042 = vunpack.c.h.b16 %v2934
    %v4043 = vunpack.c.l.b16 %v2935
    %v4044 = vunpack.c.h.b16 %v2935
    %v4045 = vunpack.c.l.b16 %v2936
    %v4046 = vunpack.c.h.b16 %v2936
    %v4047 = vunpack.c.l.b16 %v2937
    %v4048 = vunpack.c.h.b16 %v2937
    %v4049 = vunpack.c.l.b16 %v2938
    %v4050 = vunpack.c.h.b16 %v2938
    %v4051 = vunpack.c.l.b16 %v2939
    %v4052 = vunpack.c.h.b16 %v2939
    %v4053 = vunpack.c.l.b16 %v2940
    %v4054 = vunpack.c.h.b16 %v2940
    %v4055 = vunpack.c.l.b16 %v2941
    %v4056 = vunpack.c.h.b16 %v2941
    %v4057 = vunpack.c.l.b16 %v2942
    %v4058 = vunpack.c.h.b16 %v2942
    %v4059 = vunpack.c.l.b16 %v2943
    %v4060 = vunpack.c.h.b16 %v2943
    %v4061 = vunpack.c.l.b16 %v2944
    %v4062 = vunpack.c.h.b16 %v2944
    %v4063 = vunpack.c.l.b16 %v2945
    %v4064 = vunpack.c.h.b16 %v2945
    %v4065 = vunpack.c.l.b16 %v2946
    %v4066 = vunpack.c.h.b16 %v2946
    %v4067 = vunpack.c.l.b16 %v2947
    %v4068 = vunpack.c.h.b16 %v2947
    %v4069 = vunpack.c.l.b16 %v2948
    %v4070 = vunpack.c.h.b16 %v2948
    %v4071 = vunpack.c.l.b16 %v2949
    %v4072 = vunpack.c.h.b16 %v2949
    %v4073 = vunpack.c.l.b16 %v2950
    %v4074 = vunpack.c.h.b16 %v2950
    %v4075 = vunpack.c.l.b16 %v2951
    %v4076 = vunpack.c.h.b16 %v2951
    %v4077 = vunpack.c.l.b16 %v2952
    %v4078 = vunpack.c.h.b16 %v2952
    %v4079 = vunpack.c.l.b16 %v2953
    %v4080 = vunpack.c.h.b16 %v2953
    %v4081 = vunpack.c.l.b16 %v2954
    %v4082 = vunpack.c.h.b16 %v2954
    %v4083 = vunpack.c.l.b16 %v2955
    %v4084 = vunpack.c.h.b16 %v2955
    %v4085 = vunpack.c.l.b16 %v2956
    %v4086 = vunpack.c.h.b16 %v2956
    %v4087 = vunpack.c.l.b16 %v2957
    %v4088 = vunpack.c.h.b16 %v2957
    %v4089 = vunpack.c.l.b16 %v2958
    %v4090 = vunpack.c.h.b16 %v2958
    %v4091 = vunpack.c.l.b16 %v2959
    %v4092 = vunpack.c.h.b16 %v2959
    %v4093 = vunpack.c.l.b16 %v2960
    %v4094 = vunpack.c.h.b16 %v2960
    %v4095 = vunpack.c.l.b16 %v2961
    %v4096 = vunpack.c.h.b16 %v2961
    %v4097 = vunpack.c.l.b16 %v2962
    %v4098 = vunpack.c.h.b16 %v2962
    %v4099 = vunpack.c.l.b16 %v2963
    %v4100 = vunpack.c.h.b16 %v2963
    %v4101 = vunpack.c.l.b16 %v2964
    %v4102 = vunpack.c.h.b16 %v2964
    %v4103 = vunpack.c.l.b16 %v2965
    %v4104 = vunpack.c.h.b16 %v2965
    %v4105 = vunpack.c.l.b16 %v2966
    %v4106 = vunpack.c.h.b16 %v2966
    %v4107 = vunpack.c.l.b16 %v2967
    %v4108 = vunpack.c.h.b16 %v2967
    %v4109 = vunpack.c.l.b16 %v2968
    %v4110 = vunpack.c.h.b16 %v2968
    %v4111 = vunpack.c.l.b16 %v2969
    %v4112 = vunpack.c.h.b16 %v2969
    %v4113 = vunpack.c.l.b16 %v2970
    %v4114 = vunpack.c.h.b16 %v2970
    %v4115 = vunpack.c.l.b16 %v2971
    %v4116 = vunpack.c.h.b16 %v2971
    %v4117 = vunpack.c.l.b16 %v2972
    %v4118 = vunpack.c.h.b16 %v2972
    %v4119 = vunpack.c.l.b16 %v2973
    %v4120 = vunpack.c.h.b16 %v2973
    %v4121 = vunpack.c.l.b16 %v2974
    %v4122 = vunpack.c.h.b16 %v2974
    %v4123 = vunpack.c.l.b16 %v2975
    %v4124 = vunpack.c.h.b16 %v2975
    %v4125 = vunpack.c.l.b16 %v2976
    %v4126 = vunpack.c.h.b16 %v2976
    %v4127 = vunpack.c.l.b16 %v2977
    %v4128 = vunpack.c.h.b16 %v2977
    %v4129 = vunpack.c.l.b16 %v2978
    %v4130 = vunpack.c.h.b16 %v2978
    %v4131 = vpack.c.b16 %v3367, %v3363
    %v4132 = vpack.c.b16 %v3368, %v3364
    %v4133 = vpack.c.b16 %v3369, %v3365
    %v4134 = vpack.c.b16 %v3370, %v3366
    %v4135 = vpack.c.b16 %v3375, %v3371
    %v4136 = vpack.c.b16 %v3376, %v3372
    %v4137 = vpack.c.b16 %v3377, %v3373
    %v4138 = vpack.c.b16 %v3378, %v3374
    %v4139 = vpack.c.b16 %v3383, %v3379
    %v4140 = vpack.c.b16 %v3384, %v3380
    %v4141 = vpack.c.b16 %v3385, %v3381
    %v4142 = vpack.c.b16 %v3386, %v3382
    %v4143 = vpack.c.b16 %v3391, %v3387
    %v4144 = vpack.c.b16 %v3392, %v3388
    %v4145 = vpack.c.b16 %v3393, %v3389
    %v4146 = vpack.c.b16 %v3394, %v3390
    %v4147 = vpack.c.b16 %v3399, %v3395
    %v4148 = vpack.c.b16 %v3400, %v3396
    %v4149 = vpack.c.b16 %v3401, %v3397
    %v4150 = vpack.c.b16 %v3402, %v3398
    %v4151 = vpack.c.b16 %v3407, %v3403
    %v4152 = vpack.c.b16 %v3408, %v3404
    %v4153 = vpack.c.b16 %v3409, %v3405
    %v4154 = vpack.c.b16 %v3410, %v3406
    %v4155 = vpack.c.b16 %v3415, %v3411
    %v4156 = vpack.c.b16 %v3416, %v3412
    %v4157 = vpack.c.b16 %v3417, %v3413
    %v4158 = vpack.c.b16 %v3418, %v3414
    %v4159 = vpack.c.b16 %v3423, %v3419
    %v4160 = vpack.c.b16 %v3424, %v3420
    %v4161 = vpack.c.b16 %v3425, %v3421
    %v4162 = vpack.c.b16 %v3426, %v3422
    %v4163 = vpack.c.b16 %v3431, %v3427
    %v4164 = vpack.c.b16 %v3432, %v3428
    %v4165 = vpack.c.b16 %v3433, %v3429
    %v4166 = vpack.c.b16 %v3434, %v3430
    %v4167 = vpack.c.b16 %v3439, %v3435
    %v4168 = vpack.c.b16 %v3440, %v3436
    %v4169 = vpack.c.b16 %v3441, %v3437
    %v4170 = vpack.c.b16 %v3442, %v3438
    %v4171 = vpack.c.b16 %v3447, %v3443
    %v4172 = vpack.c.b16 %v3448, %v3444
    %v4173 = vpack.c.b16 %v3449, %v3445
    %v4174 = vpack.c.b16 %v3450, %v3446
    %v4175 = vpack.c.b16 %v3455, %v3451
    %v4176 = vpack.c.b16 %v3456, %v3452
    %v4177 = vpack.c.b16 %v3457, %v3453
    %v4178 = vpack.c.b16 %v3458, %v3454
    %v4179 = vpack.c.b16 %v3463, %v3459
    %v4180 = vpack.c.b16 %v3464, %v3460
    %v4181 = vpack.c.b16 %v3465, %v3461
    %v4182 = vpack.c.b16 %v3466, %v3462
    %v4183 = vpack.c.b16 %v3471, %v3467
    %v4184 = vpack.c.b16 %v3472, %v3468
    %v4185 = vpack.c.b16 %v3473, %v3469
    %v4186 = vpack.c.b16 %v3474, %v3470
    %v4187 = vpack.c.b16 %v3479, %v3475
    %v4188 = vpack.c.b16 %v3480, %v3476
    %v4189 = vpack.c.b16 %v3481, %v3477
    %v4190 = vpack.c.b16 %v3482, %v3478
    %v4191 = vpack.c.b16 %v3487, %v3483
    %v4192 = vpack.c.b16 %v3488, %v3484
    %v4193 = vpack.c.b16 %v3489, %v3485
    %v4194 = vpack.c.b16 %v3490, %v3486
    %v4195 = vpack.c.b16 %v3495, %v3491
    %v4196 = vpack.c.b16 %v3496, %v3492
    %v4197 = vpack.c.b16 %v3497, %v3493
    %v4198 = vpack.c.b16 %v3498, %v3494
    %v4199 = vpack.c.b16 %v3503, %v3499
    %v4200 = vpack.c.b16 %v3504, %v3500
    %v4201 = vpack.c.b16 %v3505, %v3501
    %v4202 = vpack.c.b16 %v3506, %v3502
    %v4203 = vpack.c.b16 %v3511, %v3507
    %v4204 = vpack.c.b16 %v3512, %v3508
    %v4205 = vpack.c.b16 %v3513, %v3509
    %v4206 = vpack.c.b16 %v3514, %v3510
    %v4207 = vpack.c.b16 %v3519, %v3515
    %v4208 = vpack.c.b16 %v3520, %v3516
    %v4209 = vpack.c.b16 %v3521, %v3517
    %v4210 = vpack.c.b16 %v3522, %v3518
    %v4211 = vpack.c.b16 %v3527, %v3523
    %v4212 = vpack.c.b16 %v3528, %v3524
    %v4213 = vpack.c.b16 %v3529, %v3525
    %v4214 = vpack.c.b16 %v3530, %v3526
    %v4215 = vpack.c.b16 %v3535, %v3531
    %v4216 = vpack.c.b16 %v3536, %v3532
    %v4217 = vpack.c.b16 %v3537, %v3533
    %v4218 = vpack.c.b16 %v3538, %v3534
    %v4219 = vpack.c.b16 %v3543, %v3539
    %v4220 = vpack.c.b16 %v3544, %v3540
    %v4221 = vpack.c.b16 %v3545, %v3541
    %v4222 = vpack.c.b16 %v3546, %v3542
    %v4223 = vpack.c.b16 %v3551, %v3547
    %v4224 = vpack.c.b16 %v3552, %v3548
    %v4225 = vpack.c.b16 %v3553, %v3549
    %v4226 = vpack.c.b16 %v3554, %v3550
    %v4227 = vpack.c.b16 %v3559, %v3555
    %v4228 = vpack.c.b16 %v3560, %v3556
    %v4229 = vpack.c.b16 %v3561, %v3557
    %v4230 = vpack.c.b16 %v3562, %v3558
    %v4231 = vpack.c.b16 %v3567, %v3563
    %v4232 = vpack.c.b16 %v3568, %v3564
    %v4233 = vpack.c.b16 %v3569, %v3565
    %v4234 = vpack.c.b16 %v3570, %v3566
    %v4235 = vpack.c.b16 %v3575, %v3571
    %v4236 = vpack.c.b16 %v3576, %v3572
    %v4237 = vpack.c.b16 %v3577, %v3573
    %v4238 = vpack.c.b16 %v3578, %v3574
    %v4239 = vpack.c.b16 %v3583, %v3579
    %v4240 = vpack.c.b16 %v3584, %v3580
    %v4241 = vpack.c.b16 %v3585, %v3581
    %v4242 = vpack.c.b16 %v3586, %v3582
    %v4243 = vpack.c.b16 %v3591, %v3587
    %v4244 = vpack.c.b16 %v3592, %v3588
    %v4245 = vpack.c.b16 %v3593, %v3589
    %v4246 = vpack.c.b16 %v3594, %v3590
    %v4247 = vpack.c.b16 %v3599, %v3595
    %v4248 = vpack.c.b16 %v3600, %v3596
    %v4249 = vpack.c.b16 %v3601, %v3597
    %v4250 = vpack.c.b16 %v3602, %v3598
    %v4251 = vpack.c.b16 %v3607, %v3603
    %v4252 = vpack.c.b16 %v3608, %v3604
    %v4253 = vpack.c.b16 %v3609, %v3605
    %v4254 = vpack.c.b16 %v3610, %v3606
    %v4255 = vpack.c.b16 %v3615, %v3611
    %v4256 = vpack.c.b16 %v3616, %v3612
    %v4257 = vpack.c.b16 %v3617, %v3613
    %v4258 = vpack.c.b16 %v3618, %v3614
    %v4259 = vpack.c.b16 %v3623, %v3619
    %v4260 = vpack.c.b16 %v3624, %v3620
    %v4261 = vpack.c.b16 %v3625, %v3621
    %v4262 = vpack.c.b16 %v3626, %v3622
    %v4263 = vpack.c.b16 %v3631, %v3627
    %v4264 = vpack.c.b16 %v3632, %v3628
    %v4265 = vpack.c.b16 %v3633, %v3629
    %v4266 = vpack.c.b16 %v3634, %v3630
    %v4267 = vpack.c.b16 %v3639, %v3635
    %v4268 = vpack.c.b16 %v3640, %v3636
    %v4269 = vpack.c.b16 %v3641, %v3637
    %v4270 = vpack.c.b16 %v3642, %v3638
    %v4271 = vpack.c.b16 %v3647, %v3643
    %v4272 = vpack.c.b16 %v3648, %v3644
    %v4273 = vpack.c.b16 %v3649, %v3645
    %v4274 = vpack.c.b16 %v3650, %v3646
    %v4275 = vpack.c.b16 %v3655, %v3651
    %v4276 = vpack.c.b16 %v3656, %v3652
    %v4277 = vpack.c.b16 %v3657, %v3653
    %v4278 = vpack.c.b16 %v3658, %v3654
    %v4279 = vpack.c.b16 %v3663, %v3659
    %v4280 = vpack.c.b16 %v3664, %v3660
    %v4281 = vpack.c.b16 %v3665, %v3661
    %v4282 = vpack.c.b16 %v3666, %v3662
    %v4283 = vpack.c.b16 %v3671, %v3667
    %v4284 = vpack.c.b16 %v3672, %v3668
    %v4285 = vpack.c.b16 %v3673, %v3669
    %v4286 = vpack.c.b16 %v3674, %v3670
    %v4287 = vpack.c.b16 %v3679, %v3675
    %v4288 = vpack.c.b16 %v3680, %v3676
    %v4289 = vpack.c.b16 %v3681, %v3677
    %v4290 = vpack.c.b16 %v3682, %v3678
    %v4291 = vpack.c.b16 %v3687, %v3683
    %v4292 = vpack.c.b16 %v3688, %v3684
    %v4293 = vpack.c.b16 %v3689, %v3685
    %v4294 = vpack.c.b16 %v3690, %v3686
    %v4295 = vpack.c.b16 %v3695, %v3691
    %v4296 = vpack.c.b16 %v3696, %v3692
    %v4297 = vpack.c.b16 %v3697, %v3693
    %v4298 = vpack.c.b16 %v3698, %v3694
    %v4299 = vpack.c.b16 %v3703, %v3699
    %v4300 = vpack.c.b16 %v3704, %v3700
    %v4301 = vpack.c.b16 %v3705, %v3701
    %v4302 = vpack.c.b16 %v3706, %v3702
    %v4303 = vpack.c.b16 %v3711, %v3707
    %v4304 = vpack.c.b16 %v3712, %v3708
    %v4305 = vpack.c.b16 %v3713, %v3709
    %v4306 = vpack.c.b16 %v3714, %v3710
    %v4307 = vpack.c.b16 %v3719, %v3715
    %v4308 = vpack.c.b16 %v3720, %v3716
    %v4309 = vpack.c.b16 %v3721, %v3717
    %v4310 = vpack.c.b16 %v3722, %v3718
    %v4311 = vpack.c.b16 %v3727, %v3723
    %v4312 = vpack.c.b16 %v3728, %v3724
    %v4313 = vpack.c.b16 %v3729, %v3725
    %v4314 = vpack.c.b16 %v3730, %v3726
    %v4315 = vpack.c.b16 %v3735, %v3731
    %v4316 = vpack.c.b16 %v3736, %v3732
    %v4317 = vpack.c.b16 %v3737, %v3733
    %v4318 = vpack.c.b16 %v3738, %v3734
    %v4319 = vpack.c.b16 %v3743, %v3739
    %v4320 = vpack.c.b16 %v3744, %v3740
    %v4321 = vpack.c.b16 %v3745, %v3741
    %v4322 = vpack.c.b16 %v3746, %v3742
    %v4323 = vpack.c.b16 %v3751, %v3747
    %v4324 = vpack.c.b16 %v3752, %v3748
    %v4325 = vpack.c.b16 %v3753, %v3749
    %v4326 = vpack.c.b16 %v3754, %v3750
    %v4327 = vpack.c.b16 %v3759, %v3755
    %v4328 = vpack.c.b16 %v3760, %v3756
    %v4329 = vpack.c.b16 %v3761, %v3757
    %v4330 = vpack.c.b16 %v3762, %v3758
    %v4331 = vpack.c.b16 %v3767, %v3763
    %v4332 = vpack.c.b16 %v3768, %v3764
    %v4333 = vpack.c.b16 %v3769, %v3765
    %v4334 = vpack.c.b16 %v3770, %v3766
    %v4335 = vpack.c.b16 %v3775, %v3771
    %v4336 = vpack.c.b16 %v3776, %v3772
    %v4337 = vpack.c.b16 %v3777, %v3773
    %v4338 = vpack.c.b16 %v3778, %v3774
    %v4339 = vpack.c.b16 %v3783, %v3779
    %v4340 = vpack.c.b16 %v3784, %v3780
    %v4341 = vpack.c.b16 %v3785, %v3781
    %v4342 = vpack.c.b16 %v3786, %v3782
    %v4343 = vpack.c.b16 %v3791, %v3787
    %v4344 = vpack.c.b16 %v3792, %v3788
    %v4345 = vpack.c.b16 %v3793, %v3789
    %v4346 = vpack.c.b16 %v3794, %v3790
    %v4347 = vpack.c.b16 %v3799, %v3795
    %v4348 = vpack.c.b16 %v3800, %v3796
    %v4349 = vpack.c.b16 %v3801, %v3797
    %v4350 = vpack.c.b16 %v3802, %v3798
    %v4351 = vpack.c.b16 %v3807, %v3803
    %v4352 = vpack.c.b16 %v3808, %v3804
    %v4353 = vpack.c.b16 %v3809, %v3805
    %v4354 = vpack.c.b16 %v3810, %v3806
    %v4355 = vpack.c.b16 %v3815, %v3811
    %v4356 = vpack.c.b16 %v3816, %v3812
    %v4357 = vpack.c.b16 %v3817, %v3813
    %v4358 = vpack.c.b16 %v3818, %v3814
    %v4359 = vpack.c.b16 %v3823, %v3819
    %v4360 = vpack.c.b16 %v3824, %v3820
    %v4361 = vpack.c.b16 %v3825, %v3821
    %v4362 = vpack.c.b16 %v3826, %v3822
    %v4363 = vpack.c.b16 %v3831, %v3827
    %v4364 = vpack.c.b16 %v3832, %v3828
    %v4365 = vpack.c.b16 %v3833, %v3829
    %v4366 = vpack.c.b16 %v3834, %v3830
    %v4367 = vpack.c.b16 %v3839, %v3835
    %v4368 = vpack.c.b16 %v3840, %v3836
    %v4369 = vpack.c.b16 %v3841, %v3837
    %v4370 = vpack.c.b16 %v3842, %v3838
    %v4371 = vpack.c.b16 %v3847, %v3843
    %v4372 = vpack.c.b16 %v3848, %v3844
    %v4373 = vpack.c.b16 %v3849, %v3845
    %v4374 = vpack.c.b16 %v3850, %v3846
    %v4375 = vpack.c.b16 %v3855, %v3851
    %v4376 = vpack.c.b16 %v3856, %v3852
    %v4377 = vpack.c.b16 %v3857, %v3853
    %v4378 = vpack.c.b16 %v3858, %v3854
    %v4379 = vpack.c.b16 %v3863, %v3859
    %v4380 = vpack.c.b16 %v3864, %v3860
    %v4381 = vpack.c.b16 %v3865, %v3861
    %v4382 = vpack.c.b16 %v3866, %v3862
    %v4383 = vpack.c.b16 %v3871, %v3867
    %v4384 = vpack.c.b16 %v3872, %v3868
    %v4385 = vpack.c.b16 %v3873, %v3869
    %v4386 = vpack.c.b16 %v3874, %v3870
    %v4387 = vpack.c.b16 %v3879, %v3875
    %v4388 = vpack.c.b16 %v3880, %v3876
    %v4389 = vpack.c.b16 %v3881, %v3877
    %v4390 = vpack.c.b16 %v3882, %v3878
    %v4391 = vpack.c.b16 %v3887, %v3883
    %v4392 = vpack.c.b16 %v3888, %v3884
    %v4393 = vpack.c.b16 %v3889, %v3885
    %v4394 = vpack.c.b16 %v3890, %v3886
    %v4395 = vpack.c.b16 %v3895, %v3891
    %v4396 = vpack.c.b16 %v3896, %v3892
    %v4397 = vpack.c.b16 %v3897, %v3893
    %v4398 = vpack.c.b16 %v3898, %v3894
    %v4399 = vpack.c.b16 %v3903, %v3899
    %v4400 = vpack.c.b16 %v3904, %v3900
    %v4401 = vpack.c.b16 %v3905, %v3901
    %v4402 = vpack.c.b16 %v3906, %v3902
    %v4403 = vpack.c.b16 %v3911, %v3907
    %v4404 = vpack.c.b16 %v3912, %v3908
    %v4405 = vpack.c.b16 %v3913, %v3909
    %v4406 = vpack.c.b16 %v3914, %v3910
    %v4407 = vpack.c.b16 %v3919, %v3915
    %v4408 = vpack.c.b16 %v3920, %v3916
    %v4409 = vpack.c.b16 %v3921, %v3917
    %v4410 = vpack.c.b16 %v3922, %v3918
    %v4411 = vpack.c.b16 %v3927, %v3923
    %v4412 = vpack.c.b16 %v3928, %v3924
    %v4413 = vpack.c.b16 %v3929, %v3925
    %v4414 = vpack.c.b16 %v3930, %v3926
    %v4415 = vpack.c.b16 %v3935, %v3931
    %v4416 = vpack.c.b16 %v3936, %v3932
    %v4417 = vpack.c.b16 %v3937, %v3933
    %v4418 = vpack.c.b16 %v3938, %v3934
    %v4419 = vpack.c.b16 %v3943, %v3939
    %v4420 = vpack.c.b16 %v3944, %v3940
    %v4421 = vpack.c.b16 %v3945, %v3941
    %v4422 = vpack.c.b16 %v3946, %v3942
    %v4423 = vpack.c.b16 %v3951, %v3947
    %v4424 = vpack.c.b16 %v3952, %v3948
    %v4425 = vpack.c.b16 %v3953, %v3949
    %v4426 = vpack.c.b16 %v3954, %v3950
    %v4427 = vpack.c.b16 %v3959, %v3955
    %v4428 = vpack.c.b16 %v3960, %v3956
    %v4429 = vpack.c.b16 %v3961, %v3957
    %v4430 = vpack.c.b16 %v3962, %v3958
    %v4431 = vpack.c.b16 %v3967, %v3963
    %v4432 = vpack.c.b16 %v3968, %v3964
    %v4433 = vpack.c.b16 %v3969, %v3965
    %v4434 = vpack.c.b16 %v3970, %v3966
    %v4435 = vpack.c.b16 %v3975, %v3971
    %v4436 = vpack.c.b16 %v3976, %v3972
    %v4437 = vpack.c.b16 %v3977, %v3973
    %v4438 = vpack.c.b16 %v3978, %v3974
    %v4439 = vpack.c.b16 %v3983, %v3979
    %v4440 = vpack.c.b16 %v3984, %v3980
    %v4441 = vpack.c.b16 %v3985, %v3981
    %v4442 = vpack.c.b16 %v3986, %v3982
    %v4443 = vpack.c.b16 %v3991, %v3987
    %v4444 = vpack.c.b16 %v3992, %v3988
    %v4445 = vpack.c.b16 %v3993, %v3989
    %v4446 = vpack.c.b16 %v3994, %v3990
    %v4447 = vpack.c.b16 %v3999, %v3995
    %v4448 = vpack.c.b16 %v4000, %v3996
    %v4449 = vpack.c.b16 %v4001, %v3997
    %v4450 = vpack.c.b16 %v4002, %v3998
    %v4451 = vpack.c.b16 %v4007, %v4003
    %v4452 = vpack.c.b16 %v4008, %v4004
    %v4453 = vpack.c.b16 %v4009, %v4005
    %v4454 = vpack.c.b16 %v4010, %v4006
    %v4455 = vpack.c.b16 %v4015, %v4011
    %v4456 = vpack.c.b16 %v4016, %v4012
    %v4457 = vpack.c.b16 %v4017, %v4013
    %v4458 = vpack.c.b16 %v4018, %v4014
    %v4459 = vpack.c.b16 %v4023, %v4019
    %v4460 = vpack.c.b16 %v4024, %v4020
    %v4461 = vpack.c.b16 %v4025, %v4021
    %v4462 = vpack.c.b16 %v4026, %v4022
    %v4463 = vpack.c.b16 %v4031, %v4027
    %v4464 = vpack.c.b16 %v4032, %v4028
    %v4465 = vpack.c.b16 %v4033, %v4029
    %v4466 = vpack.c.b16 %v4034, %v4030
    %v4467 = vpack.c.b16 %v4039, %v4035
    %v4468 = vpack.c.b16 %v4040, %v4036
    %v4469 = vpack.c.b16 %v4041, %v4037
    %v4470 = vpack.c.b16 %v4042, %v4038
    %v4471 = vpack.c.b16 %v4047, %v4043
    %v4472 = vpack.c.b16 %v4048, %v4044
    %v4473 = vpack.c.b16 %v4049, %v4045
    %v4474 = vpack.c.b16 %v4050, %v4046
    %v4475 = vpack.c.b16 %v4055, %v4051
    %v4476 = vpack.c.b16 %v4056, %v4052
    %v4477 = vpack.c.b16 %v4057, %v4053
    %v4478 = vpack.c.b16 %v4058, %v4054
    %v4479 = vpack.c.b16 %v4063, %v4059
    %v4480 = vpack.c.b16 %v4064, %v4060
    %v4481 = vpack.c.b16 %v4065, %v4061
    %v4482 = vpack.c.b16 %v4066, %v4062
    %v4483 = vpack.c.b16 %v4071, %v4067
    %v4484 = vpack.c.b16 %v4072, %v4068
    %v4485 = vpack.c.b16 %v4073, %v4069
    %v4486 = vpack.c.b16 %v4074, %v4070
    %v4487 = vpack.c.b16 %v4079, %v4075
    %v4488 = vpack.c.b16 %v4080, %v4076
    %v4489 = vpack.c.b16 %v4081, %v4077
    %v4490 = vpack.c.b16 %v4082, %v4078
    %v4491 = vpack.c.b16 %v4087, %v4083
    %v4492 = vpack.c.b16 %v4088, %v4084
    %v4493 = vpack.c.b16 %v4089, %v4085
    %v4494 = vpack.c.b16 %v4090, %v4086
    %v4495 = vpack.c.b16 %v4095, %v4091
    %v4496 = vpack.c.b16 %v4096, %v4092
    %v4497 = vpack.c.b16 %v4097, %v4093
    %v4498 = vpack.c.b16 %v4098, %v4094
    %v4499 = vpack.c.b16 %v4103, %v4099
    %v4500 = vpack.c.b16 %v4104, %v4100
    %v4501 = vpack.c.b16 %v4105, %v4101
    %v4502 = vpack.c.b16 %v4106, %v4102
    %v4503 = vpack.c.b16 %v4111, %v4107
    %v4504 = vpack.c.b16 %v4112, %v4108
    %v4505 = vpack.c.b16 %v4113, %v4109
    %v4506 = vpack.c.b16 %v4114, %v4110
    %v4507 = vpack.c.b16 %v4119, %v4115
    %v4508 = vpack.c.b16 %v4120, %v4116
    %v4509 = vpack.c.b16 %v4121, %v4117
    %v4510 = vpack.c.b16 %v4122, %v4118
    %v4511 = vpack.c.b16 %v4127, %v4123
    %v4512 = vpack.c.b16 %v4128, %v4124
    %v4513 = vpack.c.b16 %v4129, %v4125
    %v4514 = vpack.c.b16 %v4130, %v4126
    %4899 = vmatprep.subr.bf16.mxu0 %v4132
    %4900 = vmatpush1.bf16.msra.mxu0 %v4131
    %4901 = vmatprep.subr.bf16.mxu0 %v4136
    %4902 = vmatpush1.bf16.msra.mxu0 %v4135
    %4903 = vmatprep.subr.bf16.mxu0 %v4140
    %4904 = vmatpush1.bf16.msra.mxu0 %v4139
    %4905 = vmatprep.subr.bf16.mxu0 %v4144
    %4906 = vmatpush1.bf16.msra.mxu0 %v4143
    %4907 = vmatprep.subr.bf16.mxu0 %v4148
    %4908 = vmatpush1.bf16.msra.mxu0 %v4147
    %4909 = vmatprep.subr.bf16.mxu0 %v4152
    %4910 = vmatpush1.bf16.msra.mxu0 %v4151
    %4911 = vmatprep.subr.bf16.mxu0 %v4156
    %4912 = vmatpush1.bf16.msra.mxu0 %v4155
    %4913 = vmatprep.subr.bf16.mxu0 %v4160
    %4914 = vmatpush1.bf16.msra.mxu0 %v4159
    %4915 = vmatprep.subr.bf16.mxu0 %v4164
    %4916 = vmatpush1.bf16.msra.mxu0 %v4163
    %4917 = vmatprep.subr.bf16.mxu0 %v4168
    %4918 = vmatpush1.bf16.msra.mxu0 %v4167
    %4919 = vmatprep.subr.bf16.mxu0 %v4172
    %4920 = vmatpush1.bf16.msra.mxu0 %v4171
    %4921 = vmatprep.subr.bf16.mxu0 %v4176
    %4922 = vmatpush1.bf16.msra.mxu0 %v4175
    %4923 = vmatprep.subr.bf16.mxu0 %v4180
    %4924 = vmatpush1.bf16.msra.mxu0 %v4179
    %4925 = vmatprep.subr.bf16.mxu0 %v4184
    %4926 = vmatpush1.bf16.msra.mxu0 %v4183
    %4927 = vmatprep.subr.bf16.mxu0 %v4188
    %4928 = vmatpush1.bf16.msra.mxu0 %v4187
    %4929 = vmatprep.subr.bf16.mxu0 %v4192
    %4930 = vmatpush1.bf16.msra.mxu0 %v4191
    %4931 = vmatprep.mubr.bf16.mxu0 %v2548
    %4932 = vmatmul.mubr.bf16.gmra.mrb[0].mxu0 %v2547
    %v4933 = vpop.f32.mrb[0].mxu0
    %v4934 = vadd.f32 0.0, %v4933
    %v4935 = vpop.f32.mrb[0].mxu0
    %v4936 = vadd.f32 0.0, %v4935
    %v4937 = vpop.f32.mrb[0].mxu0
    %v4938 = vadd.f32 0.0, %v4937
    %v4939 = vpop.f32.mrb[0].mxu0
    %v4940 = vadd.f32 0.0, %v4939
    %4941 = vmatprep.mubr.bf16.mxu0 %v2552
    %4942 = vmatmul.mubr.bf16.gmra.mrb[0].mxu0 %v2551
    %v4943 = vpop.f32.mrb[0].mxu0
    %v4944 = vadd.f32 0.0, %v4943
    %v4945 = vpop.f32.mrb[0].mxu0
    %v4946 = vadd.f32 0.0, %v4945
    %v4947 = vpop.f32.mrb[0].mxu0
    %v4948 = vadd.f32 0.0, %v4947
    %v4949 = vpop.f32.mrb[0].mxu0
    %v4950 = vadd.f32 0.0, %v4949
    %4951 = vdwg.mxu0
    %4952 = vmatprep.subr.bf16.mxu0 %v4196
    %4953 = vmatpush1.bf16.msra.mxu0 %v4195
    %4954 = vmatprep.subr.bf16.mxu0 %v4200
    %4955 = vmatpush1.bf16.msra.mxu0 %v4199
    %4956 = vmatprep.subr.bf16.mxu0 %v4204
    %4957 = vmatpush1.bf16.msra.mxu0 %v4203
    %4958 = vmatprep.subr.bf16.mxu0 %v4208
    %4959 = vmatpush1.bf16.msra.mxu0 %v4207
    %4960 = vmatprep.subr.bf16.mxu0 %v4212
    %4961 = vmatpush1.bf16.msra.mxu0 %v4211
    %4962 = vmatprep.subr.bf16.mxu0 %v4216
    %4963 = vmatpush1.bf16.msra.mxu0 %v4215
    %4964 = vmatprep.subr.bf16.mxu0 %v4220
    %4965 = vmatpush1.bf16.msra.mxu0 %v4219
    %4966 = vmatprep.subr.bf16.mxu0 %v4224
    %4967 = vmatpush1.bf16.msra.mxu0 %v4223
    %4968 = vmatprep.subr.bf16.mxu0 %v4228
    %4969 = vmatpush1.bf16.msra.mxu0 %v4227
    %4970 = vmatprep.subr.bf16.mxu0 %v4232
    %4971 = vmatpush1.bf16.msra.mxu0 %v4231
    %4972 = vmatprep.subr.bf16.mxu0 %v4236
    %4973 = vmatpush1.bf16.msra.mxu0 %v4235
    %4974 = vmatprep.subr.bf16.mxu0 %v4240
    %4975 = vmatpush1.bf16.msra.mxu0 %v4239
    %4976 = vmatprep.subr.bf16.mxu0 %v4244
    %4977 = vmatpush1.bf16.msra.mxu0 %v4243
    %4978 = vmatprep.subr.bf16.mxu0 %v4248
    %4979 = vmatpush1.bf16.msra.mxu0 %v4247
    %4980 = vmatprep.subr.bf16.mxu0 %v4252
    %4981 = vmatpush1.bf16.msra.mxu0 %v4251
    %4982 = vmatprep.subr.bf16.mxu0 %v4256
    %4983 = vmatpush1.bf16.msra.mxu0 %v4255
    %4984 = vmatprep.mubr.bf16.mxu0 %v2550
    %4985 = vmatmul.mubr.bf16.gmra.mrb[0].mxu0 %v2549
    %v4986 = vpop.f32.mrb[0].mxu0
    %v4987 = vadd.f32 %v4934, %v4986
    %v4988 = vpop.f32.mrb[0].mxu0
    %v4989 = vadd.f32 %v4936, %v4988
    %v4990 = vpop.f32.mrb[0].mxu0
    %v4991 = vadd.f32 %v4938, %v4990
    %v4992 = vpop.f32.mrb[0].mxu0
    %v4993 = vadd.f32 %v4940, %v4992
    %4994 = vmatprep.mubr.bf16.mxu0 %v2554
    %4995 = vmatmul.mubr.bf16.gmra.mrb[0].mxu0 %v2553
    %v4996 = vpop.f32.mrb[0].mxu0
    %v4997 = vadd.f32 %v4944, %v4996
    %v4998 = vpop.f32.mrb[0].mxu0
    %v4999 = vadd.f32 %v4946, %v4998
    %v5000 = vpop.f32.mrb[0].mxu0
    %v5001 = vadd.f32 %v4948, %v5000
    %v5002 = vpop.f32.mrb[0].mxu0
    %v5003 = vadd.f32 %v4950, %v5002
    %5004 = vdwg.mxu0
    %5005 = vmatprep.subr.bf16.mxu0 %v4260
    %5006 = vmatpush1.bf16.msra.mxu0 %v4259
    %5007 = vmatprep.subr.bf16.mxu0 %v4264
    %5008 = vmatpush1.bf16.msra.mxu0 %v4263
    %5009 = vmatprep.subr.bf16.mxu0 %v4268
    %5010 = vmatpush1.bf16.msra.mxu0 %v4267
    %5011 = vmatprep.subr.bf16.mxu0 %v4272
    %5012 = vmatpush1.bf16.msra.mxu0 %v4271
    %5013 = vmatprep.subr.bf16.mxu0 %v4276
    %5014 = vmatpush1.bf16.msra.mxu0 %v4275
    %5015 = vmatprep.subr.bf16.mxu0 %v4280
    %5016 = vmatpush1.bf16.msra.mxu0 %v4279
    %5017 = vmatprep.subr.bf16.mxu0 %v4284
    %5018 = vmatpush1.bf16.msra.mxu0 %v4283
    %5019 = vmatprep.subr.bf16.mxu0 %v4288
    %5020 = vmatpush1.bf16.msra.mxu0 %v4287
    %5021 = vmatprep.subr.bf16.mxu0 %v4292
    %5022 = vmatpush1.bf16.msra.mxu0 %v4291
    %5023 = vmatprep.subr.bf16.mxu0 %v4296
    %5024 = vmatpush1.bf16.msra.mxu0 %v4295
    %5025 = vmatprep.subr.bf16.mxu0 %v4300
    %5026 = vmatpush1.bf16.msra.mxu0 %v4299
    %5027 = vmatprep.subr.bf16.mxu0 %v4304
    %5028 = vmatpush1.bf16.msra.mxu0 %v4303
    %5029 = vmatprep.subr.bf16.mxu0 %v4308
    %5030 = vmatpush1.bf16.msra.mxu0 %v4307
    %5031 = vmatprep.subr.bf16.mxu0 %v4312
    %5032 = vmatpush1.bf16.msra.mxu0 %v4311
    %5033 = vmatprep.subr.bf16.mxu0 %v4316
    %5034 = vmatpush1.bf16.msra.mxu0 %v4315
    %5035 = vmatprep.subr.bf16.mxu0 %v4320
    %5036 = vmatpush1.bf16.msra.mxu0 %v4319
    %5037 = vmatprep.mubr.bf16.mxu0 %v2468
    %5038 = vmatmul.mubr.bf16.gmra.mrb[0].mxu0 %v2467
    %v5039 = vpop.f32.mrb[0].mxu0
    %v5040 = vadd.f32 %v4987, %v5039
    %v5041 = vpop.f32.mrb[0].mxu0
    %v5042 = vadd.f32 %v4989, %v5041
    %v5043 = vpop.f32.mrb[0].mxu0
    %v5044 = vadd.f32 %v4991, %v5043
    %v5045 = vpop.f32.mrb[0].mxu0
    %v5046 = vadd.f32 %v4993, %v5045
    %5047 = vmatprep.mubr.bf16.mxu0 %v2472
    %5048 = vmatmul.mubr.bf16.gmra.mrb[0].mxu0 %v2471
    %v5049 = vpop.f32.mrb[0].mxu0
    %v5050 = vadd.f32 %v4997, %v5049
    %v5051 = vpop.f32.mrb[0].mxu0
    %v5052 = vadd.f32 %v4999, %v5051
    %v5053 = vpop.f32.mrb[0].mxu0
    %v5054 = vadd.f32 %v5001, %v5053
    %v5055 = vpop.f32.mrb[0].mxu0
    %v5056 = vadd.f32 %v5003, %v5055
    %5057 = vdwg.mxu0
    %5058 = vmatprep.subr.bf16.mxu0 %v4324
    %5059 = vmatpush1.bf16.msra.mxu0 %v4323
    %5060 = vmatprep.subr.bf16.mxu0 %v4328
    %5061 = vmatpush1.bf16.msra.mxu0 %v4327
    %5062 = vmatprep.subr.bf16.mxu0 %v4332
    %5063 = vmatpush1.bf16.msra.mxu0 %v4331
    %5064 = vmatprep.subr.bf16.mxu0 %v4336
    %5065 = vmatpush1.bf16.msra.mxu0 %v4335
    %5066 = vmatprep.subr.bf16.mxu0 %v4340
    %5067 = vmatpush1.bf16.msra.mxu0 %v4339
    %5068 = vmatprep.subr.bf16.mxu0 %v4344
    %5069 = vmatpush1.bf16.msra.mxu0 %v4343
    %5070 = vmatprep.subr.bf16.mxu0 %v4348
    %5071 = vmatpush1.bf16.msra.mxu0 %v4347
    %5072 = vmatprep.subr.bf16.mxu0 %v4352
    %5073 = vmatpush1.bf16.msra.mxu0 %v4351
    %5074 = vmatprep.subr.bf16.mxu0 %v4356
    %5075 = vmatpush1.bf16.msra.mxu0 %v4355
    %5076 = vmatprep.subr.bf16.mxu0 %v4360
    %5077 = vmatpush1.bf16.msra.mxu0 %v4359
    %5078 = vmatprep.subr.bf16.mxu0 %v4364
    %5079 = vmatpush1.bf16.msra.mxu0 %v4363
    %5080 = vmatprep.subr.bf16.mxu0 %v4368
    %5081 = vmatpush1.bf16.msra.mxu0 %v4367
    %5082 = vmatprep.subr.bf16.mxu0 %v4372
    %5083 = vmatpush1.bf16.msra.mxu0 %v4371
    %5084 = vmatprep.subr.bf16.mxu0 %v4376
    %5085 = vmatpush1.bf16.msra.mxu0 %v4375
    %5086 = vmatprep.subr.bf16.mxu0 %v4380
    %5087 = vmatpush1.bf16.msra.mxu0 %v4379
    %5088 = vmatprep.subr.bf16.mxu0 %v4384
    %5089 = vmatpush1.bf16.msra.mxu0 %v4383
    %5090 = vmatprep.mubr.bf16.mxu0 %v2470
    %5091 = vmatmul.mubr.bf16.gmra.mrb[0].mxu0 %v2469
    %v5092 = vpop.f32.mrb[0].mxu0
    %v5093 = vadd.f32 %v5040, %v5092
    %v5094 = vpop.f32.mrb[0].mxu0
    %v5095 = vadd.f32 %v5042, %v5094
    %v5096 = vpop.f32.mrb[0].mxu0
    %v5097 = vadd.f32 %v5044, %v5096
    %v5098 = vpop.f32.mrb[0].mxu0
    %v5099 = vadd.f32 %v5046, %v5098
    %5100 = vmatprep.mubr.bf16.mxu0 %v2474
    %5101 = vmatmul.mubr.bf16.gmra.mrb[0].mxu0 %v2473
    %v5102 = vpop.f32.mrb[0].mxu0
    %v5103 = vadd.f32 %v5050, %v5102
    %v5104 = vpop.f32.mrb[0].mxu0
    %v5105 = vadd.f32 %v5052, %v5104
    %v5106 = vpop.f32.mrb[0].mxu0
    %v5107 = vadd.f32 %v5054, %v5106
    %v5108 = vpop.f32.mrb[0].mxu0
    %v5109 = vadd.f32 %v5056, %v5108
    %5110 = vdwg.mxu0
    %5111 = vmatprep.subr.bf16.mxu0 %v4388
    %5112 = vmatpush1.bf16.msra.mxu0 %v4387
    %5113 = vmatprep.subr.bf16.mxu0 %v4392
    %5114 = vmatpush1.bf16.msra.mxu0 %v4391
    %5115 = vmatprep.subr.bf16.mxu0 %v4396
    %5116 = vmatpush1.bf16.msra.mxu0 %v4395
    %5117 = vmatprep.subr.bf16.mxu0 %v4400
    %5118 = vmatpush1.bf16.msra.mxu0 %v4399
    %5119 = vmatprep.subr.bf16.mxu0 %v4404
    %5120 = vmatpush1.bf16.msra.mxu0 %v4403
    %5121 = vmatprep.subr.bf16.mxu0 %v4408
    %5122 = vmatpush1.bf16.msra.mxu0 %v4407
    %5123 = vmatprep.subr.bf16.mxu0 %v4412
    %5124 = vmatpush1.bf16.msra.mxu0 %v4411
    %5125 = vmatprep.subr.bf16.mxu0 %v4416
    %5126 = vmatpush1.bf16.msra.mxu0 %v4415
    %5127 = vmatprep.subr.bf16.mxu0 %v4420
    %5128 = vmatpush1.bf16.msra.mxu0 %v4419
    %5129 = vmatprep.subr.bf16.mxu0 %v4424
    %5130 = vmatpush1.bf16.msra.mxu0 %v4423
    %5131 = vmatprep.subr.bf16.mxu0 %v4428
    %5132 = vmatpush1.bf16.msra.mxu0 %v4427
    %5133 = vmatprep.subr.bf16.mxu0 %v4432
    %5134 = vmatpush1.bf16.msra.mxu0 %v4431
    %5135 = vmatprep.subr.bf16.mxu0 %v4436
    %5136 = vmatpush1.bf16.msra.mxu0 %v4435
    %5137 = vmatprep.subr.bf16.mxu0 %v4440
    %5138 = vmatpush1.bf16.msra.mxu0 %v4439
    %5139 = vmatprep.subr.bf16.mxu0 %v4444
    %5140 = vmatpush1.bf16.msra.mxu0 %v4443
    %5141 = vmatprep.subr.bf16.mxu0 %v4448
    %5142 = vmatpush1.bf16.msra.mxu0 %v4447
    %5143 = vmatprep.mubr.bf16.mxu0 %v2588
    %5144 = vmatmul.mubr.bf16.gmra.mrb[0].mxu0 %v2587
    %v5145 = vpop.f32.mrb[0].mxu0
    %v5146 = vadd.f32 %v5093, %v5145
    %v5147 = vpop.f32.mrb[0].mxu0
    %v5148 = vadd.f32 %v5095, %v5147
    %v5149 = vpop.f32.mrb[0].mxu0
    %v5150 = vadd.f32 %v5097, %v5149
    %v5151 = vpop.f32.mrb[0].mxu0
    %v5152 = vadd.f32 %v5099, %v5151
    %5153 = vmatprep.mubr.bf16.mxu0 %v2592
    %5154 = vmatmul.mubr.bf16.gmra.mrb[0].mxu0 %v2591
    %v5155 = vpop.f32.mrb[0].mxu0
    %v5156 = vadd.f32 %v5103, %v5155
    %v5157 = vpop.f32.mrb[0].mxu0
    %v5158 = vadd.f32 %v5105, %v5157
    %v5159 = vpop.f32.mrb[0].mxu0
    %v5160 = vadd.f32 %v5107, %v5159
    %v5161 = vpop.f32.mrb[0].mxu0
    %v5162 = vadd.f32 %v5109, %v5161
    %5163 = vdwg.mxu0
    %5164 = vmatprep.subr.bf16.mxu0 %v4452
    %5165 = vmatpush1.bf16.msra.mxu0 %v4451
    %5166 = vmatprep.subr.bf16.mxu0 %v4456
    %5167 = vmatpush1.bf16.msra.mxu0 %v4455
    %5168 = vmatprep.subr.bf16.mxu0 %v4460
    %5169 = vmatpush1.bf16.msra.mxu0 %v4459
    %5170 = vmatprep.subr.bf16.mxu0 %v4464
    %5171 = vmatpush1.bf16.msra.mxu0 %v4463
    %5172 = vmatprep.subr.bf16.mxu0 %v4468
    %5173 = vmatpush1.bf16.msra.mxu0 %v4467
    %5174 = vmatprep.subr.bf16.mxu0 %v4472
    %5175 = vmatpush1.bf16.msra.mxu0 %v4471
    %5176 = vmatprep.subr.bf16.mxu0 %v4476
    %5177 = vmatpush1.bf16.msra.mxu0 %v4475
    %5178 = vmatprep.subr.bf16.mxu0 %v4480
    %5179 = vmatpush1.bf16.msra.mxu0 %v4479
    %5180 = vmatprep.subr.bf16.mxu0 %v4484
    %5181 = vmatpush1.bf16.msra.mxu0 %v4483
    %5182 = vmatprep.subr.bf16.mxu0 %v4488
    %5183 = vmatpush1.bf16.msra.mxu0 %v4487
    %5184 = vmatprep.subr.bf16.mxu0 %v4492
    %5185 = vmatpush1.bf16.msra.mxu0 %v4491
    %5186 = vmatprep.subr.bf16.mxu0 %v4496
    %5187 = vmatpush1.bf16.msra.mxu0 %v4495
    %5188 = vmatprep.subr.bf16.mxu0 %v4500
    %5189 = vmatpush1.bf16.msra.mxu0 %v4499
    %5190 = vmatprep.subr.bf16.mxu0 %v4504
    %5191 = vmatpush1.bf16.msra.mxu0 %v4503
    %5192 = vmatprep.subr.bf16.mxu0 %v4508
    %5193 = vmatpush1.bf16.msra.mxu0 %v4507
    %5194 = vmatprep.subr.bf16.mxu0 %v4512
    %5195 = vmatpush1.bf16.msra.mxu0 %v4511
    %5196 = vmatprep.mubr.bf16.mxu0 %v2590
    %5197 = vmatmul.mubr.bf16.gmra.mrb[0].mxu0 %v2589
    %v5198 = vpop.f32.mrb[0].mxu0
    %v5199 = vadd.f32 %v5146, %v5198
    %v5200 = vpop.f32.mrb[0].mxu0
    %v5201 = vadd.f32 %v5148, %v5200
    %v5202 = vpop.f32.mrb[0].mxu0
    %v5203 = vadd.f32 %v5150, %v5202
    %v5204 = vpop.f32.mrb[0].mxu0
    %v5205 = vadd.f32 %v5152, %v5204
    %5206 = vmatprep.mubr.bf16.mxu0 %v2594
    %5207 = vmatmul.mubr.bf16.gmra.mrb[0].mxu0 %v2593
    %v5208 = vpop.f32.mrb[0].mxu0
    %v5209 = vadd.f32 %v5156, %v5208
    %v5210 = vpop.f32.mrb[0].mxu0
    %v5211 = vadd.f32 %v5158, %v5210
    %v5212 = vpop.f32.mrb[0].mxu0
    %v5213 = vadd.f32 %v5160, %v5212
    %v5214 = vpop.f32.mrb[0].mxu0
    %v5215 = vadd.f32 %v5162, %v5214
    %5216 = vdwg.mxu0
    %5217 = vmatprep.subr.bf16.mxu0 %v4134
    %5218 = vmatpush1.bf16.msra.mxu0 %v4133
    %5219 = vmatprep.subr.bf16.mxu0 %v4138
    %5220 = vmatpush1.bf16.msra.mxu0 %v4137
    %5221 = vmatprep.subr.bf16.mxu0 %v4142
    %5222 = vmatpush1.bf16.msra.mxu0 %v4141
    %5223 = vmatprep.subr.bf16.mxu0 %v4146
    %5224 = vmatpush1.bf16.msra.mxu0 %v4145
    %5225 = vmatprep.subr.bf16.mxu0 %v4150
    %5226 = vmatpush1.bf16.msra.mxu0 %v4149
    %5227 = vmatprep.subr.bf16.mxu0 %v4154
    %5228 = vmatpush1.bf16.msra.mxu0 %v4153
    %5229 = vmatprep.subr.bf16.mxu0 %v4158
    %5230 = vmatpush1.bf16.msra.mxu0 %v4157
    %5231 = vmatprep.subr.bf16.mxu0 %v4162
    %5232 = vmatpush1.bf16.msra.mxu0 %v4161
    %5233 = vmatprep.subr.bf16.mxu0 %v4166
    %5234 = vmatpush1.bf16.msra.mxu0 %v4165
    %5235 = vmatprep.subr.bf16.mxu0 %v4170
    %5236 = vmatpush1.bf16.msra.mxu0 %v4169
    %5237 = vmatprep.subr.bf16.mxu0 %v4174
    %5238 = vmatpush1.bf16.msra.mxu0 %v4173
    %5239 = vmatprep.subr.bf16.mxu0 %v4178
    %5240 = vmatpush1.bf16.msra.mxu0 %v4177
    %5241 = vmatprep.subr.bf16.mxu0 %v4182
    %5242 = vmatpush1.bf16.msra.mxu0 %v4181
    %5243 = vmatprep.subr.bf16.mxu0 %v4186
    %5244 = vmatpush1.bf16.msra.mxu0 %v4185
    %5245 = vmatprep.subr.bf16.mxu0 %v4190
    %5246 = vmatpush1.bf16.msra.mxu0 %v4189
    %5247 = vmatprep.subr.bf16.mxu0 %v4194
    %5248 = vmatpush1.bf16.msra.mxu0 %v4193
    %5249 = vmatprep.mubr.bf16.mxu0 %v2548
    %5250 = vmatmul.mubr.bf16.gmra.mrb[0].mxu0 %v2547
    %v5251 = vpop.f32.mrb[0].mxu0
    %v5252 = vadd.f32 0.0, %v5251
    %v5253 = vpop.f32.mrb[0].mxu0
    %v5254 = vadd.f32 0.0, %v5253
    %v5255 = vpop.f32.mrb[0].mxu0
    %v5256 = vadd.f32 0.0, %v5255
    %v5257 = vpop.f32.mrb[0].mxu0
    %v5258 = vadd.f32 0.0, %v5257
    %5259 = vmatprep.mubr.bf16.mxu0 %v2552
    %5260 = vmatmul.mubr.bf16.gmra.mrb[0].mxu0 %v2551
    %v5261 = vpop.f32.mrb[0].mxu0
    %v5262 = vadd.f32 0.0, %v5261
    %v5263 = vpop.f32.mrb[0].mxu0
    %v5264 = vadd.f32 0.0, %v5263
    %v5265 = vpop.f32.mrb[0].mxu0
    %v5266 = vadd.f32 0.0, %v5265
    %v5267 = vpop.f32.mrb[0].mxu0
    %v5268 = vadd.f32 0.0, %v5267
    %5269 = vdwg.mxu0
    %5270 = vmatprep.subr.bf16.mxu0 %v4198
    %5271 = vmatpush1.bf16.msra.mxu0 %v4197
    %5272 = vmatprep.subr.bf16.mxu0 %v4202
    %5273 = vmatpush1.bf16.msra.mxu0 %v4201
    %5274 = vmatprep.subr.bf16.mxu0 %v4206
    %5275 = vmatpush1.bf16.msra.mxu0 %v4205
    %5276 = vmatprep.subr.bf16.mxu0 %v4210
    %5277 = vmatpush1.bf16.msra.mxu0 %v4209
    %5278 = vmatprep.subr.bf16.mxu0 %v4214
    %5279 = vmatpush1.bf16.msra.mxu0 %v4213
    %5280 = vmatprep.subr.bf16.mxu0 %v4218
    %5281 = vmatpush1.bf16.msra.mxu0 %v4217
    %5282 = vmatprep.subr.bf16.mxu0 %v4222
    %5283 = vmatpush1.bf16.msra.mxu0 %v4221
    %5284 = vmatprep.subr.bf16.mxu0 %v4226
    %5285 = vmatpush1.bf16.msra.mxu0 %v4225
    %5286 = vmatprep.subr.bf16.mxu0 %v4230
    %5287 = vmatpush1.bf16.msra.mxu0 %v4229
    %5288 = vmatprep.subr.bf16.mxu0 %v4234
    %5289 = vmatpush1.bf16.msra.mxu0 %v4233
    %5290 = vmatprep.subr.bf16.mxu0 %v4238
    %5291 = vmatpush1.bf16.msra.mxu0 %v4237
    %5292 = vmatprep.subr.bf16.mxu0 %v4242
    %5293 = vmatpush1.bf16.msra.mxu0 %v4241
    %5294 = vmatprep.subr.bf16.mxu0 %v4246
    %5295 = vmatpush1.bf16.msra.mxu0 %v4245
    %5296 = vmatprep.subr.bf16.mxu0 %v4250
    %5297 = vmatpush1.bf16.msra.mxu0 %v4249
    %5298 = vmatprep.subr.bf16.mxu0 %v4254
    %5299 = vmatpush1.bf16.msra.mxu0 %v4253
    %5300 = vmatprep.subr.bf16.mxu0 %v4258
    %5301 = vmatpush1.bf16.msra.mxu0 %v4257
    %5302 = vmatprep.mubr.bf16.mxu0 %v2550
    %5303 = vmatmul.mubr.bf16.gmra.mrb[0].mxu0 %v2549
    %v5304 = vpop.f32.mrb[0].mxu0
    %v5305 = vadd.f32 %v5252, %v5304
    %v5306 = vpop.f32.mrb[0].mxu0
    %v5307 = vadd.f32 %v5254, %v5306
    %v5308 = vpop.f32.mrb[0].mxu0
    %v5309 = vadd.f32 %v5256, %v5308
    %v5310 = vpop.f32.mrb[0].mxu0
    %v5311 = vadd.f32 %v5258, %v5310
    %5312 = vmatprep.mubr.bf16.mxu0 %v2554
    %5313 = vmatmul.mubr.bf16.gmra.mrb[0].mxu0 %v2553
    %v5314 = vpop.f32.mrb[0].mxu0
    %v5315 = vadd.f32 %v5262, %v5314
    %v5316 = vpop.f32.mrb[0].mxu0
    %v5317 = vadd.f32 %v5264, %v5316
    %v5318 = vpop.f32.mrb[0].mxu0
    %v5319 = vadd.f32 %v5266, %v5318
    %v5320 = vpop.f32.mrb[0].mxu0
    %v5321 = vadd.f32 %v5268, %v5320
    %5322 = vdwg.mxu0
    %5323 = vmatprep.subr.bf16.mxu0 %v4262
    %5324 = vmatpush1.bf16.msra.mxu0 %v4261
    %5325 = vmatprep.subr.bf16.mxu0 %v4266
    %5326 = vmatpush1.bf16.msra.mxu0 %v4265
    %5327 = vmatprep.subr.bf16.mxu0 %v4270
    %5328 = vmatpush1.bf16.msra.mxu0 %v4269
    %5329 = vmatprep.subr.bf16.mxu0 %v4274
    %5330 = vmatpush1.bf16.msra.mxu0 %v4273
    %5331 = vmatprep.subr.bf16.mxu0 %v4278
    %5332 = vmatpush1.bf16.msra.mxu0 %v4277
    %5333 = vmatprep.subr.bf16.mxu0 %v4282
    %5334 = vmatpush1.bf16.msra.mxu0 %v4281
    %5335 = vmatprep.subr.bf16.mxu0 %v4286
    %5336 = vmatpush1.bf16.msra.mxu0 %v4285
    %5337 = vmatprep.subr.bf16.mxu0 %v4290
    %5338 = vmatpush1.bf16.msra.mxu0 %v4289
    %5339 = vmatprep.subr.bf16.mxu0 %v4294
    %5340 = vmatpush1.bf16.msra.mxu0 %v4293
    %5341 = vmatprep.subr.bf16.mxu0 %v4298
    %5342 = vmatpush1.bf16.msra.mxu0 %v4297
    %5343 = vmatprep.subr.bf16.mxu0 %v4302
    %5344 = vmatpush1.bf16.msra.mxu0 %v4301
    %5345 = vmatprep.subr.bf16.mxu0 %v4306
    %5346 = vmatpush1.bf16.msra.mxu0 %v4305
    %5347 = vmatprep.subr.bf16.mxu0 %v4310
    %5348 = vmatpush1.bf16.msra.mxu0 %v4309
    %5349 = vmatprep.subr.bf16.mxu0 %v4314
    %5350 = vmatpush1.bf16.msra.mxu0 %v4313
    %5351 = vmatprep.subr.bf16.mxu0 %v4318
    %5352 = vmatpush1.bf16.msra.mxu0 %v4317
    %5353 = vmatprep.subr.bf16.mxu0 %v4322
    %5354 = vmatpush1.bf16.msra.mxu0 %v4321
    %5355 = vmatprep.mubr.bf16.mxu0 %v2468
    %5356 = vmatmul.mubr.bf16.gmra.mrb[0].mxu0 %v2467
    %v5357 = vpop.f32.mrb[0].mxu0
    %v5358 = vadd.f32 %v5305, %v5357
    %v5359 = vpop.f32.mrb[0].mxu0
    %v5360 = vadd.f32 %v5307, %v5359
    %v5361 = vpop.f32.mrb[0].mxu0
    %v5362 = vadd.f32 %v5309, %v5361
    %v5363 = vpop.f32.mrb[0].mxu0
    %v5364 = vadd.f32 %v5311, %v5363
    %5365 = vmatprep.mubr.bf16.mxu0 %v2472
    %5366 = vmatmul.mubr.bf16.gmra.mrb[0].mxu0 %v2471
    %v5367 = vpop.f32.mrb[0].mxu0
    %v5368 = vadd.f32 %v5315, %v5367
    %v5369 = vpop.f32.mrb[0].mxu0
    %v5370 = vadd.f32 %v5317, %v5369
    %v5371 = vpop.f32.mrb[0].mxu0
    %v5372 = vadd.f32 %v5319, %v5371
    %v5373 = vpop.f32.mrb[0].mxu0
    %v5374 = vadd.f32 %v5321, %v5373
    %5375 = vdwg.mxu0
    %5376 = vmatprep.subr.bf16.mxu0 %v4326
    %5377 = vmatpush1.bf16.msra.mxu0 %v4325
    %5378 = vmatprep.subr.bf16.mxu0 %v4330
    %5379 = vmatpush1.bf16.msra.mxu0 %v4329
    %5380 = vmatprep.subr.bf16.mxu0 %v4334
    %5381 = vmatpush1.bf16.msra.mxu0 %v4333
    %5382 = vmatprep.subr.bf16.mxu0 %v4338
    %5383 = vmatpush1.bf16.msra.mxu0 %v4337
    %5384 = vmatprep.subr.bf16.mxu0 %v4342
    %5385 = vmatpush1.bf16.msra.mxu0 %v4341
    %5386 = vmatprep.subr.bf16.mxu0 %v4346
    %5387 = vmatpush1.bf16.msra.mxu0 %v4345
    %5388 = vmatprep.subr.bf16.mxu0 %v4350
    %5389 = vmatpush1.bf16.msra.mxu0 %v4349
    %5390 = vmatprep.subr.bf16.mxu0 %v4354
    %5391 = vmatpush1.bf16.msra.mxu0 %v4353
    %5392 = vmatprep.subr.bf16.mxu0 %v4358
    %5393 = vmatpush1.bf16.msra.mxu0 %v4357
    %5394 = vmatprep.subr.bf16.mxu0 %v4362
    %5395 = vmatpush1.bf16.msra.mxu0 %v4361
    %5396 = vmatprep.subr.bf16.mxu0 %v4366
    %5397 = vmatpush1.bf16.msra.mxu0 %v4365
    %5398 = vmatprep.subr.bf16.mxu0 %v4370
    %5399 = vmatpush1.bf16.msra.mxu0 %v4369
    %5400 = vmatprep.subr.bf16.mxu0 %v4374
    %5401 = vmatpush1.bf16.msra.mxu0 %v4373
    %5402 = vmatprep.subr.bf16.mxu0 %v4378
    %5403 = vmatpush1.bf16.msra.mxu0 %v4377
    %5404 = vmatprep.subr.bf16.mxu0 %v4382
    %5405 = vmatpush1.bf16.msra.mxu0 %v4381
    %5406 = vmatprep.subr.bf16.mxu0 %v4386
    %5407 = vmatpush1.bf16.msra.mxu0 %v4385
    %5408 = vmatprep.mubr.bf16.mxu0 %v2470
    %5409 = vmatmul.mubr.bf16.gmra.mrb[0].mxu0 %v2469
    %v5410 = vpop.f32.mrb[0].mxu0
    %v5411 = vadd.f32 %v5358, %v5410
    %v5412 = vpop.f32.mrb[0].mxu0
    %v5413 = vadd.f32 %v5360, %v5412
    %v5414 = vpop.f32.mrb[0].mxu0
    %v5415 = vadd.f32 %v5362, %v5414
    %v5416 = vpop.f32.mrb[0].mxu0
    %v5417 = vadd.f32 %v5364, %v5416
    %5418 = vmatprep.mubr.bf16.mxu0 %v2474
    %5419 = vmatmul.mubr.bf16.gmra.mrb[0].mxu0 %v2473
    %v5420 = vpop.f32.mrb[0].mxu0
    %v5421 = vadd.f32 %v5368, %v5420
    %v5422 = vpop.f32.mrb[0].mxu0
    %v5423 = vadd.f32 %v5370, %v5422
    %v5424 = vpop.f32.mrb[0].mxu0
    %v5425 = vadd.f32 %v5372, %v5424
    %v5426 = vpop.f32.mrb[0].mxu0
    %v5427 = vadd.f32 %v5374, %v5426
    %5428 = vdwg.mxu0
    %5429 = vmatprep.subr.bf16.mxu0 %v4390
    %5430 = vmatpush1.bf16.msra.mxu0 %v4389
    %5431 = vmatprep.subr.bf16.mxu0 %v4394
    %5432 = vmatpush1.bf16.msra.mxu0 %v4393
    %5433 = vmatprep.subr.bf16.mxu0 %v4398
    %5434 = vmatpush1.bf16.msra.mxu0 %v4397
    %5435 = vmatprep.subr.bf16.mxu0 %v4402
    %5436 = vmatpush1.bf16.msra.mxu0 %v4401
    %5437 = vmatprep.subr.bf16.mxu0 %v4406
    %5438 = vmatpush1.bf16.msra.mxu0 %v4405
    %5439 = vmatprep.subr.bf16.mxu0 %v4410
    %5440 = vmatpush1.bf16.msra.mxu0 %v4409
    %5441 = vmatprep.subr.bf16.mxu0 %v4414
    %5442 = vmatpush1.bf16.msra.mxu0 %v4413
    %5443 = vmatprep.subr.bf16.mxu0 %v4418
    %5444 = vmatpush1.bf16.msra.mxu0 %v4417
    %5445 = vmatprep.subr.bf16.mxu0 %v4422
    %5446 = vmatpush1.bf16.msra.mxu0 %v4421
    %5447 = vmatprep.subr.bf16.mxu0 %v4426
    %5448 = vmatpush1.bf16.msra.mxu0 %v4425
    %5449 = vmatprep.subr.bf16.mxu0 %v4430
    %5450 = vmatpush1.bf16.msra.mxu0 %v4429
    %5451 = vmatprep.subr.bf16.mxu0 %v4434
    %5452 = vmatpush1.bf16.msra.mxu0 %v4433
    %5453 = vmatprep.subr.bf16.mxu0 %v4438
    %5454 = vmatpush1.bf16.msra.mxu0 %v4437
    %5455 = vmatprep.subr.bf16.mxu0 %v4442
    %5456 = vmatpush1.bf16.msra.mxu0 %v4441
    %5457 = vmatprep.subr.bf16.mxu0 %v4446
    %5458 = vmatpush1.bf16.msra.mxu0 %v4445
    %5459 = vmatprep.subr.bf16.mxu0 %v4450
    %5460 = vmatpush1.bf16.msra.mxu0 %v4449
    %5461 = vmatprep.mubr.bf16.mxu0 %v2588
    %5462 = vmatmul.mubr.bf16.gmra.mrb[0].mxu0 %v2587
    %v5463 = vpop.f32.mrb[0].mxu0
    %v5464 = vadd.f32 %v5411, %v5463
    %v5465 = vpop.f32.mrb[0].mxu0
    %v5466 = vadd.f32 %v5413, %v5465
    %v5467 = vpop.f32.mrb[0].mxu0
    %v5468 = vadd.f32 %v5415, %v5467
    %v5469 = vpop.f32.mrb[0].mxu0
    %v5470 = vadd.f32 %v5417, %v5469
    %5471 = vmatprep.mubr.bf16.mxu0 %v2592
    %5472 = vmatmul.mubr.bf16.gmra.mrb[0].mxu0 %v2591
    %v5473 = vpop.f32.mrb[0].mxu0
    %v5474 = vadd.f32 %v5421, %v5473
    %v5475 = vpop.f32.mrb[0].mxu0
    %v5476 = vadd.f32 %v5423, %v5475
    %v5477 = vpop.f32.mrb[0].mxu0
    %v5478 = vadd.f32 %v5425, %v5477
    %v5479 = vpop.f32.mrb[0].mxu0
    %v5480 = vadd.f32 %v5427, %v5479
    %5481 = vdwg.mxu0
    %5482 = vmatprep.subr.bf16.mxu0 %v4454
    %5483 = vmatpush1.bf16.msra.mxu0 %v4453
    %5484 = vmatprep.subr.bf16.mxu0 %v4458
    %5485 = vmatpush1.bf16.msra.mxu0 %v4457
    %5486 = vmatprep.subr.bf16.mxu0 %v4462
    %5487 = vmatpush1.bf16.msra.mxu0 %v4461
    %5488 = vmatprep.subr.bf16.mxu0 %v4466
    %5489 = vmatpush1.bf16.msra.mxu0 %v4465
    %5490 = vmatprep.subr.bf16.mxu0 %v4470
    %5491 = vmatpush1.bf16.msra.mxu0 %v4469
    %5492 = vmatprep.subr.bf16.mxu0 %v4474
    %5493 = vmatpush1.bf16.msra.mxu0 %v4473
    %5494 = vmatprep.subr.bf16.mxu0 %v4478
    %5495 = vmatpush1.bf16.msra.mxu0 %v4477
    %5496 = vmatprep.subr.bf16.mxu0 %v4482
    %5497 = vmatpush1.bf16.msra.mxu0 %v4481
    %5498 = vmatprep.subr.bf16.mxu0 %v4486
    %5499 = vmatpush1.bf16.msra.mxu0 %v4485
    %5500 = vmatprep.subr.bf16.mxu0 %v4490
    %5501 = vmatpush1.bf16.msra.mxu0 %v4489
    %5502 = vmatprep.subr.bf16.mxu0 %v4494
    %5503 = vmatpush1.bf16.msra.mxu0 %v4493
    %5504 = vmatprep.subr.bf16.mxu0 %v4498
    %5505 = vmatpush1.bf16.msra.mxu0 %v4497
    %5506 = vmatprep.subr.bf16.mxu0 %v4502
    %5507 = vmatpush1.bf16.msra.mxu0 %v4501
    %5508 = vmatprep.subr.bf16.mxu0 %v4506
    %5509 = vmatpush1.bf16.msra.mxu0 %v4505
    %5510 = vmatprep.subr.bf16.mxu0 %v4510
    %5511 = vmatpush1.bf16.msra.mxu0 %v4509
    %5512 = vmatprep.subr.bf16.mxu0 %v4514
    %5513 = vmatpush1.bf16.msra.mxu0 %v4513
    %5514 = vmatprep.mubr.bf16.mxu0 %v2590
    %5515 = vmatmul.mubr.bf16.gmra.mrb[0].mxu0 %v2589
    %v5516 = vpop.f32.mrb[0].mxu0
    %v5517 = vadd.f32 %v5464, %v5516
    %v5518 = vpop.f32.mrb[0].mxu0
    %v5519 = vadd.f32 %v5466, %v5518
    %v5520 = vpop.f32.mrb[0].mxu0
    %v5521 = vadd.f32 %v5468, %v5520
    %v5522 = vpop.f32.mrb[0].mxu0
    %v5523 = vadd.f32 %v5470, %v5522
    %5524 = vmatprep.mubr.bf16.mxu0 %v2594
    %5525 = vmatmul.mubr.bf16.gmra.mrb[0].mxu0 %v2593
    %v5526 = vpop.f32.mrb[0].mxu0
    %v5527 = vadd.f32 %v5474, %v5526
    %v5528 = vpop.f32.mrb[0].mxu0
    %v5529 = vadd.f32 %v5476, %v5528
    %v5530 = vpop.f32.mrb[0].mxu0
    %v5531 = vadd.f32 %v5478, %v5530
    %v5532 = vpop.f32.mrb[0].mxu0
    %v5533 = vadd.f32 %v5480, %v5532
    %5534 = vdwg.mxu0
    %v5535 = vadd.f32 %v5199, %v5203
    %v5536 = vrot.slane %v5535, 4
    %v5537 = vadd.f32 %v5535, %v5536
    %v5538 = vrot.slane %v5537, 2
    %v5539 = vadd.f32 %v5537, %v5538
    %v5540 = vrot.slane %v5539, 1
    %v5541 = vadd.f32 %v5539, %v5540
    %v5542 = vadd.f32 %v5201, %v5205
    %v5543 = vrot.slane %v5542, 4
    %v5544 = vadd.f32 %v5542, %v5543
    %v5545 = vrot.slane %v5544, 2
    %v5546 = vadd.f32 %v5544, %v5545
    %v5547 = vrot.slane %v5546, 1
    %v5548 = vadd.f32 %v5546, %v5547
    %v5549 = vadd.f32 %v5517, %v5521
    %v5550 = vrot.slane %v5549, 4
    %v5551 = vadd.f32 %v5549, %v5550
    %v5552 = vrot.slane %v5551, 2
    %v5553 = vadd.f32 %v5551, %v5552
    %v5554 = vrot.slane %v5553, 1
    %v5555 = vadd.f32 %v5553, %v5554
    %v5556 = vadd.f32 %v5519, %v5523
    %v5557 = vrot.slane %v5556, 4
    %v5558 = vadd.f32 %v5556, %v5557
    %v5559 = vrot.slane %v5558, 2
    %v5560 = vadd.f32 %v5558, %v5559
    %v5561 = vrot.slane %v5560, 1
    %v5562 = vadd.f32 %v5560, %v5561
    %v5563 = vadd.f32 %v5209, %v5213
    %v5564 = vrot.slane %v5563, 4
    %v5565 = vadd.f32 %v5563, %v5564
    %v5566 = vrot.slane %v5565, 2
    %v5567 = vadd.f32 %v5565, %v5566
    %v5568 = vrot.slane %v5567, 1
    %v5569 = vadd.f32 %v5567, %v5568
    %v5570 = vadd.f32 %v5211, %v5215
    %v5571 = vrot.slane %v5570, 4
    %v5572 = vadd.f32 %v5570, %v5571
    %v5573 = vrot.slane %v5572, 2
    %v5574 = vadd.f32 %v5572, %v5573
    %v5575 = vrot.slane %v5574, 1
    %v5576 = vadd.f32 %v5574, %v5575
    %v5577 = vadd.f32 %v5527, %v5531
    %v5578 = vrot.slane %v5577, 4
    %v5579 = vadd.f32 %v5577, %v5578
    %v5580 = vrot.slane %v5579, 2
    %v5581 = vadd.f32 %v5579, %v5580
    %v5582 = vrot.slane %v5581, 1
    %v5583 = vadd.f32 %v5581, %v5582
    %v5584 = vadd.f32 %v5529, %v5533
    %v5585 = vrot.slane %v5584, 4
    %v5586 = vadd.f32 %v5584, %v5585
    %v5587 = vrot.slane %v5586, 2
    %v5588 = vadd.f32 %v5586, %v5587
    %v5589 = vrot.slane %v5588, 1
    %v5590 = vadd.f32 %v5588, %v5589
    %v5591 = vrcp.pop 16.0
    %v5592 = vmul.f32 %v5541, %v5591
    %v5593 = vmul.f32 %v5548, %v5591
    %v5594 = vmul.f32 %v5555, %v5591
    %v5595 = vmul.f32 %v5562, %v5591
    %v5596 = vmul.f32 %v5569, %v5591
    %v5597 = vmul.f32 %v5576, %v5591
    %v5598 = vmul.f32 %v5583, %v5591
    %v5599 = vmul.f32 %v5590, %v5591
    %v5600 = vld [vmem:[%s8] sm:$0xff]
    %v5601 = vld [vmem:[%s8 + $0x8] sm:$0xff]
    %v5602 = vld [vmem:[%s8 + $0x10] sm:$0xff]
    %v5603 = vld [vmem:[%s8 + $0x18] sm:$0xff]
    %v5604 = vld [vmem:[%s8 + $0x20] sm:$0xff]
    %v5605 = vld [vmem:[%s8 + $0x28] sm:$0xff]
    %v5606 = vld [vmem:[%s8 + $0x30] sm:$0xff]
    %v5607 = vld [vmem:[%s8 + $0x38] sm:$0xff]
    %v5608 = vld [vmem:[%s8 + $0x40] sm:$0xff]
    %v5609 = vld [vmem:[%s8 + $0x48] sm:$0xff]
    %v5610 = vld [vmem:[%s8 + $0x50] sm:$0xff]
    %v5611 = vld [vmem:[%s8 + $0x58] sm:$0xff]
    %v5612 = vld [vmem:[%s8 + $0x60] sm:$0xff]
    %v5613 = vld [vmem:[%s8 + $0x68] sm:$0xff]
    %v5614 = vld [vmem:[%s8 + $0x70] sm:$0xff]
    %v5615 = vld [vmem:[%s8 + $0x78] sm:$0xff]
    %v5616 = vld [vmem:[%s8 + $0x80] sm:$0xff]
    %v5617 = vld [vmem:[%s8 + $0x88] sm:$0xff]
    %v5618 = vld [vmem:[%s8 + $0x90] sm:$0xff]
    %v5619 = vld [vmem:[%s8 + $0x98] sm:$0xff]
    %v5620 = vld [vmem:[%s8 + $0xa0] sm:$0xff]
    %v5621 = vld [vmem:[%s8 + $0xa8] sm:$0xff]
    %v5622 = vld [vmem:[%s8 + $0xb0] sm:$0xff]
    %v5623 = vld [vmem:[%s8 + $0xb8] sm:$0xff]
    %v5624 = vld [vmem:[%s8 + $0xc0] sm:$0xff]
    %v5625 = vld [vmem:[%s8 + $0xc8] sm:$0xff]
    %v5626 = vld [vmem:[%s8 + $0xd0] sm:$0xff]
    %v5627 = vld [vmem:[%s8 + $0xd8] sm:$0xff]
    %v5628 = vld [vmem:[%s8 + $0xe0] sm:$0xff]
    %v5629 = vld [vmem:[%s8 + $0xe8] sm:$0xff]
    %v5630 = vld [vmem:[%s8 + $0xf0] sm:$0xff]
    %v5631 = vld [vmem:[%s8 + $0xf8] sm:$0xff]
    %v5632 = vld [vmem:[%s8 + $0x100] sm:$0xff]
    %v5633 = vld [vmem:[%s8 + $0x108] sm:$0xff]
    %v5634 = vld [vmem:[%s8 + $0x110] sm:$0xff]
    %v5635 = vld [vmem:[%s8 + $0x118] sm:$0xff]
    %v5636 = vld [vmem:[%s8 + $0x120] sm:$0xff]
    %v5637 = vld [vmem:[%s8 + $0x128] sm:$0xff]
    %v5638 = vld [vmem:[%s8 + $0x130] sm:$0xff]
    %v5639 = vld [vmem:[%s8 + $0x138] sm:$0xff]
    %v5640 = vld [vmem:[%s8 + $0x140] sm:$0xff]
    %v5641 = vld [vmem:[%s8 + $0x148] sm:$0xff]
    %v5642 = vld [vmem:[%s8 + $0x150] sm:$0xff]
    %v5643 = vld [vmem:[%s8 + $0x158] sm:$0xff]
    %v5644 = vld [vmem:[%s8 + $0x160] sm:$0xff]
    %v5645 = vld [vmem:[%s8 + $0x168] sm:$0xff]
    %v5646 = vld [vmem:[%s8 + $0x170] sm:$0xff]
    %v5647 = vld [vmem:[%s8 + $0x178] sm:$0xff]
    %v5648 = vld [vmem:[%s8 + $0x180] sm:$0xff]
    %v5649 = vld [vmem:[%s8 + $0x188] sm:$0xff]
    %v5650 = vld [vmem:[%s8 + $0x190] sm:$0xff]
    %v5651 = vld [vmem:[%s8 + $0x198] sm:$0xff]
    %v5652 = vld [vmem:[%s8 + $0x1a0] sm:$0xff]
    %v5653 = vld [vmem:[%s8 + $0x1a8] sm:$0xff]
    %v5654 = vld [vmem:[%s8 + $0x1b0] sm:$0xff]
    %v5655 = vld [vmem:[%s8 + $0x1b8] sm:$0xff]
    %v5656 = vld [vmem:[%s8 + $0x1c0] sm:$0xff]
    %v5657 = vld [vmem:[%s8 + $0x1c8] sm:$0xff]
    %v5658 = vld [vmem:[%s8 + $0x1d0] sm:$0xff]
    %v5659 = vld [vmem:[%s8 + $0x1d8] sm:$0xff]
    %v5660 = vld [vmem:[%s8 + $0x1e0] sm:$0xff]
    %v5661 = vld [vmem:[%s8 + $0x1e8] sm:$0xff]
    %v5662 = vld [vmem:[%s8 + $0x1f0] sm:$0xff]
    %v5663 = vld [vmem:[%s8 + $0x1f8] sm:$0xff]
    %v5664 = vld [vmem:[#allocation16] sm:$0x1]
    %v5666 = vlaneseq
    %v5667 = vshrl.u32 %v5666, 7
    %v5668 = vsub.s32 0, %v5667
    %v5669 = vrot.slane %v5664, %v5668
    %vm5679 = vcmask 1041409
    %v5680 = vsel %vm5679, %v5596, %v5592
    %v5681 = vsel %vm5679, %v5597, %v5593
    %v5682 = vsel %vm5679, %v5598, %v5594
    %v5683 = vsel %vm5679, %v5599, %v5595
    %5688 = vmatprep.subr.mxu0 0.0
    %5689 = vmatpush1.msra.mxu0 %v5600
    %5690 = vmatprep.subr.mxu0 0.0
    %5691 = vmatpush1.msra.mxu0 %v5601
    %5692 = vmatprep.subr.mxu0 0.0
    %5693 = vmatpush1.msra.mxu0 %v5602
    %5694 = vmatprep.subr.mxu0 0.0
    %5695 = vmatpush1.msra.mxu0 %v5603
    %5696 = vmatprep.subr.mxu0 0.0
    %5697 = vmatpush1.msra.mxu0 %v5604
    %5698 = vmatprep.subr.mxu0 0.0
    %5699 = vmatpush1.msra.mxu0 %v5605
    %5700 = vmatprep.subr.mxu0 0.0
    %5701 = vmatpush1.msra.mxu0 %v5606
    %5702 = vmatprep.subr.mxu0 0.0
    %5703 = vmatpush1.msra.mxu0 %v5607
    %5704 = vmatprep.subr.mxu0 0.0
    %5705 = vmatpush1.msra.mxu0 %v5608
    %5706 = vmatprep.subr.mxu0 0.0
    %5707 = vmatpush1.msra.mxu0 %v5609
    %5708 = vmatprep.subr.mxu0 0.0
    %5709 = vmatpush1.msra.mxu0 %v5610
    %5710 = vmatprep.subr.mxu0 0.0
    %5711 = vmatpush1.msra.mxu0 %v5611
    %5712 = vmatprep.subr.mxu0 0.0
    %5713 = vmatpush1.msra.mxu0 %v5612
    %5714 = vmatprep.subr.mxu0 0.0
    %5715 = vmatpush1.msra.mxu0 %v5613
    %5716 = vmatprep.subr.mxu0 0.0
    %5717 = vmatpush1.msra.mxu0 %v5614
    %5718 = vmatprep.subr.mxu0 0.0
    %5719 = vmatpush1.msra.mxu0 %v5615
    %5720 = vmatprep.subr.mxu0 0.0
    %5721 = vmatpush1.msra.mxu0 %v5616
    %5722 = vmatprep.subr.mxu0 0.0
    %5723 = vmatpush1.msra.mxu0 %v5617
    %5724 = vmatprep.subr.mxu0 0.0
    %5725 = vmatpush1.msra.mxu0 %v5618
    %5726 = vmatprep.subr.mxu0 0.0
    %5727 = vmatpush1.msra.mxu0 %v5619
    %5728 = vmatprep.subr.mxu0 0.0
    %5729 = vmatpush1.msra.mxu0 %v5620
    %5730 = vmatprep.subr.mxu0 0.0
    %5731 = vmatpush1.msra.mxu0 %v5621
    %5732 = vmatprep.subr.mxu0 0.0
    %5733 = vmatpush1.msra.mxu0 %v5622
    %5734 = vmatprep.subr.mxu0 0.0
    %5735 = vmatpush1.msra.mxu0 %v5623
    %5736 = vmatprep.subr.mxu0 0.0
    %5737 = vmatpush1.msra.mxu0 %v5624
    %5738 = vmatprep.subr.mxu0 0.0
    %5739 = vmatpush1.msra.mxu0 %v5625
    %5740 = vmatprep.subr.mxu0 0.0
    %5741 = vmatpush1.msra.mxu0 %v5626
    %5742 = vmatprep.subr.mxu0 0.0
    %5743 = vmatpush1.msra.mxu0 %v5627
    %5744 = vmatprep.subr.mxu0 0.0
    %5745 = vmatpush1.msra.mxu0 %v5628
    %5746 = vmatprep.subr.mxu0 0.0
    %5747 = vmatpush1.msra.mxu0 %v5629
    %5748 = vmatprep.subr.mxu0 0.0
    %5749 = vmatpush1.msra.mxu0 %v5630
    %5750 = vmatprep.subr.mxu0 0.0
    %5751 = vmatpush1.msra.mxu0 %v5631
    %5752 = vmatprep.mubr.f32.mxu0 %v5681
    %5753 = vmatmul.mubr.f32.gmra.mrb[0].mxu0 %v5680
    %v5754 = vpop.f32.mrb[0].mxu0
    %v5755 = vadd.f32 %v5669, %v5754
    %v5756 = vpop.f32.mrb[0].mxu0
    %5757 = vdwg.mxu0
    %5758 = vmatprep.subr.mxu0 0.0
    %5759 = vmatpush1.msra.mxu0 %v5632
    %5760 = vmatprep.subr.mxu0 0.0
    %5761 = vmatpush1.msra.mxu0 %v5633
    %5762 = vmatprep.subr.mxu0 0.0
    %5763 = vmatpush1.msra.mxu0 %v5634
    %5764 = vmatprep.subr.mxu0 0.0
    %5765 = vmatpush1.msra.mxu0 %v5635
    %5766 = vmatprep.subr.mxu0 0.0
    %5767 = vmatpush1.msra.mxu0 %v5636
    %5768 = vmatprep.subr.mxu0 0.0
    %5769 = vmatpush1.msra.mxu0 %v5637
    %5770 = vmatprep.subr.mxu0 0.0
    %5771 = vmatpush1.msra.mxu0 %v5638
    %5772 = vmatprep.subr.mxu0 0.0
    %5773 = vmatpush1.msra.mxu0 %v5639
    %5774 = vmatprep.subr.mxu0 0.0
    %5775 = vmatpush1.msra.mxu0 %v5640
    %5776 = vmatprep.subr.mxu0 0.0
    %5777 = vmatpush1.msra.mxu0 %v5641
    %5778 = vmatprep.subr.mxu0 0.0
    %5779 = vmatpush1.msra.mxu0 %v5642
    %5780 = vmatprep.subr.mxu0 0.0
    %5781 = vmatpush1.msra.mxu0 %v5643
    %5782 = vmatprep.subr.mxu0 0.0
    %5783 = vmatpush1.msra.mxu0 %v5644
    %5784 = vmatprep.subr.mxu0 0.0
    %5785 = vmatpush1.msra.mxu0 %v5645
    %5786 = vmatprep.subr.mxu0 0.0
    %5787 = vmatpush1.msra.mxu0 %v5646
    %5788 = vmatprep.subr.mxu0 0.0
    %5789 = vmatpush1.msra.mxu0 %v5647
    %5790 = vmatprep.subr.mxu0 0.0
    %5791 = vmatpush1.msra.mxu0 %v5648
    %5792 = vmatprep.subr.mxu0 0.0
    %5793 = vmatpush1.msra.mxu0 %v5649
    %5794 = vmatprep.subr.mxu0 0.0
    %5795 = vmatpush1.msra.mxu0 %v5650
    %5796 = vmatprep.subr.mxu0 0.0
    %5797 = vmatpush1.msra.mxu0 %v5651
    %5798 = vmatprep.subr.mxu0 0.0
    %5799 = vmatpush1.msra.mxu0 %v5652
    %5800 = vmatprep.subr.mxu0 0.0
    %5801 = vmatpush1.msra.mxu0 %v5653
    %5802 = vmatprep.subr.mxu0 0.0
    %5803 = vmatpush1.msra.mxu0 %v5654
    %5804 = vmatprep.subr.mxu0 0.0
    %5805 = vmatpush1.msra.mxu0 %v5655
    %5806 = vmatprep.subr.mxu0 0.0
    %5807 = vmatpush1.msra.mxu0 %v5656
    %5808 = vmatprep.subr.mxu0 0.0
    %5809 = vmatpush1.msra.mxu0 %v5657
    %5810 = vmatprep.subr.mxu0 0.0
    %5811 = vmatpush1.msra.mxu0 %v5658
    %5812 = vmatprep.subr.mxu0 0.0
    %5813 = vmatpush1.msra.mxu0 %v5659
    %5814 = vmatprep.subr.mxu0 0.0
    %5815 = vmatpush1.msra.mxu0 %v5660
    %5816 = vmatprep.subr.mxu0 0.0
    %5817 = vmatpush1.msra.mxu0 %v5661
    %5818 = vmatprep.subr.mxu0 0.0
    %5819 = vmatpush1.msra.mxu0 %v5662
    %5820 = vmatprep.subr.mxu0 0.0
    %5821 = vmatpush1.msra.mxu0 %v5663
    %5822 = vmatprep.mubr.f32.mxu0 %v5683
    %5823 = vmatmul.mubr.f32.gmra.mrb[0].mxu0 %v5682
    %v5824 = vpop.f32.mrb[0].mxu0
    %v5825 = vadd.f32 %v5755, %v5824
    %v5826 = vpop.f32.mrb[0].mxu0
    %5827 = vdwg.mxu0
    %v5828 = vmax.f32 %v5825, 0.0
    %v5829 = vld [vmem:[#allocation17] sm:$0xff]
    %v5830 = vld [vmem:[#allocation17 + $0x8] sm:$0xff]
    %v5831 = vld [vmem:[#allocation17 + $0x10] sm:$0xff]
    %v5832 = vld [vmem:[#allocation17 + $0x18] sm:$0xff]
    %v5833 = vld [vmem:[#allocation19] sm:$0xf]
    %v5835 = vlaneseq
    %v5836 = vshrl.u32 %v5835, 7
    %v5837 = vsub.s32 0, %v5836
    %v5838 = vrot.slane %v5833, %v5837
    %v5839 = vlaneseq
    %v5840 = vshrl.u32 %v5839, 7
    %v5841 = vsub.s32 1, %v5840
    %v5842 = vrot.slane %v5833, %v5841
    %v5843 = vlaneseq
    %v5844 = vshrl.u32 %v5843, 7
    %v5845 = vsub.s32 2, %v5844
    %v5846 = vrot.slane %v5833, %v5845
    %v5847 = vlaneseq
    %v5848 = vshrl.u32 %v5847, 7
    %v5849 = vsub.s32 3, %v5848
    %v5850 = vrot.slane %v5833, %v5849
    %vm5855 = vcmask 64512
    %v5857 = vsel %vm5855, %v5828, 0
    %5859 = vmatprep.subr.mxu0 %v5830
    %5860 = vmatpush1.msra.mxu0 %v5829
    %5861 = vmatprep.subr.mxu0 0.0
    %5862 = vmatpush1.msra.mxu0 0.0
    %5863 = vmatprep.subr.mxu0 0.0
    %5864 = vmatpush1.msra.mxu0 0.0
    %5865 = vmatprep.subr.mxu0 0.0
    %5866 = vmatpush1.msra.mxu0 0.0
    %5867 = vmatprep.subr.mxu0 0.0
    %5868 = vmatpush1.msra.mxu0 0.0
    %5869 = vmatprep.subr.mxu0 0.0
    %5870 = vmatpush1.msra.mxu0 0.0
    %5871 = vmatprep.subr.mxu0 0.0
    %5872 = vmatpush1.msra.mxu0 0.0
    %5873 = vmatprep.subr.mxu0 0.0
    %5874 = vmatpush1.msra.mxu0 0.0
    %5875 = vmatprep.subr.mxu0 0.0
    %5876 = vmatpush1.msra.mxu0 0.0
    %5877 = vmatprep.subr.mxu0 0.0
    %5878 = vmatpush1.msra.mxu0 0.0
    %5879 = vmatprep.subr.mxu0 0.0
    %5880 = vmatpush1.msra.mxu0 0.0
    %5881 = vmatprep.subr.mxu0 0.0
    %5882 = vmatpush1.msra.mxu0 0.0
    %5883 = vmatprep.subr.mxu0 0.0
    %5884 = vmatpush1.msra.mxu0 0.0
    %5885 = vmatprep.subr.mxu0 0.0
    %5886 = vmatpush1.msra.mxu0 0.0
    %5887 = vmatprep.subr.mxu0 0.0
    %5888 = vmatpush1.msra.mxu0 0.0
    %5889 = vmatprep.subr.mxu0 0.0
    %5890 = vmatpush1.msra.mxu0 0.0
    %5891 = vmatprep.subr.mxu0 0.0
    %5892 = vmatpush1.msra.mxu0 0.0
    %5893 = vmatprep.subr.mxu0 0.0
    %5894 = vmatpush1.msra.mxu0 0.0
    %5895 = vmatprep.subr.mxu0 0.0
    %5896 = vmatpush1.msra.mxu0 0.0
    %5897 = vmatprep.subr.mxu0 0.0
    %5898 = vmatpush1.msra.mxu0 0.0
    %5899 = vmatprep.subr.mxu0 0.0
    %5900 = vmatpush1.msra.mxu0 0.0
    %5901 = vmatprep.subr.mxu0 0.0
    %5902 = vmatpush1.msra.mxu0 0.0
    %5903 = vmatprep.subr.mxu0 0.0
    %5904 = vmatpush1.msra.mxu0 0.0
    %5905 = vmatprep.subr.mxu0 0.0
    %5906 = vmatpush1.msra.mxu0 0.0
    %5907 = vmatprep.subr.mxu0 0.0
    %5908 = vmatpush1.msra.mxu0 0.0
    %5909 = vmatprep.subr.mxu0 0.0
    %5910 = vmatpush1.msra.mxu0 0.0
    %5911 = vmatprep.subr.mxu0 0.0
    %5912 = vmatpush1.msra.mxu0 0.0
    %5913 = vmatprep.subr.mxu0 0.0
    %5914 = vmatpush1.msra.mxu0 0.0
    %5915 = vmatprep.subr.mxu0 0.0
    %5916 = vmatpush1.msra.mxu0 0.0
    %5917 = vmatprep.subr.mxu0 0.0
    %5918 = vmatpush1.msra.mxu0 0.0
    %5919 = vmatprep.subr.mxu0 0.0
    %5920 = vmatpush1.msra.mxu0 0.0
    %5921 = vmatprep.subr.mxu0 0.0
    %5922 = vmatpush1.msra.mxu0 0.0
    %5923 = vmatprep.mubr.f32.mxu0 0.0
    %5924 = vmatmul.mubr.f32.gmra.mrb[0].mxu0 %v5857
    %v5925 = vpop.f32.mrb[0].mxu0
    %v5926 = vadd.f32 %v5838, %v5925
    %v5927 = vpop.f32.mrb[0].mxu0
    %v5928 = vadd.f32 %v5842, %v5927
    %5929 = vdwg.mxu0
    %5930 = vmatprep.subr.mxu0 %v5832
    %5931 = vmatpush1.msra.mxu0 %v5831
    %5932 = vmatprep.subr.mxu0 0.0
    %5933 = vmatpush1.msra.mxu0 0.0
    %5934 = vmatprep.subr.mxu0 0.0
    %5935 = vmatpush1.msra.mxu0 0.0
    %5936 = vmatprep.subr.mxu0 0.0
    %5937 = vmatpush1.msra.mxu0 0.0
    %5938 = vmatprep.subr.mxu0 0.0
    %5939 = vmatpush1.msra.mxu0 0.0
    %5940 = vmatprep.subr.mxu0 0.0
    %5941 = vmatpush1.msra.mxu0 0.0
    %5942 = vmatprep.subr.mxu0 0.0
    %5943 = vmatpush1.msra.mxu0 0.0
    %5944 = vmatprep.subr.mxu0 0.0
    %5945 = vmatpush1.msra.mxu0 0.0
    %5946 = vmatprep.subr.mxu0 0.0
    %5947 = vmatpush1.msra.mxu0 0.0
    %5948 = vmatprep.subr.mxu0 0.0
    %5949 = vmatpush1.msra.mxu0 0.0
    %5950 = vmatprep.subr.mxu0 0.0
    %5951 = vmatpush1.msra.mxu0 0.0
    %5952 = vmatprep.subr.mxu0 0.0
    %5953 = vmatpush1.msra.mxu0 0.0
    %5954 = vmatprep.subr.mxu0 0.0
    %5955 = vmatpush1.msra.mxu0 0.0
    %5956 = vmatprep.subr.mxu0 0.0
    %5957 = vmatpush1.msra.mxu0 0.0
    %5958 = vmatprep.subr.mxu0 0.0
    %5959 = vmatpush1.msra.mxu0 0.0
    %5960 = vmatprep.subr.mxu0 0.0
    %5961 = vmatpush1.msra.mxu0 0.0
    %5962 = vmatprep.subr.mxu0 0.0
    %5963 = vmatpush1.msra.mxu0 0.0
    %5964 = vmatprep.subr.mxu0 0.0
    %5965 = vmatpush1.msra.mxu0 0.0
    %5966 = vmatprep.subr.mxu0 0.0
    %5967 = vmatpush1.msra.mxu0 0.0
    %5968 = vmatprep.subr.mxu0 0.0
    %5969 = vmatpush1.msra.mxu0 0.0
    %5970 = vmatprep.subr.mxu0 0.0
    %5971 = vmatpush1.msra.mxu0 0.0
    %5972 = vmatprep.subr.mxu0 0.0
    %5973 = vmatpush1.msra.mxu0 0.0
    %5974 = vmatprep.subr.mxu0 0.0
    %5975 = vmatpush1.msra.mxu0 0.0
    %5976 = vmatprep.subr.mxu0 0.0
    %5977 = vmatpush1.msra.mxu0 0.0
    %5978 = vmatprep.subr.mxu0 0.0
    %5979 = vmatpush1.msra.mxu0 0.0
    %5980 = vmatprep.subr.mxu0 0.0
    %5981 = vmatpush1.msra.mxu0 0.0
    %5982 = vmatprep.subr.mxu0 0.0
    %5983 = vmatpush1.msra.mxu0 0.0
    %5984 = vmatprep.subr.mxu0 0.0
    %5985 = vmatpush1.msra.mxu0 0.0
    %5986 = vmatprep.subr.mxu0 0.0
    %5987 = vmatpush1.msra.mxu0 0.0
    %5988 = vmatprep.subr.mxu0 0.0
    %5989 = vmatpush1.msra.mxu0 0.0
    %5990 = vmatprep.subr.mxu0 0.0
    %5991 = vmatpush1.msra.mxu0 0.0
    %5992 = vmatprep.subr.mxu0 0.0
    %5993 = vmatpush1.msra.mxu0 0.0
    %5994 = vmatprep.mubr.f32.mxu0 0.0
    %5995 = vmatmul.mubr.f32.gmra.mrb[0].mxu0 %v5857
    %v5996 = vpop.f32.mrb[0].mxu0
    %v5997 = vadd.f32 %v5846, %v5996
    %v5998 = vpop.f32.mrb[0].mxu0
    %v5999 = vadd.f32 %v5850, %v5998
    %6000 = vdwg.mxu0
    %v6001 = vsub.f32 0.0, %v5926
    %v6002 = vsub.f32 0.0, %v5928
    %v6003 = vsub.f32 0.0, %v5997
    %v6004 = vsub.f32 0.0, %v5999
    %v6005 = vmul.f32 %v6001, 1.442695
    %v6006 = vpow.pop %v6005
    %v6007 = vmul.f32 %v6002, 1.442695
    %v6008 = vpow.pop %v6007
    %v6009 = vmul.f32 %v6003, 1.442695
    %v6010 = vpow.pop %v6009
    %v6011 = vmul.f32 %v6004, 1.442695
    %v6012 = vpow.pop %v6011
    %v6013 = vadd.f32 %v6006, 1.0
    %v6014 = vadd.f32 %v6008, 1.0
    %v6015 = vadd.f32 %v6010, 1.0
    %v6016 = vadd.f32 %v6012, 1.0
    %v6017 = vrcp.pop %v6013
    %v6018 = vmul.f32 1.0, %v6017
    %v6019 = vrcp.pop %v6014
    %v6020 = vmul.f32 1.0, %v6019
    %v6021 = vrcp.pop %v6015
    %v6022 = vmul.f32 1.0, %v6021
    %v6023 = vrcp.pop %v6016
    %v6024 = vmul.f32 1.0, %v6023
    %v6029 = vcombine.low %v6018, %v6020
    %v6030 = vcombine.low %v6022, %v6024
    %v6032 = vunpack.c.l.s4 1966171168
    %v6033 = vunpack.c.0.s8 %v6032
    %v6034 = vlaneseq
    %v6035 = vshrl.u32 %v6034, 7
    %v6036 = vsub.s32 %v6033, %v6035
    %v6037 = vrot.slane %v6029, %v6036
    %v6039 = vunpack.c.l.s4 1966171168
    %v6040 = vunpack.c.0.s8 %v6039
    %v6041 = vlaneseq
    %v6042 = vshrl.u32 %v6041, 7
    %v6043 = vsub.s32 %v6040, %v6042
    %v6044 = vrot.slane %v6030, %v6043
    %v6045 = vcombine.low %v6037, %v6044
    %v6046 = vcombine.high %v6037, %v6044
    %v6048 = vunpack.c.l.s4 1966171168
    %v6049 = vunpack.c.0.s8 %v6048
    %v6050 = vlaneseq
    %v6051 = vshrl.u32 %v6050, 7
    %v6052 = vsub.s32 %v6049, %v6051
    %v6053 = vrot.slane %v6045, %v6052
    %v6055 = vunpack.c.l.s4 1966171168
    %v6056 = vunpack.c.0.s8 %v6055
    %v6057 = vlaneseq
    %v6058 = vshrl.u32 %v6057, 7
    %v6059 = vsub.s32 %v6056, %v6058
    %v6060 = vrot.slane %v6046, %v6059
    %v6061 = vlaneseq
    %v6062 = vshrl.u32 %v6061, 7
    %v6063 = vsub.s32 0, %v6062
    %v6064 = vrot.slane %v6053, %v6063
    %v6065 = vlaneseq
    %v6066 = vshrl.u32 %v6065, 7
    %v6067 = vsub.s32 1, %v6066
    %v6068 = vrot.slane %v6053, %v6067
    %v6069 = vlaneseq
    %v6070 = vshrl.u32 %v6069, 7
    %v6071 = vsub.s32 2, %v6070
    %v6072 = vrot.slane %v6053, %v6071
    %v6073 = vlaneseq
    %v6074 = vshrl.u32 %v6073, 7
    %v6075 = vsub.s32 3, %v6074
    %v6076 = vrot.slane %v6053, %v6075
    %v6077 = vlaneseq
    %v6078 = vshrl.u32 %v6077, 7
    %v6079 = vsub.s32 0, %v6078
    %v6080 = vrot.slane %v6060, %v6079
    %v6081 = vlaneseq
    %v6082 = vshrl.u32 %v6081, 7
    %v6083 = vsub.s32 1, %v6082
    %v6084 = vrot.slane %v6060, %v6083
    %v6085 = vlaneseq
    %v6086 = vshrl.u32 %v6085, 7
    %v6087 = vsub.s32 2, %v6086
    %v6088 = vrot.slane %v6060, %v6087
    %v6089 = vlaneseq
    %v6090 = vshrl.u32 %v6089, 7
    %v6091 = vsub.s32 3, %v6090
    %v6092 = vrot.slane %v6060, %v6091
    %v6101 = vmul.f32 %v5199, %v6064
    %v6102 = vmul.f32 %v5201, %v6068
    %v6103 = vmul.f32 %v5517, %v6072
    %v6104 = vmul.f32 %v5519, %v6076
    %v6105 = vmul.f32 %v5203, %v6064
    %v6106 = vmul.f32 %v5205, %v6068
    %v6107 = vmul.f32 %v5521, %v6072
    %v6108 = vmul.f32 %v5523, %v6076
    %v6109 = vmul.f32 %v5209, %v6080
    %v6110 = vmul.f32 %v5211, %v6084
    %v6111 = vmul.f32 %v5527, %v6088
    %v6112 = vmul.f32 %v5529, %v6092
    %v6113 = vmul.f32 %v5213, %v6080
    %v6114 = vmul.f32 %v5215, %v6084
    %v6115 = vmul.f32 %v5531, %v6088
    %v6116 = vmul.f32 %v5533, %v6092
    %v6117 = vadd.f32 %v6101, %v659
    %v6118 = vadd.f32 %v6102, %v661
    %v6119 = vadd.f32 %v6103, %v712
    %v6120 = vadd.f32 %v6104, %v714
    %v6121 = vadd.f32 %v6105, %v663
    %v6122 = vadd.f32 %v6106, %v665
    %v6123 = vadd.f32 %v6107, %v716
    %v6124 = vadd.f32 %v6108, %v718
    %v6125 = vadd.f32 %v6109, %v669
    %v6126 = vadd.f32 %v6110, %v671
    %v6127 = vadd.f32 %v6111, %v722
    %v6128 = vadd.f32 %v6112, %v724
    %v6129 = vadd.f32 %v6113, %v673
    %v6130 = vadd.f32 %v6114, %v675
    %v6131 = vadd.f32 %v6115, %v726
    %v6132 = vadd.f32 %v6116, %v728
    %6133 = vst [vmem:[#allocation20] sm:$0xff] %v6117
    %6134 = vst [vmem:[#allocation20 + $0x8] sm:$0xff] %v6118
    %6135 = vst [vmem:[#allocation20 + $0x10] sm:$0xff] %v6119
    %6136 = vst [vmem:[#allocation20 + $0x18] sm:$0xff] %v6120
    %6137 = vst [vmem:[#allocation20 + $0x20] sm:$0xff] %v6121
    %6138 = vst [vmem:[#allocation20 + $0x28] sm:$0xff] %v6122
    %6139 = vst [vmem:[#allocation20 + $0x30] sm:$0xff] %v6123
    %6140 = vst [vmem:[#allocation20 + $0x38] sm:$0xff] %v6124
    %6141 = vst [vmem:[#allocation20 + $0x40] sm:$0xff] %v6125
    %6142 = vst [vmem:[#allocation20 + $0x48] sm:$0xff] %v6126
    %6143 = vst [vmem:[#allocation20 + $0x50] sm:$0xff] %v6127
    %6144 = vst [vmem:[#allocation20 + $0x58] sm:$0xff] %v6128
    %6145 = vst [vmem:[#allocation20 + $0x60] sm:$0xff] %v6129
    %6146 = vst [vmem:[#allocation20 + $0x68] sm:$0xff] %v6130
    %6147 = vst [vmem:[#allocation20 + $0x70] sm:$0xff] %v6131
    %6148 = vst [vmem:[#allocation20 + $0x78] sm:$0xff] %v6132
    // Predicated region
    $region94: #{tpu_custom_call.1} parent=1 // pred_check
      _
    $region95: #{tpu_custom_call.1} parent=1 // pred_check_branch
      %6150 = sbr.rel (0) target = $region97
    $region96: #{tpu_custom_call.1} parent=1 // pred_region
      %s6152 = ssub.s32 2048, 2048
      %6153 = vsyncadd [#allocation4], %s6152
      %s6154 = sshll.u32 [#allocation20], 4
      %s6155 = int_to_ptr.vmem [resolvable:$true] %s6154
      %6160 = dma.vmem_to_hbm [thread:$0]  %s6155, 2048, %s12, [#allocation4], 512, 512, 32
    $region97: #{tpu_custom_call.1} parent=1 // pred_fallthru
      _
    // Predicated region
    $region98: #{tpu_custom_call.1} parent=1 // pred_check
      _
    $region99: #{tpu_custom_call.1} parent=1 // pred_check_branch
      %6162 = sbr.rel (0) target = $region101
    $region100: #{tpu_custom_call.1} parent=1 // pred_region
      %6163 = dma.done [#allocation4], 2048
    $region101: #{tpu_custom_call.1} parent=1 // pred_fallthru
      _
    %6164 = vsyncpa [#allocation3], 1
    %6165 = vsyncpa [#allocation6], 1
    %6166 = vsyncpa [#allocation9], 1
    %6167 = vsyncpa [#allocation12], 1
    %6168 = vsyncpa [#allocation15], 1
    %6169 = vsyncpa [#allocation18], 1
    %6170 = vsyncpa [#allocation4], 1

</llo_original>
